<compile_context>
chip_gen: v7x
topology: tpu7x:2x2x1
jax: 0.10.0
libtpu: 0.0.40
codegen_flags: <defaults>
</compile_context>

<pallas_src>
import functools

import jax
import jax.numpy as jnp
from jax.experimental import pallas as pl
from jax.experimental.pallas import tpu as pltpu

_BN_EPS = 1e-5
_VMEM = pl.BlockSpec(memory_space=pltpu.MemorySpace.VMEM)


# ---------------------------------------------------------------------------
# In-kernel helpers
# ---------------------------------------------------------------------------
def _pool_select_mats(w_in, w_out, stride, pad_out):
    """0/1 matrices so that max(sel_a @ m, sel_b @ m) is the k=2 max-pool of m
    along its row (W) axis; optionally framed with zero rows for the next
    stage's spatial padding."""
    rows = w_out + 2 if pad_out else w_out
    r = jax.lax.broadcasted_iota(jnp.int32, (rows, w_in), 0)
    c = jax.lax.broadcasted_iota(jnp.int32, (rows, w_in), 1)
    if pad_out:
        base = stride * (r - 1)
        valid = (r >= 1) & (r <= w_out)
        sel_a = jnp.where((c == base) & valid, 1.0, 0.0)
        sel_b = jnp.where((c == base + 1) & valid, 1.0, 0.0)
    else:
        base = stride * r
        sel_a = jnp.where(c == base, 1.0, 0.0)
        sel_b = jnp.where(c == base + 1, 1.0, 0.0)
    return sel_a.astype(jnp.float32), sel_b.astype(jnp.float32)


def _conv_row(win, w_ref, r, w_sz, cin, cout):
    """3x3 conv (pad already in the input) for one output row.

    win: (>= r+3, W+2, Cin) f32 window of the padded input.
    w_ref: (9, Cin, Cout) bf16 per-tap weights, tap order (kh, kw).
    Returns the raw (W, Cout) f32 accumulator (no bias / BN / ReLU).
    """
    acc = jnp.zeros((w_sz, cout), jnp.float32)
    for kh in range(3):
        rowv = win[r + kh]                         # (W+2, Cin)
        for kw in range(3):
            tap = rowv[kw:kw + w_sz, :]            # (W, Cin)
            wt = w_ref[3 * kh + kw]                # (Cin, Cout) bf16
            if cin == 1:
                # K=1: cheaper as a VPU broadcast multiply-add than an MXU push.
                acc = acc + tap * wt               # (W,1)*(1,Cout) -> (W,Cout)
            else:
                acc = acc + jnp.dot(tap.astype(jnp.bfloat16), wt,
                                    preferred_element_type=jnp.float32)
    return acc


# ---------------------------------------------------------------------------
# Kernels
# ---------------------------------------------------------------------------
def _conv_pool_kernel(x_ref, w_ref, scale_ref, shift_ref, o_ref, *,
                      H, W, Cin, Cout, pad_out):
    # x_ref: (H+2, W+2, Cin) f32 zero-padded input of one image (N squeezed).
    # o_ref: (Ho+2, Wo+2, Cout) if pad_out else (Ho, Wo, Cout), f32.
    ho_n, wo_n = H // 2, W // 2
    sel_a, sel_b = _pool_select_mats(W, wo_n, 2, pad_out)
    scale = scale_ref[...]
    shift = shift_ref[...]

    if pad_out:
        zrow = jnp.zeros((wo_n + 2, Cout), jnp.float32)
        o_ref[0] = zrow
        o_ref[ho_n + 1] = zrow

    def body(ho, carry):
        win = x_ref[pl.ds(2 * ho, 4)]              # (4, W+2, Cin)
        r0 = jnp.maximum(_conv_row(win, w_ref, 0, W, Cin, Cout) * scale + shift, 0.0)
        r1 = jnp.maximum(_conv_row(win, w_ref, 1, W, Cin, Cout) * scale + shift, 0.0)
        m = jnp.maximum(r0, r1)                    # (W, Cout) H-pooled pair
        pooled = jnp.maximum(
            jnp.dot(sel_a, m, preferred_element_type=jnp.float32),
            jnp.dot(sel_b, m, preferred_element_type=jnp.float32))
        o_ref[(ho + 1) if pad_out else ho] = pooled
        return carry

    jax.lax.fori_loop(0, ho_n, body, 0)


def _conv_yz_pool_add_kernel(x_ref, w_ref, yshift_ref, zscale_ref, zshift_ref,
                             o_ref, y_scr, z_scr, *, H, W, C):
    # Shared conv3 computed ONCE; y epilogue (+bias, ReLU), z epilogue (folded
    # BN2 incl. bias, ReLU); 2x2/stride-1 max-pool of each branch; residual add.
    # Output written spatially zero-padded: (Ho+2, Wo+2, C).
    ho_n, wo_n = H - 1, W - 1
    sel_a, sel_b = _pool_select_mats(W, wo_n, 1, True)
    yshift = yshift_ref[...]
    zscale = zscale_ref[...]
    zshift = zshift_ref[...]

    zrow = jnp.zeros((wo_n + 2, C), jnp.float32)
    o_ref[0] = zrow
    o_ref[ho_n + 1] = zrow

    def conv_body(h, carry):
        win = x_ref[pl.ds(h, 3)]                   # (3, W+2, C)
        acc = _conv_row(win, w_ref, 0, W, C, C)    # shared raw conv row
        y_scr[h] = jnp.maximum(acc + yshift, 0.0)
        z_scr[h] = jnp.maximum(acc * zscale + zshift, 0.0)
        return carry

    jax.lax.fori_loop(0, H, conv_body, 0)

    def pool_body(ho, carry):
        ym = jnp.maximum(y_scr[ho], y_scr[ho + 1])
        zm = jnp.maximum(z_scr[ho], z_scr[ho + 1])
        py = jnp.maximum(jnp.dot(sel_a, ym, preferred_element_type=jnp.float32),
                         jnp.dot(sel_b, ym, preferred_element_type=jnp.float32))
        pz = jnp.maximum(jnp.dot(sel_a, zm, preferred_element_type=jnp.float32),
                         jnp.dot(sel_b, zm, preferred_element_type=jnp.float32))
        o_ref[ho + 1] = py + pz
        return carry

    jax.lax.fori_loop(0, ho_n, pool_body, 0)


def _mlp_kernel(x_ref, w1_ref, s1_ref, t1_ref, w2_ref, b2_ref, o_ref):
    # linear1 + folded BN4 + ReLU + linear2, all resident in VMEM.
    h = jnp.dot(x_ref[...].astype(jnp.bfloat16), w1_ref[...],
                preferred_element_type=jnp.float32)
    h = jnp.maximum(h * s1_ref[...] + t1_ref[...], 0.0)
    o_ref[...] = jnp.dot(h.astype(jnp.bfloat16), w2_ref[...],
                         preferred_element_type=jnp.float32) + b2_ref[...]


# ---------------------------------------------------------------------------
# Pallas wrappers
# ---------------------------------------------------------------------------
def conv_bn_relu_pool2(x_pad, w_taps, scale, shift, *, pad_out):
    n, hp, wp, cin = x_pad.shape
    h_sz, w_sz = hp - 2, wp - 2
    cout = w_taps.shape[-1]
    ho_n, wo_n = h_sz // 2, w_sz // 2
    oh = ho_n + 2 if pad_out else ho_n
    ow = wo_n + 2 if pad_out else wo_n
    kern = functools.partial(_conv_pool_kernel, H=h_sz, W=w_sz, Cin=cin,
                             Cout=cout, pad_out=pad_out)
    return pl.pallas_call(
        kern,
        out_shape=jax.ShapeDtypeStruct((n, oh, ow, cout), jnp.float32),
        grid=(n,),
        in_specs=[
            pl.BlockSpec((None, hp, wp, cin), lambda i: (i, 0, 0, 0)),
            pl.BlockSpec((9, cin, cout), lambda i: (0, 0, 0)),
            pl.BlockSpec((1, cout), lambda i: (0, 0)),
            pl.BlockSpec((1, cout), lambda i: (0, 0)),
        ],
        out_specs=pl.BlockSpec((None, oh, ow, cout), lambda i: (i, 0, 0, 0)),
        compiler_params=pltpu.CompilerParams(dimension_semantics=("parallel",)),
    )(x_pad, w_taps, scale.reshape(1, cout), shift.reshape(1, cout))


def conv3_yz_pool_add(x_pad, w_taps, ybias, zscale, zshift):
    n, hp, wp, c = x_pad.shape
    h_sz, w_sz = hp - 2, wp - 2
    ho_n, wo_n = h_sz - 1, w_sz - 1
    kern = functools.partial(_conv_yz_pool_add_kernel, H=h_sz, W=w_sz, C=c)
    return pl.pallas_call(
        kern,
        out_shape=jax.ShapeDtypeStruct((n, ho_n + 2, wo_n + 2, c), jnp.float32),
        grid=(n,),
        in_specs=[
            pl.BlockSpec((None, hp, wp, c), lambda i: (i, 0, 0, 0)),
            pl.BlockSpec((9, c, c), lambda i: (0, 0, 0)),
            pl.BlockSpec((1, c), lambda i: (0, 0)),
            pl.BlockSpec((1, c), lambda i: (0, 0)),
            pl.BlockSpec((1, c), lambda i: (0, 0)),
        ],
        out_specs=pl.BlockSpec((None, ho_n + 2, wo_n + 2, c), lambda i: (i, 0, 0, 0)),
        scratch_shapes=[
            pltpu.VMEM((h_sz, w_sz, c), jnp.float32),
            pltpu.VMEM((h_sz, w_sz, c), jnp.float32),
        ],
        compiler_params=pltpu.CompilerParams(dimension_semantics=("parallel",)),
    )(x_pad, w_taps, ybias.reshape(1, c), zscale.reshape(1, c), zshift.reshape(1, c))


def mlp_fused(x, w1, s1, t1, w2, b2):
    n = x.shape[0]
    f_out = w2.shape[1]
    return pl.pallas_call(
        _mlp_kernel,
        out_shape=jax.ShapeDtypeStruct((n, f_out), jnp.float32),
        in_specs=[_VMEM] * 6,
        out_specs=_VMEM,
    )(x, w1, s1.reshape(1, -1), t1.reshape(1, -1), w2, b2.reshape(1, -1))


# ---------------------------------------------------------------------------
# Deterministic parameter construction (synthetic; shapes follow the module)
# ---------------------------------------------------------------------------
def _conv_params(key, cin, cout):
    kw_, kb_ = jax.random.split(key)
    w = jax.random.normal(kw_, (cout, cin, 3, 3), jnp.float32) / jnp.sqrt(9.0 * cin)
    b = 0.01 * jax.random.normal(kb_, (cout,), jnp.float32)
    # PyTorch (Cout,Cin,kh,kw) -> per-tap (kh*3+kw, Cin, Cout), bf16 for the MXU.
    w_taps = jnp.transpose(w, (2, 3, 1, 0)).reshape(9, cin, cout)
    return w_taps.astype(jnp.bfloat16), b


def _linear_params(key, fin, fout):
    kw_, kb_ = jax.random.split(key)
    w = jax.random.normal(kw_, (fout, fin), jnp.float32) / jnp.sqrt(float(fin))
    b = 0.01 * jax.random.normal(kb_, (fout,), jnp.float32)
    return w, b


def _bn_fold(key, nf):
    k1, k2, k3, k4 = jax.random.split(key, 4)
    gamma = 1.0 + 0.1 * jax.random.normal(k1, (nf,), jnp.float32)
    beta = 0.1 * jax.random.normal(k2, (nf,), jnp.float32)
    mean = 0.1 * jax.random.normal(k3, (nf,), jnp.float32)
    var = 1.0 + 0.1 * jnp.abs(jax.random.normal(k4, (nf,), jnp.float32))
    scale = gamma / jnp.sqrt(var + _BN_EPS)
    shift = beta - mean * scale
    return scale, shift


def init_params(key):
    keys = jax.random.split(key, 7)
    p = {}
    p["conv1_w"], conv1_b = _conv_params(keys[0], 1, 32)
    p["conv2_w"], conv2_b = _conv_params(keys[1], 32, 64)
    p["conv3_w"], conv3_b = _conv_params(keys[2], 64, 64)
    bn2_scale, bn2_shift = _bn_fold(keys[5], 64)
    bn4_scale, bn4_shift = _bn_fold(keys[6], 850)

    # Conv epilogues: affine (scale, shift) with the conv bias folded in.
    p["c1_scale"] = jnp.ones((32,), jnp.float32)
    p["c1_shift"] = conv1_b
    p["c2_scale"] = jnp.ones((64,), jnp.float32)
    p["c2_shift"] = conv2_b
    p["y_shift"] = conv3_b                                  # y: conv + bias, ReLU
    p["z_scale"] = bn2_scale                                # z: conv + bias, BN2, ReLU
    p["z_shift"] = conv3_b * bn2_scale + bn2_shift
    p["c4_scale"] = jnp.ones((64,), jnp.float32)
    p["c4_shift"] = conv3_b

    # linear1: bias folded into BN4 shift; rows permuted (c,h,w)->(h,w,c) so the
    # NHWC flatten matches PyTorch's NCHW flatten semantics with no transpose.
    w_l1, b_l1 = _linear_params(keys[3], 64 * 3 * 3, 850)
    w1t = jnp.transpose(w_l1)                               # (576, 850), rows = (c,h,w)
    w1_nhwc = w1t.reshape(64, 3, 3, 850).transpose(1, 2, 0, 3).reshape(576, 850)
    p["lin1_w"] = w1_nhwc.astype(jnp.bfloat16)
    p["lin1_scale"] = bn4_scale
    p["lin1_shift"] = b_l1 * bn4_scale + bn4_shift

    w_l2, b_l2 = _linear_params(keys[4], 850, 232)
    p["lin2_w"] = jnp.transpose(w_l2).astype(jnp.bfloat16)  # (850, 232)
    p["lin2_b"] = b_l2
    return p


# ---------------------------------------------------------------------------
# Forward pass (mirrors Model.forward; Dropout = identity, BN = eval mode)
# ---------------------------------------------------------------------------
# TODO(synk): train-mode Dropout randomness and BatchNorm batch statistics are
# implemented with eval-mode semantics (identity / running stats).
def forward(x_nchw, p):
    x = jnp.transpose(x_nchw.astype(jnp.float32), (0, 2, 3, 1))   # NCHW -> NHWC
    xp = jnp.pad(x, ((0, 0), (1, 1), (1, 1), (0, 0)))             # only XLA pad

    # conv1 -> ReLU -> maxpool(2,2) -> dropout1; output pre-padded for conv2.
    h = conv_bn_relu_pool2(xp, p["conv1_w"], p["c1_scale"], p["c1_shift"], pad_out=True)
    # conv2 -> ReLU -> maxpool(2,2) -> dropout1; output pre-padded for conv3.
    h = conv_bn_relu_pool2(h, p["conv2_w"], p["c2_scale"], p["c2_shift"], pad_out=True)
    # shared conv3: y(ReLU, pool 2/1) + z(BN2, ReLU, pool 2/1), residual add.
    h = conv3_yz_pool_add(h, p["conv3_w"], p["y_shift"], p["z_scale"], p["z_shift"])
    # conv3 (shared weights) -> ReLU -> maxpool(2,2) -> dropout1 (unpadded output).
    h = conv_bn_relu_pool2(h, p["conv3_w"], p["c4_scale"], p["c4_shift"], pad_out=False)

    n = h.shape[0]
    flat = h.reshape(n, 3 * 3 * 64)                               # NHWC flatten (free)
    # linear1 -> BN4 -> ReLU -> dropout2 -> linear2, fused in one kernel.
    return mlp_fused(flat, p["lin1_w"], p["lin1_scale"], p["lin1_shift"],
                     p["lin2_w"], p["lin2_b"])


if __name__ == "__main__":
    key = jax.random.PRNGKey(0)
    pkey, xkey = jax.random.split(key)
    params = init_params(pkey)
    # 28x28 input so the final feature map is 3x3x64 = linear1's fan-in.
    x = jax.random.normal(xkey, (2, 1, 28, 28), jnp.float32)
    out = jax.jit(forward)(x, params)
    out = jax.block_until_ready(out)
    assert out.shape == (2, 232), out.shape
    assert bool(jnp.all(jnp.isfinite(out)))
    print("KERNEL_OK")
</pallas_src>

<mosaic_0001>
module attributes {stable_mosaic.version = 11 : i64} {
  func.func @_conv_pool_kernel(%arg0: i32, %arg1: memref<1x30x30x1xf32, #tpu.memory_space<vmem>>, %arg2: memref<9x1x32xbf16, #tpu.memory_space<vmem>>, %arg3: memref<1x32xf32, #tpu.memory_space<vmem>>, %arg4: memref<1x32xf32, #tpu.memory_space<vmem>>, %arg5: memref<1x16x16x32xf32, #tpu.memory_space<vmem>>) attributes {dimension_semantics = [#tpu.dimension_semantics<parallel>], iteration_bounds = array<i64: 2>, scalar_prefetch = 0 : i64, scratch_operands = 0 : i64, tpu.core_type = #tpu.core_type<tc>, window_params = [{transform_indices = @transform_0, window_bounds = array<i64: 1, 30, 30, 1>}, {pipeline_mode = #tpu.pipeline_mode<synchronous>, transform_indices = @transform_1, window_bounds = array<i64: 9, 1, 32>}, {pipeline_mode = #tpu.pipeline_mode<synchronous>, transform_indices = @transform_2, window_bounds = array<i64: 1, 32>}, {pipeline_mode = #tpu.pipeline_mode<synchronous>, transform_indices = @transform_3, window_bounds = array<i64: 1, 32>}, {transform_indices = @transform_4, window_bounds = array<i64: 1, 16, 16, 32>}]} {
    %0 = tpu.iota {dimensions = array<i32: 0>} : vector<16x28xi32>
    %1 = tpu.iota {dimensions = array<i32: 1>} : vector<16x28xi32>
    %c1_i32 = arith.constant 1 : i32
    %2 = vector.broadcast %c1_i32 : i32 to vector<16x28xi32>
    %3 = arith.subi %0, %2 : vector<16x28xi32>
    %c2_i32 = arith.constant 2 : i32
    %4 = vector.broadcast %c2_i32 : i32 to vector<16x28xi32>
    %5 = arith.muli %4, %3 : vector<16x28xi32>
    %c1_i32_0 = arith.constant 1 : i32
    %6 = vector.broadcast %c1_i32_0 : i32 to vector<16x28xi32>
    %7 = arith.cmpi sge, %0, %6 : vector<16x28xi32>
    %c14_i32 = arith.constant 14 : i32
    %8 = vector.broadcast %c14_i32 : i32 to vector<16x28xi32>
    %9 = arith.cmpi sle, %0, %8 : vector<16x28xi32>
    %10 = arith.andi %7, %9 : vector<16x28xi1>
    %11 = arith.cmpi eq, %1, %5 : vector<16x28xi32>
    %12 = arith.andi %11, %10 : vector<16x28xi1>
    %cst = arith.constant 1.000000e+00 : f32
    %cst_1 = arith.constant 0.000000e+00 : f32
    %13 = vector.broadcast %cst : f32 to vector<16x28xf32>
    %14 = vector.broadcast %cst_1 : f32 to vector<16x28xf32>
    %15 = arith.select %12, %13, %14 : vector<16x28xi1>, vector<16x28xf32>
    %c1_i32_2 = arith.constant 1 : i32
    %16 = vector.broadcast %c1_i32_2 : i32 to vector<16x28xi32>
    %17 = arith.addi %5, %16 : vector<16x28xi32>
    %18 = arith.cmpi eq, %1, %17 : vector<16x28xi32>
    %19 = arith.andi %18, %10 : vector<16x28xi1>
    %cst_3 = arith.constant 1.000000e+00 : f32
    %cst_4 = arith.constant 0.000000e+00 : f32
    %20 = vector.broadcast %cst_3 : f32 to vector<16x28xf32>
    %21 = vector.broadcast %cst_4 : f32 to vector<16x28xf32>
    %22 = arith.select %19, %20, %21 : vector<16x28xi1>, vector<16x28xf32>
    %c0 = arith.constant 0 : index
    %c0_5 = arith.constant 0 : index
    %23 = vector.load %arg3[%c0, %c0_5] : memref<1x32xf32, #tpu.memory_space<vmem>>, vector<1x32xf32>
    %c0_6 = arith.constant 0 : index
    %c0_7 = arith.constant 0 : index
    %24 = vector.load %arg4[%c0_6, %c0_7] : memref<1x32xf32, #tpu.memory_space<vmem>>, vector<1x32xf32>
    %cst_8 = arith.constant 0.000000e+00 : f32
    %25 = vector.broadcast %cst_8 : f32 to vector<16x32xf32>
    %c0_9 = arith.constant 0 : index
    %c0_10 = arith.constant 0 : index
    %c0_11 = arith.constant 0 : index
    %c0_12 = arith.constant 0 : index
    %26 = vector.load %arg5[%c0_9, %c0_10, %c0_11, %c0_12] : memref<1x16x16x32xf32, #tpu.memory_space<vmem>>, vector<1x1x16x32xf32>
    %27 = vector.shape_cast %26 : vector<1x1x16x32xf32> to vector<16x32xf32>
    %28 = vector.shape_cast %25 : vector<16x32xf32> to vector<1x1x16x32xf32>
    tpu.vector_store %arg5[%c0_9, %c0_10, %c0_11, %c0_12], %28 {strides = array<i32>} : memref<1x16x16x32xf32, #tpu.memory_space<vmem>>, vector<1x1x16x32xf32>,
    %c0_13 = arith.constant 0 : index
    %c15 = arith.constant 15 : index
    %c0_14 = arith.constant 0 : index
    %c0_15 = arith.constant 0 : index
    %29 = vector.load %arg5[%c0_13, %c15, %c0_14, %c0_15] : memref<1x16x16x32xf32, #tpu.memory_space<vmem>>, vector<1x1x16x32xf32>
    %30 = vector.shape_cast %29 : vector<1x1x16x32xf32> to vector<16x32xf32>
    %31 = vector.shape_cast %25 : vector<16x32xf32> to vector<1x1x16x32xf32>
    tpu.vector_store %arg5[%c0_13, %c15, %c0_14, %c0_15], %31 {strides = array<i32>} : memref<1x16x16x32xf32, #tpu.memory_space<vmem>>, vector<1x1x16x32xf32>,
    %c0_i32 = arith.constant 0 : i32
    %c14_i32_16 = arith.constant 14 : i32
    %32 = arith.addi %c0_i32, %c14_i32_16 : i32
    %c1_i32_17 = arith.constant 1 : i32
    scf.for %arg6 = %c0_i32 to %32 step %c1_i32_17  : i32 {
      %c2_i32_19 = arith.constant 2 : i32
      %33 = arith.muli %c2_i32_19, %arg6 : i32
      %c0_20 = arith.constant 0 : index
      %34 = arith.index_cast %33 : i32 to index
      %c0_21 = arith.constant 0 : index
      %c0_22 = arith.constant 0 : index
      %35 = vector.load %arg1[%c0_20, %34, %c0_21, %c0_22] : memref<1x30x30x1xf32, #tpu.memory_space<vmem>>, vector<1x4x30x1xf32>
      %36 = vector.shape_cast %35 : vector<1x4x30x1xf32> to vector<4x30x1xf32>
      %cst_23 = arith.constant 0.000000e+00 : f32
      %37 = vector.broadcast %cst_23 : f32 to vector<28x32xf32>
      %38 = vector.extract_strided_slice %36 {offsets = [0, 0, 0], sizes = [1, 30, 1], strides = [1, 1, 1]} : vector<4x30x1xf32> to vector<1x30x1xf32>
      %39 = vector.shape_cast %38 : vector<1x30x1xf32> to vector<30x1xf32>
      %40 = vector.extract_strided_slice %39 {offsets = [0, 0], sizes = [28, 1], strides = [1, 1]} : vector<30x1xf32> to vector<28x1xf32>
      %c0_24 = arith.constant 0 : index
      %c0_25 = arith.constant 0 : index
      %c0_26 = arith.constant 0 : index
      %41 = vector.load %arg2[%c0_24, %c0_25, %c0_26] : memref<9x1x32xbf16, #tpu.memory_space<vmem>>, vector<1x1x32xbf16>
      %42 = vector.shape_cast %41 : vector<1x1x32xbf16> to vector<1x32xbf16>
      %43 = arith.extf %42 : vector<1x32xbf16> to vector<1x32xf32>
      %44 = vector.broadcast %40 : vector<28x1xf32> to vector<28x32xf32>
      %45 = vector.broadcast %43 : vector<1x32xf32> to vector<28x32xf32>
      %46 = arith.mulf %44, %45 : vector<28x32xf32>
      %47 = arith.addf %37, %46 : vector<28x32xf32>
      %48 = vector.extract_strided_slice %39 {offsets = [1, 0], sizes = [28, 1], strides = [1, 1]} : vector<30x1xf32> to vector<28x1xf32>
      %c1 = arith.constant 1 : index
      %c0_27 = arith.constant 0 : index
      %c0_28 = arith.constant 0 : index
      %49 = vector.load %arg2[%c1, %c0_27, %c0_28] : memref<9x1x32xbf16, #tpu.memory_space<vmem>>, vector<1x1x32xbf16>
      %50 = vector.shape_cast %49 : vector<1x1x32xbf16> to vector<1x32xbf16>
      %51 = arith.extf %50 : vector<1x32xbf16> to vector<1x32xf32>
      %52 = vector.broadcast %48 : vector<28x1xf32> to vector<28x32xf32>
      %53 = vector.broadcast %51 : vector<1x32xf32> to vector<28x32xf32>
      %54 = arith.mulf %52, %53 : vector<28x32xf32>
      %55 = arith.addf %47, %54 : vector<28x32xf32>
      %56 = vector.extract_strided_slice %39 {offsets = [2, 0], sizes = [28, 1], strides = [1, 1]} : vector<30x1xf32> to vector<28x1xf32>
      %c2 = arith.constant 2 : index
      %c0_29 = arith.constant 0 : index
      %c0_30 = arith.constant 0 : index
      %57 = vector.load %arg2[%c2, %c0_29, %c0_30] : memref<9x1x32xbf16, #tpu.memory_space<vmem>>, vector<1x1x32xbf16>
      %58 = vector.shape_cast %57 : vector<1x1x32xbf16> to vector<1x32xbf16>
      %59 = arith.extf %58 : vector<1x32xbf16> to vector<1x32xf32>
      %60 = vector.broadcast %56 : vector<28x1xf32> to vector<28x32xf32>
      %61 = vector.broadcast %59 : vector<1x32xf32> to vector<28x32xf32>
      %62 = arith.mulf %60, %61 : vector<28x32xf32>
      %63 = arith.addf %55, %62 : vector<28x32xf32>
      %64 = vector.extract_strided_slice %36 {offsets = [1, 0, 0], sizes = [1, 30, 1], strides = [1, 1, 1]} : vector<4x30x1xf32> to vector<1x30x1xf32>
      %65 = vector.shape_cast %64 : vector<1x30x1xf32> to vector<30x1xf32>
      %66 = vector.extract_strided_slice %65 {offsets = [0, 0], sizes = [28, 1], strides = [1, 1]} : vector<30x1xf32> to vector<28x1xf32>
      %c3 = arith.constant 3 : index
      %c0_31 = arith.constant 0 : index
      %c0_32 = arith.constant 0 : index
      %67 = vector.load %arg2[%c3, %c0_31, %c0_32] : memref<9x1x32xbf16, #tpu.memory_space<vmem>>, vector<1x1x32xbf16>
      %68 = vector.shape_cast %67 : vector<1x1x32xbf16> to vector<1x32xbf16>
      %69 = arith.extf %68 : vector<1x32xbf16> to vector<1x32xf32>
      %70 = vector.broadcast %66 : vector<28x1xf32> to vector<28x32xf32>
      %71 = vector.broadcast %69 : vector<1x32xf32> to vector<28x32xf32>
      %72 = arith.mulf %70, %71 : vector<28x32xf32>
      %73 = arith.addf %63, %72 : vector<28x32xf32>
      %74 = vector.extract_strided_slice %65 {offsets = [1, 0], sizes = [28, 1], strides = [1, 1]} : vector<30x1xf32> to vector<28x1xf32>
      %c4 = arith.constant 4 : index
      %c0_33 = arith.constant 0 : index
      %c0_34 = arith.constant 0 : index
      %75 = vector.load %arg2[%c4, %c0_33, %c0_34] : memref<9x1x32xbf16, #tpu.memory_space<vmem>>, vector<1x1x32xbf16>
      %76 = vector.shape_cast %75 : vector<1x1x32xbf16> to vector<1x32xbf16>
      %77 = arith.extf %76 : vector<1x32xbf16> to vector<1x32xf32>
      %78 = vector.broadcast %74 : vector<28x1xf32> to vector<28x32xf32>
      %79 = vector.broadcast %77 : vector<1x32xf32> to vector<28x32xf32>
      %80 = arith.mulf %78, %79 : vector<28x32xf32>
      %81 = arith.addf %73, %80 : vector<28x32xf32>
      %82 = vector.extract_strided_slice %65 {offsets = [2, 0], sizes = [28, 1], strides = [1, 1]} : vector<30x1xf32> to vector<28x1xf32>
      %c5 = arith.constant 5 : index
      %c0_35 = arith.constant 0 : index
      %c0_36 = arith.constant 0 : index
      %83 = vector.load %arg2[%c5, %c0_35, %c0_36] : memref<9x1x32xbf16, #tpu.memory_space<vmem>>, vector<1x1x32xbf16>
      %84 = vector.shape_cast %83 : vector<1x1x32xbf16> to vector<1x32xbf16>
      %85 = arith.extf %84 : vector<1x32xbf16> to vector<1x32xf32>
      %86 = vector.broadcast %82 : vector<28x1xf32> to vector<28x32xf32>
      %87 = vector.broadcast %85 : vector<1x32xf32> to vector<28x32xf32>
      %88 = arith.mulf %86, %87 : vector<28x32xf32>
      %89 = arith.addf %81, %88 : vector<28x32xf32>
      %90 = vector.extract_strided_slice %36 {offsets = [2, 0, 0], sizes = [1, 30, 1], strides = [1, 1, 1]} : vector<4x30x1xf32> to vector<1x30x1xf32>
      %91 = vector.shape_cast %90 : vector<1x30x1xf32> to vector<30x1xf32>
      %92 = vector.extract_strided_slice %91 {offsets = [0, 0], sizes = [28, 1], strides = [1, 1]} : vector<30x1xf32> to vector<28x1xf32>
      %c6 = arith.constant 6 : index
      %c0_37 = arith.constant 0 : index
      %c0_38 = arith.constant 0 : index
      %93 = vector.load %arg2[%c6, %c0_37, %c0_38] : memref<9x1x32xbf16, #tpu.memory_space<vmem>>, vector<1x1x32xbf16>
      %94 = vector.shape_cast %93 : vector<1x1x32xbf16> to vector<1x32xbf16>
      %95 = arith.extf %94 : vector<1x32xbf16> to vector<1x32xf32>
      %96 = vector.broadcast %92 : vector<28x1xf32> to vector<28x32xf32>
      %97 = vector.broadcast %95 : vector<1x32xf32> to vector<28x32xf32>
      %98 = arith.mulf %96, %97 : vector<28x32xf32>
      %99 = arith.addf %89, %98 : vector<28x32xf32>
      %100 = vector.extract_strided_slice %91 {offsets = [1, 0], sizes = [28, 1], strides = [1, 1]} : vector<30x1xf32> to vector<28x1xf32>
      %c7 = arith.constant 7 : index
      %c0_39 = arith.constant 0 : index
      %c0_40 = arith.constant 0 : index
      %101 = vector.load %arg2[%c7, %c0_39, %c0_40] : memref<9x1x32xbf16, #tpu.memory_space<vmem>>, vector<1x1x32xbf16>
      %102 = vector.shape_cast %101 : vector<1x1x32xbf16> to vector<1x32xbf16>
      %103 = arith.extf %102 : vector<1x32xbf16> to vector<1x32xf32>
      %104 = vector.broadcast %100 : vector<28x1xf32> to vector<28x32xf32>
      %105 = vector.broadcast %103 : vector<1x32xf32> to vector<28x32xf32>
      %106 = arith.mulf %104, %105 : vector<28x32xf32>
      %107 = arith.addf %99, %106 : vector<28x32xf32>
      %108 = vector.extract_strided_slice %91 {offsets = [2, 0], sizes = [28, 1], strides = [1, 1]} : vector<30x1xf32> to vector<28x1xf32>
      %c8 = arith.constant 8 : index
      %c0_41 = arith.constant 0 : index
      %c0_42 = arith.constant 0 : index
      %109 = vector.load %arg2[%c8, %c0_41, %c0_42] : memref<9x1x32xbf16, #tpu.memory_space<vmem>>, vector<1x1x32xbf16>
      %110 = vector.shape_cast %109 : vector<1x1x32xbf16> to vector<1x32xbf16>
      %111 = arith.extf %110 : vector<1x32xbf16> to vector<1x32xf32>
      %112 = vector.broadcast %108 : vector<28x1xf32> to vector<28x32xf32>
      %113 = vector.broadcast %111 : vector<1x32xf32> to vector<28x32xf32>
      %114 = arith.mulf %112, %113 : vector<28x32xf32>
      %115 = arith.addf %107, %114 : vector<28x32xf32>
      %116 = vector.broadcast %23 : vector<1x32xf32> to vector<28x32xf32>
      %117 = arith.mulf %115, %116 : vector<28x32xf32>
      %118 = vector.broadcast %24 : vector<1x32xf32> to vector<28x32xf32>
      %119 = arith.addf %117, %118 : vector<28x32xf32>
      %cst_43 = arith.constant 0.000000e+00 : f32
      %120 = vector.broadcast %cst_43 : f32 to vector<28x32xf32>
      %121 = arith.maximumf %119, %120 : vector<28x32xf32>
      %cst_44 = arith.constant 0.000000e+00 : f32
      %122 = vector.broadcast %cst_44 : f32 to vector<28x32xf32>
      %123 = vector.extract_strided_slice %36 {offsets = [1, 0, 0], sizes = [1, 30, 1], strides = [1, 1, 1]} : vector<4x30x1xf32> to vector<1x30x1xf32>
      %124 = vector.shape_cast %123 : vector<1x30x1xf32> to vector<30x1xf32>
      %125 = vector.extract_strided_slice %124 {offsets = [0, 0], sizes = [28, 1], strides = [1, 1]} : vector<30x1xf32> to vector<28x1xf32>
      %c0_45 = arith.constant 0 : index
      %c0_46 = arith.constant 0 : index
      %c0_47 = arith.constant 0 : index
      %126 = vector.load %arg2[%c0_45, %c0_46, %c0_47] : memref<9x1x32xbf16, #tpu.memory_space<vmem>>, vector<1x1x32xbf16>
      %127 = vector.shape_cast %126 : vector<1x1x32xbf16> to vector<1x32xbf16>
      %128 = arith.extf %127 : vector<1x32xbf16> to vector<1x32xf32>
      %129 = vector.broadcast %125 : vector<28x1xf32> to vector<28x32xf32>
      %130 = vector.broadcast %128 : vector<1x32xf32> to vector<28x32xf32>
      %131 = arith.mulf %129, %130 : vector<28x32xf32>
      %132 = arith.addf %122, %131 : vector<28x32xf32>
      %133 = vector.extract_strided_slice %124 {offsets = [1, 0], sizes = [28, 1], strides = [1, 1]} : vector<30x1xf32> to vector<28x1xf32>
      %c1_48 = arith.constant 1 : index
      %c0_49 = arith.constant 0 : index
      %c0_50 = arith.constant 0 : index
      %134 = vector.load %arg2[%c1_48, %c0_49, %c0_50] : memref<9x1x32xbf16, #tpu.memory_space<vmem>>, vector<1x1x32xbf16>
      %135 = vector.shape_cast %134 : vector<1x1x32xbf16> to vector<1x32xbf16>
      %136 = arith.extf %135 : vector<1x32xbf16> to vector<1x32xf32>
      %137 = vector.broadcast %133 : vector<28x1xf32> to vector<28x32xf32>
      %138 = vector.broadcast %136 : vector<1x32xf32> to vector<28x32xf32>
      %139 = arith.mulf %137, %138 : vector<28x32xf32>
      %140 = arith.addf %132, %139 : vector<28x32xf32>
      %141 = vector.extract_strided_slice %124 {offsets = [2, 0], sizes = [28, 1], strides = [1, 1]} : vector<30x1xf32> to vector<28x1xf32>
      %c2_51 = arith.constant 2 : index
      %c0_52 = arith.constant 0 : index
      %c0_53 = arith.constant 0 : index
      %142 = vector.load %arg2[%c2_51, %c0_52, %c0_53] : memref<9x1x32xbf16, #tpu.memory_space<vmem>>, vector<1x1x32xbf16>
      %143 = vector.shape_cast %142 : vector<1x1x32xbf16> to vector<1x32xbf16>
      %144 = arith.extf %143 : vector<1x32xbf16> to vector<1x32xf32>
      %145 = vector.broadcast %141 : vector<28x1xf32> to vector<28x32xf32>
      %146 = vector.broadcast %144 : vector<1x32xf32> to vector<28x32xf32>
      %147 = arith.mulf %145, %146 : vector<28x32xf32>
      %148 = arith.addf %140, %147 : vector<28x32xf32>
      %149 = vector.extract_strided_slice %36 {offsets = [2, 0, 0], sizes = [1, 30, 1], strides = [1, 1, 1]} : vector<4x30x1xf32> to vector<1x30x1xf32>
      %150 = vector.shape_cast %149 : vector<1x30x1xf32> to vector<30x1xf32>
      %151 = vector.extract_strided_slice %150 {offsets = [0, 0], sizes = [28, 1], strides = [1, 1]} : vector<30x1xf32> to vector<28x1xf32>
      %c3_54 = arith.constant 3 : index
      %c0_55 = arith.constant 0 : index
      %c0_56 = arith.constant 0 : index
      %152 = vector.load %arg2[%c3_54, %c0_55, %c0_56] : memref<9x1x32xbf16, #tpu.memory_space<vmem>>, vector<1x1x32xbf16>
      %153 = vector.shape_cast %152 : vector<1x1x32xbf16> to vector<1x32xbf16>
      %154 = arith.extf %153 : vector<1x32xbf16> to vector<1x32xf32>
      %155 = vector.broadcast %151 : vector<28x1xf32> to vector<28x32xf32>
      %156 = vector.broadcast %154 : vector<1x32xf32> to vector<28x32xf32>
      %157 = arith.mulf %155, %156 : vector<28x32xf32>
      %158 = arith.addf %148, %157 : vector<28x32xf32>
      %159 = vector.extract_strided_slice %150 {offsets = [1, 0], sizes = [28, 1], strides = [1, 1]} : vector<30x1xf32> to vector<28x1xf32>
      %c4_57 = arith.constant 4 : index
      %c0_58 = arith.constant 0 : index
      %c0_59 = arith.constant 0 : index
      %160 = vector.load %arg2[%c4_57, %c0_58, %c0_59] : memref<9x1x32xbf16, #tpu.memory_space<vmem>>, vector<1x1x32xbf16>
      %161 = vector.shape_cast %160 : vector<1x1x32xbf16> to vector<1x32xbf16>
      %162 = arith.extf %161 : vector<1x32xbf16> to vector<1x32xf32>
      %163 = vector.broadcast %159 : vector<28x1xf32> to vector<28x32xf32>
      %164 = vector.broadcast %162 : vector<1x32xf32> to vector<28x32xf32>
      %165 = arith.mulf %163, %164 : vector<28x32xf32>
      %166 = arith.addf %158, %165 : vector<28x32xf32>
      %167 = vector.extract_strided_slice %150 {offsets = [2, 0], sizes = [28, 1], strides = [1, 1]} : vector<30x1xf32> to vector<28x1xf32>
      %c5_60 = arith.constant 5 : index
      %c0_61 = arith.constant 0 : index
      %c0_62 = arith.constant 0 : index
      %168 = vector.load %arg2[%c5_60, %c0_61, %c0_62] : memref<9x1x32xbf16, #tpu.memory_space<vmem>>, vector<1x1x32xbf16>
      %169 = vector.shape_cast %168 : vector<1x1x32xbf16> to vector<1x32xbf16>
      %170 = arith.extf %169 : vector<1x32xbf16> to vector<1x32xf32>
      %171 = vector.broadcast %167 : vector<28x1xf32> to vector<28x32xf32>
      %172 = vector.broadcast %170 : vector<1x32xf32> to vector<28x32xf32>
      %173 = arith.mulf %171, %172 : vector<28x32xf32>
      %174 = arith.addf %166, %173 : vector<28x32xf32>
      %175 = vector.extract_strided_slice %36 {offsets = [3, 0, 0], sizes = [1, 30, 1], strides = [1, 1, 1]} : vector<4x30x1xf32> to vector<1x30x1xf32>
      %176 = vector.shape_cast %175 : vector<1x30x1xf32> to vector<30x1xf32>
      %177 = vector.extract_strided_slice %176 {offsets = [0, 0], sizes = [28, 1], strides = [1, 1]} : vector<30x1xf32> to vector<28x1xf32>
      %c6_63 = arith.constant 6 : index
      %c0_64 = arith.constant 0 : index
      %c0_65 = arith.constant 0 : index
      %178 = vector.load %arg2[%c6_63, %c0_64, %c0_65] : memref<9x1x32xbf16, #tpu.memory_space<vmem>>, vector<1x1x32xbf16>
      %179 = vector.shape_cast %178 : vector<1x1x32xbf16> to vector<1x32xbf16>
      %180 = arith.extf %179 : vector<1x32xbf16> to vector<1x32xf32>
      %181 = vector.broadcast %177 : vector<28x1xf32> to vector<28x32xf32>
      %182 = vector.broadcast %180 : vector<1x32xf32> to vector<28x32xf32>
      %183 = arith.mulf %181, %182 : vector<28x32xf32>
      %184 = arith.addf %174, %183 : vector<28x32xf32>
      %185 = vector.extract_strided_slice %176 {offsets = [1, 0], sizes = [28, 1], strides = [1, 1]} : vector<30x1xf32> to vector<28x1xf32>
      %c7_66 = arith.constant 7 : index
      %c0_67 = arith.constant 0 : index
      %c0_68 = arith.constant 0 : index
      %186 = vector.load %arg2[%c7_66, %c0_67, %c0_68] : memref<9x1x32xbf16, #tpu.memory_space<vmem>>, vector<1x1x32xbf16>
      %187 = vector.shape_cast %186 : vector<1x1x32xbf16> to vector<1x32xbf16>
      %188 = arith.extf %187 : vector<1x32xbf16> to vector<1x32xf32>
      %189 = vector.broadcast %185 : vector<28x1xf32> to vector<28x32xf32>
      %190 = vector.broadcast %188 : vector<1x32xf32> to vector<28x32xf32>
      %191 = arith.mulf %189, %190 : vector<28x32xf32>
      %192 = arith.addf %184, %191 : vector<28x32xf32>
      %193 = vector.extract_strided_slice %176 {offsets = [2, 0], sizes = [28, 1], strides = [1, 1]} : vector<30x1xf32> to vector<28x1xf32>
      %c8_69 = arith.constant 8 : index
      %c0_70 = arith.constant 0 : index
      %c0_71 = arith.constant 0 : index
      %194 = vector.load %arg2[%c8_69, %c0_70, %c0_71] : memref<9x1x32xbf16, #tpu.memory_space<vmem>>, vector<1x1x32xbf16>
      %195 = vector.shape_cast %194 : vector<1x1x32xbf16> to vector<1x32xbf16>
      %196 = arith.extf %195 : vector<1x32xbf16> to vector<1x32xf32>
      %197 = vector.broadcast %193 : vector<28x1xf32> to vector<28x32xf32>
      %198 = vector.broadcast %196 : vector<1x32xf32> to vector<28x32xf32>
      %199 = arith.mulf %197, %198 : vector<28x32xf32>
      %200 = arith.addf %192, %199 : vector<28x32xf32>
      %201 = vector.broadcast %23 : vector<1x32xf32> to vector<28x32xf32>
      %202 = arith.mulf %200, %201 : vector<28x32xf32>
      %203 = vector.broadcast %24 : vector<1x32xf32> to vector<28x32xf32>
      %204 = arith.addf %202, %203 : vector<28x32xf32>
      %cst_72 = arith.constant 0.000000e+00 : f32
      %205 = vector.broadcast %cst_72 : f32 to vector<28x32xf32>
      %206 = arith.maximumf %204, %205 : vector<28x32xf32>
      %207 = arith.maximumf %121, %206 : vector<28x32xf32>
      %cst_73 = arith.constant dense<0.000000e+00> : vector<16x32xf32>
      %208 = tpu.matmul %15, %207, %cst_73 {dimension_numbers = #tpu.dot_dimension_numbers<[1], [0], [0], [1], [0, 0, 1, 1], [], []>} : vector<16x28xf32>, vector<28x32xf32>, vector<16x32xf32> -> vector<16x32xf32>
      %cst_74 = arith.constant dense<0.000000e+00> : vector<16x32xf32>
      %209 = tpu.matmul %22, %207, %cst_74 {dimension_numbers = #tpu.dot_dimension_numbers<[1], [0], [0], [1], [0, 0, 1, 1], [], []>} : vector<16x28xf32>, vector<28x32xf32>, vector<16x32xf32> -> vector<16x32xf32>
      %210 = arith.maximumf %208, %209 : vector<16x32xf32>
      %c1_i32_75 = arith.constant 1 : i32
      %211 = arith.addi %arg6, %c1_i32_75 : i32
      %c0_76 = arith.constant 0 : index
      %212 = arith.index_cast %211 : i32 to index
      %c0_77 = arith.constant 0 : index
      %c0_78 = arith.constant 0 : index
      %213 = vector.load %arg5[%c0_76, %212, %c0_77, %c0_78] : memref<1x16x16x32xf32, #tpu.memory_space<vmem>>, vector<1x1x16x32xf32>
      %214 = vector.shape_cast %213 : vector<1x1x16x32xf32> to vector<16x32xf32>
      %215 = vector.shape_cast %210 : vector<16x32xf32> to vector<1x1x16x32xf32>
      tpu.vector_store %arg5[%c0_76, %212, %c0_77, %c0_78], %215 {strides = array<i32>} : memref<1x16x16x32xf32, #tpu.memory_space<vmem>>, vector<1x1x16x32xf32>,
    }
    %c14_i32_18 = arith.constant 14 : i32
    return
  }
  func.func @transform_0(%arg0: i32) -> (i32, i32, i32, i32) {
    %c0_i32 = arith.constant 0 : i32
    %c0_i32_0 = arith.constant 0 : i32
    %c0_i32_1 = arith.constant 0 : i32
    %c0_i32_2 = arith.constant 0 : i32
    return %arg0, %c0_i32, %c0_i32_0, %c0_i32_1 : i32, i32, i32, i32
  }
  func.func @transform_1(%arg0: i32) -> (i32, i32, i32) {
    %c0_i32 = arith.constant 0 : i32
    %c0_i32_0 = arith.constant 0 : i32
    %c0_i32_1 = arith.constant 0 : i32
    %c0_i32_2 = arith.constant 0 : i32
    return %c0_i32, %c0_i32_0, %c0_i32_1 : i32, i32, i32
  }
  func.func @transform_2(%arg0: i32) -> (i32, i32) {
    %c0_i32 = arith.constant 0 : i32
    %c0_i32_0 = arith.constant 0 : i32
    %c0_i32_1 = arith.constant 0 : i32
    return %c0_i32, %c0_i32_0 : i32, i32
  }
  func.func @transform_3(%arg0: i32) -> (i32, i32) {
    %c0_i32 = arith.constant 0 : i32
    %c0_i32_0 = arith.constant 0 : i32
    %c0_i32_1 = arith.constant 0 : i32
    return %c0_i32, %c0_i32_0 : i32, i32
  }
  func.func @transform_4(%arg0: i32) -> (i32, i32, i32, i32) {
    %c0_i32 = arith.constant 0 : i32
    %c0_i32_0 = arith.constant 0 : i32
    %c0_i32_1 = arith.constant 0 : i32
    %c0_i32_2 = arith.constant 0 : i32
    return %arg0, %c0_i32, %c0_i32_0, %c0_i32_1 : i32, i32, i32, i32
  }
}

module attributes {stable_mosaic.version = 11 : i64} {
  func.func @_conv_pool_kernel(%arg0: i32, %arg1: memref<1x16x16x32xf32, #tpu.memory_space<vmem>>, %arg2: memref<9x32x64xbf16, #tpu.memory_space<vmem>>, %arg3: memref<1x64xf32, #tpu.memory_space<vmem>>, %arg4: memref<1x64xf32, #tpu.memory_space<vmem>>, %arg5: memref<1x9x9x64xf32, #tpu.memory_space<vmem>>) attributes {dimension_semantics = [#tpu.dimension_semantics<parallel>], iteration_bounds = array<i64: 2>, scalar_prefetch = 0 : i64, scratch_operands = 0 : i64, tpu.core_type = #tpu.core_type<tc>, window_params = [{transform_indices = @transform_0, window_bounds = array<i64: 1, 16, 16, 32>}, {pipeline_mode = #tpu.pipeline_mode<synchronous>, transform_indices = @transform_1, window_bounds = array<i64: 9, 32, 64>}, {pipeline_mode = #tpu.pipeline_mode<synchronous>, transform_indices = @transform_2, window_bounds = array<i64: 1, 64>}, {pipeline_mode = #tpu.pipeline_mode<synchronous>, transform_indices = @transform_3, window_bounds = array<i64: 1, 64>}, {transform_indices = @transform_4, window_bounds = array<i64: 1, 9, 9, 64>}]} {
    %0 = tpu.iota {dimensions = array<i32: 0>} : vector<9x14xi32>
    %1 = tpu.iota {dimensions = array<i32: 1>} : vector<9x14xi32>
    %c1_i32 = arith.constant 1 : i32
    %2 = vector.broadcast %c1_i32 : i32 to vector<9x14xi32>
    %3 = arith.subi %0, %2 : vector<9x14xi32>
    %c2_i32 = arith.constant 2 : i32
    %4 = vector.broadcast %c2_i32 : i32 to vector<9x14xi32>
    %5 = arith.muli %4, %3 : vector<9x14xi32>
    %c1_i32_0 = arith.constant 1 : i32
    %6 = vector.broadcast %c1_i32_0 : i32 to vector<9x14xi32>
    %7 = arith.cmpi sge, %0, %6 : vector<9x14xi32>
    %c7_i32 = arith.constant 7 : i32
    %8 = vector.broadcast %c7_i32 : i32 to vector<9x14xi32>
    %9 = arith.cmpi sle, %0, %8 : vector<9x14xi32>
    %10 = arith.andi %7, %9 : vector<9x14xi1>
    %11 = arith.cmpi eq, %1, %5 : vector<9x14xi32>
    %12 = arith.andi %11, %10 : vector<9x14xi1>
    %cst = arith.constant 1.000000e+00 : f32
    %cst_1 = arith.constant 0.000000e+00 : f32
    %13 = vector.broadcast %cst : f32 to vector<9x14xf32>
    %14 = vector.broadcast %cst_1 : f32 to vector<9x14xf32>
    %15 = arith.select %12, %13, %14 : vector<9x14xi1>, vector<9x14xf32>
    %c1_i32_2 = arith.constant 1 : i32
    %16 = vector.broadcast %c1_i32_2 : i32 to vector<9x14xi32>
    %17 = arith.addi %5, %16 : vector<9x14xi32>
    %18 = arith.cmpi eq, %1, %17 : vector<9x14xi32>
    %19 = arith.andi %18, %10 : vector<9x14xi1>
    %cst_3 = arith.constant 1.000000e+00 : f32
    %cst_4 = arith.constant 0.000000e+00 : f32
    %20 = vector.broadcast %cst_3 : f32 to vector<9x14xf32>
    %21 = vector.broadcast %cst_4 : f32 to vector<9x14xf32>
    %22 = arith.select %19, %20, %21 : vector<9x14xi1>, vector<9x14xf32>
    %c0 = arith.constant 0 : index
    %c0_5 = arith.constant 0 : index
    %23 = vector.load %arg3[%c0, %c0_5] : memref<1x64xf32, #tpu.memory_space<vmem>>, vector<1x64xf32>
    %c0_6 = arith.constant 0 : index
    %c0_7 = arith.constant 0 : index
    %24 = vector.load %arg4[%c0_6, %c0_7] : memref<1x64xf32, #tpu.memory_space<vmem>>, vector<1x64xf32>
    %cst_8 = arith.constant 0.000000e+00 : f32
    %25 = vector.broadcast %cst_8 : f32 to vector<9x64xf32>
    %c0_9 = arith.constant 0 : index
    %c0_10 = arith.constant 0 : index
    %c0_11 = arith.constant 0 : index
    %c0_12 = arith.constant 0 : index
    %26 = vector.load %arg5[%c0_9, %c0_10, %c0_11, %c0_12] : memref<1x9x9x64xf32, #tpu.memory_space<vmem>>, vector<1x1x9x64xf32>
    %27 = vector.shape_cast %26 : vector<1x1x9x64xf32> to vector<9x64xf32>
    %28 = vector.shape_cast %25 : vector<9x64xf32> to vector<1x1x9x64xf32>
    tpu.vector_store %arg5[%c0_9, %c0_10, %c0_11, %c0_12], %28 {strides = array<i32>} : memref<1x9x9x64xf32, #tpu.memory_space<vmem>>, vector<1x1x9x64xf32>,
    %c0_13 = arith.constant 0 : index
    %c8 = arith.constant 8 : index
    %c0_14 = arith.constant 0 : index
    %c0_15 = arith.constant 0 : index
    %29 = vector.load %arg5[%c0_13, %c8, %c0_14, %c0_15] : memref<1x9x9x64xf32, #tpu.memory_space<vmem>>, vector<1x1x9x64xf32>
    %30 = vector.shape_cast %29 : vector<1x1x9x64xf32> to vector<9x64xf32>
    %31 = vector.shape_cast %25 : vector<9x64xf32> to vector<1x1x9x64xf32>
    tpu.vector_store %arg5[%c0_13, %c8, %c0_14, %c0_15], %31 {strides = array<i32>} : memref<1x9x9x64xf32, #tpu.memory_space<vmem>>, vector<1x1x9x64xf32>,
    %c0_i32 = arith.constant 0 : i32
    %c7_i32_16 = arith.constant 7 : i32
    %32 = arith.addi %c0_i32, %c7_i32_16 : i32
    %c1_i32_17 = arith.constant 1 : i32
    scf.for %arg6 = %c0_i32 to %32 step %c1_i32_17  : i32 {
      %c2_i32_19 = arith.constant 2 : i32
      %33 = arith.muli %c2_i32_19, %arg6 : i32
      %c0_20 = arith.constant 0 : index
      %34 = arith.index_cast %33 : i32 to index
      %c0_21 = arith.constant 0 : index
      %c0_22 = arith.constant 0 : index
      %35 = vector.load %arg1[%c0_20, %34, %c0_21, %c0_22] : memref<1x16x16x32xf32, #tpu.memory_space<vmem>>, vector<1x4x16x32xf32>
      %36 = vector.shape_cast %35 : vector<1x4x16x32xf32> to vector<4x16x32xf32>
      %cst_23 = arith.constant 0.000000e+00 : f32
      %37 = vector.broadcast %cst_23 : f32 to vector<14x64xf32>
      %38 = vector.extract_strided_slice %36 {offsets = [0, 0, 0], sizes = [1, 16, 32], strides = [1, 1, 1]} : vector<4x16x32xf32> to vector<1x16x32xf32>
      %39 = vector.shape_cast %38 : vector<1x16x32xf32> to vector<16x32xf32>
      %40 = vector.extract_strided_slice %39 {offsets = [0, 0], sizes = [14, 32], strides = [1, 1]} : vector<16x32xf32> to vector<14x32xf32>
      %c0_24 = arith.constant 0 : index
      %c0_25 = arith.constant 0 : index
      %c0_26 = arith.constant 0 : index
      %41 = vector.load %arg2[%c0_24, %c0_25, %c0_26] : memref<9x32x64xbf16, #tpu.memory_space<vmem>>, vector<1x32x64xbf16>
      %42 = vector.shape_cast %41 : vector<1x32x64xbf16> to vector<32x64xbf16>
      %43 = arith.truncf %40 : vector<14x32xf32> to vector<14x32xbf16>
      %cst_27 = arith.constant dense<0.000000e+00> : vector<14x64xf32>
      %44 = tpu.matmul %43, %42, %cst_27 {dimension_numbers = #tpu.dot_dimension_numbers<[1], [0], [0], [1], [0, 0, 1, 1], [], []>} : vector<14x32xbf16>, vector<32x64xbf16>, vector<14x64xf32> -> vector<14x64xf32>
      %45 = arith.addf %37, %44 : vector<14x64xf32>
      %46 = vector.extract_strided_slice %39 {offsets = [1, 0], sizes = [14, 32], strides = [1, 1]} : vector<16x32xf32> to vector<14x32xf32>
      %c1 = arith.constant 1 : index
      %c0_28 = arith.constant 0 : index
      %c0_29 = arith.constant 0 : index
      %47 = vector.load %arg2[%c1, %c0_28, %c0_29] : memref<9x32x64xbf16, #tpu.memory_space<vmem>>, vector<1x32x64xbf16>
      %48 = vector.shape_cast %47 : vector<1x32x64xbf16> to vector<32x64xbf16>
      %49 = arith.truncf %46 : vector<14x32xf32> to vector<14x32xbf16>
      %cst_30 = arith.constant dense<0.000000e+00> : vector<14x64xf32>
      %50 = tpu.matmul %49, %48, %cst_30 {dimension_numbers = #tpu.dot_dimension_numbers<[1], [0], [0], [1], [0, 0, 1, 1], [], []>} : vector<14x32xbf16>, vector<32x64xbf16>, vector<14x64xf32> -> vector<14x64xf32>
      %51 = arith.addf %45, %50 : vector<14x64xf32>
      %52 = vector.extract_strided_slice %39 {offsets = [2, 0], sizes = [14, 32], strides = [1, 1]} : vector<16x32xf32> to vector<14x32xf32>
      %c2 = arith.constant 2 : index
      %c0_31 = arith.constant 0 : index
      %c0_32 = arith.constant 0 : index
      %53 = vector.load %arg2[%c2, %c0_31, %c0_32] : memref<9x32x64xbf16, #tpu.memory_space<vmem>>, vector<1x32x64xbf16>
      %54 = vector.shape_cast %53 : vector<1x32x64xbf16> to vector<32x64xbf16>
      %55 = arith.truncf %52 : vector<14x32xf32> to vector<14x32xbf16>
      %cst_33 = arith.constant dense<0.000000e+00> : vector<14x64xf32>
      %56 = tpu.matmul %55, %54, %cst_33 {dimension_numbers = #tpu.dot_dimension_numbers<[1], [0], [0], [1], [0, 0, 1, 1], [], []>} : vector<14x32xbf16>, vector<32x64xbf16>, vector<14x64xf32> -> vector<14x64xf32>
      %57 = arith.addf %51, %56 : vector<14x64xf32>
      %58 = vector.extract_strided_slice %36 {offsets = [1, 0, 0], sizes = [1, 16, 32], strides = [1, 1, 1]} : vector<4x16x32xf32> to vector<1x16x32xf32>
      %59 = vector.shape_cast %58 : vector<1x16x32xf32> to vector<16x32xf32>
      %60 = vector.extract_strided_slice %59 {offsets = [0, 0], sizes = [14, 32], strides = [1, 1]} : vector<16x32xf32> to vector<14x32xf32>
      %c3 = arith.constant 3 : index
      %c0_34 = arith.constant 0 : index
      %c0_35 = arith.constant 0 : index
      %61 = vector.load %arg2[%c3, %c0_34, %c0_35] : memref<9x32x64xbf16, #tpu.memory_space<vmem>>, vector<1x32x64xbf16>
      %62 = vector.shape_cast %61 : vector<1x32x64xbf16> to vector<32x64xbf16>
      %63 = arith.truncf %60 : vector<14x32xf32> to vector<14x32xbf16>
      %cst_36 = arith.constant dense<0.000000e+00> : vector<14x64xf32>
      %64 = tpu.matmul %63, %62, %cst_36 {dimension_numbers = #tpu.dot_dimension_numbers<[1], [0], [0], [1], [0, 0, 1, 1], [], []>} : vector<14x32xbf16>, vector<32x64xbf16>, vector<14x64xf32> -> vector<14x64xf32>
      %65 = arith.addf %57, %64 : vector<14x64xf32>
      %66 = vector.extract_strided_slice %59 {offsets = [1, 0], sizes = [14, 32], strides = [1, 1]} : vector<16x32xf32> to vector<14x32xf32>
      %c4 = arith.constant 4 : index
      %c0_37 = arith.constant 0 : index
      %c0_38 = arith.constant 0 : index
      %67 = vector.load %arg2[%c4, %c0_37, %c0_38] : memref<9x32x64xbf16, #tpu.memory_space<vmem>>, vector<1x32x64xbf16>
      %68 = vector.shape_cast %67 : vector<1x32x64xbf16> to vector<32x64xbf16>
      %69 = arith.truncf %66 : vector<14x32xf32> to vector<14x32xbf16>
      %cst_39 = arith.constant dense<0.000000e+00> : vector<14x64xf32>
      %70 = tpu.matmul %69, %68, %cst_39 {dimension_numbers = #tpu.dot_dimension_numbers<[1], [0], [0], [1], [0, 0, 1, 1], [], []>} : vector<14x32xbf16>, vector<32x64xbf16>, vector<14x64xf32> -> vector<14x64xf32>
      %71 = arith.addf %65, %70 : vector<14x64xf32>
      %72 = vector.extract_strided_slice %59 {offsets = [2, 0], sizes = [14, 32], strides = [1, 1]} : vector<16x32xf32> to vector<14x32xf32>
      %c5 = arith.constant 5 : index
      %c0_40 = arith.constant 0 : index
      %c0_41 = arith.constant 0 : index
      %73 = vector.load %arg2[%c5, %c0_40, %c0_41] : memref<9x32x64xbf16, #tpu.memory_space<vmem>>, vector<1x32x64xbf16>
      %74 = vector.shape_cast %73 : vector<1x32x64xbf16> to vector<32x64xbf16>
      %75 = arith.truncf %72 : vector<14x32xf32> to vector<14x32xbf16>
      %cst_42 = arith.constant dense<0.000000e+00> : vector<14x64xf32>
      %76 = tpu.matmul %75, %74, %cst_42 {dimension_numbers = #tpu.dot_dimension_numbers<[1], [0], [0], [1], [0, 0, 1, 1], [], []>} : vector<14x32xbf16>, vector<32x64xbf16>, vector<14x64xf32> -> vector<14x64xf32>
      %77 = arith.addf %71, %76 : vector<14x64xf32>
      %78 = vector.extract_strided_slice %36 {offsets = [2, 0, 0], sizes = [1, 16, 32], strides = [1, 1, 1]} : vector<4x16x32xf32> to vector<1x16x32xf32>
      %79 = vector.shape_cast %78 : vector<1x16x32xf32> to vector<16x32xf32>
      %80 = vector.extract_strided_slice %79 {offsets = [0, 0], sizes = [14, 32], strides = [1, 1]} : vector<16x32xf32> to vector<14x32xf32>
      %c6 = arith.constant 6 : index
      %c0_43 = arith.constant 0 : index
      %c0_44 = arith.constant 0 : index
      %81 = vector.load %arg2[%c6, %c0_43, %c0_44] : memref<9x32x64xbf16, #tpu.memory_space<vmem>>, vector<1x32x64xbf16>
      %82 = vector.shape_cast %81 : vector<1x32x64xbf16> to vector<32x64xbf16>
      %83 = arith.truncf %80 : vector<14x32xf32> to vector<14x32xbf16>
      %cst_45 = arith.constant dense<0.000000e+00> : vector<14x64xf32>
      %84 = tpu.matmul %83, %82, %cst_45 {dimension_numbers = #tpu.dot_dimension_numbers<[1], [0], [0], [1], [0, 0, 1, 1], [], []>} : vector<14x32xbf16>, vector<32x64xbf16>, vector<14x64xf32> -> vector<14x64xf32>
      %85 = arith.addf %77, %84 : vector<14x64xf32>
      %86 = vector.extract_strided_slice %79 {offsets = [1, 0], sizes = [14, 32], strides = [1, 1]} : vector<16x32xf32> to vector<14x32xf32>
      %c7 = arith.constant 7 : index
      %c0_46 = arith.constant 0 : index
      %c0_47 = arith.constant 0 : index
      %87 = vector.load %arg2[%c7, %c0_46, %c0_47] : memref<9x32x64xbf16, #tpu.memory_space<vmem>>, vector<1x32x64xbf16>
      %88 = vector.shape_cast %87 : vector<1x32x64xbf16> to vector<32x64xbf16>
      %89 = arith.truncf %86 : vector<14x32xf32> to vector<14x32xbf16>
      %cst_48 = arith.constant dense<0.000000e+00> : vector<14x64xf32>
      %90 = tpu.matmul %89, %88, %cst_48 {dimension_numbers = #tpu.dot_dimension_numbers<[1], [0], [0], [1], [0, 0, 1, 1], [], []>} : vector<14x32xbf16>, vector<32x64xbf16>, vector<14x64xf32> -> vector<14x64xf32>
      %91 = arith.addf %85, %90 : vector<14x64xf32>
      %92 = vector.extract_strided_slice %79 {offsets = [2, 0], sizes = [14, 32], strides = [1, 1]} : vector<16x32xf32> to vector<14x32xf32>
      %c8_49 = arith.constant 8 : index
      %c0_50 = arith.constant 0 : index
      %c0_51 = arith.constant 0 : index
      %93 = vector.load %arg2[%c8_49, %c0_50, %c0_51] : memref<9x32x64xbf16, #tpu.memory_space<vmem>>, vector<1x32x64xbf16>
      %94 = vector.shape_cast %93 : vector<1x32x64xbf16> to vector<32x64xbf16>
      %95 = arith.truncf %92 : vector<14x32xf32> to vector<14x32xbf16>
      %cst_52 = arith.constant dense<0.000000e+00> : vector<14x64xf32>
      %96 = tpu.matmul %95, %94, %cst_52 {dimension_numbers = #tpu.dot_dimension_numbers<[1], [0], [0], [1], [0, 0, 1, 1], [], []>} : vector<14x32xbf16>, vector<32x64xbf16>, vector<14x64xf32> -> vector<14x64xf32>
      %97 = arith.addf %91, %96 : vector<14x64xf32>
      %98 = vector.broadcast %23 : vector<1x64xf32> to vector<14x64xf32>
      %99 = arith.mulf %97, %98 : vector<14x64xf32>
      %100 = vector.broadcast %24 : vector<1x64xf32> to vector<14x64xf32>
      %101 = arith.addf %99, %100 : vector<14x64xf32>
      %cst_53 = arith.constant 0.000000e+00 : f32
      %102 = vector.broadcast %cst_53 : f32 to vector<14x64xf32>
      %103 = arith.maximumf %101, %102 : vector<14x64xf32>
      %cst_54 = arith.constant 0.000000e+00 : f32
      %104 = vector.broadcast %cst_54 : f32 to vector<14x64xf32>
      %105 = vector.extract_strided_slice %36 {offsets = [1, 0, 0], sizes = [1, 16, 32], strides = [1, 1, 1]} : vector<4x16x32xf32> to vector<1x16x32xf32>
      %106 = vector.shape_cast %105 : vector<1x16x32xf32> to vector<16x32xf32>
      %107 = vector.extract_strided_slice %106 {offsets = [0, 0], sizes = [14, 32], strides = [1, 1]} : vector<16x32xf32> to vector<14x32xf32>
      %c0_55 = arith.constant 0 : index
      %c0_56 = arith.constant 0 : index
      %c0_57 = arith.constant 0 : index
      %108 = vector.load %arg2[%c0_55, %c0_56, %c0_57] : memref<9x32x64xbf16, #tpu.memory_space<vmem>>, vector<1x32x64xbf16>
      %109 = vector.shape_cast %108 : vector<1x32x64xbf16> to vector<32x64xbf16>
      %110 = arith.truncf %107 : vector<14x32xf32> to vector<14x32xbf16>
      %cst_58 = arith.constant dense<0.000000e+00> : vector<14x64xf32>
      %111 = tpu.matmul %110, %109, %cst_58 {dimension_numbers = #tpu.dot_dimension_numbers<[1], [0], [0], [1], [0, 0, 1, 1], [], []>} : vector<14x32xbf16>, vector<32x64xbf16>, vector<14x64xf32> -> vector<14x64xf32>
      %112 = arith.addf %104, %111 : vector<14x64xf32>
      %113 = vector.extract_strided_slice %106 {offsets = [1, 0], sizes = [14, 32], strides = [1, 1]} : vector<16x32xf32> to vector<14x32xf32>
      %c1_59 = arith.constant 1 : index
      %c0_60 = arith.constant 0 : index
      %c0_61 = arith.constant 0 : index
      %114 = vector.load %arg2[%c1_59, %c0_60, %c0_61] : memref<9x32x64xbf16, #tpu.memory_space<vmem>>, vector<1x32x64xbf16>
      %115 = vector.shape_cast %114 : vector<1x32x64xbf16> to vector<32x64xbf16>
      %116 = arith.truncf %113 : vector<14x32xf32> to vector<14x32xbf16>
      %cst_62 = arith.constant dense<0.000000e+00> : vector<14x64xf32>
      %117 = tpu.matmul %116, %115, %cst_62 {dimension_numbers = #tpu.dot_dimension_numbers<[1], [0], [0], [1], [0, 0, 1, 1], [], []>} : vector<14x32xbf16>, vector<32x64xbf16>, vector<14x64xf32> -> vector<14x64xf32>
      %118 = arith.addf %112, %117 : vector<14x64xf32>
      %119 = vector.extract_strided_slice %106 {offsets = [2, 0], sizes = [14, 32], strides = [1, 1]} : vector<16x32xf32> to vector<14x32xf32>
      %c2_63 = arith.constant 2 : index
      %c0_64 = arith.constant 0 : index
      %c0_65 = arith.constant 0 : index
      %120 = vector.load %arg2[%c2_63, %c0_64, %c0_65] : memref<9x32x64xbf16, #tpu.memory_space<vmem>>, vector<1x32x64xbf16>
      %121 = vector.shape_cast %120 : vector<1x32x64xbf16> to vector<32x64xbf16>
      %122 = arith.truncf %119 : vector<14x32xf32> to vector<14x32xbf16>
      %cst_66 = arith.constant dense<0.000000e+00> : vector<14x64xf32>
      %123 = tpu.matmul %122, %121, %cst_66 {dimension_numbers = #tpu.dot_dimension_numbers<[1], [0], [0], [1], [0, 0, 1, 1], [], []>} : vector<14x32xbf16>, vector<32x64xbf16>, vector<14x64xf32> -> vector<14x64xf32>
      %124 = arith.addf %118, %123 : vector<14x64xf32>
      %125 = vector.extract_strided_slice %36 {offsets = [2, 0, 0], sizes = [1, 16, 32], strides = [1, 1, 1]} : vector<4x16x32xf32> to vector<1x16x32xf32>
      %126 = vector.shape_cast %125 : vector<1x16x32xf32> to vector<16x32xf32>
      %127 = vector.extract_strided_slice %126 {offsets = [0, 0], sizes = [14, 32], strides = [1, 1]} : vector<16x32xf32> to vector<14x32xf32>
      %c3_67 = arith.constant 3 : index
      %c0_68 = arith.constant 0 : index
      %c0_69 = arith.constant 0 : index
      %128 = vector.load %arg2[%c3_67, %c0_68, %c0_69] : memref<9x32x64xbf16, #tpu.memory_space<vmem>>, vector<1x32x64xbf16>
      %129 = vector.shape_cast %128 : vector<1x32x64xbf16> to vector<32x64xbf16>
      %130 = arith.truncf %127 : vector<14x32xf32> to vector<14x32xbf16>
      %cst_70 = arith.constant dense<0.000000e+00> : vector<14x64xf32>
      %131 = tpu.matmul %130, %129, %cst_70 {dimension_numbers = #tpu.dot_dimension_numbers<[1], [0], [0], [1], [0, 0, 1, 1], [], []>} : vector<14x32xbf16>, vector<32x64xbf16>, vector<14x64xf32> -> vector<14x64xf32>
      %132 = arith.addf %124, %131 : vector<14x64xf32>
      %133 = vector.extract_strided_slice %126 {offsets = [1, 0], sizes = [14, 32], strides = [1, 1]} : vector<16x32xf32> to vector<14x32xf32>
      %c4_71 = arith.constant 4 : index
      %c0_72 = arith.constant 0 : index
      %c0_73 = arith.constant 0 : index
      %134 = vector.load %arg2[%c4_71, %c0_72, %c0_73] : memref<9x32x64xbf16, #tpu.memory_space<vmem>>, vector<1x32x64xbf16>
      %135 = vector.shape_cast %134 : vector<1x32x64xbf16> to vector<32x64xbf16>
      %136 = arith.truncf %133 : vector<14x32xf32> to vector<14x32xbf16>
      %cst_74 = arith.constant dense<0.000000e+00> : vector<14x64xf32>
      %137 = tpu.matmul %136, %135, %cst_74 {dimension_numbers = #tpu.dot_dimension_numbers<[1], [0], [0], [1], [0, 0, 1, 1], [], []>} : vector<14x32xbf16>, vector<32x64xbf16>, vector<14x64xf32> -> vector<14x64xf32>
      %138 = arith.addf %132, %137 : vector<14x64xf32>
      %139 = vector.extract_strided_slice %126 {offsets = [2, 0], sizes = [14, 32], strides = [1, 1]} : vector<16x32xf32> to vector<14x32xf32>
      %c5_75 = arith.constant 5 : index
      %c0_76 = arith.constant 0 : index
      %c0_77 = arith.constant 0 : index
      %140 = vector.load %arg2[%c5_75, %c0_76, %c0_77] : memref<9x32x64xbf16, #tpu.memory_space<vmem>>, vector<1x32x64xbf16>
      %141 = vector.shape_cast %140 : vector<1x32x64xbf16> to vector<32x64xbf16>
      %142 = arith.truncf %139 : vector<14x32xf32> to vector<14x32xbf16>
      %cst_78 = arith.constant dense<0.000000e+00> : vector<14x64xf32>
      %143 = tpu.matmul %142, %141, %cst_78 {dimension_numbers = #tpu.dot_dimension_numbers<[1], [0], [0], [1], [0, 0, 1, 1], [], []>} : vector<14x32xbf16>, vector<32x64xbf16>, vector<14x64xf32> -> vector<14x64xf32>
      %144 = arith.addf %138, %143 : vector<14x64xf32>
      %145 = vector.extract_strided_slice %36 {offsets = [3, 0, 0], sizes = [1, 16, 32], strides = [1, 1, 1]} : vector<4x16x32xf32> to vector<1x16x32xf32>
      %146 = vector.shape_cast %145 : vector<1x16x32xf32> to vector<16x32xf32>
      %147 = vector.extract_strided_slice %146 {offsets = [0, 0], sizes = [14, 32], strides = [1, 1]} : vector<16x32xf32> to vector<14x32xf32>
      %c6_79 = arith.constant 6 : index
      %c0_80 = arith.constant 0 : index
      %c0_81 = arith.constant 0 : index
      %148 = vector.load %arg2[%c6_79, %c0_80, %c0_81] : memref<9x32x64xbf16, #tpu.memory_space<vmem>>, vector<1x32x64xbf16>
      %149 = vector.shape_cast %148 : vector<1x32x64xbf16> to vector<32x64xbf16>
      %150 = arith.truncf %147 : vector<14x32xf32> to vector<14x32xbf16>
      %cst_82 = arith.constant dense<0.000000e+00> : vector<14x64xf32>
      %151 = tpu.matmul %150, %149, %cst_82 {dimension_numbers = #tpu.dot_dimension_numbers<[1], [0], [0], [1], [0, 0, 1, 1], [], []>} : vector<14x32xbf16>, vector<32x64xbf16>, vector<14x64xf32> -> vector<14x64xf32>
      %152 = arith.addf %144, %151 : vector<14x64xf32>
      %153 = vector.extract_strided_slice %146 {offsets = [1, 0], sizes = [14, 32], strides = [1, 1]} : vector<16x32xf32> to vector<14x32xf32>
      %c7_83 = arith.constant 7 : index
      %c0_84 = arith.constant 0 : index
      %c0_85 = arith.constant 0 : index
      %154 = vector.load %arg2[%c7_83, %c0_84, %c0_85] : memref<9x32x64xbf16, #tpu.memory_space<vmem>>, vector<1x32x64xbf16>
      %155 = vector.shape_cast %154 : vector<1x32x64xbf16> to vector<32x64xbf16>
      %156 = arith.truncf %153 : vector<14x32xf32> to vector<14x32xbf16>
      %cst_86 = arith.constant dense<0.000000e+00> : vector<14x64xf32>
      %157 = tpu.matmul %156, %155, %cst_86 {dimension_numbers = #tpu.dot_dimension_numbers<[1], [0], [0], [1], [0, 0, 1, 1], [], []>} : vector<14x32xbf16>, vector<32x64xbf16>, vector<14x64xf32> -> vector<14x64xf32>
      %158 = arith.addf %152, %157 : vector<14x64xf32>
      %159 = vector.extract_strided_slice %146 {offsets = [2, 0], sizes = [14, 32], strides = [1, 1]} : vector<16x32xf32> to vector<14x32xf32>
      %c8_87 = arith.constant 8 : index
      %c0_88 = arith.constant 0 : index
      %c0_89 = arith.constant 0 : index
      %160 = vector.load %arg2[%c8_87, %c0_88, %c0_89] : memref<9x32x64xbf16, #tpu.memory_space<vmem>>, vector<1x32x64xbf16>
      %161 = vector.shape_cast %160 : vector<1x32x64xbf16> to vector<32x64xbf16>
      %162 = arith.truncf %159 : vector<14x32xf32> to vector<14x32xbf16>
      %cst_90 = arith.constant dense<0.000000e+00> : vector<14x64xf32>
      %163 = tpu.matmul %162, %161, %cst_90 {dimension_numbers = #tpu.dot_dimension_numbers<[1], [0], [0], [1], [0, 0, 1, 1], [], []>} : vector<14x32xbf16>, vector<32x64xbf16>, vector<14x64xf32> -> vector<14x64xf32>
      %164 = arith.addf %158, %163 : vector<14x64xf32>
      %165 = vector.broadcast %23 : vector<1x64xf32> to vector<14x64xf32>
      %166 = arith.mulf %164, %165 : vector<14x64xf32>
      %167 = vector.broadcast %24 : vector<1x64xf32> to vector<14x64xf32>
      %168 = arith.addf %166, %167 : vector<14x64xf32>
      %cst_91 = arith.constant 0.000000e+00 : f32
      %169 = vector.broadcast %cst_91 : f32 to vector<14x64xf32>
      %170 = arith.maximumf %168, %169 : vector<14x64xf32>
      %171 = arith.maximumf %103, %170 : vector<14x64xf32>
      %cst_92 = arith.constant dense<0.000000e+00> : vector<9x64xf32>
      %172 = tpu.matmul %15, %171, %cst_92 {dimension_numbers = #tpu.dot_dimension_numbers<[1], [0], [0], [1], [0, 0, 1, 1], [], []>} : vector<9x14xf32>, vector<14x64xf32>, vector<9x64xf32> -> vector<9x64xf32>
      %cst_93 = arith.constant dense<0.000000e+00> : vector<9x64xf32>
      %173 = tpu.matmul %22, %171, %cst_93 {dimension_numbers = #tpu.dot_dimension_numbers<[1], [0], [0], [1], [0, 0, 1, 1], [], []>} : vector<9x14xf32>, vector<14x64xf32>, vector<9x64xf32> -> vector<9x64xf32>
      %174 = arith.maximumf %172, %173 : vector<9x64xf32>
      %c1_i32_94 = arith.constant 1 : i32
      %175 = arith.addi %arg6, %c1_i32_94 : i32
      %c0_95 = arith.constant 0 : index
      %176 = arith.index_cast %175 : i32 to index
      %c0_96 = arith.constant 0 : index
      %c0_97 = arith.constant 0 : index
      %177 = vector.load %arg5[%c0_95, %176, %c0_96, %c0_97] : memref<1x9x9x64xf32, #tpu.memory_space<vmem>>, vector<1x1x9x64xf32>
      %178 = vector.shape_cast %177 : vector<1x1x9x64xf32> to vector<9x64xf32>
      %179 = vector.shape_cast %174 : vector<9x64xf32> to vector<1x1x9x64xf32>
      tpu.vector_store %arg5[%c0_95, %176, %c0_96, %c0_97], %179 {strides = array<i32>} : memref<1x9x9x64xf32, #tpu.memory_space<vmem>>, vector<1x1x9x64xf32>,
    }
    %c7_i32_18 = arith.constant 7 : i32
    return
  }
  func.func @transform_0(%arg0: i32) -> (i32, i32, i32, i32) {
    %c0_i32 = arith.constant 0 : i32
    %c0_i32_0 = arith.constant 0 : i32
    %c0_i32_1 = arith.constant 0 : i32
    %c0_i32_2 = arith.constant 0 : i32
    return %arg0, %c0_i32, %c0_i32_0, %c0_i32_1 : i32, i32, i32, i32
  }
  func.func @transform_1(%arg0: i32) -> (i32, i32, i32) {
    %c0_i32 = arith.constant 0 : i32
    %c0_i32_0 = arith.constant 0 : i32
    %c0_i32_1 = arith.constant 0 : i32
    %c0_i32_2 = arith.constant 0 : i32
    return %c0_i32, %c0_i32_0, %c0_i32_1 : i32, i32, i32
  }
  func.func @transform_2(%arg0: i32) -> (i32, i32) {
    %c0_i32 = arith.constant 0 : i32
    %c0_i32_0 = arith.constant 0 : i32
    %c0_i32_1 = arith.constant 0 : i32
    return %c0_i32, %c0_i32_0 : i32, i32
  }
  func.func @transform_3(%arg0: i32) -> (i32, i32) {
    %c0_i32 = arith.constant 0 : i32
    %c0_i32_0 = arith.constant 0 : i32
    %c0_i32_1 = arith.constant 0 : i32
    return %c0_i32, %c0_i32_0 : i32, i32
  }
  func.func @transform_4(%arg0: i32) -> (i32, i32, i32, i32) {
    %c0_i32 = arith.constant 0 : i32
    %c0_i32_0 = arith.constant 0 : i32
    %c0_i32_1 = arith.constant 0 : i32
    %c0_i32_2 = arith.constant 0 : i32
    return %arg0, %c0_i32, %c0_i32_0, %c0_i32_1 : i32, i32, i32, i32
  }
}

module attributes {stable_mosaic.version = 11 : i64} {
  func.func @_conv_yz_pool_add_kernel(%arg0: i32, %arg1: memref<1x9x9x64xf32, #tpu.memory_space<vmem>>, %arg2: memref<9x64x64xbf16, #tpu.memory_space<vmem>>, %arg3: memref<1x64xf32, #tpu.memory_space<vmem>>, %arg4: memref<1x64xf32, #tpu.memory_space<vmem>>, %arg5: memref<1x64xf32, #tpu.memory_space<vmem>>, %arg6: memref<1x8x8x64xf32, #tpu.memory_space<vmem>>, %arg7: memref<7x7x64xf32, #tpu.memory_space<vmem>>, %arg8: memref<7x7x64xf32, #tpu.memory_space<vmem>>) attributes {dimension_semantics = [#tpu.dimension_semantics<parallel>], iteration_bounds = array<i64: 2>, scalar_prefetch = 0 : i64, scratch_operands = 2 : i64, tpu.core_type = #tpu.core_type<tc>, window_params = [{transform_indices = @transform_0, window_bounds = array<i64: 1, 9, 9, 64>}, {pipeline_mode = #tpu.pipeline_mode<synchronous>, transform_indices = @transform_1, window_bounds = array<i64: 9, 64, 64>}, {pipeline_mode = #tpu.pipeline_mode<synchronous>, transform_indices = @transform_2, window_bounds = array<i64: 1, 64>}, {pipeline_mode = #tpu.pipeline_mode<synchronous>, transform_indices = @transform_3, window_bounds = array<i64: 1, 64>}, {pipeline_mode = #tpu.pipeline_mode<synchronous>, transform_indices = @transform_4, window_bounds = array<i64: 1, 64>}, {transform_indices = @transform_5, window_bounds = array<i64: 1, 8, 8, 64>}]} {
    %0 = tpu.iota {dimensions = array<i32: 0>} : vector<8x7xi32>
    %1 = tpu.iota {dimensions = array<i32: 1>} : vector<8x7xi32>
    %c1_i32 = arith.constant 1 : i32
    %2 = vector.broadcast %c1_i32 : i32 to vector<8x7xi32>
    %3 = arith.subi %0, %2 : vector<8x7xi32>
    %c1_i32_0 = arith.constant 1 : i32
    %4 = vector.broadcast %c1_i32_0 : i32 to vector<8x7xi32>
    %5 = arith.muli %4, %3 : vector<8x7xi32>
    %c1_i32_1 = arith.constant 1 : i32
    %6 = vector.broadcast %c1_i32_1 : i32 to vector<8x7xi32>
    %7 = arith.cmpi sge, %0, %6 : vector<8x7xi32>
    %c6_i32 = arith.constant 6 : i32
    %8 = vector.broadcast %c6_i32 : i32 to vector<8x7xi32>
    %9 = arith.cmpi sle, %0, %8 : vector<8x7xi32>
    %10 = arith.andi %7, %9 : vector<8x7xi1>
    %11 = arith.cmpi eq, %1, %5 : vector<8x7xi32>
    %12 = arith.andi %11, %10 : vector<8x7xi1>
    %cst = arith.constant 1.000000e+00 : f32
    %cst_2 = arith.constant 0.000000e+00 : f32
    %13 = vector.broadcast %cst : f32 to vector<8x7xf32>
    %14 = vector.broadcast %cst_2 : f32 to vector<8x7xf32>
    %15 = arith.select %12, %13, %14 : vector<8x7xi1>, vector<8x7xf32>
    %c1_i32_3 = arith.constant 1 : i32
    %16 = vector.broadcast %c1_i32_3 : i32 to vector<8x7xi32>
    %17 = arith.addi %5, %16 : vector<8x7xi32>
    %18 = arith.cmpi eq, %1, %17 : vector<8x7xi32>
    %19 = arith.andi %18, %10 : vector<8x7xi1>
    %cst_4 = arith.constant 1.000000e+00 : f32
    %cst_5 = arith.constant 0.000000e+00 : f32
    %20 = vector.broadcast %cst_4 : f32 to vector<8x7xf32>
    %21 = vector.broadcast %cst_5 : f32 to vector<8x7xf32>
    %22 = arith.select %19, %20, %21 : vector<8x7xi1>, vector<8x7xf32>
    %c0 = arith.constant 0 : index
    %c0_6 = arith.constant 0 : index
    %23 = vector.load %arg3[%c0, %c0_6] : memref<1x64xf32, #tpu.memory_space<vmem>>, vector<1x64xf32>
    %c0_7 = arith.constant 0 : index
    %c0_8 = arith.constant 0 : index
    %24 = vector.load %arg4[%c0_7, %c0_8] : memref<1x64xf32, #tpu.memory_space<vmem>>, vector<1x64xf32>
    %c0_9 = arith.constant 0 : index
    %c0_10 = arith.constant 0 : index
    %25 = vector.load %arg5[%c0_9, %c0_10] : memref<1x64xf32, #tpu.memory_space<vmem>>, vector<1x64xf32>
    %cst_11 = arith.constant 0.000000e+00 : f32
    %26 = vector.broadcast %cst_11 : f32 to vector<8x64xf32>
    %c0_12 = arith.constant 0 : index
    %c0_13 = arith.constant 0 : index
    %c0_14 = arith.constant 0 : index
    %c0_15 = arith.constant 0 : index
    %27 = vector.load %arg6[%c0_12, %c0_13, %c0_14, %c0_15] : memref<1x8x8x64xf32, #tpu.memory_space<vmem>>, vector<1x1x8x64xf32>
    %28 = vector.shape_cast %27 : vector<1x1x8x64xf32> to vector<8x64xf32>
    %29 = vector.shape_cast %26 : vector<8x64xf32> to vector<1x1x8x64xf32>
    tpu.vector_store %arg6[%c0_12, %c0_13, %c0_14, %c0_15], %29 {strides = array<i32>} : memref<1x8x8x64xf32, #tpu.memory_space<vmem>>, vector<1x1x8x64xf32>,
    %c0_16 = arith.constant 0 : index
    %c7 = arith.constant 7 : index
    %c0_17 = arith.constant 0 : index
    %c0_18 = arith.constant 0 : index
    %30 = vector.load %arg6[%c0_16, %c7, %c0_17, %c0_18] : memref<1x8x8x64xf32, #tpu.memory_space<vmem>>, vector<1x1x8x64xf32>
    %31 = vector.shape_cast %30 : vector<1x1x8x64xf32> to vector<8x64xf32>
    %32 = vector.shape_cast %26 : vector<8x64xf32> to vector<1x1x8x64xf32>
    tpu.vector_store %arg6[%c0_16, %c7, %c0_17, %c0_18], %32 {strides = array<i32>} : memref<1x8x8x64xf32, #tpu.memory_space<vmem>>, vector<1x1x8x64xf32>,
    %c0_i32 = arith.constant 0 : i32
    %c7_i32 = arith.constant 7 : i32
    %33 = arith.addi %c0_i32, %c7_i32 : i32
    %c1_i32_19 = arith.constant 1 : i32
    scf.for %arg9 = %c0_i32 to %33 step %c1_i32_19  : i32 {
      %c0_25 = arith.constant 0 : index
      %35 = arith.index_cast %arg9 : i32 to index
      %c0_26 = arith.constant 0 : index
      %c0_27 = arith.constant 0 : index
      %36 = vector.load %arg1[%c0_25, %35, %c0_26, %c0_27] : memref<1x9x9x64xf32, #tpu.memory_space<vmem>>, vector<1x3x9x64xf32>
      %37 = vector.shape_cast %36 : vector<1x3x9x64xf32> to vector<3x9x64xf32>
      %cst_28 = arith.constant 0.000000e+00 : f32
      %38 = vector.broadcast %cst_28 : f32 to vector<7x64xf32>
      %39 = vector.extract_strided_slice %37 {offsets = [0, 0, 0], sizes = [1, 9, 64], strides = [1, 1, 1]} : vector<3x9x64xf32> to vector<1x9x64xf32>
      %40 = vector.shape_cast %39 : vector<1x9x64xf32> to vector<9x64xf32>
      %41 = vector.extract_strided_slice %40 {offsets = [0, 0], sizes = [7, 64], strides = [1, 1]} : vector<9x64xf32> to vector<7x64xf32>
      %c0_29 = arith.constant 0 : index
      %c0_30 = arith.constant 0 : index
      %c0_31 = arith.constant 0 : index
      %42 = vector.load %arg2[%c0_29, %c0_30, %c0_31] : memref<9x64x64xbf16, #tpu.memory_space<vmem>>, vector<1x64x64xbf16>
      %43 = vector.shape_cast %42 : vector<1x64x64xbf16> to vector<64x64xbf16>
      %44 = arith.truncf %41 : vector<7x64xf32> to vector<7x64xbf16>
      %cst_32 = arith.constant dense<0.000000e+00> : vector<7x64xf32>
      %45 = tpu.matmul %44, %43, %cst_32 {dimension_numbers = #tpu.dot_dimension_numbers<[1], [0], [0], [1], [0, 0, 1, 1], [], []>} : vector<7x64xbf16>, vector<64x64xbf16>, vector<7x64xf32> -> vector<7x64xf32>
      %46 = arith.addf %38, %45 : vector<7x64xf32>
      %47 = vector.extract_strided_slice %40 {offsets = [1, 0], sizes = [7, 64], strides = [1, 1]} : vector<9x64xf32> to vector<7x64xf32>
      %c1 = arith.constant 1 : index
      %c0_33 = arith.constant 0 : index
      %c0_34 = arith.constant 0 : index
      %48 = vector.load %arg2[%c1, %c0_33, %c0_34] : memref<9x64x64xbf16, #tpu.memory_space<vmem>>, vector<1x64x64xbf16>
      %49 = vector.shape_cast %48 : vector<1x64x64xbf16> to vector<64x64xbf16>
      %50 = arith.truncf %47 : vector<7x64xf32> to vector<7x64xbf16>
      %cst_35 = arith.constant dense<0.000000e+00> : vector<7x64xf32>
      %51 = tpu.matmul %50, %49, %cst_35 {dimension_numbers = #tpu.dot_dimension_numbers<[1], [0], [0], [1], [0, 0, 1, 1], [], []>} : vector<7x64xbf16>, vector<64x64xbf16>, vector<7x64xf32> -> vector<7x64xf32>
      %52 = arith.addf %46, %51 : vector<7x64xf32>
      %53 = vector.extract_strided_slice %40 {offsets = [2, 0], sizes = [7, 64], strides = [1, 1]} : vector<9x64xf32> to vector<7x64xf32>
      %c2 = arith.constant 2 : index
      %c0_36 = arith.constant 0 : index
      %c0_37 = arith.constant 0 : index
      %54 = vector.load %arg2[%c2, %c0_36, %c0_37] : memref<9x64x64xbf16, #tpu.memory_space<vmem>>, vector<1x64x64xbf16>
      %55 = vector.shape_cast %54 : vector<1x64x64xbf16> to vector<64x64xbf16>
      %56 = arith.truncf %53 : vector<7x64xf32> to vector<7x64xbf16>
      %cst_38 = arith.constant dense<0.000000e+00> : vector<7x64xf32>
      %57 = tpu.matmul %56, %55, %cst_38 {dimension_numbers = #tpu.dot_dimension_numbers<[1], [0], [0], [1], [0, 0, 1, 1], [], []>} : vector<7x64xbf16>, vector<64x64xbf16>, vector<7x64xf32> -> vector<7x64xf32>
      %58 = arith.addf %52, %57 : vector<7x64xf32>
      %59 = vector.extract_strided_slice %37 {offsets = [1, 0, 0], sizes = [1, 9, 64], strides = [1, 1, 1]} : vector<3x9x64xf32> to vector<1x9x64xf32>
      %60 = vector.shape_cast %59 : vector<1x9x64xf32> to vector<9x64xf32>
      %61 = vector.extract_strided_slice %60 {offsets = [0, 0], sizes = [7, 64], strides = [1, 1]} : vector<9x64xf32> to vector<7x64xf32>
      %c3 = arith.constant 3 : index
      %c0_39 = arith.constant 0 : index
      %c0_40 = arith.constant 0 : index
      %62 = vector.load %arg2[%c3, %c0_39, %c0_40] : memref<9x64x64xbf16, #tpu.memory_space<vmem>>, vector<1x64x64xbf16>
      %63 = vector.shape_cast %62 : vector<1x64x64xbf16> to vector<64x64xbf16>
      %64 = arith.truncf %61 : vector<7x64xf32> to vector<7x64xbf16>
      %cst_41 = arith.constant dense<0.000000e+00> : vector<7x64xf32>
      %65 = tpu.matmul %64, %63, %cst_41 {dimension_numbers = #tpu.dot_dimension_numbers<[1], [0], [0], [1], [0, 0, 1, 1], [], []>} : vector<7x64xbf16>, vector<64x64xbf16>, vector<7x64xf32> -> vector<7x64xf32>
      %66 = arith.addf %58, %65 : vector<7x64xf32>
      %67 = vector.extract_strided_slice %60 {offsets = [1, 0], sizes = [7, 64], strides = [1, 1]} : vector<9x64xf32> to vector<7x64xf32>
      %c4 = arith.constant 4 : index
      %c0_42 = arith.constant 0 : index
      %c0_43 = arith.constant 0 : index
      %68 = vector.load %arg2[%c4, %c0_42, %c0_43] : memref<9x64x64xbf16, #tpu.memory_space<vmem>>, vector<1x64x64xbf16>
      %69 = vector.shape_cast %68 : vector<1x64x64xbf16> to vector<64x64xbf16>
      %70 = arith.truncf %67 : vector<7x64xf32> to vector<7x64xbf16>
      %cst_44 = arith.constant dense<0.000000e+00> : vector<7x64xf32>
      %71 = tpu.matmul %70, %69, %cst_44 {dimension_numbers = #tpu.dot_dimension_numbers<[1], [0], [0], [1], [0, 0, 1, 1], [], []>} : vector<7x64xbf16>, vector<64x64xbf16>, vector<7x64xf32> -> vector<7x64xf32>
      %72 = arith.addf %66, %71 : vector<7x64xf32>
      %73 = vector.extract_strided_slice %60 {offsets = [2, 0], sizes = [7, 64], strides = [1, 1]} : vector<9x64xf32> to vector<7x64xf32>
      %c5 = arith.constant 5 : index
      %c0_45 = arith.constant 0 : index
      %c0_46 = arith.constant 0 : index
      %74 = vector.load %arg2[%c5, %c0_45, %c0_46] : memref<9x64x64xbf16, #tpu.memory_space<vmem>>, vector<1x64x64xbf16>
      %75 = vector.shape_cast %74 : vector<1x64x64xbf16> to vector<64x64xbf16>
      %76 = arith.truncf %73 : vector<7x64xf32> to vector<7x64xbf16>
      %cst_47 = arith.constant dense<0.000000e+00> : vector<7x64xf32>
      %77 = tpu.matmul %76, %75, %cst_47 {dimension_numbers = #tpu.dot_dimension_numbers<[1], [0], [0], [1], [0, 0, 1, 1], [], []>} : vector<7x64xbf16>, vector<64x64xbf16>, vector<7x64xf32> -> vector<7x64xf32>
      %78 = arith.addf %72, %77 : vector<7x64xf32>
      %79 = vector.extract_strided_slice %37 {offsets = [2, 0, 0], sizes = [1, 9, 64], strides = [1, 1, 1]} : vector<3x9x64xf32> to vector<1x9x64xf32>
      %80 = vector.shape_cast %79 : vector<1x9x64xf32> to vector<9x64xf32>
      %81 = vector.extract_strided_slice %80 {offsets = [0, 0], sizes = [7, 64], strides = [1, 1]} : vector<9x64xf32> to vector<7x64xf32>
      %c6 = arith.constant 6 : index
      %c0_48 = arith.constant 0 : index
      %c0_49 = arith.constant 0 : index
      %82 = vector.load %arg2[%c6, %c0_48, %c0_49] : memref<9x64x64xbf16, #tpu.memory_space<vmem>>, vector<1x64x64xbf16>
      %83 = vector.shape_cast %82 : vector<1x64x64xbf16> to vector<64x64xbf16>
      %84 = arith.truncf %81 : vector<7x64xf32> to vector<7x64xbf16>
      %cst_50 = arith.constant dense<0.000000e+00> : vector<7x64xf32>
      %85 = tpu.matmul %84, %83, %cst_50 {dimension_numbers = #tpu.dot_dimension_numbers<[1], [0], [0], [1], [0, 0, 1, 1], [], []>} : vector<7x64xbf16>, vector<64x64xbf16>, vector<7x64xf32> -> vector<7x64xf32>
      %86 = arith.addf %78, %85 : vector<7x64xf32>
      %87 = vector.extract_strided_slice %80 {offsets = [1, 0], sizes = [7, 64], strides = [1, 1]} : vector<9x64xf32> to vector<7x64xf32>
      %c7_51 = arith.constant 7 : index
      %c0_52 = arith.constant 0 : index
      %c0_53 = arith.constant 0 : index
      %88 = vector.load %arg2[%c7_51, %c0_52, %c0_53] : memref<9x64x64xbf16, #tpu.memory_space<vmem>>, vector<1x64x64xbf16>
      %89 = vector.shape_cast %88 : vector<1x64x64xbf16> to vector<64x64xbf16>
      %90 = arith.truncf %87 : vector<7x64xf32> to vector<7x64xbf16>
      %cst_54 = arith.constant dense<0.000000e+00> : vector<7x64xf32>
      %91 = tpu.matmul %90, %89, %cst_54 {dimension_numbers = #tpu.dot_dimension_numbers<[1], [0], [0], [1], [0, 0, 1, 1], [], []>} : vector<7x64xbf16>, vector<64x64xbf16>, vector<7x64xf32> -> vector<7x64xf32>
      %92 = arith.addf %86, %91 : vector<7x64xf32>
      %93 = vector.extract_strided_slice %80 {offsets = [2, 0], sizes = [7, 64], strides = [1, 1]} : vector<9x64xf32> to vector<7x64xf32>
      %c8 = arith.constant 8 : index
      %c0_55 = arith.constant 0 : index
      %c0_56 = arith.constant 0 : index
      %94 = vector.load %arg2[%c8, %c0_55, %c0_56] : memref<9x64x64xbf16, #tpu.memory_space<vmem>>, vector<1x64x64xbf16>
      %95 = vector.shape_cast %94 : vector<1x64x64xbf16> to vector<64x64xbf16>
      %96 = arith.truncf %93 : vector<7x64xf32> to vector<7x64xbf16>
      %cst_57 = arith.constant dense<0.000000e+00> : vector<7x64xf32>
      %97 = tpu.matmul %96, %95, %cst_57 {dimension_numbers = #tpu.dot_dimension_numbers<[1], [0], [0], [1], [0, 0, 1, 1], [], []>} : vector<7x64xbf16>, vector<64x64xbf16>, vector<7x64xf32> -> vector<7x64xf32>
      %98 = arith.addf %92, %97 : vector<7x64xf32>
      %99 = vector.broadcast %23 : vector<1x64xf32> to vector<7x64xf32>
      %100 = arith.addf %98, %99 : vector<7x64xf32>
      %cst_58 = arith.constant 0.000000e+00 : f32
      %101 = vector.broadcast %cst_58 : f32 to vector<7x64xf32>
      %102 = arith.maximumf %100, %101 : vector<7x64xf32>
      %103 = arith.index_cast %arg9 : i32 to index
      %c0_59 = arith.constant 0 : index
      %c0_60 = arith.constant 0 : index
      %104 = vector.load %arg7[%103, %c0_59, %c0_60] : memref<7x7x64xf32, #tpu.memory_space<vmem>>, vector<1x7x64xf32>
      %105 = vector.shape_cast %104 : vector<1x7x64xf32> to vector<7x64xf32>
      %106 = vector.shape_cast %102 : vector<7x64xf32> to vector<1x7x64xf32>
      tpu.vector_store %arg7[%103, %c0_59, %c0_60], %106 {strides = array<i32>} : memref<7x7x64xf32, #tpu.memory_space<vmem>>, vector<1x7x64xf32>,
      %107 = vector.broadcast %24 : vector<1x64xf32> to vector<7x64xf32>
      %108 = arith.mulf %98, %107 : vector<7x64xf32>
      %109 = vector.broadcast %25 : vector<1x64xf32> to vector<7x64xf32>
      %110 = arith.addf %108, %109 : vector<7x64xf32>
      %cst_61 = arith.constant 0.000000e+00 : f32
      %111 = vector.broadcast %cst_61 : f32 to vector<7x64xf32>
      %112 = arith.maximumf %110, %111 : vector<7x64xf32>
      %113 = arith.index_cast %arg9 : i32 to index
      %c0_62 = arith.constant 0 : index
      %c0_63 = arith.constant 0 : index
      %114 = vector.load %arg8[%113, %c0_62, %c0_63] : memref<7x7x64xf32, #tpu.memory_space<vmem>>, vector<1x7x64xf32>
      %115 = vector.shape_cast %114 : vector<1x7x64xf32> to vector<7x64xf32>
      %116 = vector.shape_cast %112 : vector<7x64xf32> to vector<1x7x64xf32>
      tpu.vector_store %arg8[%113, %c0_62, %c0_63], %116 {strides = array<i32>} : memref<7x7x64xf32, #tpu.memory_space<vmem>>, vector<1x7x64xf32>,
    }
    %c7_i32_20 = arith.constant 7 : i32
    %c0_i32_21 = arith.constant 0 : i32
    %c6_i32_22 = arith.constant 6 : i32
    %34 = arith.addi %c0_i32_21, %c6_i32_22 : i32
    %c1_i32_23 = arith.constant 1 : i32
    scf.for %arg9 = %c0_i32_21 to %34 step %c1_i32_23  : i32 {
      %35 = arith.index_cast %arg9 : i32 to index
      %c0_25 = arith.constant 0 : index
      %c0_26 = arith.constant 0 : index
      %36 = vector.load %arg7[%35, %c0_25, %c0_26] : memref<7x7x64xf32, #tpu.memory_space<vmem>>, vector<1x7x64xf32>
      %37 = vector.shape_cast %36 : vector<1x7x64xf32> to vector<7x64xf32>
      %c1_i32_27 = arith.constant 1 : i32
      %38 = arith.addi %arg9, %c1_i32_27 : i32
      %39 = arith.index_cast %38 : i32 to index
      %c0_28 = arith.constant 0 : index
      %c0_29 = arith.constant 0 : index
      %40 = vector.load %arg7[%39, %c0_28, %c0_29] : memref<7x7x64xf32, #tpu.memory_space<vmem>>, vector<1x7x64xf32>
      %41 = vector.shape_cast %40 : vector<1x7x64xf32> to vector<7x64xf32>
      %42 = arith.maximumf %37, %41 : vector<7x64xf32>
      %43 = arith.index_cast %arg9 : i32 to index
      %c0_30 = arith.constant 0 : index
      %c0_31 = arith.constant 0 : index
      %44 = vector.load %arg8[%43, %c0_30, %c0_31] : memref<7x7x64xf32, #tpu.memory_space<vmem>>, vector<1x7x64xf32>
      %45 = vector.shape_cast %44 : vector<1x7x64xf32> to vector<7x64xf32>
      %c1_i32_32 = arith.constant 1 : i32
      %46 = arith.addi %arg9, %c1_i32_32 : i32
      %47 = arith.index_cast %46 : i32 to index
      %c0_33 = arith.constant 0 : index
      %c0_34 = arith.constant 0 : index
      %48 = vector.load %arg8[%47, %c0_33, %c0_34] : memref<7x7x64xf32, #tpu.memory_space<vmem>>, vector<1x7x64xf32>
      %49 = vector.shape_cast %48 : vector<1x7x64xf32> to vector<7x64xf32>
      %50 = arith.maximumf %45, %49 : vector<7x64xf32>
      %cst_35 = arith.constant dense<0.000000e+00> : vector<8x64xf32>
      %51 = tpu.matmul %15, %42, %cst_35 {dimension_numbers = #tpu.dot_dimension_numbers<[1], [0], [0], [1], [0, 0, 1, 1], [], []>} : vector<8x7xf32>, vector<7x64xf32>, vector<8x64xf32> -> vector<8x64xf32>
      %cst_36 = arith.constant dense<0.000000e+00> : vector<8x64xf32>
      %52 = tpu.matmul %22, %42, %cst_36 {dimension_numbers = #tpu.dot_dimension_numbers<[1], [0], [0], [1], [0, 0, 1, 1], [], []>} : vector<8x7xf32>, vector<7x64xf32>, vector<8x64xf32> -> vector<8x64xf32>
      %53 = arith.maximumf %51, %52 : vector<8x64xf32>
      %cst_37 = arith.constant dense<0.000000e+00> : vector<8x64xf32>
      %54 = tpu.matmul %15, %50, %cst_37 {dimension_numbers = #tpu.dot_dimension_numbers<[1], [0], [0], [1], [0, 0, 1, 1], [], []>} : vector<8x7xf32>, vector<7x64xf32>, vector<8x64xf32> -> vector<8x64xf32>
      %cst_38 = arith.constant dense<0.000000e+00> : vector<8x64xf32>
      %55 = tpu.matmul %22, %50, %cst_38 {dimension_numbers = #tpu.dot_dimension_numbers<[1], [0], [0], [1], [0, 0, 1, 1], [], []>} : vector<8x7xf32>, vector<7x64xf32>, vector<8x64xf32> -> vector<8x64xf32>
      %56 = arith.maximumf %54, %55 : vector<8x64xf32>
      %57 = arith.addf %53, %56 : vector<8x64xf32>
      %c1_i32_39 = arith.constant 1 : i32
      %58 = arith.addi %arg9, %c1_i32_39 : i32
      %c0_40 = arith.constant 0 : index
      %59 = arith.index_cast %58 : i32 to index
      %c0_41 = arith.constant 0 : index
      %c0_42 = arith.constant 0 : index
      %60 = vector.load %arg6[%c0_40, %59, %c0_41, %c0_42] : memref<1x8x8x64xf32, #tpu.memory_space<vmem>>, vector<1x1x8x64xf32>
      %61 = vector.shape_cast %60 : vector<1x1x8x64xf32> to vector<8x64xf32>
      %62 = vector.shape_cast %57 : vector<8x64xf32> to vector<1x1x8x64xf32>
      tpu.vector_store %arg6[%c0_40, %59, %c0_41, %c0_42], %62 {strides = array<i32>} : memref<1x8x8x64xf32, #tpu.memory_space<vmem>>, vector<1x1x8x64xf32>,
    }
    %c6_i32_24 = arith.constant 6 : i32
    return
  }
  func.func @transform_0(%arg0: i32) -> (i32, i32, i32, i32) {
    %c0_i32 = arith.constant 0 : i32
    %c0_i32_0 = arith.constant 0 : i32
    %c0_i32_1 = arith.constant 0 : i32
    %c0_i32_2 = arith.constant 0 : i32
    return %arg0, %c0_i32, %c0_i32_0, %c0_i32_1 : i32, i32, i32, i32
  }
  func.func @transform_1(%arg0: i32) -> (i32, i32, i32) {
    %c0_i32 = arith.constant 0 : i32
    %c0_i32_0 = arith.constant 0 : i32
    %c0_i32_1 = arith.constant 0 : i32
    %c0_i32_2 = arith.constant 0 : i32
    return %c0_i32, %c0_i32_0, %c0_i32_1 : i32, i32, i32
  }
  func.func @transform_2(%arg0: i32) -> (i32, i32) {
    %c0_i32 = arith.constant 0 : i32
    %c0_i32_0 = arith.constant 0 : i32
    %c0_i32_1 = arith.constant 0 : i32
    return %c0_i32, %c0_i32_0 : i32, i32
  }
  func.func @transform_3(%arg0: i32) -> (i32, i32) {
    %c0_i32 = arith.constant 0 : i32
    %c0_i32_0 = arith.constant 0 : i32
    %c0_i32_1 = arith.constant 0 : i32
    return %c0_i32, %c0_i32_0 : i32, i32
  }
  func.func @transform_4(%arg0: i32) -> (i32, i32) {
    %c0_i32 = arith.constant 0 : i32
    %c0_i32_0 = arith.constant 0 : i32
    %c0_i32_1 = arith.constant 0 : i32
    return %c0_i32, %c0_i32_0 : i32, i32
  }
  func.func @transform_5(%arg0: i32) -> (i32, i32, i32, i32) {
    %c0_i32 = arith.constant 0 : i32
    %c0_i32_0 = arith.constant 0 : i32
    %c0_i32_1 = arith.constant 0 : i32
    %c0_i32_2 = arith.constant 0 : i32
    return %arg0, %c0_i32, %c0_i32_0, %c0_i32_1 : i32, i32, i32, i32
  }
}

module attributes {stable_mosaic.version = 11 : i64} {
  func.func @_conv_pool_kernel(%arg0: i32, %arg1: memref<1x8x8x64xf32, #tpu.memory_space<vmem>>, %arg2: memref<9x64x64xbf16, #tpu.memory_space<vmem>>, %arg3: memref<1x64xf32, #tpu.memory_space<vmem>>, %arg4: memref<1x64xf32, #tpu.memory_space<vmem>>, %arg5: memref<1x3x3x64xf32, #tpu.memory_space<vmem>>) attributes {dimension_semantics = [#tpu.dimension_semantics<parallel>], iteration_bounds = array<i64: 2>, scalar_prefetch = 0 : i64, scratch_operands = 0 : i64, tpu.core_type = #tpu.core_type<tc>, window_params = [{transform_indices = @transform_0, window_bounds = array<i64: 1, 8, 8, 64>}, {pipeline_mode = #tpu.pipeline_mode<synchronous>, transform_indices = @transform_1, window_bounds = array<i64: 9, 64, 64>}, {pipeline_mode = #tpu.pipeline_mode<synchronous>, transform_indices = @transform_2, window_bounds = array<i64: 1, 64>}, {pipeline_mode = #tpu.pipeline_mode<synchronous>, transform_indices = @transform_3, window_bounds = array<i64: 1, 64>}, {transform_indices = @transform_4, window_bounds = array<i64: 1, 3, 3, 64>}]} {
    %0 = tpu.iota {dimensions = array<i32: 0>} : vector<3x6xi32>
    %1 = tpu.iota {dimensions = array<i32: 1>} : vector<3x6xi32>
    %c2_i32 = arith.constant 2 : i32
    %2 = vector.broadcast %c2_i32 : i32 to vector<3x6xi32>
    %3 = arith.muli %2, %0 : vector<3x6xi32>
    %4 = arith.cmpi eq, %1, %3 : vector<3x6xi32>
    %cst = arith.constant 1.000000e+00 : f32
    %cst_0 = arith.constant 0.000000e+00 : f32
    %5 = vector.broadcast %cst : f32 to vector<3x6xf32>
    %6 = vector.broadcast %cst_0 : f32 to vector<3x6xf32>
    %7 = arith.select %4, %5, %6 : vector<3x6xi1>, vector<3x6xf32>
    %c1_i32 = arith.constant 1 : i32
    %8 = vector.broadcast %c1_i32 : i32 to vector<3x6xi32>
    %9 = arith.addi %3, %8 : vector<3x6xi32>
    %10 = arith.cmpi eq, %1, %9 : vector<3x6xi32>
    %cst_1 = arith.constant 1.000000e+00 : f32
    %cst_2 = arith.constant 0.000000e+00 : f32
    %11 = vector.broadcast %cst_1 : f32 to vector<3x6xf32>
    %12 = vector.broadcast %cst_2 : f32 to vector<3x6xf32>
    %13 = arith.select %10, %11, %12 : vector<3x6xi1>, vector<3x6xf32>
    %c0 = arith.constant 0 : index
    %c0_3 = arith.constant 0 : index
    %14 = vector.load %arg3[%c0, %c0_3] : memref<1x64xf32, #tpu.memory_space<vmem>>, vector<1x64xf32>
    %c0_4 = arith.constant 0 : index
    %c0_5 = arith.constant 0 : index
    %15 = vector.load %arg4[%c0_4, %c0_5] : memref<1x64xf32, #tpu.memory_space<vmem>>, vector<1x64xf32>
    %c0_i32 = arith.constant 0 : i32
    %c3_i32 = arith.constant 3 : i32
    %16 = arith.addi %c0_i32, %c3_i32 : i32
    %c1_i32_6 = arith.constant 1 : i32
    scf.for %arg6 = %c0_i32 to %16 step %c1_i32_6  : i32 {
      %c2_i32_8 = arith.constant 2 : i32
      %17 = arith.muli %c2_i32_8, %arg6 : i32
      %c0_9 = arith.constant 0 : index
      %18 = arith.index_cast %17 : i32 to index
      %c0_10 = arith.constant 0 : index
      %c0_11 = arith.constant 0 : index
      %19 = vector.load %arg1[%c0_9, %18, %c0_10, %c0_11] : memref<1x8x8x64xf32, #tpu.memory_space<vmem>>, vector<1x4x8x64xf32>
      %20 = vector.shape_cast %19 : vector<1x4x8x64xf32> to vector<4x8x64xf32>
      %cst_12 = arith.constant 0.000000e+00 : f32
      %21 = vector.broadcast %cst_12 : f32 to vector<6x64xf32>
      %22 = vector.extract_strided_slice %20 {offsets = [0, 0, 0], sizes = [1, 8, 64], strides = [1, 1, 1]} : vector<4x8x64xf32> to vector<1x8x64xf32>
      %23 = vector.shape_cast %22 : vector<1x8x64xf32> to vector<8x64xf32>
      %24 = vector.extract_strided_slice %23 {offsets = [0, 0], sizes = [6, 64], strides = [1, 1]} : vector<8x64xf32> to vector<6x64xf32>
      %c0_13 = arith.constant 0 : index
      %c0_14 = arith.constant 0 : index
      %c0_15 = arith.constant 0 : index
      %25 = vector.load %arg2[%c0_13, %c0_14, %c0_15] : memref<9x64x64xbf16, #tpu.memory_space<vmem>>, vector<1x64x64xbf16>
      %26 = vector.shape_cast %25 : vector<1x64x64xbf16> to vector<64x64xbf16>
      %27 = arith.truncf %24 : vector<6x64xf32> to vector<6x64xbf16>
      %cst_16 = arith.constant dense<0.000000e+00> : vector<6x64xf32>
      %28 = tpu.matmul %27, %26, %cst_16 {dimension_numbers = #tpu.dot_dimension_numbers<[1], [0], [0], [1], [0, 0, 1, 1], [], []>} : vector<6x64xbf16>, vector<64x64xbf16>, vector<6x64xf32> -> vector<6x64xf32>
      %29 = arith.addf %21, %28 : vector<6x64xf32>
      %30 = vector.extract_strided_slice %23 {offsets = [1, 0], sizes = [6, 64], strides = [1, 1]} : vector<8x64xf32> to vector<6x64xf32>
      %c1 = arith.constant 1 : index
      %c0_17 = arith.constant 0 : index
      %c0_18 = arith.constant 0 : index
      %31 = vector.load %arg2[%c1, %c0_17, %c0_18] : memref<9x64x64xbf16, #tpu.memory_space<vmem>>, vector<1x64x64xbf16>
      %32 = vector.shape_cast %31 : vector<1x64x64xbf16> to vector<64x64xbf16>
      %33 = arith.truncf %30 : vector<6x64xf32> to vector<6x64xbf16>
      %cst_19 = arith.constant dense<0.000000e+00> : vector<6x64xf32>
      %34 = tpu.matmul %33, %32, %cst_19 {dimension_numbers = #tpu.dot_dimension_numbers<[1], [0], [0], [1], [0, 0, 1, 1], [], []>} : vector<6x64xbf16>, vector<64x64xbf16>, vector<6x64xf32> -> vector<6x64xf32>
      %35 = arith.addf %29, %34 : vector<6x64xf32>
      %36 = vector.extract_strided_slice %23 {offsets = [2, 0], sizes = [6, 64], strides = [1, 1]} : vector<8x64xf32> to vector<6x64xf32>
      %c2 = arith.constant 2 : index
      %c0_20 = arith.constant 0 : index
      %c0_21 = arith.constant 0 : index
      %37 = vector.load %arg2[%c2, %c0_20, %c0_21] : memref<9x64x64xbf16, #tpu.memory_space<vmem>>, vector<1x64x64xbf16>
      %38 = vector.shape_cast %37 : vector<1x64x64xbf16> to vector<64x64xbf16>
      %39 = arith.truncf %36 : vector<6x64xf32> to vector<6x64xbf16>
      %cst_22 = arith.constant dense<0.000000e+00> : vector<6x64xf32>
      %40 = tpu.matmul %39, %38, %cst_22 {dimension_numbers = #tpu.dot_dimension_numbers<[1], [0], [0], [1], [0, 0, 1, 1], [], []>} : vector<6x64xbf16>, vector<64x64xbf16>, vector<6x64xf32> -> vector<6x64xf32>
      %41 = arith.addf %35, %40 : vector<6x64xf32>
      %42 = vector.extract_strided_slice %20 {offsets = [1, 0, 0], sizes = [1, 8, 64], strides = [1, 1, 1]} : vector<4x8x64xf32> to vector<1x8x64xf32>
      %43 = vector.shape_cast %42 : vector<1x8x64xf32> to vector<8x64xf32>
      %44 = vector.extract_strided_slice %43 {offsets = [0, 0], sizes = [6, 64], strides = [1, 1]} : vector<8x64xf32> to vector<6x64xf32>
      %c3 = arith.constant 3 : index
      %c0_23 = arith.constant 0 : index
      %c0_24 = arith.constant 0 : index
      %45 = vector.load %arg2[%c3, %c0_23, %c0_24] : memref<9x64x64xbf16, #tpu.memory_space<vmem>>, vector<1x64x64xbf16>
      %46 = vector.shape_cast %45 : vector<1x64x64xbf16> to vector<64x64xbf16>
      %47 = arith.truncf %44 : vector<6x64xf32> to vector<6x64xbf16>
      %cst_25 = arith.constant dense<0.000000e+00> : vector<6x64xf32>
      %48 = tpu.matmul %47, %46, %cst_25 {dimension_numbers = #tpu.dot_dimension_numbers<[1], [0], [0], [1], [0, 0, 1, 1], [], []>} : vector<6x64xbf16>, vector<64x64xbf16>, vector<6x64xf32> -> vector<6x64xf32>
      %49 = arith.addf %41, %48 : vector<6x64xf32>
      %50 = vector.extract_strided_slice %43 {offsets = [1, 0], sizes = [6, 64], strides = [1, 1]} : vector<8x64xf32> to vector<6x64xf32>
      %c4 = arith.constant 4 : index
      %c0_26 = arith.constant 0 : index
      %c0_27 = arith.constant 0 : index
      %51 = vector.load %arg2[%c4, %c0_26, %c0_27] : memref<9x64x64xbf16, #tpu.memory_space<vmem>>, vector<1x64x64xbf16>
      %52 = vector.shape_cast %51 : vector<1x64x64xbf16> to vector<64x64xbf16>
      %53 = arith.truncf %50 : vector<6x64xf32> to vector<6x64xbf16>
      %cst_28 = arith.constant dense<0.000000e+00> : vector<6x64xf32>
      %54 = tpu.matmul %53, %52, %cst_28 {dimension_numbers = #tpu.dot_dimension_numbers<[1], [0], [0], [1], [0, 0, 1, 1], [], []>} : vector<6x64xbf16>, vector<64x64xbf16>, vector<6x64xf32> -> vector<6x64xf32>
      %55 = arith.addf %49, %54 : vector<6x64xf32>
      %56 = vector.extract_strided_slice %43 {offsets = [2, 0], sizes = [6, 64], strides = [1, 1]} : vector<8x64xf32> to vector<6x64xf32>
      %c5 = arith.constant 5 : index
      %c0_29 = arith.constant 0 : index
      %c0_30 = arith.constant 0 : index
      %57 = vector.load %arg2[%c5, %c0_29, %c0_30] : memref<9x64x64xbf16, #tpu.memory_space<vmem>>, vector<1x64x64xbf16>
      %58 = vector.shape_cast %57 : vector<1x64x64xbf16> to vector<64x64xbf16>
      %59 = arith.truncf %56 : vector<6x64xf32> to vector<6x64xbf16>
      %cst_31 = arith.constant dense<0.000000e+00> : vector<6x64xf32>
      %60 = tpu.matmul %59, %58, %cst_31 {dimension_numbers = #tpu.dot_dimension_numbers<[1], [0], [0], [1], [0, 0, 1, 1], [], []>} : vector<6x64xbf16>, vector<64x64xbf16>, vector<6x64xf32> -> vector<6x64xf32>
      %61 = arith.addf %55, %60 : vector<6x64xf32>
      %62 = vector.extract_strided_slice %20 {offsets = [2, 0, 0], sizes = [1, 8, 64], strides = [1, 1, 1]} : vector<4x8x64xf32> to vector<1x8x64xf32>
      %63 = vector.shape_cast %62 : vector<1x8x64xf32> to vector<8x64xf32>
      %64 = vector.extract_strided_slice %63 {offsets = [0, 0], sizes = [6, 64], strides = [1, 1]} : vector<8x64xf32> to vector<6x64xf32>
      %c6 = arith.constant 6 : index
      %c0_32 = arith.constant 0 : index
      %c0_33 = arith.constant 0 : index
      %65 = vector.load %arg2[%c6, %c0_32, %c0_33] : memref<9x64x64xbf16, #tpu.memory_space<vmem>>, vector<1x64x64xbf16>
      %66 = vector.shape_cast %65 : vector<1x64x64xbf16> to vector<64x64xbf16>
      %67 = arith.truncf %64 : vector<6x64xf32> to vector<6x64xbf16>
      %cst_34 = arith.constant dense<0.000000e+00> : vector<6x64xf32>
      %68 = tpu.matmul %67, %66, %cst_34 {dimension_numbers = #tpu.dot_dimension_numbers<[1], [0], [0], [1], [0, 0, 1, 1], [], []>} : vector<6x64xbf16>, vector<64x64xbf16>, vector<6x64xf32> -> vector<6x64xf32>
      %69 = arith.addf %61, %68 : vector<6x64xf32>
      %70 = vector.extract_strided_slice %63 {offsets = [1, 0], sizes = [6, 64], strides = [1, 1]} : vector<8x64xf32> to vector<6x64xf32>
      %c7 = arith.constant 7 : index
      %c0_35 = arith.constant 0 : index
      %c0_36 = arith.constant 0 : index
      %71 = vector.load %arg2[%c7, %c0_35, %c0_36] : memref<9x64x64xbf16, #tpu.memory_space<vmem>>, vector<1x64x64xbf16>
      %72 = vector.shape_cast %71 : vector<1x64x64xbf16> to vector<64x64xbf16>
      %73 = arith.truncf %70 : vector<6x64xf32> to vector<6x64xbf16>
      %cst_37 = arith.constant dense<0.000000e+00> : vector<6x64xf32>
      %74 = tpu.matmul %73, %72, %cst_37 {dimension_numbers = #tpu.dot_dimension_numbers<[1], [0], [0], [1], [0, 0, 1, 1], [], []>} : vector<6x64xbf16>, vector<64x64xbf16>, vector<6x64xf32> -> vector<6x64xf32>
      %75 = arith.addf %69, %74 : vector<6x64xf32>
      %76 = vector.extract_strided_slice %63 {offsets = [2, 0], sizes = [6, 64], strides = [1, 1]} : vector<8x64xf32> to vector<6x64xf32>
      %c8 = arith.constant 8 : index
      %c0_38 = arith.constant 0 : index
      %c0_39 = arith.constant 0 : index
      %77 = vector.load %arg2[%c8, %c0_38, %c0_39] : memref<9x64x64xbf16, #tpu.memory_space<vmem>>, vector<1x64x64xbf16>
      %78 = vector.shape_cast %77 : vector<1x64x64xbf16> to vector<64x64xbf16>
      %79 = arith.truncf %76 : vector<6x64xf32> to vector<6x64xbf16>
      %cst_40 = arith.constant dense<0.000000e+00> : vector<6x64xf32>
      %80 = tpu.matmul %79, %78, %cst_40 {dimension_numbers = #tpu.dot_dimension_numbers<[1], [0], [0], [1], [0, 0, 1, 1], [], []>} : vector<6x64xbf16>, vector<64x64xbf16>, vector<6x64xf32> -> vector<6x64xf32>
      %81 = arith.addf %75, %80 : vector<6x64xf32>
      %82 = vector.broadcast %14 : vector<1x64xf32> to vector<6x64xf32>
      %83 = arith.mulf %81, %82 : vector<6x64xf32>
      %84 = vector.broadcast %15 : vector<1x64xf32> to vector<6x64xf32>
      %85 = arith.addf %83, %84 : vector<6x64xf32>
      %cst_41 = arith.constant 0.000000e+00 : f32
      %86 = vector.broadcast %cst_41 : f32 to vector<6x64xf32>
      %87 = arith.maximumf %85, %86 : vector<6x64xf32>
      %cst_42 = arith.constant 0.000000e+00 : f32
      %88 = vector.broadcast %cst_42 : f32 to vector<6x64xf32>
      %89 = vector.extract_strided_slice %20 {offsets = [1, 0, 0], sizes = [1, 8, 64], strides = [1, 1, 1]} : vector<4x8x64xf32> to vector<1x8x64xf32>
      %90 = vector.shape_cast %89 : vector<1x8x64xf32> to vector<8x64xf32>
      %91 = vector.extract_strided_slice %90 {offsets = [0, 0], sizes = [6, 64], strides = [1, 1]} : vector<8x64xf32> to vector<6x64xf32>
      %c0_43 = arith.constant 0 : index
      %c0_44 = arith.constant 0 : index
      %c0_45 = arith.constant 0 : index
      %92 = vector.load %arg2[%c0_43, %c0_44, %c0_45] : memref<9x64x64xbf16, #tpu.memory_space<vmem>>, vector<1x64x64xbf16>
      %93 = vector.shape_cast %92 : vector<1x64x64xbf16> to vector<64x64xbf16>
      %94 = arith.truncf %91 : vector<6x64xf32> to vector<6x64xbf16>
      %cst_46 = arith.constant dense<0.000000e+00> : vector<6x64xf32>
      %95 = tpu.matmul %94, %93, %cst_46 {dimension_numbers = #tpu.dot_dimension_numbers<[1], [0], [0], [1], [0, 0, 1, 1], [], []>} : vector<6x64xbf16>, vector<64x64xbf16>, vector<6x64xf32> -> vector<6x64xf32>
      %96 = arith.addf %88, %95 : vector<6x64xf32>
      %97 = vector.extract_strided_slice %90 {offsets = [1, 0], sizes = [6, 64], strides = [1, 1]} : vector<8x64xf32> to vector<6x64xf32>
      %c1_47 = arith.constant 1 : index
      %c0_48 = arith.constant 0 : index
      %c0_49 = arith.constant 0 : index
      %98 = vector.load %arg2[%c1_47, %c0_48, %c0_49] : memref<9x64x64xbf16, #tpu.memory_space<vmem>>, vector<1x64x64xbf16>
      %99 = vector.shape_cast %98 : vector<1x64x64xbf16> to vector<64x64xbf16>
      %100 = arith.truncf %97 : vector<6x64xf32> to vector<6x64xbf16>
      %cst_50 = arith.constant dense<0.000000e+00> : vector<6x64xf32>
      %101 = tpu.matmul %100, %99, %cst_50 {dimension_numbers = #tpu.dot_dimension_numbers<[1], [0], [0], [1], [0, 0, 1, 1], [], []>} : vector<6x64xbf16>, vector<64x64xbf16>, vector<6x64xf32> -> vector<6x64xf32>
      %102 = arith.addf %96, %101 : vector<6x64xf32>
      %103 = vector.extract_strided_slice %90 {offsets = [2, 0], sizes = [6, 64], strides = [1, 1]} : vector<8x64xf32> to vector<6x64xf32>
      %c2_51 = arith.constant 2 : index
      %c0_52 = arith.constant 0 : index
      %c0_53 = arith.constant 0 : index
      %104 = vector.load %arg2[%c2_51, %c0_52, %c0_53] : memref<9x64x64xbf16, #tpu.memory_space<vmem>>, vector<1x64x64xbf16>
      %105 = vector.shape_cast %104 : vector<1x64x64xbf16> to vector<64x64xbf16>
      %106 = arith.truncf %103 : vector<6x64xf32> to vector<6x64xbf16>
      %cst_54 = arith.constant dense<0.000000e+00> : vector<6x64xf32>
      %107 = tpu.matmul %106, %105, %cst_54 {dimension_numbers = #tpu.dot_dimension_numbers<[1], [0], [0], [1], [0, 0, 1, 1], [], []>} : vector<6x64xbf16>, vector<64x64xbf16>, vector<6x64xf32> -> vector<6x64xf32>
      %108 = arith.addf %102, %107 : vector<6x64xf32>
      %109 = vector.extract_strided_slice %20 {offsets = [2, 0, 0], sizes = [1, 8, 64], strides = [1, 1, 1]} : vector<4x8x64xf32> to vector<1x8x64xf32>
      %110 = vector.shape_cast %109 : vector<1x8x64xf32> to vector<8x64xf32>
      %111 = vector.extract_strided_slice %110 {offsets = [0, 0], sizes = [6, 64], strides = [1, 1]} : vector<8x64xf32> to vector<6x64xf32>
      %c3_55 = arith.constant 3 : index
      %c0_56 = arith.constant 0 : index
      %c0_57 = arith.constant 0 : index
      %112 = vector.load %arg2[%c3_55, %c0_56, %c0_57] : memref<9x64x64xbf16, #tpu.memory_space<vmem>>, vector<1x64x64xbf16>
      %113 = vector.shape_cast %112 : vector<1x64x64xbf16> to vector<64x64xbf16>
      %114 = arith.truncf %111 : vector<6x64xf32> to vector<6x64xbf16>
      %cst_58 = arith.constant dense<0.000000e+00> : vector<6x64xf32>
      %115 = tpu.matmul %114, %113, %cst_58 {dimension_numbers = #tpu.dot_dimension_numbers<[1], [0], [0], [1], [0, 0, 1, 1], [], []>} : vector<6x64xbf16>, vector<64x64xbf16>, vector<6x64xf32> -> vector<6x64xf32>
      %116 = arith.addf %108, %115 : vector<6x64xf32>
      %117 = vector.extract_strided_slice %110 {offsets = [1, 0], sizes = [6, 64], strides = [1, 1]} : vector<8x64xf32> to vector<6x64xf32>
      %c4_59 = arith.constant 4 : index
      %c0_60 = arith.constant 0 : index
      %c0_61 = arith.constant 0 : index
      %118 = vector.load %arg2[%c4_59, %c0_60, %c0_61] : memref<9x64x64xbf16, #tpu.memory_space<vmem>>, vector<1x64x64xbf16>
      %119 = vector.shape_cast %118 : vector<1x64x64xbf16> to vector<64x64xbf16>
      %120 = arith.truncf %117 : vector<6x64xf32> to vector<6x64xbf16>
      %cst_62 = arith.constant dense<0.000000e+00> : vector<6x64xf32>
      %121 = tpu.matmul %120, %119, %cst_62 {dimension_numbers = #tpu.dot_dimension_numbers<[1], [0], [0], [1], [0, 0, 1, 1], [], []>} : vector<6x64xbf16>, vector<64x64xbf16>, vector<6x64xf32> -> vector<6x64xf32>
      %122 = arith.addf %116, %121 : vector<6x64xf32>
      %123 = vector.extract_strided_slice %110 {offsets = [2, 0], sizes = [6, 64], strides = [1, 1]} : vector<8x64xf32> to vector<6x64xf32>
      %c5_63 = arith.constant 5 : index
      %c0_64 = arith.constant 0 : index
      %c0_65 = arith.constant 0 : index
      %124 = vector.load %arg2[%c5_63, %c0_64, %c0_65] : memref<9x64x64xbf16, #tpu.memory_space<vmem>>, vector<1x64x64xbf16>
      %125 = vector.shape_cast %124 : vector<1x64x64xbf16> to vector<64x64xbf16>
      %126 = arith.truncf %123 : vector<6x64xf32> to vector<6x64xbf16>
      %cst_66 = arith.constant dense<0.000000e+00> : vector<6x64xf32>
      %127 = tpu.matmul %126, %125, %cst_66 {dimension_numbers = #tpu.dot_dimension_numbers<[1], [0], [0], [1], [0, 0, 1, 1], [], []>} : vector<6x64xbf16>, vector<64x64xbf16>, vector<6x64xf32> -> vector<6x64xf32>
      %128 = arith.addf %122, %127 : vector<6x64xf32>
      %129 = vector.extract_strided_slice %20 {offsets = [3, 0, 0], sizes = [1, 8, 64], strides = [1, 1, 1]} : vector<4x8x64xf32> to vector<1x8x64xf32>
      %130 = vector.shape_cast %129 : vector<1x8x64xf32> to vector<8x64xf32>
      %131 = vector.extract_strided_slice %130 {offsets = [0, 0], sizes = [6, 64], strides = [1, 1]} : vector<8x64xf32> to vector<6x64xf32>
      %c6_67 = arith.constant 6 : index
      %c0_68 = arith.constant 0 : index
      %c0_69 = arith.constant 0 : index
      %132 = vector.load %arg2[%c6_67, %c0_68, %c0_69] : memref<9x64x64xbf16, #tpu.memory_space<vmem>>, vector<1x64x64xbf16>
      %133 = vector.shape_cast %132 : vector<1x64x64xbf16> to vector<64x64xbf16>
      %134 = arith.truncf %131 : vector<6x64xf32> to vector<6x64xbf16>
      %cst_70 = arith.constant dense<0.000000e+00> : vector<6x64xf32>
      %135 = tpu.matmul %134, %133, %cst_70 {dimension_numbers = #tpu.dot_dimension_numbers<[1], [0], [0], [1], [0, 0, 1, 1], [], []>} : vector<6x64xbf16>, vector<64x64xbf16>, vector<6x64xf32> -> vector<6x64xf32>
      %136 = arith.addf %128, %135 : vector<6x64xf32>
      %137 = vector.extract_strided_slice %130 {offsets = [1, 0], sizes = [6, 64], strides = [1, 1]} : vector<8x64xf32> to vector<6x64xf32>
      %c7_71 = arith.constant 7 : index
      %c0_72 = arith.constant 0 : index
      %c0_73 = arith.constant 0 : index
      %138 = vector.load %arg2[%c7_71, %c0_72, %c0_73] : memref<9x64x64xbf16, #tpu.memory_space<vmem>>, vector<1x64x64xbf16>
      %139 = vector.shape_cast %138 : vector<1x64x64xbf16> to vector<64x64xbf16>
      %140 = arith.truncf %137 : vector<6x64xf32> to vector<6x64xbf16>
      %cst_74 = arith.constant dense<0.000000e+00> : vector<6x64xf32>
      %141 = tpu.matmul %140, %139, %cst_74 {dimension_numbers = #tpu.dot_dimension_numbers<[1], [0], [0], [1], [0, 0, 1, 1], [], []>} : vector<6x64xbf16>, vector<64x64xbf16>, vector<6x64xf32> -> vector<6x64xf32>
      %142 = arith.addf %136, %141 : vector<6x64xf32>
      %143 = vector.extract_strided_slice %130 {offsets = [2, 0], sizes = [6, 64], strides = [1, 1]} : vector<8x64xf32> to vector<6x64xf32>
      %c8_75 = arith.constant 8 : index
      %c0_76 = arith.constant 0 : index
      %c0_77 = arith.constant 0 : index
      %144 = vector.load %arg2[%c8_75, %c0_76, %c0_77] : memref<9x64x64xbf16, #tpu.memory_space<vmem>>, vector<1x64x64xbf16>
      %145 = vector.shape_cast %144 : vector<1x64x64xbf16> to vector<64x64xbf16>
      %146 = arith.truncf %143 : vector<6x64xf32> to vector<6x64xbf16>
      %cst_78 = arith.constant dense<0.000000e+00> : vector<6x64xf32>
      %147 = tpu.matmul %146, %145, %cst_78 {dimension_numbers = #tpu.dot_dimension_numbers<[1], [0], [0], [1], [0, 0, 1, 1], [], []>} : vector<6x64xbf16>, vector<64x64xbf16>, vector<6x64xf32> -> vector<6x64xf32>
      %148 = arith.addf %142, %147 : vector<6x64xf32>
      %149 = vector.broadcast %14 : vector<1x64xf32> to vector<6x64xf32>
      %150 = arith.mulf %148, %149 : vector<6x64xf32>
      %151 = vector.broadcast %15 : vector<1x64xf32> to vector<6x64xf32>
      %152 = arith.addf %150, %151 : vector<6x64xf32>
      %cst_79 = arith.constant 0.000000e+00 : f32
      %153 = vector.broadcast %cst_79 : f32 to vector<6x64xf32>
      %154 = arith.maximumf %152, %153 : vector<6x64xf32>
      %155 = arith.maximumf %87, %154 : vector<6x64xf32>
      %cst_80 = arith.constant dense<0.000000e+00> : vector<3x64xf32>
      %156 = tpu.matmul %7, %155, %cst_80 {dimension_numbers = #tpu.dot_dimension_numbers<[1], [0], [0], [1], [0, 0, 1, 1], [], []>} : vector<3x6xf32>, vector<6x64xf32>, vector<3x64xf32> -> vector<3x64xf32>
      %cst_81 = arith.constant dense<0.000000e+00> : vector<3x64xf32>
      %157 = tpu.matmul %13, %155, %cst_81 {dimension_numbers = #tpu.dot_dimension_numbers<[1], [0], [0], [1], [0, 0, 1, 1], [], []>} : vector<3x6xf32>, vector<6x64xf32>, vector<3x64xf32> -> vector<3x64xf32>
      %158 = arith.maximumf %156, %157 : vector<3x64xf32>
      %c0_82 = arith.constant 0 : index
      %159 = arith.index_cast %arg6 : i32 to index
      %c0_83 = arith.constant 0 : index
      %c0_84 = arith.constant 0 : index
      %160 = vector.load %arg5[%c0_82, %159, %c0_83, %c0_84] : memref<1x3x3x64xf32, #tpu.memory_space<vmem>>, vector<1x1x3x64xf32>
      %161 = vector.shape_cast %160 : vector<1x1x3x64xf32> to vector<3x64xf32>
      %162 = vector.shape_cast %158 : vector<3x64xf32> to vector<1x1x3x64xf32>
      tpu.vector_store %arg5[%c0_82, %159, %c0_83, %c0_84], %162 {strides = array<i32>} : memref<1x3x3x64xf32, #tpu.memory_space<vmem>>, vector<1x1x3x64xf32>,
    }
    %c3_i32_7 = arith.constant 3 : i32
    return
  }
  func.func @transform_0(%arg0: i32) -> (i32, i32, i32, i32) {
    %c0_i32 = arith.constant 0 : i32
    %c0_i32_0 = arith.constant 0 : i32
    %c0_i32_1 = arith.constant 0 : i32
    %c0_i32_2 = arith.constant 0 : i32
    return %arg0, %c0_i32, %c0_i32_0, %c0_i32_1 : i32, i32, i32, i32
  }
  func.func @transform_1(%arg0: i32) -> (i32, i32, i32) {
    %c0_i32 = arith.constant 0 : i32
    %c0_i32_0 = arith.constant 0 : i32
    %c0_i32_1 = arith.constant 0 : i32
    %c0_i32_2 = arith.constant 0 : i32
    return %c0_i32, %c0_i32_0, %c0_i32_1 : i32, i32, i32
  }
  func.func @transform_2(%arg0: i32) -> (i32, i32) {
    %c0_i32 = arith.constant 0 : i32
    %c0_i32_0 = arith.constant 0 : i32
    %c0_i32_1 = arith.constant 0 : i32
    return %c0_i32, %c0_i32_0 : i32, i32
  }
  func.func @transform_3(%arg0: i32) -> (i32, i32) {
    %c0_i32 = arith.constant 0 : i32
    %c0_i32_0 = arith.constant 0 : i32
    %c0_i32_1 = arith.constant 0 : i32
    return %c0_i32, %c0_i32_0 : i32, i32
  }
  func.func @transform_4(%arg0: i32) -> (i32, i32, i32, i32) {
    %c0_i32 = arith.constant 0 : i32
    %c0_i32_0 = arith.constant 0 : i32
    %c0_i32_1 = arith.constant 0 : i32
    %c0_i32_2 = arith.constant 0 : i32
    return %arg0, %c0_i32, %c0_i32_0, %c0_i32_1 : i32, i32, i32, i32
  }
}

module attributes {stable_mosaic.version = 11 : i64} {
  func.func @_mlp_kernel(%arg0: memref<2x576xf32, #tpu.memory_space<vmem>>, %arg1: memref<576x850xbf16, #tpu.memory_space<vmem>>, %arg2: memref<1x850xf32, #tpu.memory_space<vmem>>, %arg3: memref<1x850xf32, #tpu.memory_space<vmem>>, %arg4: memref<850x232xbf16, #tpu.memory_space<vmem>>, %arg5: memref<1x232xf32, #tpu.memory_space<vmem>>, %arg6: memref<2x232xf32, #tpu.memory_space<vmem>>) attributes {dimension_semantics = [], scalar_prefetch = 0 : i64, scratch_operands = 0 : i64, tpu.core_type = #tpu.core_type<tc>} {
    %c0 = arith.constant 0 : index
    %c0_0 = arith.constant 0 : index
    %0 = vector.load %arg0[%c0, %c0_0] : memref<2x576xf32, #tpu.memory_space<vmem>>, vector<2x576xf32>
    %1 = arith.truncf %0 : vector<2x576xf32> to vector<2x576xbf16>
    %c0_1 = arith.constant 0 : index
    %c0_2 = arith.constant 0 : index
    %2 = vector.load %arg1[%c0_1, %c0_2] : memref<576x850xbf16, #tpu.memory_space<vmem>>, vector<576x850xbf16>
    %cst = arith.constant dense<0.000000e+00> : vector<2x850xf32>
    %3 = tpu.matmul %1, %2, %cst {dimension_numbers = #tpu.dot_dimension_numbers<[1], [0], [0], [1], [0, 0, 1, 1], [], []>} : vector<2x576xbf16>, vector<576x850xbf16>, vector<2x850xf32> -> vector<2x850xf32>
    %c0_3 = arith.constant 0 : index
    %c0_4 = arith.constant 0 : index
    %4 = vector.load %arg2[%c0_3, %c0_4] : memref<1x850xf32, #tpu.memory_space<vmem>>, vector<1x850xf32>
    %5 = vector.broadcast %4 : vector<1x850xf32> to vector<2x850xf32>
    %6 = arith.mulf %3, %5 : vector<2x850xf32>
    %c0_5 = arith.constant 0 : index
    %c0_6 = arith.constant 0 : index
    %7 = vector.load %arg3[%c0_5, %c0_6] : memref<1x850xf32, #tpu.memory_space<vmem>>, vector<1x850xf32>
    %8 = vector.broadcast %7 : vector<1x850xf32> to vector<2x850xf32>
    %9 = arith.addf %6, %8 : vector<2x850xf32>
    %cst_7 = arith.constant 0.000000e+00 : f32
    %10 = vector.broadcast %cst_7 : f32 to vector<2x850xf32>
    %11 = arith.maximumf %9, %10 : vector<2x850xf32>
    %12 = arith.truncf %11 : vector<2x850xf32> to vector<2x850xbf16>
    %c0_8 = arith.constant 0 : index
    %c0_9 = arith.constant 0 : index
    %13 = vector.load %arg4[%c0_8, %c0_9] : memref<850x232xbf16, #tpu.memory_space<vmem>>, vector<850x232xbf16>
    %cst_10 = arith.constant dense<0.000000e+00> : vector<2x232xf32>
    %14 = tpu.matmul %12, %13, %cst_10 {dimension_numbers = #tpu.dot_dimension_numbers<[1], [0], [0], [1], [0, 0, 1, 1], [], []>} : vector<2x850xbf16>, vector<850x232xbf16>, vector<2x232xf32> -> vector<2x232xf32>
    %c0_11 = arith.constant 0 : index
    %c0_12 = arith.constant 0 : index
    %15 = vector.load %arg5[%c0_11, %c0_12] : memref<1x232xf32, #tpu.memory_space<vmem>>, vector<1x232xf32>
    %16 = vector.broadcast %15 : vector<1x232xf32> to vector<2x232xf32>
    %17 = arith.addf %14, %16 : vector<2x232xf32>
    %c0_13 = arith.constant 0 : index
    %c0_14 = arith.constant 0 : index
    %18 = vector.load %arg6[%c0_13, %c0_14] : memref<2x232xf32, #tpu.memory_space<vmem>>, vector<2x232xf32>
    tpu.vector_store %arg6[%c0_13, %c0_14], %17 {strides = array<i32>} : memref<2x232xf32, #tpu.memory_space<vmem>>, vector<2x232xf32>,
    return
  }
}

</mosaic_0001>

<llo_original>
// kernel: forward.5
$region0: #{forward.5}
  #allocation0 [shape = 'u32[]', space=smem, size = 0x4, offset = 0x4, fixed_abs, tag = 'smem constant byte address 0x4 - core index']
  #allocation1 [shape = 'u32[144,128]{1,0:T(1,128)}', space=vmem, size = 0x12000, scoped, tag = 'internal scratch']
  %s0 = inlined_call_operand.vmem [shape: f32[2,30,30,1], index: 0, kind: input, shape index: {}]
  %s1 = inlined_call_operand.vmem [shape: bf16[9,1,32], index: 1, kind: input, shape index: {}]
  %s2 = inlined_call_operand.vmem [shape: f32[1,32], index: 2, kind: input, shape index: {}]
  %s3 = inlined_call_operand.vmem [shape: f32[1,32], index: 3, kind: input, shape index: {}]
  %s4 = inlined_call_operand.vmem [shape: f32[2,16,16,32], index: 4, kind: output, shape index: {}]
  %s5 = sld [smem:[#allocation0]]
  $region56: #{forward.5} parent=0
    _
  %s7 = ssub.s32 1, %s5
  %s8 = scalar_select 0, %s7, %s5
  loop: start=0, step=1, limit=4
  $region2: #{forward.5} parent=0 // loop_pre_header
    _
  $region3: #{forward.5} parent=0 // loop_header
    %s10 = sphi 0, %s14
    %p11 = scmp.ge.s32.totalorder %s10, 4
    %s20 = sphi 0, %s22
    %s23 = sphi 0, %s20
    %s24 = sphi 0, %s23
    %s40 = sphi 0, %s24
    %s44 = sphi 0, %s44
    %s46 = sphi 0, %s44
    %s47 = sphi 0, %s46
    %s61 = sphi 0, %s47
    %s65 = sphi 0, %s65
    %s67 = sphi 0, %s65
    %s68 = sphi 0, %s67
    %s82 = sphi 0, %s68
    %s86 = sphi 0, %s86
    %s88 = sphi 0, %s86
    %s89 = sphi 0, %s88
    %s103 = sphi 0, %s89
    %s109 = sphi 0, %s111
    %s112 = sphi 0, %s109
    %s113 = sphi 0, %s112
    %s129 = sphi 0, %s113
  $region4: #{forward.5} parent=0 // loop_header_branch
    %13 = sbr.rel (%p11) target = $region8
  $region5: #{forward.5} parent=0 // loop_body
    %s15 = ssub.s32 %s10, 1
    %s16 = ssub.s32 %s10, 2
    %s17 = sadd.s32 %s10, 1
    %s18 = ssub.s32 %s10, %s17
    %p19 = scmp.eq.s32.totalorder %s18, 0
    %s21 = sadd.s32 %s20, 1
    %s22 = scalar_select %p19, %s20, %s21
    %p25 = pneg %p19
    %p26 = scmp.eq.s32.totalorder %s10, 1
    %p27 = por %p25, %p26
    %p28 = scmp.ne.s32.totalorder %s20, %s23
    %p29 = scmp.eq.s32.totalorder %s10, 0
    %p30 = por %p28, %p29
    %p31 = scmp.ne.s32.totalorder %s20, %s23
    %p32 = scmp.eq.s32.totalorder %s15, 1
    %p33 = por %p31, %p32
    %p34 = scmp.ne.s32.totalorder %s23, %s24
    %p35 = scmp.eq.s32.totalorder %s15, 0
    %p36 = por %p34, %p35
    %p37 = scmp.ne.s32.totalorder %s23, %s24
    %p38 = scmp.eq.s32.totalorder %s16, 1
    %p39 = por %p37, %p38
    %p41 = scmp.ne.s32.totalorder %s24, %s40
    %p42 = scmp.eq.s32.totalorder %s16, 0
    %p43 = por %p41, %p42
    %s45 = sadd.s32 %s44, 1
    %p48 = scmp.eq.s32.totalorder %s10, 1
    %p49 = scmp.ne.s32.totalorder %s44, %s46
    %p50 = scmp.eq.s32.totalorder %s10, 0
    %p51 = por %p49, %p50
    %p52 = scmp.ne.s32.totalorder %s44, %s46
    %p53 = scmp.eq.s32.totalorder %s15, 1
    %p54 = por %p52, %p53
    %p55 = scmp.ne.s32.totalorder %s46, %s47
    %p56 = scmp.eq.s32.totalorder %s15, 0
    %p57 = por %p55, %p56
    %p58 = scmp.ne.s32.totalorder %s46, %s47
    %p59 = scmp.eq.s32.totalorder %s16, 1
    %p60 = por %p58, %p59
    %p62 = scmp.ne.s32.totalorder %s47, %s61
    %p63 = scmp.eq.s32.totalorder %s16, 0
    %p64 = por %p62, %p63
    %s66 = sadd.s32 %s65, 1
    %p69 = scmp.eq.s32.totalorder %s10, 1
    %p70 = scmp.ne.s32.totalorder %s65, %s67
    %p71 = scmp.eq.s32.totalorder %s10, 0
    %p72 = por %p70, %p71
    %p73 = scmp.ne.s32.totalorder %s65, %s67
    %p74 = scmp.eq.s32.totalorder %s15, 1
    %p75 = por %p73, %p74
    %p76 = scmp.ne.s32.totalorder %s67, %s68
    %p77 = scmp.eq.s32.totalorder %s15, 0
    %p78 = por %p76, %p77
    %p79 = scmp.ne.s32.totalorder %s67, %s68
    %p80 = scmp.eq.s32.totalorder %s16, 1
    %p81 = por %p79, %p80
    %p83 = scmp.ne.s32.totalorder %s68, %s82
    %p84 = scmp.eq.s32.totalorder %s16, 0
    %p85 = por %p83, %p84
    %s87 = sadd.s32 %s86, 1
    %p90 = scmp.eq.s32.totalorder %s10, 1
    %p91 = scmp.ne.s32.totalorder %s86, %s88
    %p92 = scmp.eq.s32.totalorder %s10, 0
    %p93 = por %p91, %p92
    %p94 = scmp.ne.s32.totalorder %s86, %s88
    %p95 = scmp.eq.s32.totalorder %s15, 1
    %p96 = por %p94, %p95
    %p97 = scmp.ne.s32.totalorder %s88, %s89
    %p98 = scmp.eq.s32.totalorder %s15, 0
    %p99 = por %p97, %p98
    %p100 = scmp.ne.s32.totalorder %s88, %s89
    %p101 = scmp.eq.s32.totalorder %s16, 1
    %p102 = por %p100, %p101
    %p104 = scmp.ne.s32.totalorder %s89, %s103
    %p105 = scmp.eq.s32.totalorder %s16, 0
    %p106 = por %p104, %p105
    %s107 = ssub.s32 %s10, %s17
    %p108 = scmp.eq.s32.totalorder %s107, 0
    %s110 = sadd.s32 %s109, 1
    %s111 = scalar_select %p108, %s109, %s110
    %p114 = pneg %p108
    %p115 = scmp.eq.s32.totalorder %s10, 1
    %p116 = por %p114, %p115
    %p117 = scmp.ne.s32.totalorder %s109, %s112
    %p118 = scmp.eq.s32.totalorder %s10, 0
    %p119 = por %p117, %p118
    %p120 = scmp.ne.s32.totalorder %s109, %s112
    %p121 = scmp.eq.s32.totalorder %s15, 1
    %p122 = por %p120, %p121
    %p123 = scmp.ne.s32.totalorder %s112, %s113
    %p124 = scmp.eq.s32.totalorder %s15, 0
    %p125 = por %p123, %p124
    %p126 = scmp.ne.s32.totalorder %s112, %s113
    %p127 = scmp.eq.s32.totalorder %s16, 1
    %p128 = por %p126, %p127
    %p130 = scmp.ne.s32.totalorder %s113, %s129
    %p131 = scmp.eq.s32.totalorder %s16, 0
    %p132 = por %p130, %p131
    %p133 = scmp.le.s32.totalorder 1, %s10
    %p134 = scmp.lt.s32.totalorder %s10, 3
    %p135 = pnand %p133, %p134
    %p136 = pneg %p135
    // Predicated region
    $region9: #{forward.5} parent=5 // pred_check
      _
    $region10: #{forward.5} parent=5 // pred_check_branch
      %138 = sbr.rel (%p135) target = $region12
    $region11: #{forward.5} parent=5 // pred_region
      %s139 = ssub.s32 %s10, 1
      // Predicated region
      $region13: #{forward.5} parent=11 // pred_check
        %p140 = pneg %p57
      $region14: #{forward.5} parent=11 // pred_check_branch
        %142 = sbr.rel (%p140) target = $region16
      $region15: #{forward.5} parent=11 // pred_region
        _
      $region16: #{forward.5} parent=11 // pred_fallthru
        _
      // Predicated region
      $region17: #{forward.5} parent=11 // pred_check
        %p143 = pneg %p78
      $region18: #{forward.5} parent=11 // pred_check_branch
        %145 = sbr.rel (%p143) target = $region20
      $region19: #{forward.5} parent=11 // pred_region
        _
      $region20: #{forward.5} parent=11 // pred_fallthru
        _
      // Predicated region
      $region21: #{forward.5} parent=11 // pred_check
        %p146 = pneg %p99
      $region22: #{forward.5} parent=11 // pred_check_branch
        %148 = sbr.rel (%p146) target = $region24
      $region23: #{forward.5} parent=11 // pred_region
        _
      $region24: #{forward.5} parent=11 // pred_fallthru
        _
    $region12: #{forward.5} parent=5 // pred_fallthru
      _
    %p149 = scmp.lt.s32.totalorder %s10, 2
    // Predicated region
    $region25: #{forward.5} parent=5 // pred_check
      %p150 = pneg %p149
    $region26: #{forward.5} parent=5 // pred_check_branch
      %152 = sbr.rel (%p150) target = $region28
    $region27: #{forward.5} parent=5 // pred_region
      // Predicated region
      $region29: #{forward.5} parent=27 // pred_check
        %p153 = pneg %p30
      $region30: #{forward.5} parent=27 // pred_check_branch
        %155 = sbr.rel (%p153) target = $region32
      $region31: #{forward.5} parent=27 // pred_region
        %p156 = scmp.lt.s32.totalorder %s10, 1
        %s157 = scalar_select %p156, %s10, 1
        %s158 = smul.addr %s157, 120
        %s159 = smul.addr %s158, 8
        %s160 = scalar_lea.vmem %s0, %s159
      $region32: #{forward.5} parent=27 // pred_fallthru
        _
    $region28: #{forward.5} parent=5 // pred_fallthru
      _
    %p161 = scmp.le.s32.totalorder 1, %s10
    %p162 = scmp.lt.s32.totalorder %s10, 3
    %p163 = pnand %p161, %p162
    %p164 = pneg %p163
    // Predicated region
    $region33: #{forward.5} parent=5 // pred_check
      _
    $region34: #{forward.5} parent=5 // pred_check_branch
      %166 = sbr.rel (%p163) target = $region36
    $region35: #{forward.5} parent=5 // pred_region
      %s167 = ssub.s32 %s10, 1
      %p168 = scmp.lt.s32.totalorder %s15, 1
      %s169 = scalar_select %p168, %s15, 1
      %s170 = smul.addr %s169, 120
      %s171 = smul.addr %s170, 8
      %s172 = scalar_lea.vmem %s0, %s171
      %p173 = pneg %p36
      %p174 = pneg %p33
      %p175 = pneg %p57
      %p176 = pneg %p54
      %p177 = pneg %p78
      %p178 = pneg %p75
      %p179 = pneg %p99
      %p180 = pneg %p96
      %p181 = pneg %p125
      %p182 = pneg %p122
      %p183 = scmp.lt.s32.totalorder %s15, 1
      %s184 = scalar_select %p183, %s15, 1
      %s185 = smul.addr %s184, 32
      %s186 = smul.addr %s185, 8
      %s187 = scalar_lea.vmem %s4, %s186
      %p188 = scmp.lt.s32.totalorder %s15, 1
      %s189 = scalar_select %p188, %s15, 1
      %s190 = smul.addr %s189, 120
      %s191 = smul.addr %s190, 8
      %s192 = scalar_lea.vmem %s0, %s191
      %p193 = scmp.lt.s32.totalorder %s15, 1
      %s194 = scalar_select %p193, %s15, 1
      %s195 = smul.addr %s194, 32
      %s196 = smul.addr %s195, 8
      %s197 = scalar_lea.vmem %s4, %s196
      %v198 = vlaneseq
      %v199 = vshrl.u32 %v198, 7
      %v200 = vadd.s32 %v199, 8
      %v201 = vlaneseq
      %v202 = vand.u32 %v201, 127
      %v203 = vsub.s32 %v199, 1
      %v204 = vsub.s32 %v200, 1
      %v205 = vmul.u32 %v203, 2
      %v206 = vmul.u32 %v204, 2
      %vm207 = vcmp.ge.s32.totalorder %v199, 1
      %vm208 = vcmp.ge.s32.totalorder %v200, 1
      %vm209 = vcmp.le.s32.totalorder %v199, 14
      %vm210 = vcmp.le.s32.totalorder %v200, 14
      %vm211 = vmand %vm207, %vm209
      %vm212 = vmand %vm208, %vm210
      %vm213 = vcmp.eq.s32.totalorder %v202, %v205
      %vm214 = vcmp.eq.s32.totalorder %v202, %v206
      %vm215 = vmand %vm213, %vm211
      %vm216 = vmand %vm214, %vm212
      %v217 = vsel %vm215, 1.0, 0.0
      %v218 = vsel %vm216, 1.0, 0.0
      %v219 = vadd.s32 %v205, 1
      %v220 = vadd.s32 %v206, 1
      %vm221 = vcmp.eq.s32.totalorder %v202, %v219
      %vm222 = vcmp.eq.s32.totalorder %v202, %v220
      %vm223 = vmand %vm221, %vm211
      %vm224 = vmand %vm222, %vm212
      %v225 = vsel %vm223, 1.0, 0.0
      %v226 = vsel %vm224, 1.0, 0.0
      %v227 = vld [vmem:[%s2] sm:$0x1]
      %v228 = vld [vmem:[%s3] sm:$0x1]
      %vm229 = vcmask 261120
      %230 = vst.msk [vmem:[%s197] sm:$0xff] %vm229, 0.0
      %231 = vst.msk [vmem:[%s197 + $0x8] sm:$0xff] %vm229, 0.0
      %s232 = scalar_lea.vmem %s197, 240
      %233 = vst.msk [vmem:[%s232] sm:$0xff] %vm229, 0.0
      %234 = vst.msk [vmem:[%s232 + $0x8] sm:$0xff] %vm229, 0.0
      loop: start=0, step=1, limit=14
      $region37: #{forward.5} parent=35 // loop_pre_header
        _
      $region38: #{forward.5} parent=35 // loop_header
        %s236 = sphi 0, %s240
        %p237 = scmp.ge.s32.totalorder %s236, 14
      $region39: #{forward.5} parent=35 // loop_header_branch
        %239 = sbr.rel (%p237) target = $region43
      $region40: #{forward.5} parent=35 // loop_body
        %s241 = smul.u32 %s236, 2
        %s242 = smul.u32 %s241, 32
        %s243 = scalar_lea.vmem %s192, %s242
        %v244 = vld [vmem:[%s243] sm:$0xff]
        %v245 = vld [vmem:[%s243 + $0x8] sm:$0xff]
        %v246 = vld [vmem:[%s243 + $0x10] sm:$0xff]
        %v247 = vld [vmem:[%s243 + $0x18] sm:$0x3f]
        %v248 = vld [vmem:[%s243 + $0x20] sm:$0xff]
        %v249 = vld [vmem:[%s243 + $0x28] sm:$0xff]
        %v250 = vld [vmem:[%s243 + $0x30] sm:$0xff]
        %v251 = vld [vmem:[%s243 + $0x38] sm:$0x3f]
        %v252 = vld [vmem:[%s243 + $0x40] sm:$0xff]
        %v253 = vld [vmem:[%s243 + $0x48] sm:$0xff]
        %v254 = vld [vmem:[%s243 + $0x50] sm:$0xff]
        %v255 = vld [vmem:[%s243 + $0x58] sm:$0x3f]
        %v256 = vld [vmem:[%s243 + $0x60] sm:$0xff]
        %v257 = vld [vmem:[%s243 + $0x68] sm:$0xff]
        %v258 = vld [vmem:[%s243 + $0x70] sm:$0xff]
        %v259 = vld [vmem:[%s243 + $0x78] sm:$0x3f]
        %v260 = vld [vmem:[%s1] sm:$0x1]
        %v261 = vunpack.c.l.bf16 %v260
        %263 = vset.pattern.permute.xlu0 0
        %264 = vperm.xlu0 %263, %v244
        %v265 = vpop.permute.xlu0 %264
        %268 = vset.pattern.permute.xlu0 0
        %269 = vperm.xlu0 %268, %v245
        %v270 = vpop.permute.xlu0 %269
        %273 = vset.pattern.permute.xlu0 0
        %274 = vperm.xlu0 %273, %v246
        %v275 = vpop.permute.xlu0 %274
        %278 = vset.pattern.permute.xlu0 0
        %279 = vperm.xlu0 %278, %v247
        %v280 = vpop.permute.xlu0 %279
        %v282 = vlaneseq
        %v283 = vshrl.u32 %v282, 7
        %v284 = vsub.s32 0, %v283
        %v285 = vrot.slane %v261, %v284
        %v286 = vmul.f32 %v265, %v285
        %v287 = vmul.f32 %v270, %v285
        %v288 = vmul.f32 %v275, %v285
        %v289 = vmul.f32 %v280, %v285
        %v290 = vadd.f32 %v286, 0.0
        %v291 = vadd.f32 %v287, 0.0
        %v292 = vadd.f32 %v288, 0.0
        %v293 = vadd.f32 %v289, 0.0
        %s294 = scalar_lea.vmem %s1, 1
        %v295 = vld [vmem:[%s294] sm:$0x1]
        %v296 = vunpack.c.l.bf16 %v295
        %v297 = vlaneseq
        %v298 = vshrl.u32 %v297, 7
        %v299 = vsub.s32 0, %v298
        %v300 = vrot.slane %v296, %v299
        %v301 = vmul.f32 %v265, %v300
        %v302 = vmul.f32 %v270, %v300
        %v303 = vmul.f32 %v275, %v300
        %v304 = vmul.f32 %v280, %v300
        %vm309 = vcmask 1046528
        %v310 = vrot.slane %v301, 1
        %v311 = vrot.slane %v302, 1
        %v312 = vsel %vm309, %v310, %v311
        %v313 = vrot.slane %v303, 1
        %v314 = vsel %vm309, %v311, %v313
        %v315 = vrot.slane %v304, 1
        %v316 = vsel %vm309, %v313, %v315
        %v321 = vadd.f32 %v290, %v312
        %v322 = vadd.f32 %v291, %v314
        %v323 = vadd.f32 %v292, %v316
        %v324 = vadd.f32 %v293, %v315
        %s325 = scalar_lea.vmem %s1, 2
        %v326 = vld [vmem:[%s325] sm:$0x1]
        %v327 = vunpack.c.l.bf16 %v326
        %v328 = vlaneseq
        %v329 = vshrl.u32 %v328, 7
        %v330 = vsub.s32 0, %v329
        %v331 = vrot.slane %v327, %v330
        %v332 = vmul.f32 %v265, %v331
        %v333 = vmul.f32 %v270, %v331
        %v334 = vmul.f32 %v275, %v331
        %v335 = vmul.f32 %v280, %v331
        %vm340 = vcmask 1045504
        %v341 = vrot.slane %v332, 2
        %v342 = vrot.slane %v333, 2
        %v343 = vsel %vm340, %v341, %v342
        %v344 = vrot.slane %v334, 2
        %v345 = vsel %vm340, %v342, %v344
        %v346 = vrot.slane %v335, 2
        %v347 = vsel %vm340, %v344, %v346
        %v352 = vadd.f32 %v321, %v343
        %v353 = vadd.f32 %v322, %v345
        %v354 = vadd.f32 %v323, %v347
        %v355 = vadd.f32 %v324, %v346
        %s356 = scalar_lea.vmem %s1, 3
        %v357 = vld [vmem:[%s356] sm:$0x1]
        %v358 = vunpack.c.l.bf16 %v357
        %360 = vset.pattern.permute.xlu0 0
        %361 = vperm.xlu0 %360, %v248
        %v362 = vpop.permute.xlu0 %361
        %365 = vset.pattern.permute.xlu0 0
        %366 = vperm.xlu0 %365, %v249
        %v367 = vpop.permute.xlu0 %366
        %370 = vset.pattern.permute.xlu0 0
        %371 = vperm.xlu0 %370, %v250
        %v372 = vpop.permute.xlu0 %371
        %375 = vset.pattern.permute.xlu0 0
        %376 = vperm.xlu0 %375, %v251
        %v377 = vpop.permute.xlu0 %376
        %v379 = vlaneseq
        %v380 = vshrl.u32 %v379, 7
        %v381 = vsub.s32 0, %v380
        %v382 = vrot.slane %v358, %v381
        %v383 = vmul.f32 %v362, %v382
        %v384 = vmul.f32 %v367, %v382
        %v385 = vmul.f32 %v372, %v382
        %v386 = vmul.f32 %v377, %v382
        %v387 = vadd.f32 %v352, %v383
        %v388 = vadd.f32 %v353, %v384
        %v389 = vadd.f32 %v354, %v385
        %v390 = vadd.f32 %v355, %v386
        %s391 = scalar_lea.vmem %s1, 4
        %v392 = vld [vmem:[%s391] sm:$0x1]
        %v393 = vunpack.c.l.bf16 %v392
        %v394 = vlaneseq
        %v395 = vshrl.u32 %v394, 7
        %v396 = vsub.s32 0, %v395
        %v397 = vrot.slane %v393, %v396
        %v398 = vmul.f32 %v362, %v397
        %v399 = vmul.f32 %v367, %v397
        %v400 = vmul.f32 %v372, %v397
        %v401 = vmul.f32 %v377, %v397
        %v406 = vrot.slane %v398, 1
        %v407 = vrot.slane %v399, 1
        %v408 = vsel %vm309, %v406, %v407
        %v409 = vrot.slane %v400, 1
        %v410 = vsel %vm309, %v407, %v409
        %v411 = vrot.slane %v401, 1
        %v412 = vsel %vm309, %v409, %v411
        %v417 = vadd.f32 %v387, %v408
        %v418 = vadd.f32 %v388, %v410
        %v419 = vadd.f32 %v389, %v412
        %v420 = vadd.f32 %v390, %v411
        %s421 = scalar_lea.vmem %s1, 5
        %v422 = vld [vmem:[%s421] sm:$0x1]
        %v423 = vunpack.c.l.bf16 %v422
        %v424 = vlaneseq
        %v425 = vshrl.u32 %v424, 7
        %v426 = vsub.s32 0, %v425
        %v427 = vrot.slane %v423, %v426
        %v428 = vmul.f32 %v362, %v427
        %v429 = vmul.f32 %v367, %v427
        %v430 = vmul.f32 %v372, %v427
        %v431 = vmul.f32 %v377, %v427
        %v436 = vrot.slane %v428, 2
        %v437 = vrot.slane %v429, 2
        %v438 = vsel %vm340, %v436, %v437
        %v439 = vrot.slane %v430, 2
        %v440 = vsel %vm340, %v437, %v439
        %v441 = vrot.slane %v431, 2
        %v442 = vsel %vm340, %v439, %v441
        %v447 = vadd.f32 %v417, %v438
        %v448 = vadd.f32 %v418, %v440
        %v449 = vadd.f32 %v419, %v442
        %v450 = vadd.f32 %v420, %v441
        %s451 = scalar_lea.vmem %s1, 6
        %v452 = vld [vmem:[%s451] sm:$0x1]
        %v453 = vunpack.c.l.bf16 %v452
        %455 = vset.pattern.permute.xlu0 0
        %456 = vperm.xlu0 %455, %v252
        %v457 = vpop.permute.xlu0 %456
        %460 = vset.pattern.permute.xlu0 0
        %461 = vperm.xlu0 %460, %v253
        %v462 = vpop.permute.xlu0 %461
        %465 = vset.pattern.permute.xlu0 0
        %466 = vperm.xlu0 %465, %v254
        %v467 = vpop.permute.xlu0 %466
        %470 = vset.pattern.permute.xlu0 0
        %471 = vperm.xlu0 %470, %v255
        %v472 = vpop.permute.xlu0 %471
        %v474 = vlaneseq
        %v475 = vshrl.u32 %v474, 7
        %v476 = vsub.s32 0, %v475
        %v477 = vrot.slane %v453, %v476
        %v478 = vmul.f32 %v457, %v477
        %v479 = vmul.f32 %v462, %v477
        %v480 = vmul.f32 %v467, %v477
        %v481 = vmul.f32 %v472, %v477
        %v482 = vadd.f32 %v447, %v478
        %v483 = vadd.f32 %v448, %v479
        %v484 = vadd.f32 %v449, %v480
        %v485 = vadd.f32 %v450, %v481
        %s486 = scalar_lea.vmem %s1, 7
        %v487 = vld [vmem:[%s486] sm:$0x1]
        %v488 = vunpack.c.l.bf16 %v487
        %v489 = vlaneseq
        %v490 = vshrl.u32 %v489, 7
        %v491 = vsub.s32 0, %v490
        %v492 = vrot.slane %v488, %v491
        %v493 = vmul.f32 %v457, %v492
        %v494 = vmul.f32 %v462, %v492
        %v495 = vmul.f32 %v467, %v492
        %v496 = vmul.f32 %v472, %v492
        %v501 = vrot.slane %v493, 1
        %v502 = vrot.slane %v494, 1
        %v503 = vsel %vm309, %v501, %v502
        %v504 = vrot.slane %v495, 1
        %v505 = vsel %vm309, %v502, %v504
        %v506 = vrot.slane %v496, 1
        %v507 = vsel %vm309, %v504, %v506
        %v512 = vadd.f32 %v482, %v503
        %v513 = vadd.f32 %v483, %v505
        %v514 = vadd.f32 %v484, %v507
        %v515 = vadd.f32 %v485, %v506
        %s516 = scalar_lea.vmem %s1, 8
        %v517 = vld [vmem:[%s516] sm:$0x1]
        %v518 = vunpack.c.l.bf16 %v517
        %v519 = vlaneseq
        %v520 = vshrl.u32 %v519, 7
        %v521 = vsub.s32 0, %v520
        %v522 = vrot.slane %v518, %v521
        %v523 = vmul.f32 %v457, %v522
        %v524 = vmul.f32 %v462, %v522
        %v525 = vmul.f32 %v467, %v522
        %v526 = vmul.f32 %v472, %v522
        %v531 = vrot.slane %v523, 2
        %v532 = vrot.slane %v524, 2
        %v533 = vsel %vm340, %v531, %v532
        %v534 = vrot.slane %v525, 2
        %v535 = vsel %vm340, %v532, %v534
        %v536 = vrot.slane %v526, 2
        %v537 = vsel %vm340, %v534, %v536
        %v542 = vadd.f32 %v512, %v533
        %v543 = vadd.f32 %v513, %v535
        %v544 = vadd.f32 %v514, %v537
        %v545 = vadd.f32 %v515, %v536
        %v547 = vlaneseq
        %v548 = vshrl.u32 %v547, 7
        %v549 = vsub.s32 0, %v548
        %v550 = vrot.slane %v227, %v549
        %v552 = vmul.f32 %v542, %v550
        %v553 = vmul.f32 %v543, %v550
        %v554 = vmul.f32 %v544, %v550
        %v555 = vmul.f32 %v545, %v550
        %v557 = vlaneseq
        %v558 = vshrl.u32 %v557, 7
        %v559 = vsub.s32 0, %v558
        %v560 = vrot.slane %v228, %v559
        %v562 = vadd.f32 %v552, %v560
        %v563 = vadd.f32 %v553, %v560
        %v564 = vadd.f32 %v554, %v560
        %v565 = vadd.f32 %v555, %v560
        %v566 = vmax.f32 %v562, 0.0
        %v567 = vmax.f32 %v563, 0.0
        %v568 = vmax.f32 %v564, 0.0
        %v569 = vmax.f32 %v565, 0.0
        %v570 = vmul.f32 %v362, %v285
        %v571 = vmul.f32 %v367, %v285
        %v572 = vmul.f32 %v372, %v285
        %v573 = vmul.f32 %v377, %v285
        %v574 = vadd.f32 %v570, 0.0
        %v575 = vadd.f32 %v571, 0.0
        %v576 = vadd.f32 %v572, 0.0
        %v577 = vadd.f32 %v573, 0.0
        %v578 = vmul.f32 %v362, %v300
        %v579 = vmul.f32 %v367, %v300
        %v580 = vmul.f32 %v372, %v300
        %v581 = vmul.f32 %v377, %v300
        %v586 = vrot.slane %v578, 1
        %v587 = vrot.slane %v579, 1
        %v588 = vsel %vm309, %v586, %v587
        %v589 = vrot.slane %v580, 1
        %v590 = vsel %vm309, %v587, %v589
        %v591 = vrot.slane %v581, 1
        %v592 = vsel %vm309, %v589, %v591
        %v597 = vadd.f32 %v574, %v588
        %v598 = vadd.f32 %v575, %v590
        %v599 = vadd.f32 %v576, %v592
        %v600 = vadd.f32 %v577, %v591
        %v601 = vmul.f32 %v362, %v331
        %v602 = vmul.f32 %v367, %v331
        %v603 = vmul.f32 %v372, %v331
        %v604 = vmul.f32 %v377, %v331
        %v609 = vrot.slane %v601, 2
        %v610 = vrot.slane %v602, 2
        %v611 = vsel %vm340, %v609, %v610
        %v612 = vrot.slane %v603, 2
        %v613 = vsel %vm340, %v610, %v612
        %v614 = vrot.slane %v604, 2
        %v615 = vsel %vm340, %v612, %v614
        %v620 = vadd.f32 %v597, %v611
        %v621 = vadd.f32 %v598, %v613
        %v622 = vadd.f32 %v599, %v615
        %v623 = vadd.f32 %v600, %v614
        %v624 = vmul.f32 %v457, %v382
        %v625 = vmul.f32 %v462, %v382
        %v626 = vmul.f32 %v467, %v382
        %v627 = vmul.f32 %v472, %v382
        %v628 = vadd.f32 %v620, %v624
        %v629 = vadd.f32 %v621, %v625
        %v630 = vadd.f32 %v622, %v626
        %v631 = vadd.f32 %v623, %v627
        %v632 = vmul.f32 %v457, %v397
        %v633 = vmul.f32 %v462, %v397
        %v634 = vmul.f32 %v467, %v397
        %v635 = vmul.f32 %v472, %v397
        %v640 = vrot.slane %v632, 1
        %v641 = vrot.slane %v633, 1
        %v642 = vsel %vm309, %v640, %v641
        %v643 = vrot.slane %v634, 1
        %v644 = vsel %vm309, %v641, %v643
        %v645 = vrot.slane %v635, 1
        %v646 = vsel %vm309, %v643, %v645
        %v651 = vadd.f32 %v628, %v642
        %v652 = vadd.f32 %v629, %v644
        %v653 = vadd.f32 %v630, %v646
        %v654 = vadd.f32 %v631, %v645
        %v655 = vmul.f32 %v457, %v427
        %v656 = vmul.f32 %v462, %v427
        %v657 = vmul.f32 %v467, %v427
        %v658 = vmul.f32 %v472, %v427
        %v663 = vrot.slane %v655, 2
        %v664 = vrot.slane %v656, 2
        %v665 = vsel %vm340, %v663, %v664
        %v666 = vrot.slane %v657, 2
        %v667 = vsel %vm340, %v664, %v666
        %v668 = vrot.slane %v658, 2
        %v669 = vsel %vm340, %v666, %v668
        %v674 = vadd.f32 %v651, %v665
        %v675 = vadd.f32 %v652, %v667
        %v676 = vadd.f32 %v653, %v669
        %v677 = vadd.f32 %v654, %v668
        %679 = vset.pattern.permute.xlu0 0
        %680 = vperm.xlu0 %679, %v256
        %v681 = vpop.permute.xlu0 %680
        %684 = vset.pattern.permute.xlu0 0
        %685 = vperm.xlu0 %684, %v257
        %v686 = vpop.permute.xlu0 %685
        %689 = vset.pattern.permute.xlu0 0
        %690 = vperm.xlu0 %689, %v258
        %v691 = vpop.permute.xlu0 %690
        %694 = vset.pattern.permute.xlu0 0
        %695 = vperm.xlu0 %694, %v259
        %v696 = vpop.permute.xlu0 %695
        %v698 = vmul.f32 %v681, %v477
        %v699 = vmul.f32 %v686, %v477
        %v700 = vmul.f32 %v691, %v477
        %v701 = vmul.f32 %v696, %v477
        %v702 = vadd.f32 %v674, %v698
        %v703 = vadd.f32 %v675, %v699
        %v704 = vadd.f32 %v676, %v700
        %v705 = vadd.f32 %v677, %v701
        %v706 = vmul.f32 %v681, %v492
        %v707 = vmul.f32 %v686, %v492
        %v708 = vmul.f32 %v691, %v492
        %v709 = vmul.f32 %v696, %v492
        %v714 = vrot.slane %v706, 1
        %v715 = vrot.slane %v707, 1
        %v716 = vsel %vm309, %v714, %v715
        %v717 = vrot.slane %v708, 1
        %v718 = vsel %vm309, %v715, %v717
        %v719 = vrot.slane %v709, 1
        %v720 = vsel %vm309, %v717, %v719
        %v725 = vadd.f32 %v702, %v716
        %v726 = vadd.f32 %v703, %v718
        %v727 = vadd.f32 %v704, %v720
        %v728 = vadd.f32 %v705, %v719
        %v729 = vmul.f32 %v681, %v522
        %v730 = vmul.f32 %v686, %v522
        %v731 = vmul.f32 %v691, %v522
        %v732 = vmul.f32 %v696, %v522
        %v737 = vrot.slane %v729, 2
        %v738 = vrot.slane %v730, 2
        %v739 = vsel %vm340, %v737, %v738
        %v740 = vrot.slane %v731, 2
        %v741 = vsel %vm340, %v738, %v740
        %v742 = vrot.slane %v732, 2
        %v743 = vsel %vm340, %v740, %v742
        %v748 = vadd.f32 %v725, %v739
        %v749 = vadd.f32 %v726, %v741
        %v750 = vadd.f32 %v727, %v743
        %v751 = vadd.f32 %v728, %v742
        %v752 = vmul.f32 %v748, %v550
        %v753 = vmul.f32 %v749, %v550
        %v754 = vmul.f32 %v750, %v550
        %v755 = vmul.f32 %v751, %v550
        %v756 = vadd.f32 %v752, %v560
        %v757 = vadd.f32 %v753, %v560
        %v758 = vadd.f32 %v754, %v560
        %v759 = vadd.f32 %v755, %v560
        %v760 = vmax.f32 %v756, 0.0
        %v761 = vmax.f32 %v757, 0.0
        %v762 = vmax.f32 %v758, 0.0
        %v763 = vmax.f32 %v759, 0.0
        %v764 = vmax.f32 %v566, %v760
        %v765 = vmax.f32 %v567, %v761
        %v766 = vmax.f32 %v568, %v762
        %v767 = vmax.f32 %v569, %v763
        %vm768 = vcmask 228352
        %v770 = vsel %vm768, %v217, 0
        %v773 = vsel %vm768, %v218, 0
        %vm775 = vcmask 1043456
        %v777 = vsel %vm775, %v767, 0
        %779 = vmatprep.subr.mxu0 0.0
        %780 = vmatpush1.msra.mxu0 %v764
        %781 = vmatprep.subr.mxu0 0.0
        %782 = vmatpush1.msra.mxu0 %v765
        %783 = vmatprep.subr.mxu0 0.0
        %784 = vmatpush1.msra.mxu0 %v766
        %785 = vmatprep.subr.mxu0 0.0
        %786 = vmatpush1.msra.mxu0 %v777
        %787 = vmatprep.subr.mxu0 0.0
        %788 = vmatpush1.msra.mxu0 0.0
        %789 = vmatprep.subr.mxu0 0.0
        %790 = vmatpush1.msra.mxu0 0.0
        %791 = vmatprep.subr.mxu0 0.0
        %792 = vmatpush1.msra.mxu0 0.0
        %793 = vmatprep.subr.mxu0 0.0
        %794 = vmatpush1.msra.mxu0 0.0
        %795 = vmatprep.subr.mxu0 0.0
        %796 = vmatpush1.msra.mxu0 0.0
        %797 = vmatprep.subr.mxu0 0.0
        %798 = vmatpush1.msra.mxu0 0.0
        %799 = vmatprep.subr.mxu0 0.0
        %800 = vmatpush1.msra.mxu0 0.0
        %801 = vmatprep.subr.mxu0 0.0
        %802 = vmatpush1.msra.mxu0 0.0
        %803 = vmatprep.subr.mxu0 0.0
        %804 = vmatpush1.msra.mxu0 0.0
        %805 = vmatprep.subr.mxu0 0.0
        %806 = vmatpush1.msra.mxu0 0.0
        %807 = vmatprep.subr.mxu0 0.0
        %808 = vmatpush1.msra.mxu0 0.0
        %809 = vmatprep.subr.mxu0 0.0
        %810 = vmatpush1.msra.mxu0 0.0
        %811 = vmatprep.subr.mxu0 0.0
        %812 = vmatpush1.msra.mxu0 0.0
        %813 = vmatprep.subr.mxu0 0.0
        %814 = vmatpush1.msra.mxu0 0.0
        %815 = vmatprep.subr.mxu0 0.0
        %816 = vmatpush1.msra.mxu0 0.0
        %817 = vmatprep.subr.mxu0 0.0
        %818 = vmatpush1.msra.mxu0 0.0
        %819 = vmatprep.subr.mxu0 0.0
        %820 = vmatpush1.msra.mxu0 0.0
        %821 = vmatprep.subr.mxu0 0.0
        %822 = vmatpush1.msra.mxu0 0.0
        %823 = vmatprep.subr.mxu0 0.0
        %824 = vmatpush1.msra.mxu0 0.0
        %825 = vmatprep.subr.mxu0 0.0
        %826 = vmatpush1.msra.mxu0 0.0
        %827 = vmatprep.subr.mxu0 0.0
        %828 = vmatpush1.msra.mxu0 0.0
        %829 = vmatprep.subr.mxu0 0.0
        %830 = vmatpush1.msra.mxu0 0.0
        %831 = vmatprep.subr.mxu0 0.0
        %832 = vmatpush1.msra.mxu0 0.0
        %833 = vmatprep.subr.mxu0 0.0
        %834 = vmatpush1.msra.mxu0 0.0
        %835 = vmatprep.subr.mxu0 0.0
        %836 = vmatpush1.msra.mxu0 0.0
        %837 = vmatprep.subr.mxu0 0.0
        %838 = vmatpush1.msra.mxu0 0.0
        %839 = vmatprep.subr.mxu0 0.0
        %840 = vmatpush1.msra.mxu0 0.0
        %841 = vmatprep.subr.mxu0 0.0
        %842 = vmatpush1.msra.mxu0 0.0
        %843 = vmatprep.mubr.f32.mxu0 0.0
        %844 = vmatmul.mubr.f32.gmra.mrb[0].mxu0 %v770
        %v845 = vpop.f32.mrb[0].mxu0
        %v846 = vadd.f32 0.0, %v845
        %v847 = vpop.f32.mrb[0].mxu0
        %848 = vmatprep.mubr.f32.mxu0 0.0
        %849 = vmatmul.mubr.f32.gmra.mrb[0].mxu0 %v773
        %v850 = vpop.f32.mrb[0].mxu0
        %v851 = vadd.f32 0.0, %v850
        %v852 = vpop.f32.mrb[0].mxu0
        %853 = vdwg.mxu0
        %v855 = vsel %vm768, %v225, 0
        %v858 = vsel %vm768, %v226, 0
        %860 = vmatprep.subr.mxu0 0.0
        %861 = vmatpush1.msra.mxu0 %v764
        %862 = vmatprep.subr.mxu0 0.0
        %863 = vmatpush1.msra.mxu0 %v765
        %864 = vmatprep.subr.mxu0 0.0
        %865 = vmatpush1.msra.mxu0 %v766
        %866 = vmatprep.subr.mxu0 0.0
        %867 = vmatpush1.msra.mxu0 %v777
        %868 = vmatprep.subr.mxu0 0.0
        %869 = vmatpush1.msra.mxu0 0.0
        %870 = vmatprep.subr.mxu0 0.0
        %871 = vmatpush1.msra.mxu0 0.0
        %872 = vmatprep.subr.mxu0 0.0
        %873 = vmatpush1.msra.mxu0 0.0
        %874 = vmatprep.subr.mxu0 0.0
        %875 = vmatpush1.msra.mxu0 0.0
        %876 = vmatprep.subr.mxu0 0.0
        %877 = vmatpush1.msra.mxu0 0.0
        %878 = vmatprep.subr.mxu0 0.0
        %879 = vmatpush1.msra.mxu0 0.0
        %880 = vmatprep.subr.mxu0 0.0
        %881 = vmatpush1.msra.mxu0 0.0
        %882 = vmatprep.subr.mxu0 0.0
        %883 = vmatpush1.msra.mxu0 0.0
        %884 = vmatprep.subr.mxu0 0.0
        %885 = vmatpush1.msra.mxu0 0.0
        %886 = vmatprep.subr.mxu0 0.0
        %887 = vmatpush1.msra.mxu0 0.0
        %888 = vmatprep.subr.mxu0 0.0
        %889 = vmatpush1.msra.mxu0 0.0
        %890 = vmatprep.subr.mxu0 0.0
        %891 = vmatpush1.msra.mxu0 0.0
        %892 = vmatprep.subr.mxu0 0.0
        %893 = vmatpush1.msra.mxu0 0.0
        %894 = vmatprep.subr.mxu0 0.0
        %895 = vmatpush1.msra.mxu0 0.0
        %896 = vmatprep.subr.mxu0 0.0
        %897 = vmatpush1.msra.mxu0 0.0
        %898 = vmatprep.subr.mxu0 0.0
        %899 = vmatpush1.msra.mxu0 0.0
        %900 = vmatprep.subr.mxu0 0.0
        %901 = vmatpush1.msra.mxu0 0.0
        %902 = vmatprep.subr.mxu0 0.0
        %903 = vmatpush1.msra.mxu0 0.0
        %904 = vmatprep.subr.mxu0 0.0
        %905 = vmatpush1.msra.mxu0 0.0
        %906 = vmatprep.subr.mxu0 0.0
        %907 = vmatpush1.msra.mxu0 0.0
        %908 = vmatprep.subr.mxu0 0.0
        %909 = vmatpush1.msra.mxu0 0.0
        %910 = vmatprep.subr.mxu0 0.0
        %911 = vmatpush1.msra.mxu0 0.0
        %912 = vmatprep.subr.mxu0 0.0
        %913 = vmatpush1.msra.mxu0 0.0
        %914 = vmatprep.subr.mxu0 0.0
        %915 = vmatpush1.msra.mxu0 0.0
        %916 = vmatprep.subr.mxu0 0.0
        %917 = vmatpush1.msra.mxu0 0.0
        %918 = vmatprep.subr.mxu0 0.0
        %919 = vmatpush1.msra.mxu0 0.0
        %920 = vmatprep.subr.mxu0 0.0
        %921 = vmatpush1.msra.mxu0 0.0
        %922 = vmatprep.subr.mxu0 0.0
        %923 = vmatpush1.msra.mxu0 0.0
        %924 = vmatprep.mubr.f32.mxu0 0.0
        %925 = vmatmul.mubr.f32.gmra.mrb[0].mxu0 %v855
        %v926 = vpop.f32.mrb[0].mxu0
        %v927 = vadd.f32 0.0, %v926
        %v928 = vpop.f32.mrb[0].mxu0
        %929 = vmatprep.mubr.f32.mxu0 0.0
        %930 = vmatmul.mubr.f32.gmra.mrb[0].mxu0 %v858
        %v931 = vpop.f32.mrb[0].mxu0
        %v932 = vadd.f32 0.0, %v931
        %v933 = vpop.f32.mrb[0].mxu0
        %934 = vdwg.mxu0
        %v935 = vmax.f32 %v846, %v927
        %v936 = vmax.f32 %v851, %v932
        %s937 = sadd.s32 %s236, 1
        %s938 = smul.u32 %s937, 16
        %s939 = scalar_lea.vmem %s197, %s938
        %940 = vst.msk [vmem:[%s939] sm:$0xff] %vm229, %v935
        %941 = vst.msk [vmem:[%s939 + $0x8] sm:$0xff] %vm229, %v936
      $region41: #{forward.5} parent=35 // loop_footer
        %s240 = sadd.s32 1, %s236
      $region42: #{forward.5} parent=35 // loop_footer_branch
        %235 = sbr.rel target = $region38
      $region43: #{forward.5} parent=35 // loop_exit
        _
      %p942 = scmp.lt.s32.totalorder %s15, 1
      %s943 = scalar_select %p942, %s15, 1
      %s944 = smul.addr %s943, 32
      %s945 = smul.addr %s944, 8
      %s946 = scalar_lea.vmem %s4, %s945
      // Predicated region
      $region44: #{forward.5} parent=35 // pred_check
        %p947 = pneg %p122
      $region45: #{forward.5} parent=35 // pred_check_branch
        %949 = sbr.rel (%p947) target = $region47
      $region46: #{forward.5} parent=35 // pred_region
        _
      $region47: #{forward.5} parent=35 // pred_fallthru
        _
    $region36: #{forward.5} parent=5 // pred_fallthru
      _
    %p950 = scmp.le.s32.totalorder 2, %s10
    // Predicated region
    $region48: #{forward.5} parent=5 // pred_check
      %p951 = pneg %p950
    $region49: #{forward.5} parent=5 // pred_check_branch
      %953 = sbr.rel (%p951) target = $region51
    $region50: #{forward.5} parent=5 // pred_region
      %s954 = ssub.s32 %s10, 2
      // Predicated region
      $region52: #{forward.5} parent=50 // pred_check
        %p955 = pneg %p128
      $region53: #{forward.5} parent=50 // pred_check_branch
        %957 = sbr.rel (%p955) target = $region55
      $region54: #{forward.5} parent=50 // pred_region
        %p958 = scmp.lt.s32.totalorder %s16, 1
        %s959 = scalar_select %p958, %s16, 1
        %s960 = smul.addr %s959, 32
        %s961 = smul.addr %s960, 8
        %s962 = scalar_lea.vmem %s4, %s961
      $region55: #{forward.5} parent=50 // pred_fallthru
        _
    $region51: #{forward.5} parent=5 // pred_fallthru
      _
  $region6: #{forward.5} parent=0 // loop_footer
    %s14 = sadd.s32 1, %s10
  $region7: #{forward.5} parent=0 // loop_footer_branch
    %9 = sbr.rel target = $region3
  $region8: #{forward.5} parent=0 // loop_exit
    _

// kernel: forward.6
$region0: #{forward.6}
  #allocation0 [shape = 'u32[]', space=smem, size = 0x4, offset = 0x4, fixed_abs, tag = 'smem constant byte address 0x4 - core index']
  #allocation1 [shape = 'u32[144,128]{1,0:T(1,128)}', space=vmem, size = 0x12000, scoped, tag = 'internal scratch']
  %s0 = inlined_call_operand.vmem [shape: f32[2,16,16,32], index: 0, kind: input, shape index: {}]
  %s1 = inlined_call_operand.vmem [shape: bf16[9,32,64], index: 1, kind: input, shape index: {}]
  %s2 = inlined_call_operand.vmem [shape: f32[1,64], index: 2, kind: input, shape index: {}]
  %s3 = inlined_call_operand.vmem [shape: f32[1,64], index: 3, kind: input, shape index: {}]
  %s4 = inlined_call_operand.vmem [shape: f32[2,9,9,64], index: 4, kind: output, shape index: {}]
  %s5 = sld [smem:[#allocation0]]
  $region56: #{forward.6} parent=0
    _
  %s7 = ssub.s32 1, %s5
  %s8 = scalar_select 0, %s7, %s5
  loop: start=0, step=1, limit=4
  $region2: #{forward.6} parent=0 // loop_pre_header
    _
  $region3: #{forward.6} parent=0 // loop_header
    %s10 = sphi 0, %s14
    %p11 = scmp.ge.s32.totalorder %s10, 4
    %s20 = sphi 0, %s22
    %s23 = sphi 0, %s20
    %s24 = sphi 0, %s23
    %s40 = sphi 0, %s24
    %s44 = sphi 0, %s44
    %s46 = sphi 0, %s44
    %s47 = sphi 0, %s46
    %s61 = sphi 0, %s47
    %s65 = sphi 0, %s65
    %s67 = sphi 0, %s65
    %s68 = sphi 0, %s67
    %s82 = sphi 0, %s68
    %s86 = sphi 0, %s86
    %s88 = sphi 0, %s86
    %s89 = sphi 0, %s88
    %s103 = sphi 0, %s89
    %s109 = sphi 0, %s111
    %s112 = sphi 0, %s109
    %s113 = sphi 0, %s112
    %s129 = sphi 0, %s113
  $region4: #{forward.6} parent=0 // loop_header_branch
    %13 = sbr.rel (%p11) target = $region8
  $region5: #{forward.6} parent=0 // loop_body
    %s15 = ssub.s32 %s10, 1
    %s16 = ssub.s32 %s10, 2
    %s17 = sadd.s32 %s10, 1
    %s18 = ssub.s32 %s10, %s17
    %p19 = scmp.eq.s32.totalorder %s18, 0
    %s21 = sadd.s32 %s20, 1
    %s22 = scalar_select %p19, %s20, %s21
    %p25 = pneg %p19
    %p26 = scmp.eq.s32.totalorder %s10, 1
    %p27 = por %p25, %p26
    %p28 = scmp.ne.s32.totalorder %s20, %s23
    %p29 = scmp.eq.s32.totalorder %s10, 0
    %p30 = por %p28, %p29
    %p31 = scmp.ne.s32.totalorder %s20, %s23
    %p32 = scmp.eq.s32.totalorder %s15, 1
    %p33 = por %p31, %p32
    %p34 = scmp.ne.s32.totalorder %s23, %s24
    %p35 = scmp.eq.s32.totalorder %s15, 0
    %p36 = por %p34, %p35
    %p37 = scmp.ne.s32.totalorder %s23, %s24
    %p38 = scmp.eq.s32.totalorder %s16, 1
    %p39 = por %p37, %p38
    %p41 = scmp.ne.s32.totalorder %s24, %s40
    %p42 = scmp.eq.s32.totalorder %s16, 0
    %p43 = por %p41, %p42
    %s45 = sadd.s32 %s44, 1
    %p48 = scmp.eq.s32.totalorder %s10, 1
    %p49 = scmp.ne.s32.totalorder %s44, %s46
    %p50 = scmp.eq.s32.totalorder %s10, 0
    %p51 = por %p49, %p50
    %p52 = scmp.ne.s32.totalorder %s44, %s46
    %p53 = scmp.eq.s32.totalorder %s15, 1
    %p54 = por %p52, %p53
    %p55 = scmp.ne.s32.totalorder %s46, %s47
    %p56 = scmp.eq.s32.totalorder %s15, 0
    %p57 = por %p55, %p56
    %p58 = scmp.ne.s32.totalorder %s46, %s47
    %p59 = scmp.eq.s32.totalorder %s16, 1
    %p60 = por %p58, %p59
    %p62 = scmp.ne.s32.totalorder %s47, %s61
    %p63 = scmp.eq.s32.totalorder %s16, 0
    %p64 = por %p62, %p63
    %s66 = sadd.s32 %s65, 1
    %p69 = scmp.eq.s32.totalorder %s10, 1
    %p70 = scmp.ne.s32.totalorder %s65, %s67
    %p71 = scmp.eq.s32.totalorder %s10, 0
    %p72 = por %p70, %p71
    %p73 = scmp.ne.s32.totalorder %s65, %s67
    %p74 = scmp.eq.s32.totalorder %s15, 1
    %p75 = por %p73, %p74
    %p76 = scmp.ne.s32.totalorder %s67, %s68
    %p77 = scmp.eq.s32.totalorder %s15, 0
    %p78 = por %p76, %p77
    %p79 = scmp.ne.s32.totalorder %s67, %s68
    %p80 = scmp.eq.s32.totalorder %s16, 1
    %p81 = por %p79, %p80
    %p83 = scmp.ne.s32.totalorder %s68, %s82
    %p84 = scmp.eq.s32.totalorder %s16, 0
    %p85 = por %p83, %p84
    %s87 = sadd.s32 %s86, 1
    %p90 = scmp.eq.s32.totalorder %s10, 1
    %p91 = scmp.ne.s32.totalorder %s86, %s88
    %p92 = scmp.eq.s32.totalorder %s10, 0
    %p93 = por %p91, %p92
    %p94 = scmp.ne.s32.totalorder %s86, %s88
    %p95 = scmp.eq.s32.totalorder %s15, 1
    %p96 = por %p94, %p95
    %p97 = scmp.ne.s32.totalorder %s88, %s89
    %p98 = scmp.eq.s32.totalorder %s15, 0
    %p99 = por %p97, %p98
    %p100 = scmp.ne.s32.totalorder %s88, %s89
    %p101 = scmp.eq.s32.totalorder %s16, 1
    %p102 = por %p100, %p101
    %p104 = scmp.ne.s32.totalorder %s89, %s103
    %p105 = scmp.eq.s32.totalorder %s16, 0
    %p106 = por %p104, %p105
    %s107 = ssub.s32 %s10, %s17
    %p108 = scmp.eq.s32.totalorder %s107, 0
    %s110 = sadd.s32 %s109, 1
    %s111 = scalar_select %p108, %s109, %s110
    %p114 = pneg %p108
    %p115 = scmp.eq.s32.totalorder %s10, 1
    %p116 = por %p114, %p115
    %p117 = scmp.ne.s32.totalorder %s109, %s112
    %p118 = scmp.eq.s32.totalorder %s10, 0
    %p119 = por %p117, %p118
    %p120 = scmp.ne.s32.totalorder %s109, %s112
    %p121 = scmp.eq.s32.totalorder %s15, 1
    %p122 = por %p120, %p121
    %p123 = scmp.ne.s32.totalorder %s112, %s113
    %p124 = scmp.eq.s32.totalorder %s15, 0
    %p125 = por %p123, %p124
    %p126 = scmp.ne.s32.totalorder %s112, %s113
    %p127 = scmp.eq.s32.totalorder %s16, 1
    %p128 = por %p126, %p127
    %p130 = scmp.ne.s32.totalorder %s113, %s129
    %p131 = scmp.eq.s32.totalorder %s16, 0
    %p132 = por %p130, %p131
    %p133 = scmp.le.s32.totalorder 1, %s10
    %p134 = scmp.lt.s32.totalorder %s10, 3
    %p135 = pnand %p133, %p134
    %p136 = pneg %p135
    // Predicated region
    $region9: #{forward.6} parent=5 // pred_check
      _
    $region10: #{forward.6} parent=5 // pred_check_branch
      %138 = sbr.rel (%p135) target = $region12
    $region11: #{forward.6} parent=5 // pred_region
      %s139 = ssub.s32 %s10, 1
      // Predicated region
      $region13: #{forward.6} parent=11 // pred_check
        %p140 = pneg %p57
      $region14: #{forward.6} parent=11 // pred_check_branch
        %142 = sbr.rel (%p140) target = $region16
      $region15: #{forward.6} parent=11 // pred_region
        _
      $region16: #{forward.6} parent=11 // pred_fallthru
        _
      // Predicated region
      $region17: #{forward.6} parent=11 // pred_check
        %p143 = pneg %p78
      $region18: #{forward.6} parent=11 // pred_check_branch
        %145 = sbr.rel (%p143) target = $region20
      $region19: #{forward.6} parent=11 // pred_region
        _
      $region20: #{forward.6} parent=11 // pred_fallthru
        _
      // Predicated region
      $region21: #{forward.6} parent=11 // pred_check
        %p146 = pneg %p99
      $region22: #{forward.6} parent=11 // pred_check_branch
        %148 = sbr.rel (%p146) target = $region24
      $region23: #{forward.6} parent=11 // pred_region
        _
      $region24: #{forward.6} parent=11 // pred_fallthru
        _
    $region12: #{forward.6} parent=5 // pred_fallthru
      _
    %p149 = scmp.lt.s32.totalorder %s10, 2
    // Predicated region
    $region25: #{forward.6} parent=5 // pred_check
      %p150 = pneg %p149
    $region26: #{forward.6} parent=5 // pred_check_branch
      %152 = sbr.rel (%p150) target = $region28
    $region27: #{forward.6} parent=5 // pred_region
      // Predicated region
      $region29: #{forward.6} parent=27 // pred_check
        %p153 = pneg %p30
      $region30: #{forward.6} parent=27 // pred_check_branch
        %155 = sbr.rel (%p153) target = $region32
      $region31: #{forward.6} parent=27 // pred_region
        %p156 = scmp.lt.s32.totalorder %s10, 1
        %s157 = scalar_select %p156, %s10, 1
        %s158 = smul.addr %s157, 32
        %s159 = smul.addr %s158, 8
        %s160 = scalar_lea.vmem %s0, %s159
      $region32: #{forward.6} parent=27 // pred_fallthru
        _
    $region28: #{forward.6} parent=5 // pred_fallthru
      _
    %p161 = scmp.le.s32.totalorder 1, %s10
    %p162 = scmp.lt.s32.totalorder %s10, 3
    %p163 = pnand %p161, %p162
    %p164 = pneg %p163
    // Predicated region
    $region33: #{forward.6} parent=5 // pred_check
      _
    $region34: #{forward.6} parent=5 // pred_check_branch
      %166 = sbr.rel (%p163) target = $region36
    $region35: #{forward.6} parent=5 // pred_region
      %s167 = ssub.s32 %s10, 1
      %p168 = scmp.lt.s32.totalorder %s15, 1
      %s169 = scalar_select %p168, %s15, 1
      %s170 = smul.addr %s169, 32
      %s171 = smul.addr %s170, 8
      %s172 = scalar_lea.vmem %s0, %s171
      %p173 = pneg %p36
      %p174 = pneg %p33
      %p175 = pneg %p57
      %p176 = pneg %p54
      %p177 = pneg %p78
      %p178 = pneg %p75
      %p179 = pneg %p99
      %p180 = pneg %p96
      %p181 = pneg %p125
      %p182 = pneg %p122
      %p183 = scmp.lt.s32.totalorder %s15, 1
      %s184 = scalar_select %p183, %s15, 1
      %s185 = smul.addr %s184, 18
      %s186 = smul.addr %s185, 8
      %s187 = scalar_lea.vmem %s4, %s186
      %p188 = scmp.lt.s32.totalorder %s15, 1
      %s189 = scalar_select %p188, %s15, 1
      %s190 = smul.addr %s189, 32
      %s191 = smul.addr %s190, 8
      %s192 = scalar_lea.vmem %s0, %s191
      %p193 = scmp.lt.s32.totalorder %s15, 1
      %s194 = scalar_select %p193, %s15, 1
      %s195 = smul.addr %s194, 18
      %s196 = smul.addr %s195, 8
      %s197 = scalar_lea.vmem %s4, %s196
      %v199 = vlaneseq
      %v200 = vshrl.u32 %v199, 7
      %v201 = vadd.s32 %v200, 8
      %v202 = vlaneseq
      %v203 = vand.u32 %v202, 127
      %v204 = vsub.s32 %v200, 1
      %v205 = vsub.s32 %v201, 1
      %v206 = vmul.u32 %v204, 2
      %v207 = vmul.u32 %v205, 2
      %vm208 = vcmp.ge.s32.totalorder %v200, 1
      %vm209 = vcmp.ge.s32.totalorder %v201, 1
      %vm210 = vcmp.le.s32.totalorder %v200, 7
      %vm211 = vcmp.le.s32.totalorder %v201, 7
      %vm212 = vmand %vm208, %vm210
      %vm213 = vmand %vm209, %vm211
      %vm214 = vcmp.eq.s32.totalorder %v203, %v206
      %vm215 = vcmp.eq.s32.totalorder %v203, %v207
      %vm216 = vmand %vm214, %vm212
      %vm217 = vmand %vm215, %vm213
      %v218 = vsel %vm216, 1.0, 0.0
      %v219 = vsel %vm217, 1.0, 0.0
      %v220 = vadd.s32 %v206, 1
      %v221 = vadd.s32 %v207, 1
      %vm222 = vcmp.eq.s32.totalorder %v203, %v220
      %vm223 = vcmp.eq.s32.totalorder %v203, %v221
      %vm224 = vmand %vm222, %vm212
      %vm225 = vmand %vm223, %vm213
      %v226 = vsel %vm224, 1.0, 0.0
      %v227 = vsel %vm225, 1.0, 0.0
      %v228 = vld [vmem:[%s2] sm:$0x1]
      %v229 = vld [vmem:[%s3] sm:$0x1]
      %vm230 = vcmask 523264
      %231 = vst.msk [vmem:[%s197] sm:$0xff] %vm230, 0.0
      %vm232 = vcmask 516096
      %233 = vst.msk [vmem:[%s197 + $0x8] sm:$0x1] %vm232, 0.0
      %s234 = scalar_lea.vmem %s197, 128
      %235 = vst.msk [vmem:[%s234] sm:$0xff] %vm230, 0.0
      %236 = vst.msk [vmem:[%s234 + $0x8] sm:$0x1] %vm232, 0.0
      loop: start=0, step=1, limit=7
      $region37: #{forward.6} parent=35 // loop_pre_header
        _
      $region38: #{forward.6} parent=35 // loop_header
        %s238 = sphi 0, %s242
        %p239 = scmp.ge.s32.totalorder %s238, 7
      $region39: #{forward.6} parent=35 // loop_header_branch
        %241 = sbr.rel (%p239) target = $region43
      $region40: #{forward.6} parent=35 // loop_body
        %s243 = smul.u32 %s238, 2
        %s244 = smul.u32 %s243, 16
        %s245 = scalar_lea.vmem %s192, %s244
        %v246 = vld [vmem:[%s245] sm:$0xff]
        %v247 = vld [vmem:[%s245 + $0x8] sm:$0xff]
        %v248 = vld [vmem:[%s245 + $0x10] sm:$0xff]
        %v249 = vld [vmem:[%s245 + $0x18] sm:$0xff]
        %v250 = vld [vmem:[%s245 + $0x20] sm:$0xff]
        %v251 = vld [vmem:[%s245 + $0x28] sm:$0xff]
        %v252 = vld [vmem:[%s245 + $0x30] sm:$0xff]
        %v253 = vld [vmem:[%s245 + $0x38] sm:$0xff]
        %v254 = vld [vmem:[%s1] sm:$0xf]
        %v255 = vld [vmem:[%s1 + $0x4] sm:$0xf]
        %v256 = vld [vmem:[%s1 + $0x8] sm:$0xf]
        %v257 = vld [vmem:[%s1 + $0xc] sm:$0xf]
        %v258 = vpack.c.bf16 %v247, %v246
        %s259 = scalar_lea.vmem %s1, 16
        %v260 = vld [vmem:[%s259] sm:$0xf]
        %v261 = vld [vmem:[%s259 + $0x4] sm:$0xf]
        %v262 = vld [vmem:[%s259 + $0x8] sm:$0xf]
        %v263 = vld [vmem:[%s259 + $0xc] sm:$0xf]
        %v265 = vshrl.u32 %v258, 16
        %v267 = vshll.u32 %v258, 16
        %v269 = vrot.slane %v267, 1
        %v270 = vor.u32 %v265, %v269
        %v275 = vunpack.c.l.b16 %v260
        %v276 = vunpack.c.l.b16 %v261
        %v277 = vunpack.c.l.b16 %v262
        %v278 = vunpack.c.l.b16 %v263
        %v279 = vpack.c.b16 %v276, %v275
        %v280 = vpack.c.b16 %v278, %v277
        %vm283 = vcmask 261120
        %v285 = vsel %vm283, %v270, 0
        %287 = vmatprep.subr.bf16.mxu0 0
        %288 = vmatpush1.bf16.msra.mxu0 %v279
        %289 = vmatprep.subr.bf16.mxu0 0
        %290 = vmatpush1.bf16.msra.mxu0 %v280
        %291 = vmatprep.subr.bf16.mxu0 0
        %292 = vmatpush1.bf16.msra.mxu0 0
        %293 = vmatprep.subr.bf16.mxu0 0
        %294 = vmatpush1.bf16.msra.mxu0 0
        %295 = vmatprep.subr.bf16.mxu0 0
        %296 = vmatpush1.bf16.msra.mxu0 0
        %297 = vmatprep.subr.bf16.mxu0 0
        %298 = vmatpush1.bf16.msra.mxu0 0
        %299 = vmatprep.subr.bf16.mxu0 0
        %300 = vmatpush1.bf16.msra.mxu0 0
        %301 = vmatprep.subr.bf16.mxu0 0
        %302 = vmatpush1.bf16.msra.mxu0 0
        %303 = vmatprep.subr.bf16.mxu0 0
        %304 = vmatpush1.bf16.msra.mxu0 0
        %305 = vmatprep.subr.bf16.mxu0 0
        %306 = vmatpush1.bf16.msra.mxu0 0
        %307 = vmatprep.subr.bf16.mxu0 0
        %308 = vmatpush1.bf16.msra.mxu0 0
        %309 = vmatprep.subr.bf16.mxu0 0
        %310 = vmatpush1.bf16.msra.mxu0 0
        %311 = vmatprep.subr.bf16.mxu0 0
        %312 = vmatpush1.bf16.msra.mxu0 0
        %313 = vmatprep.subr.bf16.mxu0 0
        %314 = vmatpush1.bf16.msra.mxu0 0
        %315 = vmatprep.subr.bf16.mxu0 0
        %316 = vmatpush1.bf16.msra.mxu0 0
        %317 = vmatprep.subr.bf16.mxu0 0
        %318 = vmatpush1.bf16.msra.mxu0 0
        %319 = vmatprep.mubr.bf16.mxu0 0
        %320 = vmatmul.mubr.bf16.gmra.mrb[0].mxu0 %v285
        %v321 = vpop.f32.mrb[0].mxu0
        %v322 = vadd.f32 0.0, %v321
        %v323 = vpop.f32.mrb[0].mxu0
        %v324 = vpop.f32.mrb[0].mxu0
        %v325 = vadd.f32 0.0, %v324
        %v326 = vpop.f32.mrb[0].mxu0
        %327 = vdwg.mxu0
        %v332 = vunpack.c.l.b16 %v254
        %v333 = vunpack.c.l.b16 %v255
        %v334 = vunpack.c.l.b16 %v256
        %v335 = vunpack.c.l.b16 %v257
        %v336 = vpack.c.b16 %v333, %v332
        %v337 = vpack.c.b16 %v335, %v334
        %v340 = vsel %vm283, %v258, 0
        %342 = vmatprep.subr.bf16.mxu0 0
        %343 = vmatpush1.bf16.msra.mxu0 %v336
        %344 = vmatprep.subr.bf16.mxu0 0
        %345 = vmatpush1.bf16.msra.mxu0 %v337
        %346 = vmatprep.subr.bf16.mxu0 0
        %347 = vmatpush1.bf16.msra.mxu0 0
        %348 = vmatprep.subr.bf16.mxu0 0
        %349 = vmatpush1.bf16.msra.mxu0 0
        %350 = vmatprep.subr.bf16.mxu0 0
        %351 = vmatpush1.bf16.msra.mxu0 0
        %352 = vmatprep.subr.bf16.mxu0 0
        %353 = vmatpush1.bf16.msra.mxu0 0
        %354 = vmatprep.subr.bf16.mxu0 0
        %355 = vmatpush1.bf16.msra.mxu0 0
        %356 = vmatprep.subr.bf16.mxu0 0
        %357 = vmatpush1.bf16.msra.mxu0 0
        %358 = vmatprep.subr.bf16.mxu0 0
        %359 = vmatpush1.bf16.msra.mxu0 0
        %360 = vmatprep.subr.bf16.mxu0 0
        %361 = vmatpush1.bf16.msra.mxu0 0
        %362 = vmatprep.subr.bf16.mxu0 0
        %363 = vmatpush1.bf16.msra.mxu0 0
        %364 = vmatprep.subr.bf16.mxu0 0
        %365 = vmatpush1.bf16.msra.mxu0 0
        %366 = vmatprep.subr.bf16.mxu0 0
        %367 = vmatpush1.bf16.msra.mxu0 0
        %368 = vmatprep.subr.bf16.mxu0 0
        %369 = vmatpush1.bf16.msra.mxu0 0
        %370 = vmatprep.subr.bf16.mxu0 0
        %371 = vmatpush1.bf16.msra.mxu0 0
        %372 = vmatprep.subr.bf16.mxu0 0
        %373 = vmatpush1.bf16.msra.mxu0 0
        %374 = vmatprep.mubr.bf16.mxu0 0
        %375 = vmatmul.mubr.bf16.gmra.mrb[0].mxu0 %v340
        %v376 = vpop.f32.mrb[0].mxu0
        %v377 = vadd.f32 %v322, %v376
        %v378 = vpop.f32.mrb[0].mxu0
        %v379 = vpop.f32.mrb[0].mxu0
        %v380 = vadd.f32 %v325, %v379
        %v381 = vpop.f32.mrb[0].mxu0
        %382 = vdwg.mxu0
        %s383 = scalar_lea.vmem %s1, 32
        %v384 = vld [vmem:[%s383] sm:$0xf]
        %v385 = vld [vmem:[%s383 + $0x4] sm:$0xf]
        %v386 = vld [vmem:[%s383 + $0x8] sm:$0xf]
        %v387 = vld [vmem:[%s383 + $0xc] sm:$0xf]
        %v389 = vrot.slane %v258, 1
        %v394 = vunpack.c.l.b16 %v384
        %v395 = vunpack.c.l.b16 %v385
        %v396 = vunpack.c.l.b16 %v386
        %v397 = vunpack.c.l.b16 %v387
        %v398 = vpack.c.b16 %v395, %v394
        %v399 = vpack.c.b16 %v397, %v396
        %v403 = vsel %vm283, %v389, 0
        %405 = vmatprep.subr.bf16.mxu0 0
        %406 = vmatpush1.bf16.msra.mxu0 %v398
        %407 = vmatprep.subr.bf16.mxu0 0
        %408 = vmatpush1.bf16.msra.mxu0 %v399
        %409 = vmatprep.subr.bf16.mxu0 0
        %410 = vmatpush1.bf16.msra.mxu0 0
        %411 = vmatprep.subr.bf16.mxu0 0
        %412 = vmatpush1.bf16.msra.mxu0 0
        %413 = vmatprep.subr.bf16.mxu0 0
        %414 = vmatpush1.bf16.msra.mxu0 0
        %415 = vmatprep.subr.bf16.mxu0 0
        %416 = vmatpush1.bf16.msra.mxu0 0
        %417 = vmatprep.subr.bf16.mxu0 0
        %418 = vmatpush1.bf16.msra.mxu0 0
        %419 = vmatprep.subr.bf16.mxu0 0
        %420 = vmatpush1.bf16.msra.mxu0 0
        %421 = vmatprep.subr.bf16.mxu0 0
        %422 = vmatpush1.bf16.msra.mxu0 0
        %423 = vmatprep.subr.bf16.mxu0 0
        %424 = vmatpush1.bf16.msra.mxu0 0
        %425 = vmatprep.subr.bf16.mxu0 0
        %426 = vmatpush1.bf16.msra.mxu0 0
        %427 = vmatprep.subr.bf16.mxu0 0
        %428 = vmatpush1.bf16.msra.mxu0 0
        %429 = vmatprep.subr.bf16.mxu0 0
        %430 = vmatpush1.bf16.msra.mxu0 0
        %431 = vmatprep.subr.bf16.mxu0 0
        %432 = vmatpush1.bf16.msra.mxu0 0
        %433 = vmatprep.subr.bf16.mxu0 0
        %434 = vmatpush1.bf16.msra.mxu0 0
        %435 = vmatprep.subr.bf16.mxu0 0
        %436 = vmatpush1.bf16.msra.mxu0 0
        %437 = vmatprep.mubr.bf16.mxu0 0
        %438 = vmatmul.mubr.bf16.gmra.mrb[0].mxu0 %v403
        %v439 = vpop.f32.mrb[0].mxu0
        %v440 = vadd.f32 0.0, %v439
        %v441 = vpop.f32.mrb[0].mxu0
        %v442 = vpop.f32.mrb[0].mxu0
        %v443 = vadd.f32 0.0, %v442
        %v444 = vpop.f32.mrb[0].mxu0
        %445 = vdwg.mxu0
        %v446 = vadd.f32 %v377, %v440
        %v447 = vadd.f32 %v380, %v443
        %s448 = scalar_lea.vmem %s1, 48
        %v449 = vld [vmem:[%s448] sm:$0xf]
        %v450 = vld [vmem:[%s448 + $0x4] sm:$0xf]
        %v451 = vld [vmem:[%s448 + $0x8] sm:$0xf]
        %v452 = vld [vmem:[%s448 + $0xc] sm:$0xf]
        %v453 = vpack.c.bf16 %v249, %v248
        %v458 = vunpack.c.l.b16 %v449
        %v459 = vunpack.c.l.b16 %v450
        %v460 = vunpack.c.l.b16 %v451
        %v461 = vunpack.c.l.b16 %v452
        %v462 = vpack.c.b16 %v459, %v458
        %v463 = vpack.c.b16 %v461, %v460
        %v467 = vsel %vm283, %v453, 0
        %469 = vmatprep.subr.bf16.mxu0 0
        %470 = vmatpush1.bf16.msra.mxu0 %v462
        %471 = vmatprep.subr.bf16.mxu0 0
        %472 = vmatpush1.bf16.msra.mxu0 %v463
        %473 = vmatprep.subr.bf16.mxu0 0
        %474 = vmatpush1.bf16.msra.mxu0 0
        %475 = vmatprep.subr.bf16.mxu0 0
        %476 = vmatpush1.bf16.msra.mxu0 0
        %477 = vmatprep.subr.bf16.mxu0 0
        %478 = vmatpush1.bf16.msra.mxu0 0
        %479 = vmatprep.subr.bf16.mxu0 0
        %480 = vmatpush1.bf16.msra.mxu0 0
        %481 = vmatprep.subr.bf16.mxu0 0
        %482 = vmatpush1.bf16.msra.mxu0 0
        %483 = vmatprep.subr.bf16.mxu0 0
        %484 = vmatpush1.bf16.msra.mxu0 0
        %485 = vmatprep.subr.bf16.mxu0 0
        %486 = vmatpush1.bf16.msra.mxu0 0
        %487 = vmatprep.subr.bf16.mxu0 0
        %488 = vmatpush1.bf16.msra.mxu0 0
        %489 = vmatprep.subr.bf16.mxu0 0
        %490 = vmatpush1.bf16.msra.mxu0 0
        %491 = vmatprep.subr.bf16.mxu0 0
        %492 = vmatpush1.bf16.msra.mxu0 0
        %493 = vmatprep.subr.bf16.mxu0 0
        %494 = vmatpush1.bf16.msra.mxu0 0
        %495 = vmatprep.subr.bf16.mxu0 0
        %496 = vmatpush1.bf16.msra.mxu0 0
        %497 = vmatprep.subr.bf16.mxu0 0
        %498 = vmatpush1.bf16.msra.mxu0 0
        %499 = vmatprep.subr.bf16.mxu0 0
        %500 = vmatpush1.bf16.msra.mxu0 0
        %501 = vmatprep.mubr.bf16.mxu0 0
        %502 = vmatmul.mubr.bf16.gmra.mrb[0].mxu0 %v467
        %v503 = vpop.f32.mrb[0].mxu0
        %v504 = vadd.f32 0.0, %v503
        %v505 = vpop.f32.mrb[0].mxu0
        %v506 = vpop.f32.mrb[0].mxu0
        %v507 = vadd.f32 0.0, %v506
        %v508 = vpop.f32.mrb[0].mxu0
        %509 = vdwg.mxu0
        %v510 = vadd.f32 %v446, %v504
        %v511 = vadd.f32 %v447, %v507
        %s512 = scalar_lea.vmem %s1, 64
        %v513 = vld [vmem:[%s512] sm:$0xf]
        %v514 = vld [vmem:[%s512 + $0x4] sm:$0xf]
        %v515 = vld [vmem:[%s512 + $0x8] sm:$0xf]
        %v516 = vld [vmem:[%s512 + $0xc] sm:$0xf]
        %v517 = vshrl.u32 %v453, 16
        %v519 = vshll.u32 %v453, 16
        %v521 = vrot.slane %v519, 1
        %v522 = vor.u32 %v517, %v521
        %v527 = vunpack.c.l.b16 %v513
        %v528 = vunpack.c.l.b16 %v514
        %v529 = vunpack.c.l.b16 %v515
        %v530 = vunpack.c.l.b16 %v516
        %v531 = vpack.c.b16 %v528, %v527
        %v532 = vpack.c.b16 %v530, %v529
        %v536 = vsel %vm283, %v522, 0
        %538 = vmatprep.subr.bf16.mxu0 0
        %539 = vmatpush1.bf16.msra.mxu0 %v531
        %540 = vmatprep.subr.bf16.mxu0 0
        %541 = vmatpush1.bf16.msra.mxu0 %v532
        %542 = vmatprep.subr.bf16.mxu0 0
        %543 = vmatpush1.bf16.msra.mxu0 0
        %544 = vmatprep.subr.bf16.mxu0 0
        %545 = vmatpush1.bf16.msra.mxu0 0
        %546 = vmatprep.subr.bf16.mxu0 0
        %547 = vmatpush1.bf16.msra.mxu0 0
        %548 = vmatprep.subr.bf16.mxu0 0
        %549 = vmatpush1.bf16.msra.mxu0 0
        %550 = vmatprep.subr.bf16.mxu0 0
        %551 = vmatpush1.bf16.msra.mxu0 0
        %552 = vmatprep.subr.bf16.mxu0 0
        %553 = vmatpush1.bf16.msra.mxu0 0
        %554 = vmatprep.subr.bf16.mxu0 0
        %555 = vmatpush1.bf16.msra.mxu0 0
        %556 = vmatprep.subr.bf16.mxu0 0
        %557 = vmatpush1.bf16.msra.mxu0 0
        %558 = vmatprep.subr.bf16.mxu0 0
        %559 = vmatpush1.bf16.msra.mxu0 0
        %560 = vmatprep.subr.bf16.mxu0 0
        %561 = vmatpush1.bf16.msra.mxu0 0
        %562 = vmatprep.subr.bf16.mxu0 0
        %563 = vmatpush1.bf16.msra.mxu0 0
        %564 = vmatprep.subr.bf16.mxu0 0
        %565 = vmatpush1.bf16.msra.mxu0 0
        %566 = vmatprep.subr.bf16.mxu0 0
        %567 = vmatpush1.bf16.msra.mxu0 0
        %568 = vmatprep.subr.bf16.mxu0 0
        %569 = vmatpush1.bf16.msra.mxu0 0
        %570 = vmatprep.mubr.bf16.mxu0 0
        %571 = vmatmul.mubr.bf16.gmra.mrb[0].mxu0 %v536
        %v572 = vpop.f32.mrb[0].mxu0
        %v573 = vadd.f32 0.0, %v572
        %v574 = vpop.f32.mrb[0].mxu0
        %v575 = vpop.f32.mrb[0].mxu0
        %v576 = vadd.f32 0.0, %v575
        %v577 = vpop.f32.mrb[0].mxu0
        %578 = vdwg.mxu0
        %v579 = vadd.f32 %v510, %v573
        %v580 = vadd.f32 %v511, %v576
        %s581 = scalar_lea.vmem %s1, 80
        %v582 = vld [vmem:[%s581] sm:$0xf]
        %v583 = vld [vmem:[%s581 + $0x4] sm:$0xf]
        %v584 = vld [vmem:[%s581 + $0x8] sm:$0xf]
        %v585 = vld [vmem:[%s581 + $0xc] sm:$0xf]
        %v587 = vrot.slane %v453, 1
        %v592 = vunpack.c.l.b16 %v582
        %v593 = vunpack.c.l.b16 %v583
        %v594 = vunpack.c.l.b16 %v584
        %v595 = vunpack.c.l.b16 %v585
        %v596 = vpack.c.b16 %v593, %v592
        %v597 = vpack.c.b16 %v595, %v594
        %v601 = vsel %vm283, %v587, 0
        %603 = vmatprep.subr.bf16.mxu0 0
        %604 = vmatpush1.bf16.msra.mxu0 %v596
        %605 = vmatprep.subr.bf16.mxu0 0
        %606 = vmatpush1.bf16.msra.mxu0 %v597
        %607 = vmatprep.subr.bf16.mxu0 0
        %608 = vmatpush1.bf16.msra.mxu0 0
        %609 = vmatprep.subr.bf16.mxu0 0
        %610 = vmatpush1.bf16.msra.mxu0 0
        %611 = vmatprep.subr.bf16.mxu0 0
        %612 = vmatpush1.bf16.msra.mxu0 0
        %613 = vmatprep.subr.bf16.mxu0 0
        %614 = vmatpush1.bf16.msra.mxu0 0
        %615 = vmatprep.subr.bf16.mxu0 0
        %616 = vmatpush1.bf16.msra.mxu0 0
        %617 = vmatprep.subr.bf16.mxu0 0
        %618 = vmatpush1.bf16.msra.mxu0 0
        %619 = vmatprep.subr.bf16.mxu0 0
        %620 = vmatpush1.bf16.msra.mxu0 0
        %621 = vmatprep.subr.bf16.mxu0 0
        %622 = vmatpush1.bf16.msra.mxu0 0
        %623 = vmatprep.subr.bf16.mxu0 0
        %624 = vmatpush1.bf16.msra.mxu0 0
        %625 = vmatprep.subr.bf16.mxu0 0
        %626 = vmatpush1.bf16.msra.mxu0 0
        %627 = vmatprep.subr.bf16.mxu0 0
        %628 = vmatpush1.bf16.msra.mxu0 0
        %629 = vmatprep.subr.bf16.mxu0 0
        %630 = vmatpush1.bf16.msra.mxu0 0
        %631 = vmatprep.subr.bf16.mxu0 0
        %632 = vmatpush1.bf16.msra.mxu0 0
        %633 = vmatprep.subr.bf16.mxu0 0
        %634 = vmatpush1.bf16.msra.mxu0 0
        %635 = vmatprep.mubr.bf16.mxu0 0
        %636 = vmatmul.mubr.bf16.gmra.mrb[0].mxu0 %v601
        %v637 = vpop.f32.mrb[0].mxu0
        %v638 = vadd.f32 0.0, %v637
        %v639 = vpop.f32.mrb[0].mxu0
        %v640 = vpop.f32.mrb[0].mxu0
        %v641 = vadd.f32 0.0, %v640
        %v642 = vpop.f32.mrb[0].mxu0
        %643 = vdwg.mxu0
        %v644 = vadd.f32 %v579, %v638
        %v645 = vadd.f32 %v580, %v641
        %s646 = scalar_lea.vmem %s1, 96
        %v647 = vld [vmem:[%s646] sm:$0xf]
        %v648 = vld [vmem:[%s646 + $0x4] sm:$0xf]
        %v649 = vld [vmem:[%s646 + $0x8] sm:$0xf]
        %v650 = vld [vmem:[%s646 + $0xc] sm:$0xf]
        %v651 = vpack.c.bf16 %v251, %v250
        %v656 = vunpack.c.l.b16 %v647
        %v657 = vunpack.c.l.b16 %v648
        %v658 = vunpack.c.l.b16 %v649
        %v659 = vunpack.c.l.b16 %v650
        %v660 = vpack.c.b16 %v657, %v656
        %v661 = vpack.c.b16 %v659, %v658
        %v665 = vsel %vm283, %v651, 0
        %667 = vmatprep.subr.bf16.mxu0 0
        %668 = vmatpush1.bf16.msra.mxu0 %v660
        %669 = vmatprep.subr.bf16.mxu0 0
        %670 = vmatpush1.bf16.msra.mxu0 %v661
        %671 = vmatprep.subr.bf16.mxu0 0
        %672 = vmatpush1.bf16.msra.mxu0 0
        %673 = vmatprep.subr.bf16.mxu0 0
        %674 = vmatpush1.bf16.msra.mxu0 0
        %675 = vmatprep.subr.bf16.mxu0 0
        %676 = vmatpush1.bf16.msra.mxu0 0
        %677 = vmatprep.subr.bf16.mxu0 0
        %678 = vmatpush1.bf16.msra.mxu0 0
        %679 = vmatprep.subr.bf16.mxu0 0
        %680 = vmatpush1.bf16.msra.mxu0 0
        %681 = vmatprep.subr.bf16.mxu0 0
        %682 = vmatpush1.bf16.msra.mxu0 0
        %683 = vmatprep.subr.bf16.mxu0 0
        %684 = vmatpush1.bf16.msra.mxu0 0
        %685 = vmatprep.subr.bf16.mxu0 0
        %686 = vmatpush1.bf16.msra.mxu0 0
        %687 = vmatprep.subr.bf16.mxu0 0
        %688 = vmatpush1.bf16.msra.mxu0 0
        %689 = vmatprep.subr.bf16.mxu0 0
        %690 = vmatpush1.bf16.msra.mxu0 0
        %691 = vmatprep.subr.bf16.mxu0 0
        %692 = vmatpush1.bf16.msra.mxu0 0
        %693 = vmatprep.subr.bf16.mxu0 0
        %694 = vmatpush1.bf16.msra.mxu0 0
        %695 = vmatprep.subr.bf16.mxu0 0
        %696 = vmatpush1.bf16.msra.mxu0 0
        %697 = vmatprep.subr.bf16.mxu0 0
        %698 = vmatpush1.bf16.msra.mxu0 0
        %699 = vmatprep.mubr.bf16.mxu0 0
        %700 = vmatmul.mubr.bf16.gmra.mrb[0].mxu0 %v665
        %v701 = vpop.f32.mrb[0].mxu0
        %v702 = vadd.f32 0.0, %v701
        %v703 = vpop.f32.mrb[0].mxu0
        %v704 = vpop.f32.mrb[0].mxu0
        %v705 = vadd.f32 0.0, %v704
        %v706 = vpop.f32.mrb[0].mxu0
        %707 = vdwg.mxu0
        %v708 = vadd.f32 %v644, %v702
        %v709 = vadd.f32 %v645, %v705
        %s710 = scalar_lea.vmem %s1, 112
        %v711 = vld [vmem:[%s710] sm:$0xf]
        %v712 = vld [vmem:[%s710 + $0x4] sm:$0xf]
        %v713 = vld [vmem:[%s710 + $0x8] sm:$0xf]
        %v714 = vld [vmem:[%s710 + $0xc] sm:$0xf]
        %v715 = vshrl.u32 %v651, 16
        %v717 = vshll.u32 %v651, 16
        %v719 = vrot.slane %v717, 1
        %v720 = vor.u32 %v715, %v719
        %v725 = vunpack.c.l.b16 %v711
        %v726 = vunpack.c.l.b16 %v712
        %v727 = vunpack.c.l.b16 %v713
        %v728 = vunpack.c.l.b16 %v714
        %v729 = vpack.c.b16 %v726, %v725
        %v730 = vpack.c.b16 %v728, %v727
        %v734 = vsel %vm283, %v720, 0
        %736 = vmatprep.subr.bf16.mxu0 0
        %737 = vmatpush1.bf16.msra.mxu0 %v729
        %738 = vmatprep.subr.bf16.mxu0 0
        %739 = vmatpush1.bf16.msra.mxu0 %v730
        %740 = vmatprep.subr.bf16.mxu0 0
        %741 = vmatpush1.bf16.msra.mxu0 0
        %742 = vmatprep.subr.bf16.mxu0 0
        %743 = vmatpush1.bf16.msra.mxu0 0
        %744 = vmatprep.subr.bf16.mxu0 0
        %745 = vmatpush1.bf16.msra.mxu0 0
        %746 = vmatprep.subr.bf16.mxu0 0
        %747 = vmatpush1.bf16.msra.mxu0 0
        %748 = vmatprep.subr.bf16.mxu0 0
        %749 = vmatpush1.bf16.msra.mxu0 0
        %750 = vmatprep.subr.bf16.mxu0 0
        %751 = vmatpush1.bf16.msra.mxu0 0
        %752 = vmatprep.subr.bf16.mxu0 0
        %753 = vmatpush1.bf16.msra.mxu0 0
        %754 = vmatprep.subr.bf16.mxu0 0
        %755 = vmatpush1.bf16.msra.mxu0 0
        %756 = vmatprep.subr.bf16.mxu0 0
        %757 = vmatpush1.bf16.msra.mxu0 0
        %758 = vmatprep.subr.bf16.mxu0 0
        %759 = vmatpush1.bf16.msra.mxu0 0
        %760 = vmatprep.subr.bf16.mxu0 0
        %761 = vmatpush1.bf16.msra.mxu0 0
        %762 = vmatprep.subr.bf16.mxu0 0
        %763 = vmatpush1.bf16.msra.mxu0 0
        %764 = vmatprep.subr.bf16.mxu0 0
        %765 = vmatpush1.bf16.msra.mxu0 0
        %766 = vmatprep.subr.bf16.mxu0 0
        %767 = vmatpush1.bf16.msra.mxu0 0
        %768 = vmatprep.mubr.bf16.mxu0 0
        %769 = vmatmul.mubr.bf16.gmra.mrb[0].mxu0 %v734
        %v770 = vpop.f32.mrb[0].mxu0
        %v771 = vadd.f32 0.0, %v770
        %v772 = vpop.f32.mrb[0].mxu0
        %v773 = vpop.f32.mrb[0].mxu0
        %v774 = vadd.f32 0.0, %v773
        %v775 = vpop.f32.mrb[0].mxu0
        %776 = vdwg.mxu0
        %v777 = vadd.f32 %v708, %v771
        %v778 = vadd.f32 %v709, %v774
        %s779 = scalar_lea.vmem %s1, 128
        %v780 = vld [vmem:[%s779] sm:$0xf]
        %v781 = vld [vmem:[%s779 + $0x4] sm:$0xf]
        %v782 = vld [vmem:[%s779 + $0x8] sm:$0xf]
        %v783 = vld [vmem:[%s779 + $0xc] sm:$0xf]
        %v785 = vrot.slane %v651, 1
        %v790 = vunpack.c.l.b16 %v780
        %v791 = vunpack.c.l.b16 %v781
        %v792 = vunpack.c.l.b16 %v782
        %v793 = vunpack.c.l.b16 %v783
        %v794 = vpack.c.b16 %v791, %v790
        %v795 = vpack.c.b16 %v793, %v792
        %v799 = vsel %vm283, %v785, 0
        %801 = vmatprep.subr.bf16.mxu0 0
        %802 = vmatpush1.bf16.msra.mxu0 %v794
        %803 = vmatprep.subr.bf16.mxu0 0
        %804 = vmatpush1.bf16.msra.mxu0 %v795
        %805 = vmatprep.subr.bf16.mxu0 0
        %806 = vmatpush1.bf16.msra.mxu0 0
        %807 = vmatprep.subr.bf16.mxu0 0
        %808 = vmatpush1.bf16.msra.mxu0 0
        %809 = vmatprep.subr.bf16.mxu0 0
        %810 = vmatpush1.bf16.msra.mxu0 0
        %811 = vmatprep.subr.bf16.mxu0 0
        %812 = vmatpush1.bf16.msra.mxu0 0
        %813 = vmatprep.subr.bf16.mxu0 0
        %814 = vmatpush1.bf16.msra.mxu0 0
        %815 = vmatprep.subr.bf16.mxu0 0
        %816 = vmatpush1.bf16.msra.mxu0 0
        %817 = vmatprep.subr.bf16.mxu0 0
        %818 = vmatpush1.bf16.msra.mxu0 0
        %819 = vmatprep.subr.bf16.mxu0 0
        %820 = vmatpush1.bf16.msra.mxu0 0
        %821 = vmatprep.subr.bf16.mxu0 0
        %822 = vmatpush1.bf16.msra.mxu0 0
        %823 = vmatprep.subr.bf16.mxu0 0
        %824 = vmatpush1.bf16.msra.mxu0 0
        %825 = vmatprep.subr.bf16.mxu0 0
        %826 = vmatpush1.bf16.msra.mxu0 0
        %827 = vmatprep.subr.bf16.mxu0 0
        %828 = vmatpush1.bf16.msra.mxu0 0
        %829 = vmatprep.subr.bf16.mxu0 0
        %830 = vmatpush1.bf16.msra.mxu0 0
        %831 = vmatprep.subr.bf16.mxu0 0
        %832 = vmatpush1.bf16.msra.mxu0 0
        %833 = vmatprep.mubr.bf16.mxu0 0
        %834 = vmatmul.mubr.bf16.gmra.mrb[0].mxu0 %v799
        %v835 = vpop.f32.mrb[0].mxu0
        %v836 = vadd.f32 0.0, %v835
        %v837 = vpop.f32.mrb[0].mxu0
        %v838 = vpop.f32.mrb[0].mxu0
        %v839 = vadd.f32 0.0, %v838
        %v840 = vpop.f32.mrb[0].mxu0
        %841 = vdwg.mxu0
        %v842 = vadd.f32 %v777, %v836
        %v843 = vadd.f32 %v778, %v839
        %v845 = vlaneseq
        %v846 = vshrl.u32 %v845, 7
        %v847 = vsub.s32 0, %v846
        %v848 = vrot.slane %v228, %v847
        %v850 = vmul.f32 %v842, %v848
        %v851 = vmul.f32 %v843, %v848
        %v853 = vlaneseq
        %v854 = vshrl.u32 %v853, 7
        %v855 = vsub.s32 0, %v854
        %v856 = vrot.slane %v229, %v855
        %v858 = vadd.f32 %v850, %v856
        %v859 = vadd.f32 %v851, %v856
        %v860 = vmax.f32 %v858, 0.0
        %v861 = vmax.f32 %v859, 0.0
        %862 = vmatprep.subr.bf16.mxu0 0
        %863 = vmatpush1.bf16.msra.mxu0 %v279
        %864 = vmatprep.subr.bf16.mxu0 0
        %865 = vmatpush1.bf16.msra.mxu0 %v280
        %866 = vmatprep.subr.bf16.mxu0 0
        %867 = vmatpush1.bf16.msra.mxu0 0
        %868 = vmatprep.subr.bf16.mxu0 0
        %869 = vmatpush1.bf16.msra.mxu0 0
        %870 = vmatprep.subr.bf16.mxu0 0
        %871 = vmatpush1.bf16.msra.mxu0 0
        %872 = vmatprep.subr.bf16.mxu0 0
        %873 = vmatpush1.bf16.msra.mxu0 0
        %874 = vmatprep.subr.bf16.mxu0 0
        %875 = vmatpush1.bf16.msra.mxu0 0
        %876 = vmatprep.subr.bf16.mxu0 0
        %877 = vmatpush1.bf16.msra.mxu0 0
        %878 = vmatprep.subr.bf16.mxu0 0
        %879 = vmatpush1.bf16.msra.mxu0 0
        %880 = vmatprep.subr.bf16.mxu0 0
        %881 = vmatpush1.bf16.msra.mxu0 0
        %882 = vmatprep.subr.bf16.mxu0 0
        %883 = vmatpush1.bf16.msra.mxu0 0
        %884 = vmatprep.subr.bf16.mxu0 0
        %885 = vmatpush1.bf16.msra.mxu0 0
        %886 = vmatprep.subr.bf16.mxu0 0
        %887 = vmatpush1.bf16.msra.mxu0 0
        %888 = vmatprep.subr.bf16.mxu0 0
        %889 = vmatpush1.bf16.msra.mxu0 0
        %890 = vmatprep.subr.bf16.mxu0 0
        %891 = vmatpush1.bf16.msra.mxu0 0
        %892 = vmatprep.subr.bf16.mxu0 0
        %893 = vmatpush1.bf16.msra.mxu0 0
        %894 = vmatprep.mubr.bf16.mxu0 0
        %895 = vmatmul.mubr.bf16.gmra.mrb[0].mxu0 %v536
        %v896 = vpop.f32.mrb[0].mxu0
        %v897 = vadd.f32 0.0, %v896
        %v898 = vpop.f32.mrb[0].mxu0
        %v899 = vpop.f32.mrb[0].mxu0
        %v900 = vadd.f32 0.0, %v899
        %v901 = vpop.f32.mrb[0].mxu0
        %902 = vdwg.mxu0
        %903 = vmatprep.subr.bf16.mxu0 0
        %904 = vmatpush1.bf16.msra.mxu0 %v336
        %905 = vmatprep.subr.bf16.mxu0 0
        %906 = vmatpush1.bf16.msra.mxu0 %v337
        %907 = vmatprep.subr.bf16.mxu0 0
        %908 = vmatpush1.bf16.msra.mxu0 0
        %909 = vmatprep.subr.bf16.mxu0 0
        %910 = vmatpush1.bf16.msra.mxu0 0
        %911 = vmatprep.subr.bf16.mxu0 0
        %912 = vmatpush1.bf16.msra.mxu0 0
        %913 = vmatprep.subr.bf16.mxu0 0
        %914 = vmatpush1.bf16.msra.mxu0 0
        %915 = vmatprep.subr.bf16.mxu0 0
        %916 = vmatpush1.bf16.msra.mxu0 0
        %917 = vmatprep.subr.bf16.mxu0 0
        %918 = vmatpush1.bf16.msra.mxu0 0
        %919 = vmatprep.subr.bf16.mxu0 0
        %920 = vmatpush1.bf16.msra.mxu0 0
        %921 = vmatprep.subr.bf16.mxu0 0
        %922 = vmatpush1.bf16.msra.mxu0 0
        %923 = vmatprep.subr.bf16.mxu0 0
        %924 = vmatpush1.bf16.msra.mxu0 0
        %925 = vmatprep.subr.bf16.mxu0 0
        %926 = vmatpush1.bf16.msra.mxu0 0
        %927 = vmatprep.subr.bf16.mxu0 0
        %928 = vmatpush1.bf16.msra.mxu0 0
        %929 = vmatprep.subr.bf16.mxu0 0
        %930 = vmatpush1.bf16.msra.mxu0 0
        %931 = vmatprep.subr.bf16.mxu0 0
        %932 = vmatpush1.bf16.msra.mxu0 0
        %933 = vmatprep.subr.bf16.mxu0 0
        %934 = vmatpush1.bf16.msra.mxu0 0
        %935 = vmatprep.mubr.bf16.mxu0 0
        %936 = vmatmul.mubr.bf16.gmra.mrb[0].mxu0 %v467
        %v937 = vpop.f32.mrb[0].mxu0
        %v938 = vadd.f32 %v897, %v937
        %v939 = vpop.f32.mrb[0].mxu0
        %v940 = vpop.f32.mrb[0].mxu0
        %v941 = vadd.f32 %v900, %v940
        %v942 = vpop.f32.mrb[0].mxu0
        %943 = vdwg.mxu0
        %944 = vmatprep.subr.bf16.mxu0 0
        %945 = vmatpush1.bf16.msra.mxu0 %v398
        %946 = vmatprep.subr.bf16.mxu0 0
        %947 = vmatpush1.bf16.msra.mxu0 %v399
        %948 = vmatprep.subr.bf16.mxu0 0
        %949 = vmatpush1.bf16.msra.mxu0 0
        %950 = vmatprep.subr.bf16.mxu0 0
        %951 = vmatpush1.bf16.msra.mxu0 0
        %952 = vmatprep.subr.bf16.mxu0 0
        %953 = vmatpush1.bf16.msra.mxu0 0
        %954 = vmatprep.subr.bf16.mxu0 0
        %955 = vmatpush1.bf16.msra.mxu0 0
        %956 = vmatprep.subr.bf16.mxu0 0
        %957 = vmatpush1.bf16.msra.mxu0 0
        %958 = vmatprep.subr.bf16.mxu0 0
        %959 = vmatpush1.bf16.msra.mxu0 0
        %960 = vmatprep.subr.bf16.mxu0 0
        %961 = vmatpush1.bf16.msra.mxu0 0
        %962 = vmatprep.subr.bf16.mxu0 0
        %963 = vmatpush1.bf16.msra.mxu0 0
        %964 = vmatprep.subr.bf16.mxu0 0
        %965 = vmatpush1.bf16.msra.mxu0 0
        %966 = vmatprep.subr.bf16.mxu0 0
        %967 = vmatpush1.bf16.msra.mxu0 0
        %968 = vmatprep.subr.bf16.mxu0 0
        %969 = vmatpush1.bf16.msra.mxu0 0
        %970 = vmatprep.subr.bf16.mxu0 0
        %971 = vmatpush1.bf16.msra.mxu0 0
        %972 = vmatprep.subr.bf16.mxu0 0
        %973 = vmatpush1.bf16.msra.mxu0 0
        %974 = vmatprep.subr.bf16.mxu0 0
        %975 = vmatpush1.bf16.msra.mxu0 0
        %976 = vmatprep.mubr.bf16.mxu0 0
        %977 = vmatmul.mubr.bf16.gmra.mrb[0].mxu0 %v601
        %v978 = vpop.f32.mrb[0].mxu0
        %v979 = vadd.f32 0.0, %v978
        %v980 = vpop.f32.mrb[0].mxu0
        %v981 = vpop.f32.mrb[0].mxu0
        %v982 = vadd.f32 0.0, %v981
        %v983 = vpop.f32.mrb[0].mxu0
        %984 = vdwg.mxu0
        %v985 = vadd.f32 %v938, %v979
        %v986 = vadd.f32 %v941, %v982
        %987 = vmatprep.subr.bf16.mxu0 0
        %988 = vmatpush1.bf16.msra.mxu0 %v462
        %989 = vmatprep.subr.bf16.mxu0 0
        %990 = vmatpush1.bf16.msra.mxu0 %v463
        %991 = vmatprep.subr.bf16.mxu0 0
        %992 = vmatpush1.bf16.msra.mxu0 0
        %993 = vmatprep.subr.bf16.mxu0 0
        %994 = vmatpush1.bf16.msra.mxu0 0
        %995 = vmatprep.subr.bf16.mxu0 0
        %996 = vmatpush1.bf16.msra.mxu0 0
        %997 = vmatprep.subr.bf16.mxu0 0
        %998 = vmatpush1.bf16.msra.mxu0 0
        %999 = vmatprep.subr.bf16.mxu0 0
        %1000 = vmatpush1.bf16.msra.mxu0 0
        %1001 = vmatprep.subr.bf16.mxu0 0
        %1002 = vmatpush1.bf16.msra.mxu0 0
        %1003 = vmatprep.subr.bf16.mxu0 0
        %1004 = vmatpush1.bf16.msra.mxu0 0
        %1005 = vmatprep.subr.bf16.mxu0 0
        %1006 = vmatpush1.bf16.msra.mxu0 0
        %1007 = vmatprep.subr.bf16.mxu0 0
        %1008 = vmatpush1.bf16.msra.mxu0 0
        %1009 = vmatprep.subr.bf16.mxu0 0
        %1010 = vmatpush1.bf16.msra.mxu0 0
        %1011 = vmatprep.subr.bf16.mxu0 0
        %1012 = vmatpush1.bf16.msra.mxu0 0
        %1013 = vmatprep.subr.bf16.mxu0 0
        %1014 = vmatpush1.bf16.msra.mxu0 0
        %1015 = vmatprep.subr.bf16.mxu0 0
        %1016 = vmatpush1.bf16.msra.mxu0 0
        %1017 = vmatprep.subr.bf16.mxu0 0
        %1018 = vmatpush1.bf16.msra.mxu0 0
        %1019 = vmatprep.mubr.bf16.mxu0 0
        %1020 = vmatmul.mubr.bf16.gmra.mrb[0].mxu0 %v665
        %v1021 = vpop.f32.mrb[0].mxu0
        %v1022 = vadd.f32 0.0, %v1021
        %v1023 = vpop.f32.mrb[0].mxu0
        %v1024 = vpop.f32.mrb[0].mxu0
        %v1025 = vadd.f32 0.0, %v1024
        %v1026 = vpop.f32.mrb[0].mxu0
        %1027 = vdwg.mxu0
        %v1028 = vadd.f32 %v985, %v1022
        %v1029 = vadd.f32 %v986, %v1025
        %1030 = vmatprep.subr.bf16.mxu0 0
        %1031 = vmatpush1.bf16.msra.mxu0 %v531
        %1032 = vmatprep.subr.bf16.mxu0 0
        %1033 = vmatpush1.bf16.msra.mxu0 %v532
        %1034 = vmatprep.subr.bf16.mxu0 0
        %1035 = vmatpush1.bf16.msra.mxu0 0
        %1036 = vmatprep.subr.bf16.mxu0 0
        %1037 = vmatpush1.bf16.msra.mxu0 0
        %1038 = vmatprep.subr.bf16.mxu0 0
        %1039 = vmatpush1.bf16.msra.mxu0 0
        %1040 = vmatprep.subr.bf16.mxu0 0
        %1041 = vmatpush1.bf16.msra.mxu0 0
        %1042 = vmatprep.subr.bf16.mxu0 0
        %1043 = vmatpush1.bf16.msra.mxu0 0
        %1044 = vmatprep.subr.bf16.mxu0 0
        %1045 = vmatpush1.bf16.msra.mxu0 0
        %1046 = vmatprep.subr.bf16.mxu0 0
        %1047 = vmatpush1.bf16.msra.mxu0 0
        %1048 = vmatprep.subr.bf16.mxu0 0
        %1049 = vmatpush1.bf16.msra.mxu0 0
        %1050 = vmatprep.subr.bf16.mxu0 0
        %1051 = vmatpush1.bf16.msra.mxu0 0
        %1052 = vmatprep.subr.bf16.mxu0 0
        %1053 = vmatpush1.bf16.msra.mxu0 0
        %1054 = vmatprep.subr.bf16.mxu0 0
        %1055 = vmatpush1.bf16.msra.mxu0 0
        %1056 = vmatprep.subr.bf16.mxu0 0
        %1057 = vmatpush1.bf16.msra.mxu0 0
        %1058 = vmatprep.subr.bf16.mxu0 0
        %1059 = vmatpush1.bf16.msra.mxu0 0
        %1060 = vmatprep.subr.bf16.mxu0 0
        %1061 = vmatpush1.bf16.msra.mxu0 0
        %1062 = vmatprep.mubr.bf16.mxu0 0
        %1063 = vmatmul.mubr.bf16.gmra.mrb[0].mxu0 %v734
        %v1064 = vpop.f32.mrb[0].mxu0
        %v1065 = vadd.f32 0.0, %v1064
        %v1066 = vpop.f32.mrb[0].mxu0
        %v1067 = vpop.f32.mrb[0].mxu0
        %v1068 = vadd.f32 0.0, %v1067
        %v1069 = vpop.f32.mrb[0].mxu0
        %1070 = vdwg.mxu0
        %v1071 = vadd.f32 %v1028, %v1065
        %v1072 = vadd.f32 %v1029, %v1068
        %1073 = vmatprep.subr.bf16.mxu0 0
        %1074 = vmatpush1.bf16.msra.mxu0 %v596
        %1075 = vmatprep.subr.bf16.mxu0 0
        %1076 = vmatpush1.bf16.msra.mxu0 %v597
        %1077 = vmatprep.subr.bf16.mxu0 0
        %1078 = vmatpush1.bf16.msra.mxu0 0
        %1079 = vmatprep.subr.bf16.mxu0 0
        %1080 = vmatpush1.bf16.msra.mxu0 0
        %1081 = vmatprep.subr.bf16.mxu0 0
        %1082 = vmatpush1.bf16.msra.mxu0 0
        %1083 = vmatprep.subr.bf16.mxu0 0
        %1084 = vmatpush1.bf16.msra.mxu0 0
        %1085 = vmatprep.subr.bf16.mxu0 0
        %1086 = vmatpush1.bf16.msra.mxu0 0
        %1087 = vmatprep.subr.bf16.mxu0 0
        %1088 = vmatpush1.bf16.msra.mxu0 0
        %1089 = vmatprep.subr.bf16.mxu0 0
        %1090 = vmatpush1.bf16.msra.mxu0 0
        %1091 = vmatprep.subr.bf16.mxu0 0
        %1092 = vmatpush1.bf16.msra.mxu0 0
        %1093 = vmatprep.subr.bf16.mxu0 0
        %1094 = vmatpush1.bf16.msra.mxu0 0
        %1095 = vmatprep.subr.bf16.mxu0 0
        %1096 = vmatpush1.bf16.msra.mxu0 0
        %1097 = vmatprep.subr.bf16.mxu0 0
        %1098 = vmatpush1.bf16.msra.mxu0 0
        %1099 = vmatprep.subr.bf16.mxu0 0
        %1100 = vmatpush1.bf16.msra.mxu0 0
        %1101 = vmatprep.subr.bf16.mxu0 0
        %1102 = vmatpush1.bf16.msra.mxu0 0
        %1103 = vmatprep.subr.bf16.mxu0 0
        %1104 = vmatpush1.bf16.msra.mxu0 0
        %1105 = vmatprep.mubr.bf16.mxu0 0
        %1106 = vmatmul.mubr.bf16.gmra.mrb[0].mxu0 %v799
        %v1107 = vpop.f32.mrb[0].mxu0
        %v1108 = vadd.f32 0.0, %v1107
        %v1109 = vpop.f32.mrb[0].mxu0
        %v1110 = vpop.f32.mrb[0].mxu0
        %v1111 = vadd.f32 0.0, %v1110
        %v1112 = vpop.f32.mrb[0].mxu0
        %1113 = vdwg.mxu0
        %v1114 = vadd.f32 %v1071, %v1108
        %v1115 = vadd.f32 %v1072, %v1111
        %v1116 = vpack.c.bf16 %v253, %v252
        %v1118 = vsel %vm283, %v1116, 0
        %1120 = vmatprep.subr.bf16.mxu0 0
        %1121 = vmatpush1.bf16.msra.mxu0 %v660
        %1122 = vmatprep.subr.bf16.mxu0 0
        %1123 = vmatpush1.bf16.msra.mxu0 %v661
        %1124 = vmatprep.subr.bf16.mxu0 0
        %1125 = vmatpush1.bf16.msra.mxu0 0
        %1126 = vmatprep.subr.bf16.mxu0 0
        %1127 = vmatpush1.bf16.msra.mxu0 0
        %1128 = vmatprep.subr.bf16.mxu0 0
        %1129 = vmatpush1.bf16.msra.mxu0 0
        %1130 = vmatprep.subr.bf16.mxu0 0
        %1131 = vmatpush1.bf16.msra.mxu0 0
        %1132 = vmatprep.subr.bf16.mxu0 0
        %1133 = vmatpush1.bf16.msra.mxu0 0
        %1134 = vmatprep.subr.bf16.mxu0 0
        %1135 = vmatpush1.bf16.msra.mxu0 0
        %1136 = vmatprep.subr.bf16.mxu0 0
        %1137 = vmatpush1.bf16.msra.mxu0 0
        %1138 = vmatprep.subr.bf16.mxu0 0
        %1139 = vmatpush1.bf16.msra.mxu0 0
        %1140 = vmatprep.subr.bf16.mxu0 0
        %1141 = vmatpush1.bf16.msra.mxu0 0
        %1142 = vmatprep.subr.bf16.mxu0 0
        %1143 = vmatpush1.bf16.msra.mxu0 0
        %1144 = vmatprep.subr.bf16.mxu0 0
        %1145 = vmatpush1.bf16.msra.mxu0 0
        %1146 = vmatprep.subr.bf16.mxu0 0
        %1147 = vmatpush1.bf16.msra.mxu0 0
        %1148 = vmatprep.subr.bf16.mxu0 0
        %1149 = vmatpush1.bf16.msra.mxu0 0
        %1150 = vmatprep.subr.bf16.mxu0 0
        %1151 = vmatpush1.bf16.msra.mxu0 0
        %1152 = vmatprep.mubr.bf16.mxu0 0
        %1153 = vmatmul.mubr.bf16.gmra.mrb[0].mxu0 %v1118
        %v1154 = vpop.f32.mrb[0].mxu0
        %v1155 = vadd.f32 0.0, %v1154
        %v1156 = vpop.f32.mrb[0].mxu0
        %v1157 = vpop.f32.mrb[0].mxu0
        %v1158 = vadd.f32 0.0, %v1157
        %v1159 = vpop.f32.mrb[0].mxu0
        %1160 = vdwg.mxu0
        %v1161 = vadd.f32 %v1114, %v1155
        %v1162 = vadd.f32 %v1115, %v1158
        %v1163 = vshrl.u32 %v1116, 16
        %v1165 = vshll.u32 %v1116, 16
        %v1167 = vrot.slane %v1165, 1
        %v1168 = vor.u32 %v1163, %v1167
        %v1170 = vsel %vm283, %v1168, 0
        %1172 = vmatprep.subr.bf16.mxu0 0
        %1173 = vmatpush1.bf16.msra.mxu0 %v729
        %1174 = vmatprep.subr.bf16.mxu0 0
        %1175 = vmatpush1.bf16.msra.mxu0 %v730
        %1176 = vmatprep.subr.bf16.mxu0 0
        %1177 = vmatpush1.bf16.msra.mxu0 0
        %1178 = vmatprep.subr.bf16.mxu0 0
        %1179 = vmatpush1.bf16.msra.mxu0 0
        %1180 = vmatprep.subr.bf16.mxu0 0
        %1181 = vmatpush1.bf16.msra.mxu0 0
        %1182 = vmatprep.subr.bf16.mxu0 0
        %1183 = vmatpush1.bf16.msra.mxu0 0
        %1184 = vmatprep.subr.bf16.mxu0 0
        %1185 = vmatpush1.bf16.msra.mxu0 0
        %1186 = vmatprep.subr.bf16.mxu0 0
        %1187 = vmatpush1.bf16.msra.mxu0 0
        %1188 = vmatprep.subr.bf16.mxu0 0
        %1189 = vmatpush1.bf16.msra.mxu0 0
        %1190 = vmatprep.subr.bf16.mxu0 0
        %1191 = vmatpush1.bf16.msra.mxu0 0
        %1192 = vmatprep.subr.bf16.mxu0 0
        %1193 = vmatpush1.bf16.msra.mxu0 0
        %1194 = vmatprep.subr.bf16.mxu0 0
        %1195 = vmatpush1.bf16.msra.mxu0 0
        %1196 = vmatprep.subr.bf16.mxu0 0
        %1197 = vmatpush1.bf16.msra.mxu0 0
        %1198 = vmatprep.subr.bf16.mxu0 0
        %1199 = vmatpush1.bf16.msra.mxu0 0
        %1200 = vmatprep.subr.bf16.mxu0 0
        %1201 = vmatpush1.bf16.msra.mxu0 0
        %1202 = vmatprep.subr.bf16.mxu0 0
        %1203 = vmatpush1.bf16.msra.mxu0 0
        %1204 = vmatprep.mubr.bf16.mxu0 0
        %1205 = vmatmul.mubr.bf16.gmra.mrb[0].mxu0 %v1170
        %v1206 = vpop.f32.mrb[0].mxu0
        %v1207 = vadd.f32 0.0, %v1206
        %v1208 = vpop.f32.mrb[0].mxu0
        %v1209 = vpop.f32.mrb[0].mxu0
        %v1210 = vadd.f32 0.0, %v1209
        %v1211 = vpop.f32.mrb[0].mxu0
        %1212 = vdwg.mxu0
        %v1213 = vadd.f32 %v1161, %v1207
        %v1214 = vadd.f32 %v1162, %v1210
        %v1216 = vrot.slane %v1116, 1
        %v1218 = vsel %vm283, %v1216, 0
        %1220 = vmatprep.subr.bf16.mxu0 0
        %1221 = vmatpush1.bf16.msra.mxu0 %v794
        %1222 = vmatprep.subr.bf16.mxu0 0
        %1223 = vmatpush1.bf16.msra.mxu0 %v795
        %1224 = vmatprep.subr.bf16.mxu0 0
        %1225 = vmatpush1.bf16.msra.mxu0 0
        %1226 = vmatprep.subr.bf16.mxu0 0
        %1227 = vmatpush1.bf16.msra.mxu0 0
        %1228 = vmatprep.subr.bf16.mxu0 0
        %1229 = vmatpush1.bf16.msra.mxu0 0
        %1230 = vmatprep.subr.bf16.mxu0 0
        %1231 = vmatpush1.bf16.msra.mxu0 0
        %1232 = vmatprep.subr.bf16.mxu0 0
        %1233 = vmatpush1.bf16.msra.mxu0 0
        %1234 = vmatprep.subr.bf16.mxu0 0
        %1235 = vmatpush1.bf16.msra.mxu0 0
        %1236 = vmatprep.subr.bf16.mxu0 0
        %1237 = vmatpush1.bf16.msra.mxu0 0
        %1238 = vmatprep.subr.bf16.mxu0 0
        %1239 = vmatpush1.bf16.msra.mxu0 0
        %1240 = vmatprep.subr.bf16.mxu0 0
        %1241 = vmatpush1.bf16.msra.mxu0 0
        %1242 = vmatprep.subr.bf16.mxu0 0
        %1243 = vmatpush1.bf16.msra.mxu0 0
        %1244 = vmatprep.subr.bf16.mxu0 0
        %1245 = vmatpush1.bf16.msra.mxu0 0
        %1246 = vmatprep.subr.bf16.mxu0 0
        %1247 = vmatpush1.bf16.msra.mxu0 0
        %1248 = vmatprep.subr.bf16.mxu0 0
        %1249 = vmatpush1.bf16.msra.mxu0 0
        %1250 = vmatprep.subr.bf16.mxu0 0
        %1251 = vmatpush1.bf16.msra.mxu0 0
        %1252 = vmatprep.mubr.bf16.mxu0 0
        %1253 = vmatmul.mubr.bf16.gmra.mrb[0].mxu0 %v1218
        %v1254 = vpop.f32.mrb[0].mxu0
        %v1255 = vadd.f32 0.0, %v1254
        %v1256 = vpop.f32.mrb[0].mxu0
        %v1257 = vpop.f32.mrb[0].mxu0
        %v1258 = vadd.f32 0.0, %v1257
        %v1259 = vpop.f32.mrb[0].mxu0
        %1260 = vdwg.mxu0
        %v1261 = vadd.f32 %v1213, %v1255
        %v1262 = vadd.f32 %v1214, %v1258
        %v1263 = vmul.f32 %v1261, %v848
        %v1264 = vmul.f32 %v1262, %v848
        %v1265 = vadd.f32 %v1263, %v856
        %v1266 = vadd.f32 %v1264, %v856
        %v1267 = vmax.f32 %v1265, 0.0
        %v1268 = vmax.f32 %v1266, 0.0
        %v1269 = vmax.f32 %v860, %v1267
        %v1270 = vmax.f32 %v861, %v1268
        %vm1271 = vcmask 113664
        %v1273 = vsel %vm1271, %v218, 0
        %v1276 = vsel %vm1271, %v219, 0
        %vm1278 = vcmask 1045504
        %v1280 = vsel %vm1278, %v1270, 0
        %1282 = vmatprep.subr.mxu0 0.0
        %1283 = vmatpush1.msra.mxu0 %v1269
        %1284 = vmatprep.subr.mxu0 0.0
        %1285 = vmatpush1.msra.mxu0 %v1280
        %1286 = vmatprep.subr.mxu0 0.0
        %1287 = vmatpush1.msra.mxu0 0.0
        %1288 = vmatprep.subr.mxu0 0.0
        %1289 = vmatpush1.msra.mxu0 0.0
        %1290 = vmatprep.subr.mxu0 0.0
        %1291 = vmatpush1.msra.mxu0 0.0
        %1292 = vmatprep.subr.mxu0 0.0
        %1293 = vmatpush1.msra.mxu0 0.0
        %1294 = vmatprep.subr.mxu0 0.0
        %1295 = vmatpush1.msra.mxu0 0.0
        %1296 = vmatprep.subr.mxu0 0.0
        %1297 = vmatpush1.msra.mxu0 0.0
        %1298 = vmatprep.subr.mxu0 0.0
        %1299 = vmatpush1.msra.mxu0 0.0
        %1300 = vmatprep.subr.mxu0 0.0
        %1301 = vmatpush1.msra.mxu0 0.0
        %1302 = vmatprep.subr.mxu0 0.0
        %1303 = vmatpush1.msra.mxu0 0.0
        %1304 = vmatprep.subr.mxu0 0.0
        %1305 = vmatpush1.msra.mxu0 0.0
        %1306 = vmatprep.subr.mxu0 0.0
        %1307 = vmatpush1.msra.mxu0 0.0
        %1308 = vmatprep.subr.mxu0 0.0
        %1309 = vmatpush1.msra.mxu0 0.0
        %1310 = vmatprep.subr.mxu0 0.0
        %1311 = vmatpush1.msra.mxu0 0.0
        %1312 = vmatprep.subr.mxu0 0.0
        %1313 = vmatpush1.msra.mxu0 0.0
        %1314 = vmatprep.subr.mxu0 0.0
        %1315 = vmatpush1.msra.mxu0 0.0
        %1316 = vmatprep.subr.mxu0 0.0
        %1317 = vmatpush1.msra.mxu0 0.0
        %1318 = vmatprep.subr.mxu0 0.0
        %1319 = vmatpush1.msra.mxu0 0.0
        %1320 = vmatprep.subr.mxu0 0.0
        %1321 = vmatpush1.msra.mxu0 0.0
        %1322 = vmatprep.subr.mxu0 0.0
        %1323 = vmatpush1.msra.mxu0 0.0
        %1324 = vmatprep.subr.mxu0 0.0
        %1325 = vmatpush1.msra.mxu0 0.0
        %1326 = vmatprep.subr.mxu0 0.0
        %1327 = vmatpush1.msra.mxu0 0.0
        %1328 = vmatprep.subr.mxu0 0.0
        %1329 = vmatpush1.msra.mxu0 0.0
        %1330 = vmatprep.subr.mxu0 0.0
        %1331 = vmatpush1.msra.mxu0 0.0
        %1332 = vmatprep.subr.mxu0 0.0
        %1333 = vmatpush1.msra.mxu0 0.0
        %1334 = vmatprep.subr.mxu0 0.0
        %1335 = vmatpush1.msra.mxu0 0.0
        %1336 = vmatprep.subr.mxu0 0.0
        %1337 = vmatpush1.msra.mxu0 0.0
        %1338 = vmatprep.subr.mxu0 0.0
        %1339 = vmatpush1.msra.mxu0 0.0
        %1340 = vmatprep.subr.mxu0 0.0
        %1341 = vmatpush1.msra.mxu0 0.0
        %1342 = vmatprep.subr.mxu0 0.0
        %1343 = vmatpush1.msra.mxu0 0.0
        %1344 = vmatprep.subr.mxu0 0.0
        %1345 = vmatpush1.msra.mxu0 0.0
        %1346 = vmatprep.mubr.f32.mxu0 0.0
        %1347 = vmatmul.mubr.f32.gmra.mrb[0].mxu0 %v1273
        %v1348 = vpop.f32.mrb[0].mxu0
        %v1349 = vadd.f32 0.0, %v1348
        %v1350 = vpop.f32.mrb[0].mxu0
        %1351 = vmatprep.mubr.f32.mxu0 0.0
        %1352 = vmatmul.mubr.f32.gmra.mrb[0].mxu0 %v1276
        %v1353 = vpop.f32.mrb[0].mxu0
        %v1354 = vadd.f32 0.0, %v1353
        %v1355 = vpop.f32.mrb[0].mxu0
        %1356 = vdwg.mxu0
        %v1358 = vsel %vm1271, %v226, 0
        %v1361 = vsel %vm1271, %v227, 0
        %1363 = vmatprep.subr.mxu0 0.0
        %1364 = vmatpush1.msra.mxu0 %v1269
        %1365 = vmatprep.subr.mxu0 0.0
        %1366 = vmatpush1.msra.mxu0 %v1280
        %1367 = vmatprep.subr.mxu0 0.0
        %1368 = vmatpush1.msra.mxu0 0.0
        %1369 = vmatprep.subr.mxu0 0.0
        %1370 = vmatpush1.msra.mxu0 0.0
        %1371 = vmatprep.subr.mxu0 0.0
        %1372 = vmatpush1.msra.mxu0 0.0
        %1373 = vmatprep.subr.mxu0 0.0
        %1374 = vmatpush1.msra.mxu0 0.0
        %1375 = vmatprep.subr.mxu0 0.0
        %1376 = vmatpush1.msra.mxu0 0.0
        %1377 = vmatprep.subr.mxu0 0.0
        %1378 = vmatpush1.msra.mxu0 0.0
        %1379 = vmatprep.subr.mxu0 0.0
        %1380 = vmatpush1.msra.mxu0 0.0
        %1381 = vmatprep.subr.mxu0 0.0
        %1382 = vmatpush1.msra.mxu0 0.0
        %1383 = vmatprep.subr.mxu0 0.0
        %1384 = vmatpush1.msra.mxu0 0.0
        %1385 = vmatprep.subr.mxu0 0.0
        %1386 = vmatpush1.msra.mxu0 0.0
        %1387 = vmatprep.subr.mxu0 0.0
        %1388 = vmatpush1.msra.mxu0 0.0
        %1389 = vmatprep.subr.mxu0 0.0
        %1390 = vmatpush1.msra.mxu0 0.0
        %1391 = vmatprep.subr.mxu0 0.0
        %1392 = vmatpush1.msra.mxu0 0.0
        %1393 = vmatprep.subr.mxu0 0.0
        %1394 = vmatpush1.msra.mxu0 0.0
        %1395 = vmatprep.subr.mxu0 0.0
        %1396 = vmatpush1.msra.mxu0 0.0
        %1397 = vmatprep.subr.mxu0 0.0
        %1398 = vmatpush1.msra.mxu0 0.0
        %1399 = vmatprep.subr.mxu0 0.0
        %1400 = vmatpush1.msra.mxu0 0.0
        %1401 = vmatprep.subr.mxu0 0.0
        %1402 = vmatpush1.msra.mxu0 0.0
        %1403 = vmatprep.subr.mxu0 0.0
        %1404 = vmatpush1.msra.mxu0 0.0
        %1405 = vmatprep.subr.mxu0 0.0
        %1406 = vmatpush1.msra.mxu0 0.0
        %1407 = vmatprep.subr.mxu0 0.0
        %1408 = vmatpush1.msra.mxu0 0.0
        %1409 = vmatprep.subr.mxu0 0.0
        %1410 = vmatpush1.msra.mxu0 0.0
        %1411 = vmatprep.subr.mxu0 0.0
        %1412 = vmatpush1.msra.mxu0 0.0
        %1413 = vmatprep.subr.mxu0 0.0
        %1414 = vmatpush1.msra.mxu0 0.0
        %1415 = vmatprep.subr.mxu0 0.0
        %1416 = vmatpush1.msra.mxu0 0.0
        %1417 = vmatprep.subr.mxu0 0.0
        %1418 = vmatpush1.msra.mxu0 0.0
        %1419 = vmatprep.subr.mxu0 0.0
        %1420 = vmatpush1.msra.mxu0 0.0
        %1421 = vmatprep.subr.mxu0 0.0
        %1422 = vmatpush1.msra.mxu0 0.0
        %1423 = vmatprep.subr.mxu0 0.0
        %1424 = vmatpush1.msra.mxu0 0.0
        %1425 = vmatprep.subr.mxu0 0.0
        %1426 = vmatpush1.msra.mxu0 0.0
        %1427 = vmatprep.mubr.f32.mxu0 0.0
        %1428 = vmatmul.mubr.f32.gmra.mrb[0].mxu0 %v1358
        %v1429 = vpop.f32.mrb[0].mxu0
        %v1430 = vadd.f32 0.0, %v1429
        %v1431 = vpop.f32.mrb[0].mxu0
        %1432 = vmatprep.mubr.f32.mxu0 0.0
        %1433 = vmatmul.mubr.f32.gmra.mrb[0].mxu0 %v1361
        %v1434 = vpop.f32.mrb[0].mxu0
        %v1435 = vadd.f32 0.0, %v1434
        %v1436 = vpop.f32.mrb[0].mxu0
        %1437 = vdwg.mxu0
        %v1438 = vmax.f32 %v1349, %v1430
        %v1439 = vmax.f32 %v1354, %v1435
        %s1440 = sadd.s32 %s238, 1
        %s1441 = smul.u32 %s1440, 16
        %s1442 = scalar_lea.vmem %s197, %s1441
        %1443 = vst.msk [vmem:[%s1442] sm:$0xff] %vm230, %v1438
        %1444 = vst.msk [vmem:[%s1442 + $0x8] sm:$0x1] %vm232, %v1439
      $region41: #{forward.6} parent=35 // loop_footer
        %s242 = sadd.s32 1, %s238
      $region42: #{forward.6} parent=35 // loop_footer_branch
        %237 = sbr.rel target = $region38
      $region43: #{forward.6} parent=35 // loop_exit
        _
      %p1445 = scmp.lt.s32.totalorder %s15, 1
      %s1446 = scalar_select %p1445, %s15, 1
      %s1447 = smul.addr %s1446, 18
      %s1448 = smul.addr %s1447, 8
      %s1449 = scalar_lea.vmem %s4, %s1448
      // Predicated region
      $region44: #{forward.6} parent=35 // pred_check
        %p1450 = pneg %p122
      $region45: #{forward.6} parent=35 // pred_check_branch
        %1452 = sbr.rel (%p1450) target = $region47
      $region46: #{forward.6} parent=35 // pred_region
        _
      $region47: #{forward.6} parent=35 // pred_fallthru
        _
    $region36: #{forward.6} parent=5 // pred_fallthru
      _
    %p1453 = scmp.le.s32.totalorder 2, %s10
    // Predicated region
    $region48: #{forward.6} parent=5 // pred_check
      %p1454 = pneg %p1453
    $region49: #{forward.6} parent=5 // pred_check_branch
      %1456 = sbr.rel (%p1454) target = $region51
    $region50: #{forward.6} parent=5 // pred_region
      %s1457 = ssub.s32 %s10, 2
      // Predicated region
      $region52: #{forward.6} parent=50 // pred_check
        %p1458 = pneg %p128
      $region53: #{forward.6} parent=50 // pred_check_branch
        %1460 = sbr.rel (%p1458) target = $region55
      $region54: #{forward.6} parent=50 // pred_region
        %p1461 = scmp.lt.s32.totalorder %s16, 1
        %s1462 = scalar_select %p1461, %s16, 1
        %s1463 = smul.addr %s1462, 18
        %s1464 = smul.addr %s1463, 8
        %s1465 = scalar_lea.vmem %s4, %s1464
      $region55: #{forward.6} parent=50 // pred_fallthru
        _
    $region51: #{forward.6} parent=5 // pred_fallthru
      _
  $region6: #{forward.6} parent=0 // loop_footer
    %s14 = sadd.s32 1, %s10
  $region7: #{forward.6} parent=0 // loop_footer_branch
    %9 = sbr.rel target = $region3
  $region8: #{forward.6} parent=0 // loop_exit
    _

// kernel: forward.7
$region0: #{forward.7}
  #allocation0 [shape = 'u32[]', space=smem, size = 0x4, offset = 0x4, fixed_abs, tag = 'smem constant byte address 0x4 - core index']
  #allocation1 [shape = 'u32[144,128]{1,0:T(1,128)}', space=vmem, size = 0x12000, scoped, tag = 'internal scratch']
  #allocation2 [shape = 'f32[7,7,64]{2,1,0:T(8,128)}', space=vmem, size = 0x7000, scoped, tag = 'scratch operand']
  #allocation3 [shape = 'f32[7,7,64]{2,1,0:T(8,128)}', space=vmem, size = 0x7000, scoped, tag = 'scratch operand']
  %s0 = inlined_call_operand.vmem [shape: f32[2,9,9,64], index: 0, kind: input, shape index: {}]
  %s1 = inlined_call_operand.vmem [shape: bf16[9,64,64], index: 1, kind: input, shape index: {}]
  %s2 = inlined_call_operand.vmem [shape: f32[1,64], index: 2, kind: input, shape index: {}]
  %s3 = inlined_call_operand.vmem [shape: f32[1,64], index: 3, kind: input, shape index: {}]
  %s4 = inlined_call_operand.vmem [shape: f32[1,64], index: 4, kind: input, shape index: {}]
  %s5 = inlined_call_operand.vmem [shape: f32[2,8,8,64], index: 5, kind: output, shape index: {}]
  %s6 = sld [smem:[#allocation0]]
  $region67: #{forward.7} parent=0
    _
  %s8 = ssub.s32 1, %s6
  %s9 = scalar_select 0, %s8, %s6
  loop: start=0, step=1, limit=4
  $region2: #{forward.7} parent=0 // loop_pre_header
    _
  $region3: #{forward.7} parent=0 // loop_header
    %s11 = sphi 0, %s15
    %p12 = scmp.ge.s32.totalorder %s11, 4
    %s21 = sphi 0, %s23
    %s24 = sphi 0, %s21
    %s25 = sphi 0, %s24
    %s41 = sphi 0, %s25
    %s45 = sphi 0, %s45
    %s47 = sphi 0, %s45
    %s48 = sphi 0, %s47
    %s62 = sphi 0, %s48
    %s66 = sphi 0, %s66
    %s68 = sphi 0, %s66
    %s69 = sphi 0, %s68
    %s83 = sphi 0, %s69
    %s87 = sphi 0, %s87
    %s89 = sphi 0, %s87
    %s90 = sphi 0, %s89
    %s104 = sphi 0, %s90
    %s108 = sphi 0, %s108
    %s110 = sphi 0, %s108
    %s111 = sphi 0, %s110
    %s125 = sphi 0, %s111
    %s131 = sphi 0, %s133
    %s134 = sphi 0, %s131
    %s135 = sphi 0, %s134
    %s151 = sphi 0, %s135
  $region4: #{forward.7} parent=0 // loop_header_branch
    %14 = sbr.rel (%p12) target = $region8
  $region5: #{forward.7} parent=0 // loop_body
    %s16 = ssub.s32 %s11, 1
    %s17 = ssub.s32 %s11, 2
    %s18 = sadd.s32 %s11, 1
    %s19 = ssub.s32 %s11, %s18
    %p20 = scmp.eq.s32.totalorder %s19, 0
    %s22 = sadd.s32 %s21, 1
    %s23 = scalar_select %p20, %s21, %s22
    %p26 = pneg %p20
    %p27 = scmp.eq.s32.totalorder %s11, 1
    %p28 = por %p26, %p27
    %p29 = scmp.ne.s32.totalorder %s21, %s24
    %p30 = scmp.eq.s32.totalorder %s11, 0
    %p31 = por %p29, %p30
    %p32 = scmp.ne.s32.totalorder %s21, %s24
    %p33 = scmp.eq.s32.totalorder %s16, 1
    %p34 = por %p32, %p33
    %p35 = scmp.ne.s32.totalorder %s24, %s25
    %p36 = scmp.eq.s32.totalorder %s16, 0
    %p37 = por %p35, %p36
    %p38 = scmp.ne.s32.totalorder %s24, %s25
    %p39 = scmp.eq.s32.totalorder %s17, 1
    %p40 = por %p38, %p39
    %p42 = scmp.ne.s32.totalorder %s25, %s41
    %p43 = scmp.eq.s32.totalorder %s17, 0
    %p44 = por %p42, %p43
    %s46 = sadd.s32 %s45, 1
    %p49 = scmp.eq.s32.totalorder %s11, 1
    %p50 = scmp.ne.s32.totalorder %s45, %s47
    %p51 = scmp.eq.s32.totalorder %s11, 0
    %p52 = por %p50, %p51
    %p53 = scmp.ne.s32.totalorder %s45, %s47
    %p54 = scmp.eq.s32.totalorder %s16, 1
    %p55 = por %p53, %p54
    %p56 = scmp.ne.s32.totalorder %s47, %s48
    %p57 = scmp.eq.s32.totalorder %s16, 0
    %p58 = por %p56, %p57
    %p59 = scmp.ne.s32.totalorder %s47, %s48
    %p60 = scmp.eq.s32.totalorder %s17, 1
    %p61 = por %p59, %p60
    %p63 = scmp.ne.s32.totalorder %s48, %s62
    %p64 = scmp.eq.s32.totalorder %s17, 0
    %p65 = por %p63, %p64
    %s67 = sadd.s32 %s66, 1
    %p70 = scmp.eq.s32.totalorder %s11, 1
    %p71 = scmp.ne.s32.totalorder %s66, %s68
    %p72 = scmp.eq.s32.totalorder %s11, 0
    %p73 = por %p71, %p72
    %p74 = scmp.ne.s32.totalorder %s66, %s68
    %p75 = scmp.eq.s32.totalorder %s16, 1
    %p76 = por %p74, %p75
    %p77 = scmp.ne.s32.totalorder %s68, %s69
    %p78 = scmp.eq.s32.totalorder %s16, 0
    %p79 = por %p77, %p78
    %p80 = scmp.ne.s32.totalorder %s68, %s69
    %p81 = scmp.eq.s32.totalorder %s17, 1
    %p82 = por %p80, %p81
    %p84 = scmp.ne.s32.totalorder %s69, %s83
    %p85 = scmp.eq.s32.totalorder %s17, 0
    %p86 = por %p84, %p85
    %s88 = sadd.s32 %s87, 1
    %p91 = scmp.eq.s32.totalorder %s11, 1
    %p92 = scmp.ne.s32.totalorder %s87, %s89
    %p93 = scmp.eq.s32.totalorder %s11, 0
    %p94 = por %p92, %p93
    %p95 = scmp.ne.s32.totalorder %s87, %s89
    %p96 = scmp.eq.s32.totalorder %s16, 1
    %p97 = por %p95, %p96
    %p98 = scmp.ne.s32.totalorder %s89, %s90
    %p99 = scmp.eq.s32.totalorder %s16, 0
    %p100 = por %p98, %p99
    %p101 = scmp.ne.s32.totalorder %s89, %s90
    %p102 = scmp.eq.s32.totalorder %s17, 1
    %p103 = por %p101, %p102
    %p105 = scmp.ne.s32.totalorder %s90, %s104
    %p106 = scmp.eq.s32.totalorder %s17, 0
    %p107 = por %p105, %p106
    %s109 = sadd.s32 %s108, 1
    %p112 = scmp.eq.s32.totalorder %s11, 1
    %p113 = scmp.ne.s32.totalorder %s108, %s110
    %p114 = scmp.eq.s32.totalorder %s11, 0
    %p115 = por %p113, %p114
    %p116 = scmp.ne.s32.totalorder %s108, %s110
    %p117 = scmp.eq.s32.totalorder %s16, 1
    %p118 = por %p116, %p117
    %p119 = scmp.ne.s32.totalorder %s110, %s111
    %p120 = scmp.eq.s32.totalorder %s16, 0
    %p121 = por %p119, %p120
    %p122 = scmp.ne.s32.totalorder %s110, %s111
    %p123 = scmp.eq.s32.totalorder %s17, 1
    %p124 = por %p122, %p123
    %p126 = scmp.ne.s32.totalorder %s111, %s125
    %p127 = scmp.eq.s32.totalorder %s17, 0
    %p128 = por %p126, %p127
    %s129 = ssub.s32 %s11, %s18
    %p130 = scmp.eq.s32.totalorder %s129, 0
    %s132 = sadd.s32 %s131, 1
    %s133 = scalar_select %p130, %s131, %s132
    %p136 = pneg %p130
    %p137 = scmp.eq.s32.totalorder %s11, 1
    %p138 = por %p136, %p137
    %p139 = scmp.ne.s32.totalorder %s131, %s134
    %p140 = scmp.eq.s32.totalorder %s11, 0
    %p141 = por %p139, %p140
    %p142 = scmp.ne.s32.totalorder %s131, %s134
    %p143 = scmp.eq.s32.totalorder %s16, 1
    %p144 = por %p142, %p143
    %p145 = scmp.ne.s32.totalorder %s134, %s135
    %p146 = scmp.eq.s32.totalorder %s16, 0
    %p147 = por %p145, %p146
    %p148 = scmp.ne.s32.totalorder %s134, %s135
    %p149 = scmp.eq.s32.totalorder %s17, 1
    %p150 = por %p148, %p149
    %p152 = scmp.ne.s32.totalorder %s135, %s151
    %p153 = scmp.eq.s32.totalorder %s17, 0
    %p154 = por %p152, %p153
    %p155 = scmp.le.s32.totalorder 1, %s11
    %p156 = scmp.lt.s32.totalorder %s11, 3
    %p157 = pnand %p155, %p156
    %p158 = pneg %p157
    // Predicated region
    $region9: #{forward.7} parent=5 // pred_check
      _
    $region10: #{forward.7} parent=5 // pred_check_branch
      %160 = sbr.rel (%p157) target = $region12
    $region11: #{forward.7} parent=5 // pred_region
      %s161 = ssub.s32 %s11, 1
      // Predicated region
      $region13: #{forward.7} parent=11 // pred_check
        %p162 = pneg %p58
      $region14: #{forward.7} parent=11 // pred_check_branch
        %164 = sbr.rel (%p162) target = $region16
      $region15: #{forward.7} parent=11 // pred_region
        _
      $region16: #{forward.7} parent=11 // pred_fallthru
        _
      // Predicated region
      $region17: #{forward.7} parent=11 // pred_check
        %p165 = pneg %p79
      $region18: #{forward.7} parent=11 // pred_check_branch
        %167 = sbr.rel (%p165) target = $region20
      $region19: #{forward.7} parent=11 // pred_region
        _
      $region20: #{forward.7} parent=11 // pred_fallthru
        _
      // Predicated region
      $region21: #{forward.7} parent=11 // pred_check
        %p168 = pneg %p100
      $region22: #{forward.7} parent=11 // pred_check_branch
        %170 = sbr.rel (%p168) target = $region24
      $region23: #{forward.7} parent=11 // pred_region
        _
      $region24: #{forward.7} parent=11 // pred_fallthru
        _
      // Predicated region
      $region25: #{forward.7} parent=11 // pred_check
        %p171 = pneg %p121
      $region26: #{forward.7} parent=11 // pred_check_branch
        %173 = sbr.rel (%p171) target = $region28
      $region27: #{forward.7} parent=11 // pred_region
        _
      $region28: #{forward.7} parent=11 // pred_fallthru
        _
    $region12: #{forward.7} parent=5 // pred_fallthru
      _
    %p174 = scmp.lt.s32.totalorder %s11, 2
    // Predicated region
    $region29: #{forward.7} parent=5 // pred_check
      %p175 = pneg %p174
    $region30: #{forward.7} parent=5 // pred_check_branch
      %177 = sbr.rel (%p175) target = $region32
    $region31: #{forward.7} parent=5 // pred_region
      // Predicated region
      $region33: #{forward.7} parent=31 // pred_check
        %p178 = pneg %p31
      $region34: #{forward.7} parent=31 // pred_check_branch
        %180 = sbr.rel (%p178) target = $region36
      $region35: #{forward.7} parent=31 // pred_region
        %p181 = scmp.lt.s32.totalorder %s11, 1
        %s182 = scalar_select %p181, %s11, 1
        %s183 = smul.addr %s182, 18
        %s184 = smul.addr %s183, 8
        %s185 = scalar_lea.vmem %s0, %s184
      $region36: #{forward.7} parent=31 // pred_fallthru
        _
    $region32: #{forward.7} parent=5 // pred_fallthru
      _
    %p186 = scmp.le.s32.totalorder 1, %s11
    %p187 = scmp.lt.s32.totalorder %s11, 3
    %p188 = pnand %p186, %p187
    %p189 = pneg %p188
    // Predicated region
    $region37: #{forward.7} parent=5 // pred_check
      _
    $region38: #{forward.7} parent=5 // pred_check_branch
      %191 = sbr.rel (%p188) target = $region40
    $region39: #{forward.7} parent=5 // pred_region
      %s192 = ssub.s32 %s11, 1
      %p193 = scmp.lt.s32.totalorder %s16, 1
      %s194 = scalar_select %p193, %s16, 1
      %s195 = smul.addr %s194, 18
      %s196 = smul.addr %s195, 8
      %s197 = scalar_lea.vmem %s0, %s196
      %p198 = pneg %p37
      %p199 = pneg %p34
      %p200 = pneg %p58
      %p201 = pneg %p55
      %p202 = pneg %p79
      %p203 = pneg %p76
      %p204 = pneg %p100
      %p205 = pneg %p97
      %p206 = pneg %p121
      %p207 = pneg %p118
      %p208 = pneg %p147
      %p209 = pneg %p144
      %p210 = scmp.lt.s32.totalorder %s16, 1
      %s211 = scalar_select %p210, %s16, 1
      %s212 = smul.addr %s211, 8
      %s213 = smul.addr %s212, 8
      %s214 = scalar_lea.vmem %s5, %s213
      %p215 = scmp.lt.s32.totalorder %s16, 1
      %s216 = scalar_select %p215, %s16, 1
      %s217 = smul.addr %s216, 18
      %s218 = smul.addr %s217, 8
      %s219 = scalar_lea.vmem %s0, %s218
      %p220 = scmp.lt.s32.totalorder %s16, 1
      %s221 = scalar_select %p220, %s16, 1
      %s222 = smul.addr %s221, 8
      %s223 = smul.addr %s222, 8
      %s224 = scalar_lea.vmem %s5, %s223
      %v226 = vlaneseq
      %v227 = vshrl.u32 %v226, 7
      %v228 = vlaneseq
      %v229 = vand.u32 %v228, 127
      %v230 = vsub.s32 %v227, 1
      %vm231 = vcmp.ge.s32.totalorder %v227, 1
      %vm232 = vcmp.le.s32.totalorder %v227, 6
      %vm233 = vmand %vm231, %vm232
      %vm234 = vcmp.eq.s32.totalorder %v229, %v230
      %vm235 = vmand %vm234, %vm233
      %v236 = vsel %vm235, 1.0, 0.0
      %vm237 = vcmp.eq.s32.totalorder %v229, %v227
      %vm238 = vmand %vm237, %vm233
      %v239 = vsel %vm238, 1.0, 0.0
      %v240 = vld [vmem:[%s2] sm:$0x1]
      %v241 = vld [vmem:[%s3] sm:$0x1]
      %v242 = vld [vmem:[%s4] sm:$0x1]
      %vm243 = vcmask 523264
      %244 = vst.msk [vmem:[%s224] sm:$0xff] %vm243, 0.0
      %s245 = scalar_lea.vmem %s224, 56
      %246 = vst.msk [vmem:[%s245] sm:$0xff] %vm243, 0.0
      loop: start=0, step=1, limit=7
      $region41: #{forward.7} parent=39 // loop_pre_header
        _
      $region42: #{forward.7} parent=39 // loop_header
        %s248 = sphi 0, %s252
        %p249 = scmp.ge.s32.totalorder %s248, 7
      $region43: #{forward.7} parent=39 // loop_header_branch
        %251 = sbr.rel (%p249) target = $region47
      $region44: #{forward.7} parent=39 // loop_body
        %s253 = smul.u32 %s248, 16
        %s254 = scalar_lea.vmem %s219, %s253
        %v255 = vld [vmem:[%s254] sm:$0xff]
        %v256 = vld [vmem:[%s254 + $0x8] sm:$0x1]
        %v257 = vld [vmem:[%s254 + $0x10] sm:$0xff]
        %v258 = vld [vmem:[%s254 + $0x18] sm:$0x1]
        %v259 = vld [vmem:[%s254 + $0x20] sm:$0xff]
        %v260 = vld [vmem:[%s254 + $0x28] sm:$0x1]
        %v261 = vld [vmem:[%s1] sm:$0xf]
        %v262 = vld [vmem:[%s1 + $0x4] sm:$0xf]
        %v263 = vld [vmem:[%s1 + $0x8] sm:$0xf]
        %v264 = vld [vmem:[%s1 + $0xc] sm:$0xf]
        %v265 = vld [vmem:[%s1 + $0x10] sm:$0xf]
        %v266 = vld [vmem:[%s1 + $0x14] sm:$0xf]
        %v267 = vld [vmem:[%s1 + $0x18] sm:$0xf]
        %v268 = vld [vmem:[%s1 + $0x1c] sm:$0xf]
        %v269 = vpack.c.bf16 %v255, %v255
        %s270 = scalar_lea.vmem %s1, 32
        %v271 = vld [vmem:[%s270] sm:$0xf]
        %v272 = vld [vmem:[%s270 + $0x4] sm:$0xf]
        %v273 = vld [vmem:[%s270 + $0x8] sm:$0xf]
        %v274 = vld [vmem:[%s270 + $0xc] sm:$0xf]
        %v275 = vld [vmem:[%s270 + $0x10] sm:$0xf]
        %v276 = vld [vmem:[%s270 + $0x14] sm:$0xf]
        %v277 = vld [vmem:[%s270 + $0x18] sm:$0xf]
        %v278 = vld [vmem:[%s270 + $0x1c] sm:$0xf]
        %v280 = vshrl.u32 %v269, 16
        %v282 = vshll.u32 %v269, 16
        %v284 = vrot.slane %v282, 1
        %v285 = vor.u32 %v280, %v284
        %v294 = vunpack.c.l.b16 %v271
        %v295 = vunpack.c.l.b16 %v272
        %v296 = vunpack.c.l.b16 %v273
        %v297 = vunpack.c.l.b16 %v274
        %v298 = vunpack.c.l.b16 %v275
        %v299 = vunpack.c.l.b16 %v276
        %v300 = vunpack.c.l.b16 %v277
        %v301 = vunpack.c.l.b16 %v278
        %v302 = vpack.c.b16 %v295, %v294
        %v303 = vpack.c.b16 %v297, %v296
        %v304 = vpack.c.b16 %v299, %v298
        %v305 = vpack.c.b16 %v301, %v300
        %v311 = vsel %vm243, %v285, 0
        %313 = vmatprep.subr.bf16.mxu0 0
        %314 = vmatpush1.bf16.msra.mxu0 %v302
        %315 = vmatprep.subr.bf16.mxu0 0
        %316 = vmatpush1.bf16.msra.mxu0 %v303
        %317 = vmatprep.subr.bf16.mxu0 0
        %318 = vmatpush1.bf16.msra.mxu0 %v304
        %319 = vmatprep.subr.bf16.mxu0 0
        %320 = vmatpush1.bf16.msra.mxu0 %v305
        %321 = vmatprep.subr.bf16.mxu0 0
        %322 = vmatpush1.bf16.msra.mxu0 0
        %323 = vmatprep.subr.bf16.mxu0 0
        %324 = vmatpush1.bf16.msra.mxu0 0
        %325 = vmatprep.subr.bf16.mxu0 0
        %326 = vmatpush1.bf16.msra.mxu0 0
        %327 = vmatprep.subr.bf16.mxu0 0
        %328 = vmatpush1.bf16.msra.mxu0 0
        %329 = vmatprep.subr.bf16.mxu0 0
        %330 = vmatpush1.bf16.msra.mxu0 0
        %331 = vmatprep.subr.bf16.mxu0 0
        %332 = vmatpush1.bf16.msra.mxu0 0
        %333 = vmatprep.subr.bf16.mxu0 0
        %334 = vmatpush1.bf16.msra.mxu0 0
        %335 = vmatprep.subr.bf16.mxu0 0
        %336 = vmatpush1.bf16.msra.mxu0 0
        %337 = vmatprep.subr.bf16.mxu0 0
        %338 = vmatpush1.bf16.msra.mxu0 0
        %339 = vmatprep.subr.bf16.mxu0 0
        %340 = vmatpush1.bf16.msra.mxu0 0
        %341 = vmatprep.subr.bf16.mxu0 0
        %342 = vmatpush1.bf16.msra.mxu0 0
        %343 = vmatprep.subr.bf16.mxu0 0
        %344 = vmatpush1.bf16.msra.mxu0 0
        %345 = vmatprep.mubr.bf16.mxu0 0
        %346 = vmatmul.mubr.bf16.gmra.mrb[0].mxu0 %v311
        %v347 = vpop.f32.mrb[0].mxu0
        %v348 = vadd.f32 0.0, %v347
        %v349 = vpop.f32.mrb[0].mxu0
        %v350 = vpop.f32.mrb[0].mxu0
        %v351 = vpop.f32.mrb[0].mxu0
        %352 = vdwg.mxu0
        %v361 = vunpack.c.l.b16 %v261
        %v362 = vunpack.c.l.b16 %v262
        %v363 = vunpack.c.l.b16 %v263
        %v364 = vunpack.c.l.b16 %v264
        %v365 = vunpack.c.l.b16 %v265
        %v366 = vunpack.c.l.b16 %v266
        %v367 = vunpack.c.l.b16 %v267
        %v368 = vunpack.c.l.b16 %v268
        %v369 = vpack.c.b16 %v362, %v361
        %v370 = vpack.c.b16 %v364, %v363
        %v371 = vpack.c.b16 %v366, %v365
        %v372 = vpack.c.b16 %v368, %v367
        %v377 = vsel %vm243, %v269, 0
        %379 = vmatprep.subr.bf16.mxu0 0
        %380 = vmatpush1.bf16.msra.mxu0 %v369
        %381 = vmatprep.subr.bf16.mxu0 0
        %382 = vmatpush1.bf16.msra.mxu0 %v370
        %383 = vmatprep.subr.bf16.mxu0 0
        %384 = vmatpush1.bf16.msra.mxu0 %v371
        %385 = vmatprep.subr.bf16.mxu0 0
        %386 = vmatpush1.bf16.msra.mxu0 %v372
        %387 = vmatprep.subr.bf16.mxu0 0
        %388 = vmatpush1.bf16.msra.mxu0 0
        %389 = vmatprep.subr.bf16.mxu0 0
        %390 = vmatpush1.bf16.msra.mxu0 0
        %391 = vmatprep.subr.bf16.mxu0 0
        %392 = vmatpush1.bf16.msra.mxu0 0
        %393 = vmatprep.subr.bf16.mxu0 0
        %394 = vmatpush1.bf16.msra.mxu0 0
        %395 = vmatprep.subr.bf16.mxu0 0
        %396 = vmatpush1.bf16.msra.mxu0 0
        %397 = vmatprep.subr.bf16.mxu0 0
        %398 = vmatpush1.bf16.msra.mxu0 0
        %399 = vmatprep.subr.bf16.mxu0 0
        %400 = vmatpush1.bf16.msra.mxu0 0
        %401 = vmatprep.subr.bf16.mxu0 0
        %402 = vmatpush1.bf16.msra.mxu0 0
        %403 = vmatprep.subr.bf16.mxu0 0
        %404 = vmatpush1.bf16.msra.mxu0 0
        %405 = vmatprep.subr.bf16.mxu0 0
        %406 = vmatpush1.bf16.msra.mxu0 0
        %407 = vmatprep.subr.bf16.mxu0 0
        %408 = vmatpush1.bf16.msra.mxu0 0
        %409 = vmatprep.subr.bf16.mxu0 0
        %410 = vmatpush1.bf16.msra.mxu0 0
        %411 = vmatprep.mubr.bf16.mxu0 0
        %412 = vmatmul.mubr.bf16.gmra.mrb[0].mxu0 %v377
        %v413 = vpop.f32.mrb[0].mxu0
        %v414 = vadd.f32 %v348, %v413
        %v415 = vpop.f32.mrb[0].mxu0
        %v416 = vpop.f32.mrb[0].mxu0
        %v417 = vpop.f32.mrb[0].mxu0
        %418 = vdwg.mxu0
        %s419 = scalar_lea.vmem %s1, 64
        %v420 = vld [vmem:[%s419] sm:$0xf]
        %v421 = vld [vmem:[%s419 + $0x4] sm:$0xf]
        %v422 = vld [vmem:[%s419 + $0x8] sm:$0xf]
        %v423 = vld [vmem:[%s419 + $0xc] sm:$0xf]
        %v424 = vld [vmem:[%s419 + $0x10] sm:$0xf]
        %v425 = vld [vmem:[%s419 + $0x14] sm:$0xf]
        %v426 = vld [vmem:[%s419 + $0x18] sm:$0xf]
        %v427 = vld [vmem:[%s419 + $0x1c] sm:$0xf]
        %v428 = vpack.c.bf16 %v256, %v255
        %v430 = vrot.slane %v428, 1
        %v439 = vunpack.c.l.b16 %v420
        %v440 = vunpack.c.l.b16 %v421
        %v441 = vunpack.c.l.b16 %v422
        %v442 = vunpack.c.l.b16 %v423
        %v443 = vunpack.c.l.b16 %v424
        %v444 = vunpack.c.l.b16 %v425
        %v445 = vunpack.c.l.b16 %v426
        %v446 = vunpack.c.l.b16 %v427
        %v447 = vpack.c.b16 %v440, %v439
        %v448 = vpack.c.b16 %v442, %v441
        %v449 = vpack.c.b16 %v444, %v443
        %v450 = vpack.c.b16 %v446, %v445
        %v456 = vsel %vm243, %v430, 0
        %458 = vmatprep.subr.bf16.mxu0 0
        %459 = vmatpush1.bf16.msra.mxu0 %v447
        %460 = vmatprep.subr.bf16.mxu0 0
        %461 = vmatpush1.bf16.msra.mxu0 %v448
        %462 = vmatprep.subr.bf16.mxu0 0
        %463 = vmatpush1.bf16.msra.mxu0 %v449
        %464 = vmatprep.subr.bf16.mxu0 0
        %465 = vmatpush1.bf16.msra.mxu0 %v450
        %466 = vmatprep.subr.bf16.mxu0 0
        %467 = vmatpush1.bf16.msra.mxu0 0
        %468 = vmatprep.subr.bf16.mxu0 0
        %469 = vmatpush1.bf16.msra.mxu0 0
        %470 = vmatprep.subr.bf16.mxu0 0
        %471 = vmatpush1.bf16.msra.mxu0 0
        %472 = vmatprep.subr.bf16.mxu0 0
        %473 = vmatpush1.bf16.msra.mxu0 0
        %474 = vmatprep.subr.bf16.mxu0 0
        %475 = vmatpush1.bf16.msra.mxu0 0
        %476 = vmatprep.subr.bf16.mxu0 0
        %477 = vmatpush1.bf16.msra.mxu0 0
        %478 = vmatprep.subr.bf16.mxu0 0
        %479 = vmatpush1.bf16.msra.mxu0 0
        %480 = vmatprep.subr.bf16.mxu0 0
        %481 = vmatpush1.bf16.msra.mxu0 0
        %482 = vmatprep.subr.bf16.mxu0 0
        %483 = vmatpush1.bf16.msra.mxu0 0
        %484 = vmatprep.subr.bf16.mxu0 0
        %485 = vmatpush1.bf16.msra.mxu0 0
        %486 = vmatprep.subr.bf16.mxu0 0
        %487 = vmatpush1.bf16.msra.mxu0 0
        %488 = vmatprep.subr.bf16.mxu0 0
        %489 = vmatpush1.bf16.msra.mxu0 0
        %490 = vmatprep.mubr.bf16.mxu0 0
        %491 = vmatmul.mubr.bf16.gmra.mrb[0].mxu0 %v456
        %v492 = vpop.f32.mrb[0].mxu0
        %v493 = vadd.f32 0.0, %v492
        %v494 = vpop.f32.mrb[0].mxu0
        %v495 = vpop.f32.mrb[0].mxu0
        %v496 = vpop.f32.mrb[0].mxu0
        %497 = vdwg.mxu0
        %v498 = vadd.f32 %v414, %v493
        %s499 = scalar_lea.vmem %s1, 96
        %v500 = vld [vmem:[%s499] sm:$0xf]
        %v501 = vld [vmem:[%s499 + $0x4] sm:$0xf]
        %v502 = vld [vmem:[%s499 + $0x8] sm:$0xf]
        %v503 = vld [vmem:[%s499 + $0xc] sm:$0xf]
        %v504 = vld [vmem:[%s499 + $0x10] sm:$0xf]
        %v505 = vld [vmem:[%s499 + $0x14] sm:$0xf]
        %v506 = vld [vmem:[%s499 + $0x18] sm:$0xf]
        %v507 = vld [vmem:[%s499 + $0x1c] sm:$0xf]
        %v508 = vpack.c.bf16 %v257, %v257
        %v517 = vunpack.c.l.b16 %v500
        %v518 = vunpack.c.l.b16 %v501
        %v519 = vunpack.c.l.b16 %v502
        %v520 = vunpack.c.l.b16 %v503
        %v521 = vunpack.c.l.b16 %v504
        %v522 = vunpack.c.l.b16 %v505
        %v523 = vunpack.c.l.b16 %v506
        %v524 = vunpack.c.l.b16 %v507
        %v525 = vpack.c.b16 %v518, %v517
        %v526 = vpack.c.b16 %v520, %v519
        %v527 = vpack.c.b16 %v522, %v521
        %v528 = vpack.c.b16 %v524, %v523
        %v534 = vsel %vm243, %v508, 0
        %536 = vmatprep.subr.bf16.mxu0 0
        %537 = vmatpush1.bf16.msra.mxu0 %v525
        %538 = vmatprep.subr.bf16.mxu0 0
        %539 = vmatpush1.bf16.msra.mxu0 %v526
        %540 = vmatprep.subr.bf16.mxu0 0
        %541 = vmatpush1.bf16.msra.mxu0 %v527
        %542 = vmatprep.subr.bf16.mxu0 0
        %543 = vmatpush1.bf16.msra.mxu0 %v528
        %544 = vmatprep.subr.bf16.mxu0 0
        %545 = vmatpush1.bf16.msra.mxu0 0
        %546 = vmatprep.subr.bf16.mxu0 0
        %547 = vmatpush1.bf16.msra.mxu0 0
        %548 = vmatprep.subr.bf16.mxu0 0
        %549 = vmatpush1.bf16.msra.mxu0 0
        %550 = vmatprep.subr.bf16.mxu0 0
        %551 = vmatpush1.bf16.msra.mxu0 0
        %552 = vmatprep.subr.bf16.mxu0 0
        %553 = vmatpush1.bf16.msra.mxu0 0
        %554 = vmatprep.subr.bf16.mxu0 0
        %555 = vmatpush1.bf16.msra.mxu0 0
        %556 = vmatprep.subr.bf16.mxu0 0
        %557 = vmatpush1.bf16.msra.mxu0 0
        %558 = vmatprep.subr.bf16.mxu0 0
        %559 = vmatpush1.bf16.msra.mxu0 0
        %560 = vmatprep.subr.bf16.mxu0 0
        %561 = vmatpush1.bf16.msra.mxu0 0
        %562 = vmatprep.subr.bf16.mxu0 0
        %563 = vmatpush1.bf16.msra.mxu0 0
        %564 = vmatprep.subr.bf16.mxu0 0
        %565 = vmatpush1.bf16.msra.mxu0 0
        %566 = vmatprep.subr.bf16.mxu0 0
        %567 = vmatpush1.bf16.msra.mxu0 0
        %568 = vmatprep.mubr.bf16.mxu0 0
        %569 = vmatmul.mubr.bf16.gmra.mrb[0].mxu0 %v534
        %v570 = vpop.f32.mrb[0].mxu0
        %v571 = vadd.f32 0.0, %v570
        %v572 = vpop.f32.mrb[0].mxu0
        %v573 = vpop.f32.mrb[0].mxu0
        %v574 = vpop.f32.mrb[0].mxu0
        %575 = vdwg.mxu0
        %v576 = vadd.f32 %v498, %v571
        %s577 = scalar_lea.vmem %s1, 128
        %v578 = vld [vmem:[%s577] sm:$0xf]
        %v579 = vld [vmem:[%s577 + $0x4] sm:$0xf]
        %v580 = vld [vmem:[%s577 + $0x8] sm:$0xf]
        %v581 = vld [vmem:[%s577 + $0xc] sm:$0xf]
        %v582 = vld [vmem:[%s577 + $0x10] sm:$0xf]
        %v583 = vld [vmem:[%s577 + $0x14] sm:$0xf]
        %v584 = vld [vmem:[%s577 + $0x18] sm:$0xf]
        %v585 = vld [vmem:[%s577 + $0x1c] sm:$0xf]
        %v586 = vshrl.u32 %v508, 16
        %v588 = vshll.u32 %v508, 16
        %v590 = vrot.slane %v588, 1
        %v591 = vor.u32 %v586, %v590
        %v600 = vunpack.c.l.b16 %v578
        %v601 = vunpack.c.l.b16 %v579
        %v602 = vunpack.c.l.b16 %v580
        %v603 = vunpack.c.l.b16 %v581
        %v604 = vunpack.c.l.b16 %v582
        %v605 = vunpack.c.l.b16 %v583
        %v606 = vunpack.c.l.b16 %v584
        %v607 = vunpack.c.l.b16 %v585
        %v608 = vpack.c.b16 %v601, %v600
        %v609 = vpack.c.b16 %v603, %v602
        %v610 = vpack.c.b16 %v605, %v604
        %v611 = vpack.c.b16 %v607, %v606
        %v617 = vsel %vm243, %v591, 0
        %619 = vmatprep.subr.bf16.mxu0 0
        %620 = vmatpush1.bf16.msra.mxu0 %v608
        %621 = vmatprep.subr.bf16.mxu0 0
        %622 = vmatpush1.bf16.msra.mxu0 %v609
        %623 = vmatprep.subr.bf16.mxu0 0
        %624 = vmatpush1.bf16.msra.mxu0 %v610
        %625 = vmatprep.subr.bf16.mxu0 0
        %626 = vmatpush1.bf16.msra.mxu0 %v611
        %627 = vmatprep.subr.bf16.mxu0 0
        %628 = vmatpush1.bf16.msra.mxu0 0
        %629 = vmatprep.subr.bf16.mxu0 0
        %630 = vmatpush1.bf16.msra.mxu0 0
        %631 = vmatprep.subr.bf16.mxu0 0
        %632 = vmatpush1.bf16.msra.mxu0 0
        %633 = vmatprep.subr.bf16.mxu0 0
        %634 = vmatpush1.bf16.msra.mxu0 0
        %635 = vmatprep.subr.bf16.mxu0 0
        %636 = vmatpush1.bf16.msra.mxu0 0
        %637 = vmatprep.subr.bf16.mxu0 0
        %638 = vmatpush1.bf16.msra.mxu0 0
        %639 = vmatprep.subr.bf16.mxu0 0
        %640 = vmatpush1.bf16.msra.mxu0 0
        %641 = vmatprep.subr.bf16.mxu0 0
        %642 = vmatpush1.bf16.msra.mxu0 0
        %643 = vmatprep.subr.bf16.mxu0 0
        %644 = vmatpush1.bf16.msra.mxu0 0
        %645 = vmatprep.subr.bf16.mxu0 0
        %646 = vmatpush1.bf16.msra.mxu0 0
        %647 = vmatprep.subr.bf16.mxu0 0
        %648 = vmatpush1.bf16.msra.mxu0 0
        %649 = vmatprep.subr.bf16.mxu0 0
        %650 = vmatpush1.bf16.msra.mxu0 0
        %651 = vmatprep.mubr.bf16.mxu0 0
        %652 = vmatmul.mubr.bf16.gmra.mrb[0].mxu0 %v617
        %v653 = vpop.f32.mrb[0].mxu0
        %v654 = vadd.f32 0.0, %v653
        %v655 = vpop.f32.mrb[0].mxu0
        %v656 = vpop.f32.mrb[0].mxu0
        %v657 = vpop.f32.mrb[0].mxu0
        %658 = vdwg.mxu0
        %v659 = vadd.f32 %v576, %v654
        %s660 = scalar_lea.vmem %s1, 160
        %v661 = vld [vmem:[%s660] sm:$0xf]
        %v662 = vld [vmem:[%s660 + $0x4] sm:$0xf]
        %v663 = vld [vmem:[%s660 + $0x8] sm:$0xf]
        %v664 = vld [vmem:[%s660 + $0xc] sm:$0xf]
        %v665 = vld [vmem:[%s660 + $0x10] sm:$0xf]
        %v666 = vld [vmem:[%s660 + $0x14] sm:$0xf]
        %v667 = vld [vmem:[%s660 + $0x18] sm:$0xf]
        %v668 = vld [vmem:[%s660 + $0x1c] sm:$0xf]
        %v669 = vpack.c.bf16 %v258, %v257
        %v671 = vrot.slane %v669, 1
        %v680 = vunpack.c.l.b16 %v661
        %v681 = vunpack.c.l.b16 %v662
        %v682 = vunpack.c.l.b16 %v663
        %v683 = vunpack.c.l.b16 %v664
        %v684 = vunpack.c.l.b16 %v665
        %v685 = vunpack.c.l.b16 %v666
        %v686 = vunpack.c.l.b16 %v667
        %v687 = vunpack.c.l.b16 %v668
        %v688 = vpack.c.b16 %v681, %v680
        %v689 = vpack.c.b16 %v683, %v682
        %v690 = vpack.c.b16 %v685, %v684
        %v691 = vpack.c.b16 %v687, %v686
        %v697 = vsel %vm243, %v671, 0
        %699 = vmatprep.subr.bf16.mxu0 0
        %700 = vmatpush1.bf16.msra.mxu0 %v688
        %701 = vmatprep.subr.bf16.mxu0 0
        %702 = vmatpush1.bf16.msra.mxu0 %v689
        %703 = vmatprep.subr.bf16.mxu0 0
        %704 = vmatpush1.bf16.msra.mxu0 %v690
        %705 = vmatprep.subr.bf16.mxu0 0
        %706 = vmatpush1.bf16.msra.mxu0 %v691
        %707 = vmatprep.subr.bf16.mxu0 0
        %708 = vmatpush1.bf16.msra.mxu0 0
        %709 = vmatprep.subr.bf16.mxu0 0
        %710 = vmatpush1.bf16.msra.mxu0 0
        %711 = vmatprep.subr.bf16.mxu0 0
        %712 = vmatpush1.bf16.msra.mxu0 0
        %713 = vmatprep.subr.bf16.mxu0 0
        %714 = vmatpush1.bf16.msra.mxu0 0
        %715 = vmatprep.subr.bf16.mxu0 0
        %716 = vmatpush1.bf16.msra.mxu0 0
        %717 = vmatprep.subr.bf16.mxu0 0
        %718 = vmatpush1.bf16.msra.mxu0 0
        %719 = vmatprep.subr.bf16.mxu0 0
        %720 = vmatpush1.bf16.msra.mxu0 0
        %721 = vmatprep.subr.bf16.mxu0 0
        %722 = vmatpush1.bf16.msra.mxu0 0
        %723 = vmatprep.subr.bf16.mxu0 0
        %724 = vmatpush1.bf16.msra.mxu0 0
        %725 = vmatprep.subr.bf16.mxu0 0
        %726 = vmatpush1.bf16.msra.mxu0 0
        %727 = vmatprep.subr.bf16.mxu0 0
        %728 = vmatpush1.bf16.msra.mxu0 0
        %729 = vmatprep.subr.bf16.mxu0 0
        %730 = vmatpush1.bf16.msra.mxu0 0
        %731 = vmatprep.mubr.bf16.mxu0 0
        %732 = vmatmul.mubr.bf16.gmra.mrb[0].mxu0 %v697
        %v733 = vpop.f32.mrb[0].mxu0
        %v734 = vadd.f32 0.0, %v733
        %v735 = vpop.f32.mrb[0].mxu0
        %v736 = vpop.f32.mrb[0].mxu0
        %v737 = vpop.f32.mrb[0].mxu0
        %738 = vdwg.mxu0
        %v739 = vadd.f32 %v659, %v734
        %s740 = scalar_lea.vmem %s1, 192
        %v741 = vld [vmem:[%s740] sm:$0xf]
        %v742 = vld [vmem:[%s740 + $0x4] sm:$0xf]
        %v743 = vld [vmem:[%s740 + $0x8] sm:$0xf]
        %v744 = vld [vmem:[%s740 + $0xc] sm:$0xf]
        %v745 = vld [vmem:[%s740 + $0x10] sm:$0xf]
        %v746 = vld [vmem:[%s740 + $0x14] sm:$0xf]
        %v747 = vld [vmem:[%s740 + $0x18] sm:$0xf]
        %v748 = vld [vmem:[%s740 + $0x1c] sm:$0xf]
        %v749 = vpack.c.bf16 %v259, %v259
        %v758 = vunpack.c.l.b16 %v741
        %v759 = vunpack.c.l.b16 %v742
        %v760 = vunpack.c.l.b16 %v743
        %v761 = vunpack.c.l.b16 %v744
        %v762 = vunpack.c.l.b16 %v745
        %v763 = vunpack.c.l.b16 %v746
        %v764 = vunpack.c.l.b16 %v747
        %v765 = vunpack.c.l.b16 %v748
        %v766 = vpack.c.b16 %v759, %v758
        %v767 = vpack.c.b16 %v761, %v760
        %v768 = vpack.c.b16 %v763, %v762
        %v769 = vpack.c.b16 %v765, %v764
        %v775 = vsel %vm243, %v749, 0
        %777 = vmatprep.subr.bf16.mxu0 0
        %778 = vmatpush1.bf16.msra.mxu0 %v766
        %779 = vmatprep.subr.bf16.mxu0 0
        %780 = vmatpush1.bf16.msra.mxu0 %v767
        %781 = vmatprep.subr.bf16.mxu0 0
        %782 = vmatpush1.bf16.msra.mxu0 %v768
        %783 = vmatprep.subr.bf16.mxu0 0
        %784 = vmatpush1.bf16.msra.mxu0 %v769
        %785 = vmatprep.subr.bf16.mxu0 0
        %786 = vmatpush1.bf16.msra.mxu0 0
        %787 = vmatprep.subr.bf16.mxu0 0
        %788 = vmatpush1.bf16.msra.mxu0 0
        %789 = vmatprep.subr.bf16.mxu0 0
        %790 = vmatpush1.bf16.msra.mxu0 0
        %791 = vmatprep.subr.bf16.mxu0 0
        %792 = vmatpush1.bf16.msra.mxu0 0
        %793 = vmatprep.subr.bf16.mxu0 0
        %794 = vmatpush1.bf16.msra.mxu0 0
        %795 = vmatprep.subr.bf16.mxu0 0
        %796 = vmatpush1.bf16.msra.mxu0 0
        %797 = vmatprep.subr.bf16.mxu0 0
        %798 = vmatpush1.bf16.msra.mxu0 0
        %799 = vmatprep.subr.bf16.mxu0 0
        %800 = vmatpush1.bf16.msra.mxu0 0
        %801 = vmatprep.subr.bf16.mxu0 0
        %802 = vmatpush1.bf16.msra.mxu0 0
        %803 = vmatprep.subr.bf16.mxu0 0
        %804 = vmatpush1.bf16.msra.mxu0 0
        %805 = vmatprep.subr.bf16.mxu0 0
        %806 = vmatpush1.bf16.msra.mxu0 0
        %807 = vmatprep.subr.bf16.mxu0 0
        %808 = vmatpush1.bf16.msra.mxu0 0
        %809 = vmatprep.mubr.bf16.mxu0 0
        %810 = vmatmul.mubr.bf16.gmra.mrb[0].mxu0 %v775
        %v811 = vpop.f32.mrb[0].mxu0
        %v812 = vadd.f32 0.0, %v811
        %v813 = vpop.f32.mrb[0].mxu0
        %v814 = vpop.f32.mrb[0].mxu0
        %v815 = vpop.f32.mrb[0].mxu0
        %816 = vdwg.mxu0
        %v817 = vadd.f32 %v739, %v812
        %s818 = scalar_lea.vmem %s1, 224
        %v819 = vld [vmem:[%s818] sm:$0xf]
        %v820 = vld [vmem:[%s818 + $0x4] sm:$0xf]
        %v821 = vld [vmem:[%s818 + $0x8] sm:$0xf]
        %v822 = vld [vmem:[%s818 + $0xc] sm:$0xf]
        %v823 = vld [vmem:[%s818 + $0x10] sm:$0xf]
        %v824 = vld [vmem:[%s818 + $0x14] sm:$0xf]
        %v825 = vld [vmem:[%s818 + $0x18] sm:$0xf]
        %v826 = vld [vmem:[%s818 + $0x1c] sm:$0xf]
        %v827 = vshrl.u32 %v749, 16
        %v829 = vshll.u32 %v749, 16
        %v831 = vrot.slane %v829, 1
        %v832 = vor.u32 %v827, %v831
        %v841 = vunpack.c.l.b16 %v819
        %v842 = vunpack.c.l.b16 %v820
        %v843 = vunpack.c.l.b16 %v821
        %v844 = vunpack.c.l.b16 %v822
        %v845 = vunpack.c.l.b16 %v823
        %v846 = vunpack.c.l.b16 %v824
        %v847 = vunpack.c.l.b16 %v825
        %v848 = vunpack.c.l.b16 %v826
        %v849 = vpack.c.b16 %v842, %v841
        %v850 = vpack.c.b16 %v844, %v843
        %v851 = vpack.c.b16 %v846, %v845
        %v852 = vpack.c.b16 %v848, %v847
        %v858 = vsel %vm243, %v832, 0
        %860 = vmatprep.subr.bf16.mxu0 0
        %861 = vmatpush1.bf16.msra.mxu0 %v849
        %862 = vmatprep.subr.bf16.mxu0 0
        %863 = vmatpush1.bf16.msra.mxu0 %v850
        %864 = vmatprep.subr.bf16.mxu0 0
        %865 = vmatpush1.bf16.msra.mxu0 %v851
        %866 = vmatprep.subr.bf16.mxu0 0
        %867 = vmatpush1.bf16.msra.mxu0 %v852
        %868 = vmatprep.subr.bf16.mxu0 0
        %869 = vmatpush1.bf16.msra.mxu0 0
        %870 = vmatprep.subr.bf16.mxu0 0
        %871 = vmatpush1.bf16.msra.mxu0 0
        %872 = vmatprep.subr.bf16.mxu0 0
        %873 = vmatpush1.bf16.msra.mxu0 0
        %874 = vmatprep.subr.bf16.mxu0 0
        %875 = vmatpush1.bf16.msra.mxu0 0
        %876 = vmatprep.subr.bf16.mxu0 0
        %877 = vmatpush1.bf16.msra.mxu0 0
        %878 = vmatprep.subr.bf16.mxu0 0
        %879 = vmatpush1.bf16.msra.mxu0 0
        %880 = vmatprep.subr.bf16.mxu0 0
        %881 = vmatpush1.bf16.msra.mxu0 0
        %882 = vmatprep.subr.bf16.mxu0 0
        %883 = vmatpush1.bf16.msra.mxu0 0
        %884 = vmatprep.subr.bf16.mxu0 0
        %885 = vmatpush1.bf16.msra.mxu0 0
        %886 = vmatprep.subr.bf16.mxu0 0
        %887 = vmatpush1.bf16.msra.mxu0 0
        %888 = vmatprep.subr.bf16.mxu0 0
        %889 = vmatpush1.bf16.msra.mxu0 0
        %890 = vmatprep.subr.bf16.mxu0 0
        %891 = vmatpush1.bf16.msra.mxu0 0
        %892 = vmatprep.mubr.bf16.mxu0 0
        %893 = vmatmul.mubr.bf16.gmra.mrb[0].mxu0 %v858
        %v894 = vpop.f32.mrb[0].mxu0
        %v895 = vadd.f32 0.0, %v894
        %v896 = vpop.f32.mrb[0].mxu0
        %v897 = vpop.f32.mrb[0].mxu0
        %v898 = vpop.f32.mrb[0].mxu0
        %899 = vdwg.mxu0
        %v900 = vadd.f32 %v817, %v895
        %s901 = scalar_lea.vmem %s1, 256
        %v902 = vld [vmem:[%s901] sm:$0xf]
        %v903 = vld [vmem:[%s901 + $0x4] sm:$0xf]
        %v904 = vld [vmem:[%s901 + $0x8] sm:$0xf]
        %v905 = vld [vmem:[%s901 + $0xc] sm:$0xf]
        %v906 = vld [vmem:[%s901 + $0x10] sm:$0xf]
        %v907 = vld [vmem:[%s901 + $0x14] sm:$0xf]
        %v908 = vld [vmem:[%s901 + $0x18] sm:$0xf]
        %v909 = vld [vmem:[%s901 + $0x1c] sm:$0xf]
        %v910 = vpack.c.bf16 %v260, %v259
        %v912 = vrot.slane %v910, 1
        %v921 = vunpack.c.l.b16 %v902
        %v922 = vunpack.c.l.b16 %v903
        %v923 = vunpack.c.l.b16 %v904
        %v924 = vunpack.c.l.b16 %v905
        %v925 = vunpack.c.l.b16 %v906
        %v926 = vunpack.c.l.b16 %v907
        %v927 = vunpack.c.l.b16 %v908
        %v928 = vunpack.c.l.b16 %v909
        %v929 = vpack.c.b16 %v922, %v921
        %v930 = vpack.c.b16 %v924, %v923
        %v931 = vpack.c.b16 %v926, %v925
        %v932 = vpack.c.b16 %v928, %v927
        %v938 = vsel %vm243, %v912, 0
        %940 = vmatprep.subr.bf16.mxu0 0
        %941 = vmatpush1.bf16.msra.mxu0 %v929
        %942 = vmatprep.subr.bf16.mxu0 0
        %943 = vmatpush1.bf16.msra.mxu0 %v930
        %944 = vmatprep.subr.bf16.mxu0 0
        %945 = vmatpush1.bf16.msra.mxu0 %v931
        %946 = vmatprep.subr.bf16.mxu0 0
        %947 = vmatpush1.bf16.msra.mxu0 %v932
        %948 = vmatprep.subr.bf16.mxu0 0
        %949 = vmatpush1.bf16.msra.mxu0 0
        %950 = vmatprep.subr.bf16.mxu0 0
        %951 = vmatpush1.bf16.msra.mxu0 0
        %952 = vmatprep.subr.bf16.mxu0 0
        %953 = vmatpush1.bf16.msra.mxu0 0
        %954 = vmatprep.subr.bf16.mxu0 0
        %955 = vmatpush1.bf16.msra.mxu0 0
        %956 = vmatprep.subr.bf16.mxu0 0
        %957 = vmatpush1.bf16.msra.mxu0 0
        %958 = vmatprep.subr.bf16.mxu0 0
        %959 = vmatpush1.bf16.msra.mxu0 0
        %960 = vmatprep.subr.bf16.mxu0 0
        %961 = vmatpush1.bf16.msra.mxu0 0
        %962 = vmatprep.subr.bf16.mxu0 0
        %963 = vmatpush1.bf16.msra.mxu0 0
        %964 = vmatprep.subr.bf16.mxu0 0
        %965 = vmatpush1.bf16.msra.mxu0 0
        %966 = vmatprep.subr.bf16.mxu0 0
        %967 = vmatpush1.bf16.msra.mxu0 0
        %968 = vmatprep.subr.bf16.mxu0 0
        %969 = vmatpush1.bf16.msra.mxu0 0
        %970 = vmatprep.subr.bf16.mxu0 0
        %971 = vmatpush1.bf16.msra.mxu0 0
        %972 = vmatprep.mubr.bf16.mxu0 0
        %973 = vmatmul.mubr.bf16.gmra.mrb[0].mxu0 %v938
        %v974 = vpop.f32.mrb[0].mxu0
        %v975 = vadd.f32 0.0, %v974
        %v976 = vpop.f32.mrb[0].mxu0
        %v977 = vpop.f32.mrb[0].mxu0
        %v978 = vpop.f32.mrb[0].mxu0
        %979 = vdwg.mxu0
        %v980 = vadd.f32 %v900, %v975
        %v982 = vlaneseq
        %v983 = vshrl.u32 %v982, 7
        %v984 = vsub.s32 0, %v983
        %v985 = vrot.slane %v240, %v984
        %v987 = vadd.f32 %v980, %v985
        %v988 = vmax.f32 %v987, 0.0
        %s989 = smul.u32 %s248, 8
        %s990 = scalar_lea.vmem [#allocation2], %s989
        %vm991 = vcmask 522240
        %992 = vst.msk [vmem:[%s990] sm:$0x7f] %vm991, %v988
        %v994 = vlaneseq
        %v995 = vshrl.u32 %v994, 7
        %v996 = vsub.s32 0, %v995
        %v997 = vrot.slane %v241, %v996
        %v999 = vmul.f32 %v980, %v997
        %v1001 = vlaneseq
        %v1002 = vshrl.u32 %v1001, 7
        %v1003 = vsub.s32 0, %v1002
        %v1004 = vrot.slane %v242, %v1003
        %v1006 = vadd.f32 %v999, %v1004
        %v1007 = vmax.f32 %v1006, 0.0
        %s1008 = scalar_lea.vmem [#allocation3], %s989
        %1009 = vst.msk [vmem:[%s1008] sm:$0x7f] %vm991, %v1007
      $region45: #{forward.7} parent=39 // loop_footer
        %s252 = sadd.s32 1, %s248
      $region46: #{forward.7} parent=39 // loop_footer_branch
        %247 = sbr.rel target = $region42
      $region47: #{forward.7} parent=39 // loop_exit
        _
      loop: start=0, step=1, limit=6
      $region48: #{forward.7} parent=39 // loop_pre_header
        _
      $region49: #{forward.7} parent=39 // loop_header
        %s1011 = sphi 0, %s1015
        %p1012 = scmp.ge.s32.totalorder %s1011, 6
      $region50: #{forward.7} parent=39 // loop_header_branch
        %1014 = sbr.rel (%p1012) target = $region54
      $region51: #{forward.7} parent=39 // loop_body
        %s1016 = smul.u32 %s1011, 8
        %s1017 = scalar_lea.vmem [#allocation2], %s1016
        %v1018 = vld [vmem:[%s1017] sm:$0x7f]
        %s1019 = sadd.s32 %s1011, 1
        %s1020 = smul.u32 %s1019, 8
        %s1021 = scalar_lea.vmem [#allocation2], %s1020
        %v1022 = vld [vmem:[%s1021] sm:$0x7f]
        %v1023 = vmax.f32 %v1018, %v1022
        %s1024 = scalar_lea.vmem [#allocation3], %s1016
        %v1025 = vld [vmem:[%s1024] sm:$0x7f]
        %s1026 = scalar_lea.vmem [#allocation3], %s1020
        %v1027 = vld [vmem:[%s1026] sm:$0x7f]
        %v1028 = vmax.f32 %v1025, %v1027
        %vm1029 = vcmask 56320
        %v1031 = vsel %vm1029, %v236, 0
        %vm1033 = vcmask 1046528
        %v1035 = vsel %vm1033, %v1023, 0
        %1037 = vmatprep.subr.mxu0 0.0
        %1038 = vmatpush1.msra.mxu0 %v1035
        %1039 = vmatprep.subr.mxu0 0.0
        %1040 = vmatpush1.msra.mxu0 0.0
        %1041 = vmatprep.subr.mxu0 0.0
        %1042 = vmatpush1.msra.mxu0 0.0
        %1043 = vmatprep.subr.mxu0 0.0
        %1044 = vmatpush1.msra.mxu0 0.0
        %1045 = vmatprep.subr.mxu0 0.0
        %1046 = vmatpush1.msra.mxu0 0.0
        %1047 = vmatprep.subr.mxu0 0.0
        %1048 = vmatpush1.msra.mxu0 0.0
        %1049 = vmatprep.subr.mxu0 0.0
        %1050 = vmatpush1.msra.mxu0 0.0
        %1051 = vmatprep.subr.mxu0 0.0
        %1052 = vmatpush1.msra.mxu0 0.0
        %1053 = vmatprep.subr.mxu0 0.0
        %1054 = vmatpush1.msra.mxu0 0.0
        %1055 = vmatprep.subr.mxu0 0.0
        %1056 = vmatpush1.msra.mxu0 0.0
        %1057 = vmatprep.subr.mxu0 0.0
        %1058 = vmatpush1.msra.mxu0 0.0
        %1059 = vmatprep.subr.mxu0 0.0
        %1060 = vmatpush1.msra.mxu0 0.0
        %1061 = vmatprep.subr.mxu0 0.0
        %1062 = vmatpush1.msra.mxu0 0.0
        %1063 = vmatprep.subr.mxu0 0.0
        %1064 = vmatpush1.msra.mxu0 0.0
        %1065 = vmatprep.subr.mxu0 0.0
        %1066 = vmatpush1.msra.mxu0 0.0
        %1067 = vmatprep.subr.mxu0 0.0
        %1068 = vmatpush1.msra.mxu0 0.0
        %1069 = vmatprep.subr.mxu0 0.0
        %1070 = vmatpush1.msra.mxu0 0.0
        %1071 = vmatprep.subr.mxu0 0.0
        %1072 = vmatpush1.msra.mxu0 0.0
        %1073 = vmatprep.subr.mxu0 0.0
        %1074 = vmatpush1.msra.mxu0 0.0
        %1075 = vmatprep.subr.mxu0 0.0
        %1076 = vmatpush1.msra.mxu0 0.0
        %1077 = vmatprep.subr.mxu0 0.0
        %1078 = vmatpush1.msra.mxu0 0.0
        %1079 = vmatprep.subr.mxu0 0.0
        %1080 = vmatpush1.msra.mxu0 0.0
        %1081 = vmatprep.subr.mxu0 0.0
        %1082 = vmatpush1.msra.mxu0 0.0
        %1083 = vmatprep.subr.mxu0 0.0
        %1084 = vmatpush1.msra.mxu0 0.0
        %1085 = vmatprep.subr.mxu0 0.0
        %1086 = vmatpush1.msra.mxu0 0.0
        %1087 = vmatprep.subr.mxu0 0.0
        %1088 = vmatpush1.msra.mxu0 0.0
        %1089 = vmatprep.subr.mxu0 0.0
        %1090 = vmatpush1.msra.mxu0 0.0
        %1091 = vmatprep.subr.mxu0 0.0
        %1092 = vmatpush1.msra.mxu0 0.0
        %1093 = vmatprep.subr.mxu0 0.0
        %1094 = vmatpush1.msra.mxu0 0.0
        %1095 = vmatprep.subr.mxu0 0.0
        %1096 = vmatpush1.msra.mxu0 0.0
        %1097 = vmatprep.subr.mxu0 0.0
        %1098 = vmatpush1.msra.mxu0 0.0
        %1099 = vmatprep.subr.mxu0 0.0
        %1100 = vmatpush1.msra.mxu0 0.0
        %1101 = vmatprep.mubr.f32.mxu0 0.0
        %1102 = vmatmul.mubr.f32.gmra.mrb[0].mxu0 %v1031
        %v1103 = vpop.f32.mrb[0].mxu0
        %v1104 = vadd.f32 0.0, %v1103
        %v1105 = vpop.f32.mrb[0].mxu0
        %1106 = vdwg.mxu0
        %v1108 = vsel %vm1029, %v239, 0
        %1110 = vmatprep.subr.mxu0 0.0
        %1111 = vmatpush1.msra.mxu0 %v1035
        %1112 = vmatprep.subr.mxu0 0.0
        %1113 = vmatpush1.msra.mxu0 0.0
        %1114 = vmatprep.subr.mxu0 0.0
        %1115 = vmatpush1.msra.mxu0 0.0
        %1116 = vmatprep.subr.mxu0 0.0
        %1117 = vmatpush1.msra.mxu0 0.0
        %1118 = vmatprep.subr.mxu0 0.0
        %1119 = vmatpush1.msra.mxu0 0.0
        %1120 = vmatprep.subr.mxu0 0.0
        %1121 = vmatpush1.msra.mxu0 0.0
        %1122 = vmatprep.subr.mxu0 0.0
        %1123 = vmatpush1.msra.mxu0 0.0
        %1124 = vmatprep.subr.mxu0 0.0
        %1125 = vmatpush1.msra.mxu0 0.0
        %1126 = vmatprep.subr.mxu0 0.0
        %1127 = vmatpush1.msra.mxu0 0.0
        %1128 = vmatprep.subr.mxu0 0.0
        %1129 = vmatpush1.msra.mxu0 0.0
        %1130 = vmatprep.subr.mxu0 0.0
        %1131 = vmatpush1.msra.mxu0 0.0
        %1132 = vmatprep.subr.mxu0 0.0
        %1133 = vmatpush1.msra.mxu0 0.0
        %1134 = vmatprep.subr.mxu0 0.0
        %1135 = vmatpush1.msra.mxu0 0.0
        %1136 = vmatprep.subr.mxu0 0.0
        %1137 = vmatpush1.msra.mxu0 0.0
        %1138 = vmatprep.subr.mxu0 0.0
        %1139 = vmatpush1.msra.mxu0 0.0
        %1140 = vmatprep.subr.mxu0 0.0
        %1141 = vmatpush1.msra.mxu0 0.0
        %1142 = vmatprep.subr.mxu0 0.0
        %1143 = vmatpush1.msra.mxu0 0.0
        %1144 = vmatprep.subr.mxu0 0.0
        %1145 = vmatpush1.msra.mxu0 0.0
        %1146 = vmatprep.subr.mxu0 0.0
        %1147 = vmatpush1.msra.mxu0 0.0
        %1148 = vmatprep.subr.mxu0 0.0
        %1149 = vmatpush1.msra.mxu0 0.0
        %1150 = vmatprep.subr.mxu0 0.0
        %1151 = vmatpush1.msra.mxu0 0.0
        %1152 = vmatprep.subr.mxu0 0.0
        %1153 = vmatpush1.msra.mxu0 0.0
        %1154 = vmatprep.subr.mxu0 0.0
        %1155 = vmatpush1.msra.mxu0 0.0
        %1156 = vmatprep.subr.mxu0 0.0
        %1157 = vmatpush1.msra.mxu0 0.0
        %1158 = vmatprep.subr.mxu0 0.0
        %1159 = vmatpush1.msra.mxu0 0.0
        %1160 = vmatprep.subr.mxu0 0.0
        %1161 = vmatpush1.msra.mxu0 0.0
        %1162 = vmatprep.subr.mxu0 0.0
        %1163 = vmatpush1.msra.mxu0 0.0
        %1164 = vmatprep.subr.mxu0 0.0
        %1165 = vmatpush1.msra.mxu0 0.0
        %1166 = vmatprep.subr.mxu0 0.0
        %1167 = vmatpush1.msra.mxu0 0.0
        %1168 = vmatprep.subr.mxu0 0.0
        %1169 = vmatpush1.msra.mxu0 0.0
        %1170 = vmatprep.subr.mxu0 0.0
        %1171 = vmatpush1.msra.mxu0 0.0
        %1172 = vmatprep.subr.mxu0 0.0
        %1173 = vmatpush1.msra.mxu0 0.0
        %1174 = vmatprep.mubr.f32.mxu0 0.0
        %1175 = vmatmul.mubr.f32.gmra.mrb[0].mxu0 %v1108
        %v1176 = vpop.f32.mrb[0].mxu0
        %v1177 = vadd.f32 0.0, %v1176
        %v1178 = vpop.f32.mrb[0].mxu0
        %1179 = vdwg.mxu0
        %v1180 = vmax.f32 %v1104, %v1177
        %v1182 = vsel %vm1033, %v1028, 0
        %1184 = vmatprep.subr.mxu0 0.0
        %1185 = vmatpush1.msra.mxu0 %v1182
        %1186 = vmatprep.subr.mxu0 0.0
        %1187 = vmatpush1.msra.mxu0 0.0
        %1188 = vmatprep.subr.mxu0 0.0
        %1189 = vmatpush1.msra.mxu0 0.0
        %1190 = vmatprep.subr.mxu0 0.0
        %1191 = vmatpush1.msra.mxu0 0.0
        %1192 = vmatprep.subr.mxu0 0.0
        %1193 = vmatpush1.msra.mxu0 0.0
        %1194 = vmatprep.subr.mxu0 0.0
        %1195 = vmatpush1.msra.mxu0 0.0
        %1196 = vmatprep.subr.mxu0 0.0
        %1197 = vmatpush1.msra.mxu0 0.0
        %1198 = vmatprep.subr.mxu0 0.0
        %1199 = vmatpush1.msra.mxu0 0.0
        %1200 = vmatprep.subr.mxu0 0.0
        %1201 = vmatpush1.msra.mxu0 0.0
        %1202 = vmatprep.subr.mxu0 0.0
        %1203 = vmatpush1.msra.mxu0 0.0
        %1204 = vmatprep.subr.mxu0 0.0
        %1205 = vmatpush1.msra.mxu0 0.0
        %1206 = vmatprep.subr.mxu0 0.0
        %1207 = vmatpush1.msra.mxu0 0.0
        %1208 = vmatprep.subr.mxu0 0.0
        %1209 = vmatpush1.msra.mxu0 0.0
        %1210 = vmatprep.subr.mxu0 0.0
        %1211 = vmatpush1.msra.mxu0 0.0
        %1212 = vmatprep.subr.mxu0 0.0
        %1213 = vmatpush1.msra.mxu0 0.0
        %1214 = vmatprep.subr.mxu0 0.0
        %1215 = vmatpush1.msra.mxu0 0.0
        %1216 = vmatprep.subr.mxu0 0.0
        %1217 = vmatpush1.msra.mxu0 0.0
        %1218 = vmatprep.subr.mxu0 0.0
        %1219 = vmatpush1.msra.mxu0 0.0
        %1220 = vmatprep.subr.mxu0 0.0
        %1221 = vmatpush1.msra.mxu0 0.0
        %1222 = vmatprep.subr.mxu0 0.0
        %1223 = vmatpush1.msra.mxu0 0.0
        %1224 = vmatprep.subr.mxu0 0.0
        %1225 = vmatpush1.msra.mxu0 0.0
        %1226 = vmatprep.subr.mxu0 0.0
        %1227 = vmatpush1.msra.mxu0 0.0
        %1228 = vmatprep.subr.mxu0 0.0
        %1229 = vmatpush1.msra.mxu0 0.0
        %1230 = vmatprep.subr.mxu0 0.0
        %1231 = vmatpush1.msra.mxu0 0.0
        %1232 = vmatprep.subr.mxu0 0.0
        %1233 = vmatpush1.msra.mxu0 0.0
        %1234 = vmatprep.subr.mxu0 0.0
        %1235 = vmatpush1.msra.mxu0 0.0
        %1236 = vmatprep.subr.mxu0 0.0
        %1237 = vmatpush1.msra.mxu0 0.0
        %1238 = vmatprep.subr.mxu0 0.0
        %1239 = vmatpush1.msra.mxu0 0.0
        %1240 = vmatprep.subr.mxu0 0.0
        %1241 = vmatpush1.msra.mxu0 0.0
        %1242 = vmatprep.subr.mxu0 0.0
        %1243 = vmatpush1.msra.mxu0 0.0
        %1244 = vmatprep.subr.mxu0 0.0
        %1245 = vmatpush1.msra.mxu0 0.0
        %1246 = vmatprep.subr.mxu0 0.0
        %1247 = vmatpush1.msra.mxu0 0.0
        %1248 = vmatprep.mubr.f32.mxu0 0.0
        %1249 = vmatmul.mubr.f32.gmra.mrb[0].mxu0 %v1031
        %v1250 = vpop.f32.mrb[0].mxu0
        %v1251 = vadd.f32 0.0, %v1250
        %v1252 = vpop.f32.mrb[0].mxu0
        %1253 = vdwg.mxu0
        %1254 = vmatprep.subr.mxu0 0.0
        %1255 = vmatpush1.msra.mxu0 %v1182
        %1256 = vmatprep.subr.mxu0 0.0
        %1257 = vmatpush1.msra.mxu0 0.0
        %1258 = vmatprep.subr.mxu0 0.0
        %1259 = vmatpush1.msra.mxu0 0.0
        %1260 = vmatprep.subr.mxu0 0.0
        %1261 = vmatpush1.msra.mxu0 0.0
        %1262 = vmatprep.subr.mxu0 0.0
        %1263 = vmatpush1.msra.mxu0 0.0
        %1264 = vmatprep.subr.mxu0 0.0
        %1265 = vmatpush1.msra.mxu0 0.0
        %1266 = vmatprep.subr.mxu0 0.0
        %1267 = vmatpush1.msra.mxu0 0.0
        %1268 = vmatprep.subr.mxu0 0.0
        %1269 = vmatpush1.msra.mxu0 0.0
        %1270 = vmatprep.subr.mxu0 0.0
        %1271 = vmatpush1.msra.mxu0 0.0
        %1272 = vmatprep.subr.mxu0 0.0
        %1273 = vmatpush1.msra.mxu0 0.0
        %1274 = vmatprep.subr.mxu0 0.0
        %1275 = vmatpush1.msra.mxu0 0.0
        %1276 = vmatprep.subr.mxu0 0.0
        %1277 = vmatpush1.msra.mxu0 0.0
        %1278 = vmatprep.subr.mxu0 0.0
        %1279 = vmatpush1.msra.mxu0 0.0
        %1280 = vmatprep.subr.mxu0 0.0
        %1281 = vmatpush1.msra.mxu0 0.0
        %1282 = vmatprep.subr.mxu0 0.0
        %1283 = vmatpush1.msra.mxu0 0.0
        %1284 = vmatprep.subr.mxu0 0.0
        %1285 = vmatpush1.msra.mxu0 0.0
        %1286 = vmatprep.subr.mxu0 0.0
        %1287 = vmatpush1.msra.mxu0 0.0
        %1288 = vmatprep.subr.mxu0 0.0
        %1289 = vmatpush1.msra.mxu0 0.0
        %1290 = vmatprep.subr.mxu0 0.0
        %1291 = vmatpush1.msra.mxu0 0.0
        %1292 = vmatprep.subr.mxu0 0.0
        %1293 = vmatpush1.msra.mxu0 0.0
        %1294 = vmatprep.subr.mxu0 0.0
        %1295 = vmatpush1.msra.mxu0 0.0
        %1296 = vmatprep.subr.mxu0 0.0
        %1297 = vmatpush1.msra.mxu0 0.0
        %1298 = vmatprep.subr.mxu0 0.0
        %1299 = vmatpush1.msra.mxu0 0.0
        %1300 = vmatprep.subr.mxu0 0.0
        %1301 = vmatpush1.msra.mxu0 0.0
        %1302 = vmatprep.subr.mxu0 0.0
        %1303 = vmatpush1.msra.mxu0 0.0
        %1304 = vmatprep.subr.mxu0 0.0
        %1305 = vmatpush1.msra.mxu0 0.0
        %1306 = vmatprep.subr.mxu0 0.0
        %1307 = vmatpush1.msra.mxu0 0.0
        %1308 = vmatprep.subr.mxu0 0.0
        %1309 = vmatpush1.msra.mxu0 0.0
        %1310 = vmatprep.subr.mxu0 0.0
        %1311 = vmatpush1.msra.mxu0 0.0
        %1312 = vmatprep.subr.mxu0 0.0
        %1313 = vmatpush1.msra.mxu0 0.0
        %1314 = vmatprep.subr.mxu0 0.0
        %1315 = vmatpush1.msra.mxu0 0.0
        %1316 = vmatprep.subr.mxu0 0.0
        %1317 = vmatpush1.msra.mxu0 0.0
        %1318 = vmatprep.mubr.f32.mxu0 0.0
        %1319 = vmatmul.mubr.f32.gmra.mrb[0].mxu0 %v1108
        %v1320 = vpop.f32.mrb[0].mxu0
        %v1321 = vadd.f32 0.0, %v1320
        %v1322 = vpop.f32.mrb[0].mxu0
        %1323 = vdwg.mxu0
        %v1324 = vmax.f32 %v1251, %v1321
        %v1325 = vadd.f32 %v1180, %v1324
        %s1326 = scalar_lea.vmem %s224, %s1020
        %1327 = vst.msk [vmem:[%s1326] sm:$0xff] %vm243, %v1325
      $region52: #{forward.7} parent=39 // loop_footer
        %s1015 = sadd.s32 1, %s1011
      $region53: #{forward.7} parent=39 // loop_footer_branch
        %1010 = sbr.rel target = $region49
      $region54: #{forward.7} parent=39 // loop_exit
        _
      %p1328 = scmp.lt.s32.totalorder %s16, 1
      %s1329 = scalar_select %p1328, %s16, 1
      %s1330 = smul.addr %s1329, 8
      %s1331 = smul.addr %s1330, 8
      %s1332 = scalar_lea.vmem %s5, %s1331
      // Predicated region
      $region55: #{forward.7} parent=39 // pred_check
        %p1333 = pneg %p144
      $region56: #{forward.7} parent=39 // pred_check_branch
        %1335 = sbr.rel (%p1333) target = $region58
      $region57: #{forward.7} parent=39 // pred_region
        _
      $region58: #{forward.7} parent=39 // pred_fallthru
        _
    $region40: #{forward.7} parent=5 // pred_fallthru
      _
    %p1336 = scmp.le.s32.totalorder 2, %s11
    // Predicated region
    $region59: #{forward.7} parent=5 // pred_check
      %p1337 = pneg %p1336
    $region60: #{forward.7} parent=5 // pred_check_branch
      %1339 = sbr.rel (%p1337) target = $region62
    $region61: #{forward.7} parent=5 // pred_region
      %s1340 = ssub.s32 %s11, 2
      // Predicated region
      $region63: #{forward.7} parent=61 // pred_check
        %p1341 = pneg %p150
      $region64: #{forward.7} parent=61 // pred_check_branch
        %1343 = sbr.rel (%p1341) target = $region66
      $region65: #{forward.7} parent=61 // pred_region
        %p1344 = scmp.lt.s32.totalorder %s17, 1
        %s1345 = scalar_select %p1344, %s17, 1
        %s1346 = smul.addr %s1345, 8
        %s1347 = smul.addr %s1346, 8
        %s1348 = scalar_lea.vmem %s5, %s1347
      $region66: #{forward.7} parent=61 // pred_fallthru
        _
    $region62: #{forward.7} parent=5 // pred_fallthru
      _
  $region6: #{forward.7} parent=0 // loop_footer
    %s15 = sadd.s32 1, %s11
  $region7: #{forward.7} parent=0 // loop_footer_branch
    %10 = sbr.rel target = $region3
  $region8: #{forward.7} parent=0 // loop_exit
    _

// kernel: forward.8
$region0: #{forward.8}
  #allocation0 [shape = 'u32[]', space=smem, size = 0x4, offset = 0x4, fixed_abs, tag = 'smem constant byte address 0x4 - core index']
  #allocation1 [shape = 'u32[144,128]{1,0:T(1,128)}', space=vmem, size = 0x12000, scoped, tag = 'internal scratch']
  %s0 = inlined_call_operand.vmem [shape: f32[2,8,8,64], index: 0, kind: input, shape index: {}]
  %s1 = inlined_call_operand.vmem [shape: bf16[9,64,64], index: 1, kind: input, shape index: {}]
  %s2 = inlined_call_operand.vmem [shape: f32[1,64], index: 2, kind: input, shape index: {}]
  %s3 = inlined_call_operand.vmem [shape: f32[1,64], index: 3, kind: input, shape index: {}]
  %s4 = inlined_call_operand.vmem [shape: f32[2,3,3,64], index: 4, kind: output, shape index: {}]
  %s5 = sld [smem:[#allocation0]]
  $region56: #{forward.8} parent=0
    _
  %s7 = ssub.s32 1, %s5
  %s8 = scalar_select 0, %s7, %s5
  loop: start=0, step=1, limit=4
  $region2: #{forward.8} parent=0 // loop_pre_header
    _
  $region3: #{forward.8} parent=0 // loop_header
    %s10 = sphi 0, %s14
    %p11 = scmp.ge.s32.totalorder %s10, 4
    %s20 = sphi 0, %s22
    %s23 = sphi 0, %s20
    %s24 = sphi 0, %s23
    %s40 = sphi 0, %s24
    %s44 = sphi 0, %s44
    %s46 = sphi 0, %s44
    %s47 = sphi 0, %s46
    %s61 = sphi 0, %s47
    %s65 = sphi 0, %s65
    %s67 = sphi 0, %s65
    %s68 = sphi 0, %s67
    %s82 = sphi 0, %s68
    %s86 = sphi 0, %s86
    %s88 = sphi 0, %s86
    %s89 = sphi 0, %s88
    %s103 = sphi 0, %s89
    %s109 = sphi 0, %s111
    %s112 = sphi 0, %s109
    %s113 = sphi 0, %s112
    %s129 = sphi 0, %s113
  $region4: #{forward.8} parent=0 // loop_header_branch
    %13 = sbr.rel (%p11) target = $region8
  $region5: #{forward.8} parent=0 // loop_body
    %s15 = ssub.s32 %s10, 1
    %s16 = ssub.s32 %s10, 2
    %s17 = sadd.s32 %s10, 1
    %s18 = ssub.s32 %s10, %s17
    %p19 = scmp.eq.s32.totalorder %s18, 0
    %s21 = sadd.s32 %s20, 1
    %s22 = scalar_select %p19, %s20, %s21
    %p25 = pneg %p19
    %p26 = scmp.eq.s32.totalorder %s10, 1
    %p27 = por %p25, %p26
    %p28 = scmp.ne.s32.totalorder %s20, %s23
    %p29 = scmp.eq.s32.totalorder %s10, 0
    %p30 = por %p28, %p29
    %p31 = scmp.ne.s32.totalorder %s20, %s23
    %p32 = scmp.eq.s32.totalorder %s15, 1
    %p33 = por %p31, %p32
    %p34 = scmp.ne.s32.totalorder %s23, %s24
    %p35 = scmp.eq.s32.totalorder %s15, 0
    %p36 = por %p34, %p35
    %p37 = scmp.ne.s32.totalorder %s23, %s24
    %p38 = scmp.eq.s32.totalorder %s16, 1
    %p39 = por %p37, %p38
    %p41 = scmp.ne.s32.totalorder %s24, %s40
    %p42 = scmp.eq.s32.totalorder %s16, 0
    %p43 = por %p41, %p42
    %s45 = sadd.s32 %s44, 1
    %p48 = scmp.eq.s32.totalorder %s10, 1
    %p49 = scmp.ne.s32.totalorder %s44, %s46
    %p50 = scmp.eq.s32.totalorder %s10, 0
    %p51 = por %p49, %p50
    %p52 = scmp.ne.s32.totalorder %s44, %s46
    %p53 = scmp.eq.s32.totalorder %s15, 1
    %p54 = por %p52, %p53
    %p55 = scmp.ne.s32.totalorder %s46, %s47
    %p56 = scmp.eq.s32.totalorder %s15, 0
    %p57 = por %p55, %p56
    %p58 = scmp.ne.s32.totalorder %s46, %s47
    %p59 = scmp.eq.s32.totalorder %s16, 1
    %p60 = por %p58, %p59
    %p62 = scmp.ne.s32.totalorder %s47, %s61
    %p63 = scmp.eq.s32.totalorder %s16, 0
    %p64 = por %p62, %p63
    %s66 = sadd.s32 %s65, 1
    %p69 = scmp.eq.s32.totalorder %s10, 1
    %p70 = scmp.ne.s32.totalorder %s65, %s67
    %p71 = scmp.eq.s32.totalorder %s10, 0
    %p72 = por %p70, %p71
    %p73 = scmp.ne.s32.totalorder %s65, %s67
    %p74 = scmp.eq.s32.totalorder %s15, 1
    %p75 = por %p73, %p74
    %p76 = scmp.ne.s32.totalorder %s67, %s68
    %p77 = scmp.eq.s32.totalorder %s15, 0
    %p78 = por %p76, %p77
    %p79 = scmp.ne.s32.totalorder %s67, %s68
    %p80 = scmp.eq.s32.totalorder %s16, 1
    %p81 = por %p79, %p80
    %p83 = scmp.ne.s32.totalorder %s68, %s82
    %p84 = scmp.eq.s32.totalorder %s16, 0
    %p85 = por %p83, %p84
    %s87 = sadd.s32 %s86, 1
    %p90 = scmp.eq.s32.totalorder %s10, 1
    %p91 = scmp.ne.s32.totalorder %s86, %s88
    %p92 = scmp.eq.s32.totalorder %s10, 0
    %p93 = por %p91, %p92
    %p94 = scmp.ne.s32.totalorder %s86, %s88
    %p95 = scmp.eq.s32.totalorder %s15, 1
    %p96 = por %p94, %p95
    %p97 = scmp.ne.s32.totalorder %s88, %s89
    %p98 = scmp.eq.s32.totalorder %s15, 0
    %p99 = por %p97, %p98
    %p100 = scmp.ne.s32.totalorder %s88, %s89
    %p101 = scmp.eq.s32.totalorder %s16, 1
    %p102 = por %p100, %p101
    %p104 = scmp.ne.s32.totalorder %s89, %s103
    %p105 = scmp.eq.s32.totalorder %s16, 0
    %p106 = por %p104, %p105
    %s107 = ssub.s32 %s10, %s17
    %p108 = scmp.eq.s32.totalorder %s107, 0
    %s110 = sadd.s32 %s109, 1
    %s111 = scalar_select %p108, %s109, %s110
    %p114 = pneg %p108
    %p115 = scmp.eq.s32.totalorder %s10, 1
    %p116 = por %p114, %p115
    %p117 = scmp.ne.s32.totalorder %s109, %s112
    %p118 = scmp.eq.s32.totalorder %s10, 0
    %p119 = por %p117, %p118
    %p120 = scmp.ne.s32.totalorder %s109, %s112
    %p121 = scmp.eq.s32.totalorder %s15, 1
    %p122 = por %p120, %p121
    %p123 = scmp.ne.s32.totalorder %s112, %s113
    %p124 = scmp.eq.s32.totalorder %s15, 0
    %p125 = por %p123, %p124
    %p126 = scmp.ne.s32.totalorder %s112, %s113
    %p127 = scmp.eq.s32.totalorder %s16, 1
    %p128 = por %p126, %p127
    %p130 = scmp.ne.s32.totalorder %s113, %s129
    %p131 = scmp.eq.s32.totalorder %s16, 0
    %p132 = por %p130, %p131
    %p133 = scmp.le.s32.totalorder 1, %s10
    %p134 = scmp.lt.s32.totalorder %s10, 3
    %p135 = pnand %p133, %p134
    %p136 = pneg %p135
    // Predicated region
    $region9: #{forward.8} parent=5 // pred_check
      _
    $region10: #{forward.8} parent=5 // pred_check_branch
      %138 = sbr.rel (%p135) target = $region12
    $region11: #{forward.8} parent=5 // pred_region
      %s139 = ssub.s32 %s10, 1
      // Predicated region
      $region13: #{forward.8} parent=11 // pred_check
        %p140 = pneg %p57
      $region14: #{forward.8} parent=11 // pred_check_branch
        %142 = sbr.rel (%p140) target = $region16
      $region15: #{forward.8} parent=11 // pred_region
        _
      $region16: #{forward.8} parent=11 // pred_fallthru
        _
      // Predicated region
      $region17: #{forward.8} parent=11 // pred_check
        %p143 = pneg %p78
      $region18: #{forward.8} parent=11 // pred_check_branch
        %145 = sbr.rel (%p143) target = $region20
      $region19: #{forward.8} parent=11 // pred_region
        _
      $region20: #{forward.8} parent=11 // pred_fallthru
        _
      // Predicated region
      $region21: #{forward.8} parent=11 // pred_check
        %p146 = pneg %p99
      $region22: #{forward.8} parent=11 // pred_check_branch
        %148 = sbr.rel (%p146) target = $region24
      $region23: #{forward.8} parent=11 // pred_region
        _
      $region24: #{forward.8} parent=11 // pred_fallthru
        _
    $region12: #{forward.8} parent=5 // pred_fallthru
      _
    %p149 = scmp.lt.s32.totalorder %s10, 2
    // Predicated region
    $region25: #{forward.8} parent=5 // pred_check
      %p150 = pneg %p149
    $region26: #{forward.8} parent=5 // pred_check_branch
      %152 = sbr.rel (%p150) target = $region28
    $region27: #{forward.8} parent=5 // pred_region
      // Predicated region
      $region29: #{forward.8} parent=27 // pred_check
        %p153 = pneg %p30
      $region30: #{forward.8} parent=27 // pred_check_branch
        %155 = sbr.rel (%p153) target = $region32
      $region31: #{forward.8} parent=27 // pred_region
        %p156 = scmp.lt.s32.totalorder %s10, 1
        %s157 = scalar_select %p156, %s10, 1
        %s158 = smul.addr %s157, 8
        %s159 = smul.addr %s158, 8
        %s160 = scalar_lea.vmem %s0, %s159
      $region32: #{forward.8} parent=27 // pred_fallthru
        _
    $region28: #{forward.8} parent=5 // pred_fallthru
      _
    %p161 = scmp.le.s32.totalorder 1, %s10
    %p162 = scmp.lt.s32.totalorder %s10, 3
    %p163 = pnand %p161, %p162
    %p164 = pneg %p163
    // Predicated region
    $region33: #{forward.8} parent=5 // pred_check
      _
    $region34: #{forward.8} parent=5 // pred_check_branch
      %166 = sbr.rel (%p163) target = $region36
    $region35: #{forward.8} parent=5 // pred_region
      %s167 = ssub.s32 %s10, 1
      %p168 = scmp.lt.s32.totalorder %s15, 1
      %s169 = scalar_select %p168, %s15, 1
      %s170 = smul.addr %s169, 8
      %s171 = smul.addr %s170, 8
      %s172 = scalar_lea.vmem %s0, %s171
      %p173 = pneg %p36
      %p174 = pneg %p33
      %p175 = pneg %p57
      %p176 = pneg %p54
      %p177 = pneg %p78
      %p178 = pneg %p75
      %p179 = pneg %p99
      %p180 = pneg %p96
      %p181 = pneg %p125
      %p182 = pneg %p122
      %p183 = scmp.lt.s32.totalorder %s15, 1
      %s184 = scalar_select %p183, %s15, 1
      %s185 = smul.addr %s184, 3
      %s186 = smul.addr %s185, 4
      %s187 = scalar_lea.vmem %s4, %s186
      %p188 = scmp.lt.s32.totalorder %s15, 1
      %s189 = scalar_select %p188, %s15, 1
      %s190 = smul.addr %s189, 8
      %s191 = smul.addr %s190, 8
      %s192 = scalar_lea.vmem %s0, %s191
      %p193 = scmp.lt.s32.totalorder %s15, 1
      %s194 = scalar_select %p193, %s15, 1
      %s195 = smul.addr %s194, 3
      %s196 = smul.addr %s195, 4
      %s197 = scalar_lea.vmem %s4, %s196
      %v199 = vlaneseq
      %v200 = vshrl.u32 %v199, 7
      %v201 = vlaneseq
      %v202 = vand.u32 %v201, 127
      %v203 = vmul.u32 %v200, 2
      %vm204 = vcmp.eq.s32.totalorder %v202, %v203
      %v205 = vsel %vm204, 1.0, 0.0
      %v206 = vadd.s32 %v203, 1
      %vm207 = vcmp.eq.s32.totalorder %v202, %v206
      %v208 = vsel %vm207, 1.0, 0.0
      %v209 = vld [vmem:[%s2] sm:$0x1]
      %v210 = vld [vmem:[%s3] sm:$0x1]
      loop: start=0, step=1, limit=3
      $region37: #{forward.8} parent=35 // loop_pre_header
        _
      $region38: #{forward.8} parent=35 // loop_header
        %s212 = sphi 0, %s216
        %p213 = scmp.ge.s32.totalorder %s212, 3
      $region39: #{forward.8} parent=35 // loop_header_branch
        %215 = sbr.rel (%p213) target = $region43
      $region40: #{forward.8} parent=35 // loop_body
        %s217 = smul.u32 %s212, 2
        %s218 = smul.u32 %s217, 8
        %s219 = scalar_lea.vmem %s192, %s218
        %v220 = vld [vmem:[%s219] sm:$0xff]
        %v221 = vld [vmem:[%s219 + $0x8] sm:$0xff]
        %v222 = vld [vmem:[%s219 + $0x10] sm:$0xff]
        %v223 = vld [vmem:[%s219 + $0x18] sm:$0xff]
        %v224 = vld [vmem:[%s1] sm:$0xf]
        %v225 = vld [vmem:[%s1 + $0x4] sm:$0xf]
        %v226 = vld [vmem:[%s1 + $0x8] sm:$0xf]
        %v227 = vld [vmem:[%s1 + $0xc] sm:$0xf]
        %v228 = vld [vmem:[%s1 + $0x10] sm:$0xf]
        %v229 = vld [vmem:[%s1 + $0x14] sm:$0xf]
        %v230 = vld [vmem:[%s1 + $0x18] sm:$0xf]
        %v231 = vld [vmem:[%s1 + $0x1c] sm:$0xf]
        %v232 = vpack.c.bf16 %v220, %v220
        %s233 = scalar_lea.vmem %s1, 32
        %v234 = vld [vmem:[%s233] sm:$0xf]
        %v235 = vld [vmem:[%s233 + $0x4] sm:$0xf]
        %v236 = vld [vmem:[%s233 + $0x8] sm:$0xf]
        %v237 = vld [vmem:[%s233 + $0xc] sm:$0xf]
        %v238 = vld [vmem:[%s233 + $0x10] sm:$0xf]
        %v239 = vld [vmem:[%s233 + $0x14] sm:$0xf]
        %v240 = vld [vmem:[%s233 + $0x18] sm:$0xf]
        %v241 = vld [vmem:[%s233 + $0x1c] sm:$0xf]
        %v243 = vshrl.u32 %v232, 16
        %v245 = vshll.u32 %v232, 16
        %v247 = vrot.slane %v245, 1
        %v248 = vor.u32 %v243, %v247
        %v257 = vunpack.c.l.b16 %v234
        %v258 = vunpack.c.l.b16 %v235
        %v259 = vunpack.c.l.b16 %v236
        %v260 = vunpack.c.l.b16 %v237
        %v261 = vunpack.c.l.b16 %v238
        %v262 = vunpack.c.l.b16 %v239
        %v263 = vunpack.c.l.b16 %v240
        %v264 = vunpack.c.l.b16 %v241
        %v265 = vpack.c.b16 %v258, %v257
        %v266 = vpack.c.b16 %v260, %v259
        %v267 = vpack.c.b16 %v262, %v261
        %v268 = vpack.c.b16 %v264, %v263
        %vm273 = vcmask 523264
        %v275 = vsel %vm273, %v248, 0
        %277 = vmatprep.subr.bf16.mxu0 0
        %278 = vmatpush1.bf16.msra.mxu0 %v265
        %279 = vmatprep.subr.bf16.mxu0 0
        %280 = vmatpush1.bf16.msra.mxu0 %v266
        %281 = vmatprep.subr.bf16.mxu0 0
        %282 = vmatpush1.bf16.msra.mxu0 %v267
        %283 = vmatprep.subr.bf16.mxu0 0
        %284 = vmatpush1.bf16.msra.mxu0 %v268
        %285 = vmatprep.subr.bf16.mxu0 0
        %286 = vmatpush1.bf16.msra.mxu0 0
        %287 = vmatprep.subr.bf16.mxu0 0
        %288 = vmatpush1.bf16.msra.mxu0 0
        %289 = vmatprep.subr.bf16.mxu0 0
        %290 = vmatpush1.bf16.msra.mxu0 0
        %291 = vmatprep.subr.bf16.mxu0 0
        %292 = vmatpush1.bf16.msra.mxu0 0
        %293 = vmatprep.subr.bf16.mxu0 0
        %294 = vmatpush1.bf16.msra.mxu0 0
        %295 = vmatprep.subr.bf16.mxu0 0
        %296 = vmatpush1.bf16.msra.mxu0 0
        %297 = vmatprep.subr.bf16.mxu0 0
        %298 = vmatpush1.bf16.msra.mxu0 0
        %299 = vmatprep.subr.bf16.mxu0 0
        %300 = vmatpush1.bf16.msra.mxu0 0
        %301 = vmatprep.subr.bf16.mxu0 0
        %302 = vmatpush1.bf16.msra.mxu0 0
        %303 = vmatprep.subr.bf16.mxu0 0
        %304 = vmatpush1.bf16.msra.mxu0 0
        %305 = vmatprep.subr.bf16.mxu0 0
        %306 = vmatpush1.bf16.msra.mxu0 0
        %307 = vmatprep.subr.bf16.mxu0 0
        %308 = vmatpush1.bf16.msra.mxu0 0
        %309 = vmatprep.mubr.bf16.mxu0 0
        %310 = vmatmul.mubr.bf16.gmra.mrb[0].mxu0 %v275
        %v311 = vpop.f32.mrb[0].mxu0
        %v312 = vadd.f32 0.0, %v311
        %v313 = vpop.f32.mrb[0].mxu0
        %v314 = vpop.f32.mrb[0].mxu0
        %v315 = vpop.f32.mrb[0].mxu0
        %316 = vdwg.mxu0
        %v325 = vunpack.c.l.b16 %v224
        %v326 = vunpack.c.l.b16 %v225
        %v327 = vunpack.c.l.b16 %v226
        %v328 = vunpack.c.l.b16 %v227
        %v329 = vunpack.c.l.b16 %v228
        %v330 = vunpack.c.l.b16 %v229
        %v331 = vunpack.c.l.b16 %v230
        %v332 = vunpack.c.l.b16 %v231
        %v333 = vpack.c.b16 %v326, %v325
        %v334 = vpack.c.b16 %v328, %v327
        %v335 = vpack.c.b16 %v330, %v329
        %v336 = vpack.c.b16 %v332, %v331
        %v341 = vsel %vm273, %v232, 0
        %343 = vmatprep.subr.bf16.mxu0 0
        %344 = vmatpush1.bf16.msra.mxu0 %v333
        %345 = vmatprep.subr.bf16.mxu0 0
        %346 = vmatpush1.bf16.msra.mxu0 %v334
        %347 = vmatprep.subr.bf16.mxu0 0
        %348 = vmatpush1.bf16.msra.mxu0 %v335
        %349 = vmatprep.subr.bf16.mxu0 0
        %350 = vmatpush1.bf16.msra.mxu0 %v336
        %351 = vmatprep.subr.bf16.mxu0 0
        %352 = vmatpush1.bf16.msra.mxu0 0
        %353 = vmatprep.subr.bf16.mxu0 0
        %354 = vmatpush1.bf16.msra.mxu0 0
        %355 = vmatprep.subr.bf16.mxu0 0
        %356 = vmatpush1.bf16.msra.mxu0 0
        %357 = vmatprep.subr.bf16.mxu0 0
        %358 = vmatpush1.bf16.msra.mxu0 0
        %359 = vmatprep.subr.bf16.mxu0 0
        %360 = vmatpush1.bf16.msra.mxu0 0
        %361 = vmatprep.subr.bf16.mxu0 0
        %362 = vmatpush1.bf16.msra.mxu0 0
        %363 = vmatprep.subr.bf16.mxu0 0
        %364 = vmatpush1.bf16.msra.mxu0 0
        %365 = vmatprep.subr.bf16.mxu0 0
        %366 = vmatpush1.bf16.msra.mxu0 0
        %367 = vmatprep.subr.bf16.mxu0 0
        %368 = vmatpush1.bf16.msra.mxu0 0
        %369 = vmatprep.subr.bf16.mxu0 0
        %370 = vmatpush1.bf16.msra.mxu0 0
        %371 = vmatprep.subr.bf16.mxu0 0
        %372 = vmatpush1.bf16.msra.mxu0 0
        %373 = vmatprep.subr.bf16.mxu0 0
        %374 = vmatpush1.bf16.msra.mxu0 0
        %375 = vmatprep.mubr.bf16.mxu0 0
        %376 = vmatmul.mubr.bf16.gmra.mrb[0].mxu0 %v341
        %v377 = vpop.f32.mrb[0].mxu0
        %v378 = vadd.f32 %v312, %v377
        %v379 = vpop.f32.mrb[0].mxu0
        %v380 = vpop.f32.mrb[0].mxu0
        %v381 = vpop.f32.mrb[0].mxu0
        %382 = vdwg.mxu0
        %s383 = scalar_lea.vmem %s1, 64
        %v384 = vld [vmem:[%s383] sm:$0xf]
        %v385 = vld [vmem:[%s383 + $0x4] sm:$0xf]
        %v386 = vld [vmem:[%s383 + $0x8] sm:$0xf]
        %v387 = vld [vmem:[%s383 + $0xc] sm:$0xf]
        %v388 = vld [vmem:[%s383 + $0x10] sm:$0xf]
        %v389 = vld [vmem:[%s383 + $0x14] sm:$0xf]
        %v390 = vld [vmem:[%s383 + $0x18] sm:$0xf]
        %v391 = vld [vmem:[%s383 + $0x1c] sm:$0xf]
        %v393 = vrot.slane %v232, 1
        %v402 = vunpack.c.l.b16 %v384
        %v403 = vunpack.c.l.b16 %v385
        %v404 = vunpack.c.l.b16 %v386
        %v405 = vunpack.c.l.b16 %v387
        %v406 = vunpack.c.l.b16 %v388
        %v407 = vunpack.c.l.b16 %v389
        %v408 = vunpack.c.l.b16 %v390
        %v409 = vunpack.c.l.b16 %v391
        %v410 = vpack.c.b16 %v403, %v402
        %v411 = vpack.c.b16 %v405, %v404
        %v412 = vpack.c.b16 %v407, %v406
        %v413 = vpack.c.b16 %v409, %v408
        %v419 = vsel %vm273, %v393, 0
        %421 = vmatprep.subr.bf16.mxu0 0
        %422 = vmatpush1.bf16.msra.mxu0 %v410
        %423 = vmatprep.subr.bf16.mxu0 0
        %424 = vmatpush1.bf16.msra.mxu0 %v411
        %425 = vmatprep.subr.bf16.mxu0 0
        %426 = vmatpush1.bf16.msra.mxu0 %v412
        %427 = vmatprep.subr.bf16.mxu0 0
        %428 = vmatpush1.bf16.msra.mxu0 %v413
        %429 = vmatprep.subr.bf16.mxu0 0
        %430 = vmatpush1.bf16.msra.mxu0 0
        %431 = vmatprep.subr.bf16.mxu0 0
        %432 = vmatpush1.bf16.msra.mxu0 0
        %433 = vmatprep.subr.bf16.mxu0 0
        %434 = vmatpush1.bf16.msra.mxu0 0
        %435 = vmatprep.subr.bf16.mxu0 0
        %436 = vmatpush1.bf16.msra.mxu0 0
        %437 = vmatprep.subr.bf16.mxu0 0
        %438 = vmatpush1.bf16.msra.mxu0 0
        %439 = vmatprep.subr.bf16.mxu0 0
        %440 = vmatpush1.bf16.msra.mxu0 0
        %441 = vmatprep.subr.bf16.mxu0 0
        %442 = vmatpush1.bf16.msra.mxu0 0
        %443 = vmatprep.subr.bf16.mxu0 0
        %444 = vmatpush1.bf16.msra.mxu0 0
        %445 = vmatprep.subr.bf16.mxu0 0
        %446 = vmatpush1.bf16.msra.mxu0 0
        %447 = vmatprep.subr.bf16.mxu0 0
        %448 = vmatpush1.bf16.msra.mxu0 0
        %449 = vmatprep.subr.bf16.mxu0 0
        %450 = vmatpush1.bf16.msra.mxu0 0
        %451 = vmatprep.subr.bf16.mxu0 0
        %452 = vmatpush1.bf16.msra.mxu0 0
        %453 = vmatprep.mubr.bf16.mxu0 0
        %454 = vmatmul.mubr.bf16.gmra.mrb[0].mxu0 %v419
        %v455 = vpop.f32.mrb[0].mxu0
        %v456 = vadd.f32 0.0, %v455
        %v457 = vpop.f32.mrb[0].mxu0
        %v458 = vpop.f32.mrb[0].mxu0
        %v459 = vpop.f32.mrb[0].mxu0
        %460 = vdwg.mxu0
        %v461 = vadd.f32 %v378, %v456
        %s462 = scalar_lea.vmem %s1, 96
        %v463 = vld [vmem:[%s462] sm:$0xf]
        %v464 = vld [vmem:[%s462 + $0x4] sm:$0xf]
        %v465 = vld [vmem:[%s462 + $0x8] sm:$0xf]
        %v466 = vld [vmem:[%s462 + $0xc] sm:$0xf]
        %v467 = vld [vmem:[%s462 + $0x10] sm:$0xf]
        %v468 = vld [vmem:[%s462 + $0x14] sm:$0xf]
        %v469 = vld [vmem:[%s462 + $0x18] sm:$0xf]
        %v470 = vld [vmem:[%s462 + $0x1c] sm:$0xf]
        %v471 = vpack.c.bf16 %v221, %v221
        %v480 = vunpack.c.l.b16 %v463
        %v481 = vunpack.c.l.b16 %v464
        %v482 = vunpack.c.l.b16 %v465
        %v483 = vunpack.c.l.b16 %v466
        %v484 = vunpack.c.l.b16 %v467
        %v485 = vunpack.c.l.b16 %v468
        %v486 = vunpack.c.l.b16 %v469
        %v487 = vunpack.c.l.b16 %v470
        %v488 = vpack.c.b16 %v481, %v480
        %v489 = vpack.c.b16 %v483, %v482
        %v490 = vpack.c.b16 %v485, %v484
        %v491 = vpack.c.b16 %v487, %v486
        %v497 = vsel %vm273, %v471, 0
        %499 = vmatprep.subr.bf16.mxu0 0
        %500 = vmatpush1.bf16.msra.mxu0 %v488
        %501 = vmatprep.subr.bf16.mxu0 0
        %502 = vmatpush1.bf16.msra.mxu0 %v489
        %503 = vmatprep.subr.bf16.mxu0 0
        %504 = vmatpush1.bf16.msra.mxu0 %v490
        %505 = vmatprep.subr.bf16.mxu0 0
        %506 = vmatpush1.bf16.msra.mxu0 %v491
        %507 = vmatprep.subr.bf16.mxu0 0
        %508 = vmatpush1.bf16.msra.mxu0 0
        %509 = vmatprep.subr.bf16.mxu0 0
        %510 = vmatpush1.bf16.msra.mxu0 0
        %511 = vmatprep.subr.bf16.mxu0 0
        %512 = vmatpush1.bf16.msra.mxu0 0
        %513 = vmatprep.subr.bf16.mxu0 0
        %514 = vmatpush1.bf16.msra.mxu0 0
        %515 = vmatprep.subr.bf16.mxu0 0
        %516 = vmatpush1.bf16.msra.mxu0 0
        %517 = vmatprep.subr.bf16.mxu0 0
        %518 = vmatpush1.bf16.msra.mxu0 0
        %519 = vmatprep.subr.bf16.mxu0 0
        %520 = vmatpush1.bf16.msra.mxu0 0
        %521 = vmatprep.subr.bf16.mxu0 0
        %522 = vmatpush1.bf16.msra.mxu0 0
        %523 = vmatprep.subr.bf16.mxu0 0
        %524 = vmatpush1.bf16.msra.mxu0 0
        %525 = vmatprep.subr.bf16.mxu0 0
        %526 = vmatpush1.bf16.msra.mxu0 0
        %527 = vmatprep.subr.bf16.mxu0 0
        %528 = vmatpush1.bf16.msra.mxu0 0
        %529 = vmatprep.subr.bf16.mxu0 0
        %530 = vmatpush1.bf16.msra.mxu0 0
        %531 = vmatprep.mubr.bf16.mxu0 0
        %532 = vmatmul.mubr.bf16.gmra.mrb[0].mxu0 %v497
        %v533 = vpop.f32.mrb[0].mxu0
        %v534 = vadd.f32 0.0, %v533
        %v535 = vpop.f32.mrb[0].mxu0
        %v536 = vpop.f32.mrb[0].mxu0
        %v537 = vpop.f32.mrb[0].mxu0
        %538 = vdwg.mxu0
        %v539 = vadd.f32 %v461, %v534
        %s540 = scalar_lea.vmem %s1, 128
        %v541 = vld [vmem:[%s540] sm:$0xf]
        %v542 = vld [vmem:[%s540 + $0x4] sm:$0xf]
        %v543 = vld [vmem:[%s540 + $0x8] sm:$0xf]
        %v544 = vld [vmem:[%s540 + $0xc] sm:$0xf]
        %v545 = vld [vmem:[%s540 + $0x10] sm:$0xf]
        %v546 = vld [vmem:[%s540 + $0x14] sm:$0xf]
        %v547 = vld [vmem:[%s540 + $0x18] sm:$0xf]
        %v548 = vld [vmem:[%s540 + $0x1c] sm:$0xf]
        %v549 = vshrl.u32 %v471, 16
        %v551 = vshll.u32 %v471, 16
        %v553 = vrot.slane %v551, 1
        %v554 = vor.u32 %v549, %v553
        %v563 = vunpack.c.l.b16 %v541
        %v564 = vunpack.c.l.b16 %v542
        %v565 = vunpack.c.l.b16 %v543
        %v566 = vunpack.c.l.b16 %v544
        %v567 = vunpack.c.l.b16 %v545
        %v568 = vunpack.c.l.b16 %v546
        %v569 = vunpack.c.l.b16 %v547
        %v570 = vunpack.c.l.b16 %v548
        %v571 = vpack.c.b16 %v564, %v563
        %v572 = vpack.c.b16 %v566, %v565
        %v573 = vpack.c.b16 %v568, %v567
        %v574 = vpack.c.b16 %v570, %v569
        %v580 = vsel %vm273, %v554, 0
        %582 = vmatprep.subr.bf16.mxu0 0
        %583 = vmatpush1.bf16.msra.mxu0 %v571
        %584 = vmatprep.subr.bf16.mxu0 0
        %585 = vmatpush1.bf16.msra.mxu0 %v572
        %586 = vmatprep.subr.bf16.mxu0 0
        %587 = vmatpush1.bf16.msra.mxu0 %v573
        %588 = vmatprep.subr.bf16.mxu0 0
        %589 = vmatpush1.bf16.msra.mxu0 %v574
        %590 = vmatprep.subr.bf16.mxu0 0
        %591 = vmatpush1.bf16.msra.mxu0 0
        %592 = vmatprep.subr.bf16.mxu0 0
        %593 = vmatpush1.bf16.msra.mxu0 0
        %594 = vmatprep.subr.bf16.mxu0 0
        %595 = vmatpush1.bf16.msra.mxu0 0
        %596 = vmatprep.subr.bf16.mxu0 0
        %597 = vmatpush1.bf16.msra.mxu0 0
        %598 = vmatprep.subr.bf16.mxu0 0
        %599 = vmatpush1.bf16.msra.mxu0 0
        %600 = vmatprep.subr.bf16.mxu0 0
        %601 = vmatpush1.bf16.msra.mxu0 0
        %602 = vmatprep.subr.bf16.mxu0 0
        %603 = vmatpush1.bf16.msra.mxu0 0
        %604 = vmatprep.subr.bf16.mxu0 0
        %605 = vmatpush1.bf16.msra.mxu0 0
        %606 = vmatprep.subr.bf16.mxu0 0
        %607 = vmatpush1.bf16.msra.mxu0 0
        %608 = vmatprep.subr.bf16.mxu0 0
        %609 = vmatpush1.bf16.msra.mxu0 0
        %610 = vmatprep.subr.bf16.mxu0 0
        %611 = vmatpush1.bf16.msra.mxu0 0
        %612 = vmatprep.subr.bf16.mxu0 0
        %613 = vmatpush1.bf16.msra.mxu0 0
        %614 = vmatprep.mubr.bf16.mxu0 0
        %615 = vmatmul.mubr.bf16.gmra.mrb[0].mxu0 %v580
        %v616 = vpop.f32.mrb[0].mxu0
        %v617 = vadd.f32 0.0, %v616
        %v618 = vpop.f32.mrb[0].mxu0
        %v619 = vpop.f32.mrb[0].mxu0
        %v620 = vpop.f32.mrb[0].mxu0
        %621 = vdwg.mxu0
        %v622 = vadd.f32 %v539, %v617
        %s623 = scalar_lea.vmem %s1, 160
        %v624 = vld [vmem:[%s623] sm:$0xf]
        %v625 = vld [vmem:[%s623 + $0x4] sm:$0xf]
        %v626 = vld [vmem:[%s623 + $0x8] sm:$0xf]
        %v627 = vld [vmem:[%s623 + $0xc] sm:$0xf]
        %v628 = vld [vmem:[%s623 + $0x10] sm:$0xf]
        %v629 = vld [vmem:[%s623 + $0x14] sm:$0xf]
        %v630 = vld [vmem:[%s623 + $0x18] sm:$0xf]
        %v631 = vld [vmem:[%s623 + $0x1c] sm:$0xf]
        %v633 = vrot.slane %v471, 1
        %v642 = vunpack.c.l.b16 %v624
        %v643 = vunpack.c.l.b16 %v625
        %v644 = vunpack.c.l.b16 %v626
        %v645 = vunpack.c.l.b16 %v627
        %v646 = vunpack.c.l.b16 %v628
        %v647 = vunpack.c.l.b16 %v629
        %v648 = vunpack.c.l.b16 %v630
        %v649 = vunpack.c.l.b16 %v631
        %v650 = vpack.c.b16 %v643, %v642
        %v651 = vpack.c.b16 %v645, %v644
        %v652 = vpack.c.b16 %v647, %v646
        %v653 = vpack.c.b16 %v649, %v648
        %v659 = vsel %vm273, %v633, 0
        %661 = vmatprep.subr.bf16.mxu0 0
        %662 = vmatpush1.bf16.msra.mxu0 %v650
        %663 = vmatprep.subr.bf16.mxu0 0
        %664 = vmatpush1.bf16.msra.mxu0 %v651
        %665 = vmatprep.subr.bf16.mxu0 0
        %666 = vmatpush1.bf16.msra.mxu0 %v652
        %667 = vmatprep.subr.bf16.mxu0 0
        %668 = vmatpush1.bf16.msra.mxu0 %v653
        %669 = vmatprep.subr.bf16.mxu0 0
        %670 = vmatpush1.bf16.msra.mxu0 0
        %671 = vmatprep.subr.bf16.mxu0 0
        %672 = vmatpush1.bf16.msra.mxu0 0
        %673 = vmatprep.subr.bf16.mxu0 0
        %674 = vmatpush1.bf16.msra.mxu0 0
        %675 = vmatprep.subr.bf16.mxu0 0
        %676 = vmatpush1.bf16.msra.mxu0 0
        %677 = vmatprep.subr.bf16.mxu0 0
        %678 = vmatpush1.bf16.msra.mxu0 0
        %679 = vmatprep.subr.bf16.mxu0 0
        %680 = vmatpush1.bf16.msra.mxu0 0
        %681 = vmatprep.subr.bf16.mxu0 0
        %682 = vmatpush1.bf16.msra.mxu0 0
        %683 = vmatprep.subr.bf16.mxu0 0
        %684 = vmatpush1.bf16.msra.mxu0 0
        %685 = vmatprep.subr.bf16.mxu0 0
        %686 = vmatpush1.bf16.msra.mxu0 0
        %687 = vmatprep.subr.bf16.mxu0 0
        %688 = vmatpush1.bf16.msra.mxu0 0
        %689 = vmatprep.subr.bf16.mxu0 0
        %690 = vmatpush1.bf16.msra.mxu0 0
        %691 = vmatprep.subr.bf16.mxu0 0
        %692 = vmatpush1.bf16.msra.mxu0 0
        %693 = vmatprep.mubr.bf16.mxu0 0
        %694 = vmatmul.mubr.bf16.gmra.mrb[0].mxu0 %v659
        %v695 = vpop.f32.mrb[0].mxu0
        %v696 = vadd.f32 0.0, %v695
        %v697 = vpop.f32.mrb[0].mxu0
        %v698 = vpop.f32.mrb[0].mxu0
        %v699 = vpop.f32.mrb[0].mxu0
        %700 = vdwg.mxu0
        %v701 = vadd.f32 %v622, %v696
        %s702 = scalar_lea.vmem %s1, 192
        %v703 = vld [vmem:[%s702] sm:$0xf]
        %v704 = vld [vmem:[%s702 + $0x4] sm:$0xf]
        %v705 = vld [vmem:[%s702 + $0x8] sm:$0xf]
        %v706 = vld [vmem:[%s702 + $0xc] sm:$0xf]
        %v707 = vld [vmem:[%s702 + $0x10] sm:$0xf]
        %v708 = vld [vmem:[%s702 + $0x14] sm:$0xf]
        %v709 = vld [vmem:[%s702 + $0x18] sm:$0xf]
        %v710 = vld [vmem:[%s702 + $0x1c] sm:$0xf]
        %v711 = vpack.c.bf16 %v222, %v222
        %v720 = vunpack.c.l.b16 %v703
        %v721 = vunpack.c.l.b16 %v704
        %v722 = vunpack.c.l.b16 %v705
        %v723 = vunpack.c.l.b16 %v706
        %v724 = vunpack.c.l.b16 %v707
        %v725 = vunpack.c.l.b16 %v708
        %v726 = vunpack.c.l.b16 %v709
        %v727 = vunpack.c.l.b16 %v710
        %v728 = vpack.c.b16 %v721, %v720
        %v729 = vpack.c.b16 %v723, %v722
        %v730 = vpack.c.b16 %v725, %v724
        %v731 = vpack.c.b16 %v727, %v726
        %v737 = vsel %vm273, %v711, 0
        %739 = vmatprep.subr.bf16.mxu0 0
        %740 = vmatpush1.bf16.msra.mxu0 %v728
        %741 = vmatprep.subr.bf16.mxu0 0
        %742 = vmatpush1.bf16.msra.mxu0 %v729
        %743 = vmatprep.subr.bf16.mxu0 0
        %744 = vmatpush1.bf16.msra.mxu0 %v730
        %745 = vmatprep.subr.bf16.mxu0 0
        %746 = vmatpush1.bf16.msra.mxu0 %v731
        %747 = vmatprep.subr.bf16.mxu0 0
        %748 = vmatpush1.bf16.msra.mxu0 0
        %749 = vmatprep.subr.bf16.mxu0 0
        %750 = vmatpush1.bf16.msra.mxu0 0
        %751 = vmatprep.subr.bf16.mxu0 0
        %752 = vmatpush1.bf16.msra.mxu0 0
        %753 = vmatprep.subr.bf16.mxu0 0
        %754 = vmatpush1.bf16.msra.mxu0 0
        %755 = vmatprep.subr.bf16.mxu0 0
        %756 = vmatpush1.bf16.msra.mxu0 0
        %757 = vmatprep.subr.bf16.mxu0 0
        %758 = vmatpush1.bf16.msra.mxu0 0
        %759 = vmatprep.subr.bf16.mxu0 0
        %760 = vmatpush1.bf16.msra.mxu0 0
        %761 = vmatprep.subr.bf16.mxu0 0
        %762 = vmatpush1.bf16.msra.mxu0 0
        %763 = vmatprep.subr.bf16.mxu0 0
        %764 = vmatpush1.bf16.msra.mxu0 0
        %765 = vmatprep.subr.bf16.mxu0 0
        %766 = vmatpush1.bf16.msra.mxu0 0
        %767 = vmatprep.subr.bf16.mxu0 0
        %768 = vmatpush1.bf16.msra.mxu0 0
        %769 = vmatprep.subr.bf16.mxu0 0
        %770 = vmatpush1.bf16.msra.mxu0 0
        %771 = vmatprep.mubr.bf16.mxu0 0
        %772 = vmatmul.mubr.bf16.gmra.mrb[0].mxu0 %v737
        %v773 = vpop.f32.mrb[0].mxu0
        %v774 = vadd.f32 0.0, %v773
        %v775 = vpop.f32.mrb[0].mxu0
        %v776 = vpop.f32.mrb[0].mxu0
        %v777 = vpop.f32.mrb[0].mxu0
        %778 = vdwg.mxu0
        %v779 = vadd.f32 %v701, %v774
        %s780 = scalar_lea.vmem %s1, 224
        %v781 = vld [vmem:[%s780] sm:$0xf]
        %v782 = vld [vmem:[%s780 + $0x4] sm:$0xf]
        %v783 = vld [vmem:[%s780 + $0x8] sm:$0xf]
        %v784 = vld [vmem:[%s780 + $0xc] sm:$0xf]
        %v785 = vld [vmem:[%s780 + $0x10] sm:$0xf]
        %v786 = vld [vmem:[%s780 + $0x14] sm:$0xf]
        %v787 = vld [vmem:[%s780 + $0x18] sm:$0xf]
        %v788 = vld [vmem:[%s780 + $0x1c] sm:$0xf]
        %v789 = vshrl.u32 %v711, 16
        %v791 = vshll.u32 %v711, 16
        %v793 = vrot.slane %v791, 1
        %v794 = vor.u32 %v789, %v793
        %v803 = vunpack.c.l.b16 %v781
        %v804 = vunpack.c.l.b16 %v782
        %v805 = vunpack.c.l.b16 %v783
        %v806 = vunpack.c.l.b16 %v784
        %v807 = vunpack.c.l.b16 %v785
        %v808 = vunpack.c.l.b16 %v786
        %v809 = vunpack.c.l.b16 %v787
        %v810 = vunpack.c.l.b16 %v788
        %v811 = vpack.c.b16 %v804, %v803
        %v812 = vpack.c.b16 %v806, %v805
        %v813 = vpack.c.b16 %v808, %v807
        %v814 = vpack.c.b16 %v810, %v809
        %v820 = vsel %vm273, %v794, 0
        %822 = vmatprep.subr.bf16.mxu0 0
        %823 = vmatpush1.bf16.msra.mxu0 %v811
        %824 = vmatprep.subr.bf16.mxu0 0
        %825 = vmatpush1.bf16.msra.mxu0 %v812
        %826 = vmatprep.subr.bf16.mxu0 0
        %827 = vmatpush1.bf16.msra.mxu0 %v813
        %828 = vmatprep.subr.bf16.mxu0 0
        %829 = vmatpush1.bf16.msra.mxu0 %v814
        %830 = vmatprep.subr.bf16.mxu0 0
        %831 = vmatpush1.bf16.msra.mxu0 0
        %832 = vmatprep.subr.bf16.mxu0 0
        %833 = vmatpush1.bf16.msra.mxu0 0
        %834 = vmatprep.subr.bf16.mxu0 0
        %835 = vmatpush1.bf16.msra.mxu0 0
        %836 = vmatprep.subr.bf16.mxu0 0
        %837 = vmatpush1.bf16.msra.mxu0 0
        %838 = vmatprep.subr.bf16.mxu0 0
        %839 = vmatpush1.bf16.msra.mxu0 0
        %840 = vmatprep.subr.bf16.mxu0 0
        %841 = vmatpush1.bf16.msra.mxu0 0
        %842 = vmatprep.subr.bf16.mxu0 0
        %843 = vmatpush1.bf16.msra.mxu0 0
        %844 = vmatprep.subr.bf16.mxu0 0
        %845 = vmatpush1.bf16.msra.mxu0 0
        %846 = vmatprep.subr.bf16.mxu0 0
        %847 = vmatpush1.bf16.msra.mxu0 0
        %848 = vmatprep.subr.bf16.mxu0 0
        %849 = vmatpush1.bf16.msra.mxu0 0
        %850 = vmatprep.subr.bf16.mxu0 0
        %851 = vmatpush1.bf16.msra.mxu0 0
        %852 = vmatprep.subr.bf16.mxu0 0
        %853 = vmatpush1.bf16.msra.mxu0 0
        %854 = vmatprep.mubr.bf16.mxu0 0
        %855 = vmatmul.mubr.bf16.gmra.mrb[0].mxu0 %v820
        %v856 = vpop.f32.mrb[0].mxu0
        %v857 = vadd.f32 0.0, %v856
        %v858 = vpop.f32.mrb[0].mxu0
        %v859 = vpop.f32.mrb[0].mxu0
        %v860 = vpop.f32.mrb[0].mxu0
        %861 = vdwg.mxu0
        %v862 = vadd.f32 %v779, %v857
        %s863 = scalar_lea.vmem %s1, 256
        %v864 = vld [vmem:[%s863] sm:$0xf]
        %v865 = vld [vmem:[%s863 + $0x4] sm:$0xf]
        %v866 = vld [vmem:[%s863 + $0x8] sm:$0xf]
        %v867 = vld [vmem:[%s863 + $0xc] sm:$0xf]
        %v868 = vld [vmem:[%s863 + $0x10] sm:$0xf]
        %v869 = vld [vmem:[%s863 + $0x14] sm:$0xf]
        %v870 = vld [vmem:[%s863 + $0x18] sm:$0xf]
        %v871 = vld [vmem:[%s863 + $0x1c] sm:$0xf]
        %v873 = vrot.slane %v711, 1
        %v882 = vunpack.c.l.b16 %v864
        %v883 = vunpack.c.l.b16 %v865
        %v884 = vunpack.c.l.b16 %v866
        %v885 = vunpack.c.l.b16 %v867
        %v886 = vunpack.c.l.b16 %v868
        %v887 = vunpack.c.l.b16 %v869
        %v888 = vunpack.c.l.b16 %v870
        %v889 = vunpack.c.l.b16 %v871
        %v890 = vpack.c.b16 %v883, %v882
        %v891 = vpack.c.b16 %v885, %v884
        %v892 = vpack.c.b16 %v887, %v886
        %v893 = vpack.c.b16 %v889, %v888
        %v899 = vsel %vm273, %v873, 0
        %901 = vmatprep.subr.bf16.mxu0 0
        %902 = vmatpush1.bf16.msra.mxu0 %v890
        %903 = vmatprep.subr.bf16.mxu0 0
        %904 = vmatpush1.bf16.msra.mxu0 %v891
        %905 = vmatprep.subr.bf16.mxu0 0
        %906 = vmatpush1.bf16.msra.mxu0 %v892
        %907 = vmatprep.subr.bf16.mxu0 0
        %908 = vmatpush1.bf16.msra.mxu0 %v893
        %909 = vmatprep.subr.bf16.mxu0 0
        %910 = vmatpush1.bf16.msra.mxu0 0
        %911 = vmatprep.subr.bf16.mxu0 0
        %912 = vmatpush1.bf16.msra.mxu0 0
        %913 = vmatprep.subr.bf16.mxu0 0
        %914 = vmatpush1.bf16.msra.mxu0 0
        %915 = vmatprep.subr.bf16.mxu0 0
        %916 = vmatpush1.bf16.msra.mxu0 0
        %917 = vmatprep.subr.bf16.mxu0 0
        %918 = vmatpush1.bf16.msra.mxu0 0
        %919 = vmatprep.subr.bf16.mxu0 0
        %920 = vmatpush1.bf16.msra.mxu0 0
        %921 = vmatprep.subr.bf16.mxu0 0
        %922 = vmatpush1.bf16.msra.mxu0 0
        %923 = vmatprep.subr.bf16.mxu0 0
        %924 = vmatpush1.bf16.msra.mxu0 0
        %925 = vmatprep.subr.bf16.mxu0 0
        %926 = vmatpush1.bf16.msra.mxu0 0
        %927 = vmatprep.subr.bf16.mxu0 0
        %928 = vmatpush1.bf16.msra.mxu0 0
        %929 = vmatprep.subr.bf16.mxu0 0
        %930 = vmatpush1.bf16.msra.mxu0 0
        %931 = vmatprep.subr.bf16.mxu0 0
        %932 = vmatpush1.bf16.msra.mxu0 0
        %933 = vmatprep.mubr.bf16.mxu0 0
        %934 = vmatmul.mubr.bf16.gmra.mrb[0].mxu0 %v899
        %v935 = vpop.f32.mrb[0].mxu0
        %v936 = vadd.f32 0.0, %v935
        %v937 = vpop.f32.mrb[0].mxu0
        %v938 = vpop.f32.mrb[0].mxu0
        %v939 = vpop.f32.mrb[0].mxu0
        %940 = vdwg.mxu0
        %v941 = vadd.f32 %v862, %v936
        %v943 = vlaneseq
        %v944 = vshrl.u32 %v943, 7
        %v945 = vsub.s32 0, %v944
        %v946 = vrot.slane %v209, %v945
        %v948 = vmul.f32 %v941, %v946
        %v950 = vlaneseq
        %v951 = vshrl.u32 %v950, 7
        %v952 = vsub.s32 0, %v951
        %v953 = vrot.slane %v210, %v952
        %v955 = vadd.f32 %v948, %v953
        %v956 = vmax.f32 %v955, 0.0
        %957 = vmatprep.subr.bf16.mxu0 0
        %958 = vmatpush1.bf16.msra.mxu0 %v265
        %959 = vmatprep.subr.bf16.mxu0 0
        %960 = vmatpush1.bf16.msra.mxu0 %v266
        %961 = vmatprep.subr.bf16.mxu0 0
        %962 = vmatpush1.bf16.msra.mxu0 %v267
        %963 = vmatprep.subr.bf16.mxu0 0
        %964 = vmatpush1.bf16.msra.mxu0 %v268
        %965 = vmatprep.subr.bf16.mxu0 0
        %966 = vmatpush1.bf16.msra.mxu0 0
        %967 = vmatprep.subr.bf16.mxu0 0
        %968 = vmatpush1.bf16.msra.mxu0 0
        %969 = vmatprep.subr.bf16.mxu0 0
        %970 = vmatpush1.bf16.msra.mxu0 0
        %971 = vmatprep.subr.bf16.mxu0 0
        %972 = vmatpush1.bf16.msra.mxu0 0
        %973 = vmatprep.subr.bf16.mxu0 0
        %974 = vmatpush1.bf16.msra.mxu0 0
        %975 = vmatprep.subr.bf16.mxu0 0
        %976 = vmatpush1.bf16.msra.mxu0 0
        %977 = vmatprep.subr.bf16.mxu0 0
        %978 = vmatpush1.bf16.msra.mxu0 0
        %979 = vmatprep.subr.bf16.mxu0 0
        %980 = vmatpush1.bf16.msra.mxu0 0
        %981 = vmatprep.subr.bf16.mxu0 0
        %982 = vmatpush1.bf16.msra.mxu0 0
        %983 = vmatprep.subr.bf16.mxu0 0
        %984 = vmatpush1.bf16.msra.mxu0 0
        %985 = vmatprep.subr.bf16.mxu0 0
        %986 = vmatpush1.bf16.msra.mxu0 0
        %987 = vmatprep.subr.bf16.mxu0 0
        %988 = vmatpush1.bf16.msra.mxu0 0
        %989 = vmatprep.mubr.bf16.mxu0 0
        %990 = vmatmul.mubr.bf16.gmra.mrb[0].mxu0 %v580
        %v991 = vpop.f32.mrb[0].mxu0
        %v992 = vadd.f32 0.0, %v991
        %v993 = vpop.f32.mrb[0].mxu0
        %v994 = vpop.f32.mrb[0].mxu0
        %v995 = vpop.f32.mrb[0].mxu0
        %996 = vdwg.mxu0
        %997 = vmatprep.subr.bf16.mxu0 0
        %998 = vmatpush1.bf16.msra.mxu0 %v333
        %999 = vmatprep.subr.bf16.mxu0 0
        %1000 = vmatpush1.bf16.msra.mxu0 %v334
        %1001 = vmatprep.subr.bf16.mxu0 0
        %1002 = vmatpush1.bf16.msra.mxu0 %v335
        %1003 = vmatprep.subr.bf16.mxu0 0
        %1004 = vmatpush1.bf16.msra.mxu0 %v336
        %1005 = vmatprep.subr.bf16.mxu0 0
        %1006 = vmatpush1.bf16.msra.mxu0 0
        %1007 = vmatprep.subr.bf16.mxu0 0
        %1008 = vmatpush1.bf16.msra.mxu0 0
        %1009 = vmatprep.subr.bf16.mxu0 0
        %1010 = vmatpush1.bf16.msra.mxu0 0
        %1011 = vmatprep.subr.bf16.mxu0 0
        %1012 = vmatpush1.bf16.msra.mxu0 0
        %1013 = vmatprep.subr.bf16.mxu0 0
        %1014 = vmatpush1.bf16.msra.mxu0 0
        %1015 = vmatprep.subr.bf16.mxu0 0
        %1016 = vmatpush1.bf16.msra.mxu0 0
        %1017 = vmatprep.subr.bf16.mxu0 0
        %1018 = vmatpush1.bf16.msra.mxu0 0
        %1019 = vmatprep.subr.bf16.mxu0 0
        %1020 = vmatpush1.bf16.msra.mxu0 0
        %1021 = vmatprep.subr.bf16.mxu0 0
        %1022 = vmatpush1.bf16.msra.mxu0 0
        %1023 = vmatprep.subr.bf16.mxu0 0
        %1024 = vmatpush1.bf16.msra.mxu0 0
        %1025 = vmatprep.subr.bf16.mxu0 0
        %1026 = vmatpush1.bf16.msra.mxu0 0
        %1027 = vmatprep.subr.bf16.mxu0 0
        %1028 = vmatpush1.bf16.msra.mxu0 0
        %1029 = vmatprep.mubr.bf16.mxu0 0
        %1030 = vmatmul.mubr.bf16.gmra.mrb[0].mxu0 %v497
        %v1031 = vpop.f32.mrb[0].mxu0
        %v1032 = vadd.f32 %v992, %v1031
        %v1033 = vpop.f32.mrb[0].mxu0
        %v1034 = vpop.f32.mrb[0].mxu0
        %v1035 = vpop.f32.mrb[0].mxu0
        %1036 = vdwg.mxu0
        %1037 = vmatprep.subr.bf16.mxu0 0
        %1038 = vmatpush1.bf16.msra.mxu0 %v410
        %1039 = vmatprep.subr.bf16.mxu0 0
        %1040 = vmatpush1.bf16.msra.mxu0 %v411
        %1041 = vmatprep.subr.bf16.mxu0 0
        %1042 = vmatpush1.bf16.msra.mxu0 %v412
        %1043 = vmatprep.subr.bf16.mxu0 0
        %1044 = vmatpush1.bf16.msra.mxu0 %v413
        %1045 = vmatprep.subr.bf16.mxu0 0
        %1046 = vmatpush1.bf16.msra.mxu0 0
        %1047 = vmatprep.subr.bf16.mxu0 0
        %1048 = vmatpush1.bf16.msra.mxu0 0
        %1049 = vmatprep.subr.bf16.mxu0 0
        %1050 = vmatpush1.bf16.msra.mxu0 0
        %1051 = vmatprep.subr.bf16.mxu0 0
        %1052 = vmatpush1.bf16.msra.mxu0 0
        %1053 = vmatprep.subr.bf16.mxu0 0
        %1054 = vmatpush1.bf16.msra.mxu0 0
        %1055 = vmatprep.subr.bf16.mxu0 0
        %1056 = vmatpush1.bf16.msra.mxu0 0
        %1057 = vmatprep.subr.bf16.mxu0 0
        %1058 = vmatpush1.bf16.msra.mxu0 0
        %1059 = vmatprep.subr.bf16.mxu0 0
        %1060 = vmatpush1.bf16.msra.mxu0 0
        %1061 = vmatprep.subr.bf16.mxu0 0
        %1062 = vmatpush1.bf16.msra.mxu0 0
        %1063 = vmatprep.subr.bf16.mxu0 0
        %1064 = vmatpush1.bf16.msra.mxu0 0
        %1065 = vmatprep.subr.bf16.mxu0 0
        %1066 = vmatpush1.bf16.msra.mxu0 0
        %1067 = vmatprep.subr.bf16.mxu0 0
        %1068 = vmatpush1.bf16.msra.mxu0 0
        %1069 = vmatprep.mubr.bf16.mxu0 0
        %1070 = vmatmul.mubr.bf16.gmra.mrb[0].mxu0 %v659
        %v1071 = vpop.f32.mrb[0].mxu0
        %v1072 = vadd.f32 0.0, %v1071
        %v1073 = vpop.f32.mrb[0].mxu0
        %v1074 = vpop.f32.mrb[0].mxu0
        %v1075 = vpop.f32.mrb[0].mxu0
        %1076 = vdwg.mxu0
        %v1077 = vadd.f32 %v1032, %v1072
        %1078 = vmatprep.subr.bf16.mxu0 0
        %1079 = vmatpush1.bf16.msra.mxu0 %v488
        %1080 = vmatprep.subr.bf16.mxu0 0
        %1081 = vmatpush1.bf16.msra.mxu0 %v489
        %1082 = vmatprep.subr.bf16.mxu0 0
        %1083 = vmatpush1.bf16.msra.mxu0 %v490
        %1084 = vmatprep.subr.bf16.mxu0 0
        %1085 = vmatpush1.bf16.msra.mxu0 %v491
        %1086 = vmatprep.subr.bf16.mxu0 0
        %1087 = vmatpush1.bf16.msra.mxu0 0
        %1088 = vmatprep.subr.bf16.mxu0 0
        %1089 = vmatpush1.bf16.msra.mxu0 0
        %1090 = vmatprep.subr.bf16.mxu0 0
        %1091 = vmatpush1.bf16.msra.mxu0 0
        %1092 = vmatprep.subr.bf16.mxu0 0
        %1093 = vmatpush1.bf16.msra.mxu0 0
        %1094 = vmatprep.subr.bf16.mxu0 0
        %1095 = vmatpush1.bf16.msra.mxu0 0
        %1096 = vmatprep.subr.bf16.mxu0 0
        %1097 = vmatpush1.bf16.msra.mxu0 0
        %1098 = vmatprep.subr.bf16.mxu0 0
        %1099 = vmatpush1.bf16.msra.mxu0 0
        %1100 = vmatprep.subr.bf16.mxu0 0
        %1101 = vmatpush1.bf16.msra.mxu0 0
        %1102 = vmatprep.subr.bf16.mxu0 0
        %1103 = vmatpush1.bf16.msra.mxu0 0
        %1104 = vmatprep.subr.bf16.mxu0 0
        %1105 = vmatpush1.bf16.msra.mxu0 0
        %1106 = vmatprep.subr.bf16.mxu0 0
        %1107 = vmatpush1.bf16.msra.mxu0 0
        %1108 = vmatprep.subr.bf16.mxu0 0
        %1109 = vmatpush1.bf16.msra.mxu0 0
        %1110 = vmatprep.mubr.bf16.mxu0 0
        %1111 = vmatmul.mubr.bf16.gmra.mrb[0].mxu0 %v737
        %v1112 = vpop.f32.mrb[0].mxu0
        %v1113 = vadd.f32 0.0, %v1112
        %v1114 = vpop.f32.mrb[0].mxu0
        %v1115 = vpop.f32.mrb[0].mxu0
        %v1116 = vpop.f32.mrb[0].mxu0
        %1117 = vdwg.mxu0
        %v1118 = vadd.f32 %v1077, %v1113
        %1119 = vmatprep.subr.bf16.mxu0 0
        %1120 = vmatpush1.bf16.msra.mxu0 %v571
        %1121 = vmatprep.subr.bf16.mxu0 0
        %1122 = vmatpush1.bf16.msra.mxu0 %v572
        %1123 = vmatprep.subr.bf16.mxu0 0
        %1124 = vmatpush1.bf16.msra.mxu0 %v573
        %1125 = vmatprep.subr.bf16.mxu0 0
        %1126 = vmatpush1.bf16.msra.mxu0 %v574
        %1127 = vmatprep.subr.bf16.mxu0 0
        %1128 = vmatpush1.bf16.msra.mxu0 0
        %1129 = vmatprep.subr.bf16.mxu0 0
        %1130 = vmatpush1.bf16.msra.mxu0 0
        %1131 = vmatprep.subr.bf16.mxu0 0
        %1132 = vmatpush1.bf16.msra.mxu0 0
        %1133 = vmatprep.subr.bf16.mxu0 0
        %1134 = vmatpush1.bf16.msra.mxu0 0
        %1135 = vmatprep.subr.bf16.mxu0 0
        %1136 = vmatpush1.bf16.msra.mxu0 0
        %1137 = vmatprep.subr.bf16.mxu0 0
        %1138 = vmatpush1.bf16.msra.mxu0 0
        %1139 = vmatprep.subr.bf16.mxu0 0
        %1140 = vmatpush1.bf16.msra.mxu0 0
        %1141 = vmatprep.subr.bf16.mxu0 0
        %1142 = vmatpush1.bf16.msra.mxu0 0
        %1143 = vmatprep.subr.bf16.mxu0 0
        %1144 = vmatpush1.bf16.msra.mxu0 0
        %1145 = vmatprep.subr.bf16.mxu0 0
        %1146 = vmatpush1.bf16.msra.mxu0 0
        %1147 = vmatprep.subr.bf16.mxu0 0
        %1148 = vmatpush1.bf16.msra.mxu0 0
        %1149 = vmatprep.subr.bf16.mxu0 0
        %1150 = vmatpush1.bf16.msra.mxu0 0
        %1151 = vmatprep.mubr.bf16.mxu0 0
        %1152 = vmatmul.mubr.bf16.gmra.mrb[0].mxu0 %v820
        %v1153 = vpop.f32.mrb[0].mxu0
        %v1154 = vadd.f32 0.0, %v1153
        %v1155 = vpop.f32.mrb[0].mxu0
        %v1156 = vpop.f32.mrb[0].mxu0
        %v1157 = vpop.f32.mrb[0].mxu0
        %1158 = vdwg.mxu0
        %v1159 = vadd.f32 %v1118, %v1154
        %1160 = vmatprep.subr.bf16.mxu0 0
        %1161 = vmatpush1.bf16.msra.mxu0 %v650
        %1162 = vmatprep.subr.bf16.mxu0 0
        %1163 = vmatpush1.bf16.msra.mxu0 %v651
        %1164 = vmatprep.subr.bf16.mxu0 0
        %1165 = vmatpush1.bf16.msra.mxu0 %v652
        %1166 = vmatprep.subr.bf16.mxu0 0
        %1167 = vmatpush1.bf16.msra.mxu0 %v653
        %1168 = vmatprep.subr.bf16.mxu0 0
        %1169 = vmatpush1.bf16.msra.mxu0 0
        %1170 = vmatprep.subr.bf16.mxu0 0
        %1171 = vmatpush1.bf16.msra.mxu0 0
        %1172 = vmatprep.subr.bf16.mxu0 0
        %1173 = vmatpush1.bf16.msra.mxu0 0
        %1174 = vmatprep.subr.bf16.mxu0 0
        %1175 = vmatpush1.bf16.msra.mxu0 0
        %1176 = vmatprep.subr.bf16.mxu0 0
        %1177 = vmatpush1.bf16.msra.mxu0 0
        %1178 = vmatprep.subr.bf16.mxu0 0
        %1179 = vmatpush1.bf16.msra.mxu0 0
        %1180 = vmatprep.subr.bf16.mxu0 0
        %1181 = vmatpush1.bf16.msra.mxu0 0
        %1182 = vmatprep.subr.bf16.mxu0 0
        %1183 = vmatpush1.bf16.msra.mxu0 0
        %1184 = vmatprep.subr.bf16.mxu0 0
        %1185 = vmatpush1.bf16.msra.mxu0 0
        %1186 = vmatprep.subr.bf16.mxu0 0
        %1187 = vmatpush1.bf16.msra.mxu0 0
        %1188 = vmatprep.subr.bf16.mxu0 0
        %1189 = vmatpush1.bf16.msra.mxu0 0
        %1190 = vmatprep.subr.bf16.mxu0 0
        %1191 = vmatpush1.bf16.msra.mxu0 0
        %1192 = vmatprep.mubr.bf16.mxu0 0
        %1193 = vmatmul.mubr.bf16.gmra.mrb[0].mxu0 %v899
        %v1194 = vpop.f32.mrb[0].mxu0
        %v1195 = vadd.f32 0.0, %v1194
        %v1196 = vpop.f32.mrb[0].mxu0
        %v1197 = vpop.f32.mrb[0].mxu0
        %v1198 = vpop.f32.mrb[0].mxu0
        %1199 = vdwg.mxu0
        %v1200 = vadd.f32 %v1159, %v1195
        %v1201 = vpack.c.bf16 %v223, %v223
        %v1203 = vsel %vm273, %v1201, 0
        %1205 = vmatprep.subr.bf16.mxu0 0
        %1206 = vmatpush1.bf16.msra.mxu0 %v728
        %1207 = vmatprep.subr.bf16.mxu0 0
        %1208 = vmatpush1.bf16.msra.mxu0 %v729
        %1209 = vmatprep.subr.bf16.mxu0 0
        %1210 = vmatpush1.bf16.msra.mxu0 %v730
        %1211 = vmatprep.subr.bf16.mxu0 0
        %1212 = vmatpush1.bf16.msra.mxu0 %v731
        %1213 = vmatprep.subr.bf16.mxu0 0
        %1214 = vmatpush1.bf16.msra.mxu0 0
        %1215 = vmatprep.subr.bf16.mxu0 0
        %1216 = vmatpush1.bf16.msra.mxu0 0
        %1217 = vmatprep.subr.bf16.mxu0 0
        %1218 = vmatpush1.bf16.msra.mxu0 0
        %1219 = vmatprep.subr.bf16.mxu0 0
        %1220 = vmatpush1.bf16.msra.mxu0 0
        %1221 = vmatprep.subr.bf16.mxu0 0
        %1222 = vmatpush1.bf16.msra.mxu0 0
        %1223 = vmatprep.subr.bf16.mxu0 0
        %1224 = vmatpush1.bf16.msra.mxu0 0
        %1225 = vmatprep.subr.bf16.mxu0 0
        %1226 = vmatpush1.bf16.msra.mxu0 0
        %1227 = vmatprep.subr.bf16.mxu0 0
        %1228 = vmatpush1.bf16.msra.mxu0 0
        %1229 = vmatprep.subr.bf16.mxu0 0
        %1230 = vmatpush1.bf16.msra.mxu0 0
        %1231 = vmatprep.subr.bf16.mxu0 0
        %1232 = vmatpush1.bf16.msra.mxu0 0
        %1233 = vmatprep.subr.bf16.mxu0 0
        %1234 = vmatpush1.bf16.msra.mxu0 0
        %1235 = vmatprep.subr.bf16.mxu0 0
        %1236 = vmatpush1.bf16.msra.mxu0 0
        %1237 = vmatprep.mubr.bf16.mxu0 0
        %1238 = vmatmul.mubr.bf16.gmra.mrb[0].mxu0 %v1203
        %v1239 = vpop.f32.mrb[0].mxu0
        %v1240 = vadd.f32 0.0, %v1239
        %v1241 = vpop.f32.mrb[0].mxu0
        %v1242 = vpop.f32.mrb[0].mxu0
        %v1243 = vpop.f32.mrb[0].mxu0
        %1244 = vdwg.mxu0
        %v1245 = vadd.f32 %v1200, %v1240
        %v1246 = vshrl.u32 %v1201, 16
        %v1248 = vshll.u32 %v1201, 16
        %v1250 = vrot.slane %v1248, 1
        %v1251 = vor.u32 %v1246, %v1250
        %v1253 = vsel %vm273, %v1251, 0
        %1255 = vmatprep.subr.bf16.mxu0 0
        %1256 = vmatpush1.bf16.msra.mxu0 %v811
        %1257 = vmatprep.subr.bf16.mxu0 0
        %1258 = vmatpush1.bf16.msra.mxu0 %v812
        %1259 = vmatprep.subr.bf16.mxu0 0
        %1260 = vmatpush1.bf16.msra.mxu0 %v813
        %1261 = vmatprep.subr.bf16.mxu0 0
        %1262 = vmatpush1.bf16.msra.mxu0 %v814
        %1263 = vmatprep.subr.bf16.mxu0 0
        %1264 = vmatpush1.bf16.msra.mxu0 0
        %1265 = vmatprep.subr.bf16.mxu0 0
        %1266 = vmatpush1.bf16.msra.mxu0 0
        %1267 = vmatprep.subr.bf16.mxu0 0
        %1268 = vmatpush1.bf16.msra.mxu0 0
        %1269 = vmatprep.subr.bf16.mxu0 0
        %1270 = vmatpush1.bf16.msra.mxu0 0
        %1271 = vmatprep.subr.bf16.mxu0 0
        %1272 = vmatpush1.bf16.msra.mxu0 0
        %1273 = vmatprep.subr.bf16.mxu0 0
        %1274 = vmatpush1.bf16.msra.mxu0 0
        %1275 = vmatprep.subr.bf16.mxu0 0
        %1276 = vmatpush1.bf16.msra.mxu0 0
        %1277 = vmatprep.subr.bf16.mxu0 0
        %1278 = vmatpush1.bf16.msra.mxu0 0
        %1279 = vmatprep.subr.bf16.mxu0 0
        %1280 = vmatpush1.bf16.msra.mxu0 0
        %1281 = vmatprep.subr.bf16.mxu0 0
        %1282 = vmatpush1.bf16.msra.mxu0 0
        %1283 = vmatprep.subr.bf16.mxu0 0
        %1284 = vmatpush1.bf16.msra.mxu0 0
        %1285 = vmatprep.subr.bf16.mxu0 0
        %1286 = vmatpush1.bf16.msra.mxu0 0
        %1287 = vmatprep.mubr.bf16.mxu0 0
        %1288 = vmatmul.mubr.bf16.gmra.mrb[0].mxu0 %v1253
        %v1289 = vpop.f32.mrb[0].mxu0
        %v1290 = vadd.f32 0.0, %v1289
        %v1291 = vpop.f32.mrb[0].mxu0
        %v1292 = vpop.f32.mrb[0].mxu0
        %v1293 = vpop.f32.mrb[0].mxu0
        %1294 = vdwg.mxu0
        %v1295 = vadd.f32 %v1245, %v1290
        %v1297 = vrot.slane %v1201, 1
        %v1299 = vsel %vm273, %v1297, 0
        %1301 = vmatprep.subr.bf16.mxu0 0
        %1302 = vmatpush1.bf16.msra.mxu0 %v890
        %1303 = vmatprep.subr.bf16.mxu0 0
        %1304 = vmatpush1.bf16.msra.mxu0 %v891
        %1305 = vmatprep.subr.bf16.mxu0 0
        %1306 = vmatpush1.bf16.msra.mxu0 %v892
        %1307 = vmatprep.subr.bf16.mxu0 0
        %1308 = vmatpush1.bf16.msra.mxu0 %v893
        %1309 = vmatprep.subr.bf16.mxu0 0
        %1310 = vmatpush1.bf16.msra.mxu0 0
        %1311 = vmatprep.subr.bf16.mxu0 0
        %1312 = vmatpush1.bf16.msra.mxu0 0
        %1313 = vmatprep.subr.bf16.mxu0 0
        %1314 = vmatpush1.bf16.msra.mxu0 0
        %1315 = vmatprep.subr.bf16.mxu0 0
        %1316 = vmatpush1.bf16.msra.mxu0 0
        %1317 = vmatprep.subr.bf16.mxu0 0
        %1318 = vmatpush1.bf16.msra.mxu0 0
        %1319 = vmatprep.subr.bf16.mxu0 0
        %1320 = vmatpush1.bf16.msra.mxu0 0
        %1321 = vmatprep.subr.bf16.mxu0 0
        %1322 = vmatpush1.bf16.msra.mxu0 0
        %1323 = vmatprep.subr.bf16.mxu0 0
        %1324 = vmatpush1.bf16.msra.mxu0 0
        %1325 = vmatprep.subr.bf16.mxu0 0
        %1326 = vmatpush1.bf16.msra.mxu0 0
        %1327 = vmatprep.subr.bf16.mxu0 0
        %1328 = vmatpush1.bf16.msra.mxu0 0
        %1329 = vmatprep.subr.bf16.mxu0 0
        %1330 = vmatpush1.bf16.msra.mxu0 0
        %1331 = vmatprep.subr.bf16.mxu0 0
        %1332 = vmatpush1.bf16.msra.mxu0 0
        %1333 = vmatprep.mubr.bf16.mxu0 0
        %1334 = vmatmul.mubr.bf16.gmra.mrb[0].mxu0 %v1299
        %v1335 = vpop.f32.mrb[0].mxu0
        %v1336 = vadd.f32 0.0, %v1335
        %v1337 = vpop.f32.mrb[0].mxu0
        %v1338 = vpop.f32.mrb[0].mxu0
        %v1339 = vpop.f32.mrb[0].mxu0
        %1340 = vdwg.mxu0
        %v1341 = vadd.f32 %v1295, %v1336
        %v1342 = vmul.f32 %v1341, %v946
        %v1343 = vadd.f32 %v1342, %v953
        %v1344 = vmax.f32 %v1343, 0.0
        %v1345 = vmax.f32 %v956, %v1344
        %vm1346 = vcmask 48128
        %v1348 = vsel %vm1346, %v205, 0
        %vm1350 = vcmask 1045504
        %v1352 = vsel %vm1350, %v1345, 0
        %1354 = vmatprep.subr.mxu0 0.0
        %1355 = vmatpush1.msra.mxu0 %v1352
        %1356 = vmatprep.subr.mxu0 0.0
        %1357 = vmatpush1.msra.mxu0 0.0
        %1358 = vmatprep.subr.mxu0 0.0
        %1359 = vmatpush1.msra.mxu0 0.0
        %1360 = vmatprep.subr.mxu0 0.0
        %1361 = vmatpush1.msra.mxu0 0.0
        %1362 = vmatprep.subr.mxu0 0.0
        %1363 = vmatpush1.msra.mxu0 0.0
        %1364 = vmatprep.subr.mxu0 0.0
        %1365 = vmatpush1.msra.mxu0 0.0
        %1366 = vmatprep.subr.mxu0 0.0
        %1367 = vmatpush1.msra.mxu0 0.0
        %1368 = vmatprep.subr.mxu0 0.0
        %1369 = vmatpush1.msra.mxu0 0.0
        %1370 = vmatprep.subr.mxu0 0.0
        %1371 = vmatpush1.msra.mxu0 0.0
        %1372 = vmatprep.subr.mxu0 0.0
        %1373 = vmatpush1.msra.mxu0 0.0
        %1374 = vmatprep.subr.mxu0 0.0
        %1375 = vmatpush1.msra.mxu0 0.0
        %1376 = vmatprep.subr.mxu0 0.0
        %1377 = vmatpush1.msra.mxu0 0.0
        %1378 = vmatprep.subr.mxu0 0.0
        %1379 = vmatpush1.msra.mxu0 0.0
        %1380 = vmatprep.subr.mxu0 0.0
        %1381 = vmatpush1.msra.mxu0 0.0
        %1382 = vmatprep.subr.mxu0 0.0
        %1383 = vmatpush1.msra.mxu0 0.0
        %1384 = vmatprep.subr.mxu0 0.0
        %1385 = vmatpush1.msra.mxu0 0.0
        %1386 = vmatprep.subr.mxu0 0.0
        %1387 = vmatpush1.msra.mxu0 0.0
        %1388 = vmatprep.subr.mxu0 0.0
        %1389 = vmatpush1.msra.mxu0 0.0
        %1390 = vmatprep.subr.mxu0 0.0
        %1391 = vmatpush1.msra.mxu0 0.0
        %1392 = vmatprep.subr.mxu0 0.0
        %1393 = vmatpush1.msra.mxu0 0.0
        %1394 = vmatprep.subr.mxu0 0.0
        %1395 = vmatpush1.msra.mxu0 0.0
        %1396 = vmatprep.subr.mxu0 0.0
        %1397 = vmatpush1.msra.mxu0 0.0
        %1398 = vmatprep.subr.mxu0 0.0
        %1399 = vmatpush1.msra.mxu0 0.0
        %1400 = vmatprep.subr.mxu0 0.0
        %1401 = vmatpush1.msra.mxu0 0.0
        %1402 = vmatprep.subr.mxu0 0.0
        %1403 = vmatpush1.msra.mxu0 0.0
        %1404 = vmatprep.subr.mxu0 0.0
        %1405 = vmatpush1.msra.mxu0 0.0
        %1406 = vmatprep.subr.mxu0 0.0
        %1407 = vmatpush1.msra.mxu0 0.0
        %1408 = vmatprep.subr.mxu0 0.0
        %1409 = vmatpush1.msra.mxu0 0.0
        %1410 = vmatprep.subr.mxu0 0.0
        %1411 = vmatpush1.msra.mxu0 0.0
        %1412 = vmatprep.subr.mxu0 0.0
        %1413 = vmatpush1.msra.mxu0 0.0
        %1414 = vmatprep.subr.mxu0 0.0
        %1415 = vmatpush1.msra.mxu0 0.0
        %1416 = vmatprep.subr.mxu0 0.0
        %1417 = vmatpush1.msra.mxu0 0.0
        %1418 = vmatprep.mubr.f32.mxu0 0.0
        %1419 = vmatmul.mubr.f32.gmra.mrb[0].mxu0 %v1348
        %v1420 = vpop.f32.mrb[0].mxu0
        %v1421 = vadd.f32 0.0, %v1420
        %v1422 = vpop.f32.mrb[0].mxu0
        %1423 = vdwg.mxu0
        %v1425 = vsel %vm1346, %v208, 0
        %1427 = vmatprep.subr.mxu0 0.0
        %1428 = vmatpush1.msra.mxu0 %v1352
        %1429 = vmatprep.subr.mxu0 0.0
        %1430 = vmatpush1.msra.mxu0 0.0
        %1431 = vmatprep.subr.mxu0 0.0
        %1432 = vmatpush1.msra.mxu0 0.0
        %1433 = vmatprep.subr.mxu0 0.0
        %1434 = vmatpush1.msra.mxu0 0.0
        %1435 = vmatprep.subr.mxu0 0.0
        %1436 = vmatpush1.msra.mxu0 0.0
        %1437 = vmatprep.subr.mxu0 0.0
        %1438 = vmatpush1.msra.mxu0 0.0
        %1439 = vmatprep.subr.mxu0 0.0
        %1440 = vmatpush1.msra.mxu0 0.0
        %1441 = vmatprep.subr.mxu0 0.0
        %1442 = vmatpush1.msra.mxu0 0.0
        %1443 = vmatprep.subr.mxu0 0.0
        %1444 = vmatpush1.msra.mxu0 0.0
        %1445 = vmatprep.subr.mxu0 0.0
        %1446 = vmatpush1.msra.mxu0 0.0
        %1447 = vmatprep.subr.mxu0 0.0
        %1448 = vmatpush1.msra.mxu0 0.0
        %1449 = vmatprep.subr.mxu0 0.0
        %1450 = vmatpush1.msra.mxu0 0.0
        %1451 = vmatprep.subr.mxu0 0.0
        %1452 = vmatpush1.msra.mxu0 0.0
        %1453 = vmatprep.subr.mxu0 0.0
        %1454 = vmatpush1.msra.mxu0 0.0
        %1455 = vmatprep.subr.mxu0 0.0
        %1456 = vmatpush1.msra.mxu0 0.0
        %1457 = vmatprep.subr.mxu0 0.0
        %1458 = vmatpush1.msra.mxu0 0.0
        %1459 = vmatprep.subr.mxu0 0.0
        %1460 = vmatpush1.msra.mxu0 0.0
        %1461 = vmatprep.subr.mxu0 0.0
        %1462 = vmatpush1.msra.mxu0 0.0
        %1463 = vmatprep.subr.mxu0 0.0
        %1464 = vmatpush1.msra.mxu0 0.0
        %1465 = vmatprep.subr.mxu0 0.0
        %1466 = vmatpush1.msra.mxu0 0.0
        %1467 = vmatprep.subr.mxu0 0.0
        %1468 = vmatpush1.msra.mxu0 0.0
        %1469 = vmatprep.subr.mxu0 0.0
        %1470 = vmatpush1.msra.mxu0 0.0
        %1471 = vmatprep.subr.mxu0 0.0
        %1472 = vmatpush1.msra.mxu0 0.0
        %1473 = vmatprep.subr.mxu0 0.0
        %1474 = vmatpush1.msra.mxu0 0.0
        %1475 = vmatprep.subr.mxu0 0.0
        %1476 = vmatpush1.msra.mxu0 0.0
        %1477 = vmatprep.subr.mxu0 0.0
        %1478 = vmatpush1.msra.mxu0 0.0
        %1479 = vmatprep.subr.mxu0 0.0
        %1480 = vmatpush1.msra.mxu0 0.0
        %1481 = vmatprep.subr.mxu0 0.0
        %1482 = vmatpush1.msra.mxu0 0.0
        %1483 = vmatprep.subr.mxu0 0.0
        %1484 = vmatpush1.msra.mxu0 0.0
        %1485 = vmatprep.subr.mxu0 0.0
        %1486 = vmatpush1.msra.mxu0 0.0
        %1487 = vmatprep.subr.mxu0 0.0
        %1488 = vmatpush1.msra.mxu0 0.0
        %1489 = vmatprep.subr.mxu0 0.0
        %1490 = vmatpush1.msra.mxu0 0.0
        %1491 = vmatprep.mubr.f32.mxu0 0.0
        %1492 = vmatmul.mubr.f32.gmra.mrb[0].mxu0 %v1425
        %v1493 = vpop.f32.mrb[0].mxu0
        %v1494 = vadd.f32 0.0, %v1493
        %v1495 = vpop.f32.mrb[0].mxu0
        %1496 = vdwg.mxu0
        %v1497 = vmax.f32 %v1421, %v1494
        %s1498 = smul.u32 %s212, 4
        %s1499 = scalar_lea.vmem %s197, %s1498
        %vm1500 = vcmask 518144
        %1501 = vst.msk [vmem:[%s1499] sm:$0x7] %vm1500, %v1497
      $region41: #{forward.8} parent=35 // loop_footer
        %s216 = sadd.s32 1, %s212
      $region42: #{forward.8} parent=35 // loop_footer_branch
        %211 = sbr.rel target = $region38
      $region43: #{forward.8} parent=35 // loop_exit
        _
      %p1502 = scmp.lt.s32.totalorder %s15, 1
      %s1503 = scalar_select %p1502, %s15, 1
      %s1504 = smul.addr %s1503, 3
      %s1505 = smul.addr %s1504, 4
      %s1506 = scalar_lea.vmem %s4, %s1505
      // Predicated region
      $region44: #{forward.8} parent=35 // pred_check
        %p1507 = pneg %p122
      $region45: #{forward.8} parent=35 // pred_check_branch
        %1509 = sbr.rel (%p1507) target = $region47
      $region46: #{forward.8} parent=35 // pred_region
        _
      $region47: #{forward.8} parent=35 // pred_fallthru
        _
    $region36: #{forward.8} parent=5 // pred_fallthru
      _
    %p1510 = scmp.le.s32.totalorder 2, %s10
    // Predicated region
    $region48: #{forward.8} parent=5 // pred_check
      %p1511 = pneg %p1510
    $region49: #{forward.8} parent=5 // pred_check_branch
      %1513 = sbr.rel (%p1511) target = $region51
    $region50: #{forward.8} parent=5 // pred_region
      %s1514 = ssub.s32 %s10, 2
      // Predicated region
      $region52: #{forward.8} parent=50 // pred_check
        %p1515 = pneg %p128
      $region53: #{forward.8} parent=50 // pred_check_branch
        %1517 = sbr.rel (%p1515) target = $region55
      $region54: #{forward.8} parent=50 // pred_region
        %p1518 = scmp.lt.s32.totalorder %s16, 1
        %s1519 = scalar_select %p1518, %s16, 1
        %s1520 = smul.addr %s1519, 3
        %s1521 = smul.addr %s1520, 4
        %s1522 = scalar_lea.vmem %s4, %s1521
      $region55: #{forward.8} parent=50 // pred_fallthru
        _
    $region51: #{forward.8} parent=5 // pred_fallthru
      _
  $region6: #{forward.8} parent=0 // loop_footer
    %s14 = sadd.s32 1, %s10
  $region7: #{forward.8} parent=0 // loop_footer_branch
    %9 = sbr.rel target = $region3
  $region8: #{forward.8} parent=0 // loop_exit
    _

// kernel: forward.9
$region0: #{forward.9}
  #allocation0 [shape = 'u32[]', space=smem, size = 0x4, offset = 0x4, fixed_abs, tag = 'smem constant byte address 0x4 - core index']
  #allocation1 [shape = 'u32[144,128]{1,0:T(1,128)}', space=vmem, size = 0x12000, scoped, tag = 'internal scratch']
  %s0 = inlined_call_operand.vmem [shape: f32[2,576], index: 0, kind: input, shape index: {}]
  %s1 = inlined_call_operand.vmem [shape: bf16[576,850], index: 1, kind: input, shape index: {}]
  %s2 = inlined_call_operand.vmem [shape: f32[1,850], index: 2, kind: input, shape index: {}]
  %s3 = inlined_call_operand.vmem [shape: f32[1,850], index: 3, kind: input, shape index: {}]
  %s4 = inlined_call_operand.vmem [shape: bf16[850,232], index: 4, kind: input, shape index: {}]
  %s5 = inlined_call_operand.vmem [shape: f32[1,232], index: 5, kind: input, shape index: {}]
  %s6 = inlined_call_operand.hbm [shape: f32[2,232], index: 6, kind: output, shape index: {}]
  %s7 = sld [smem:[#allocation0]]
  $region34: #{forward.9} parent=0
    _
  %s9 = ssub.s32 1, %s7
  %s10 = scalar_select 0, %s9, %s7
  $region1: #{forward.9} parent=0
    #allocation2 [shape = 'u8[2048]{0}', space=vmem, size = 0x800, scoped, tag = 'output window, operand 0, single buffered']
    #allocation3 [shape = 's32[1]{0}', space=sflag, size = 0x4, scoped, tag = 'scoped memory for forward.9']
    %11 = vsyncpa [#allocation3], 0
    // Predicated region
    $region2: #{forward.9} parent=1 // pred_check
      _
    $region3: #{forward.9} parent=1 // pred_check_branch
      %13 = sbr.rel (0) target = $region5
    $region4: #{forward.9} parent=1 // pred_region
      _
    $region5: #{forward.9} parent=1 // pred_fallthru
      _
    // Predicated region
    $region6: #{forward.9} parent=1 // pred_check
      _
    $region7: #{forward.9} parent=1 // pred_check_branch
      %15 = sbr.rel (0) target = $region9
    $region8: #{forward.9} parent=1 // pred_region
      _
    $region9: #{forward.9} parent=1 // pred_fallthru
      _
    // Predicated region
    $region10: #{forward.9} parent=1 // pred_check
      _
    $region11: #{forward.9} parent=1 // pred_check_branch
      %17 = sbr.rel (0) target = $region13
    $region12: #{forward.9} parent=1 // pred_region
      _
    $region13: #{forward.9} parent=1 // pred_fallthru
      _
    // Predicated region
    $region14: #{forward.9} parent=1 // pred_check
      _
    $region15: #{forward.9} parent=1 // pred_check_branch
      %19 = sbr.rel (0) target = $region17
    $region16: #{forward.9} parent=1 // pred_region
      _
    $region17: #{forward.9} parent=1 // pred_fallthru
      _
    // Predicated region
    $region18: #{forward.9} parent=1 // pred_check
      _
    $region19: #{forward.9} parent=1 // pred_check_branch
      %21 = sbr.rel (0) target = $region21
    $region20: #{forward.9} parent=1 // pred_region
      _
    $region21: #{forward.9} parent=1 // pred_fallthru
      _
    // Predicated region
    $region22: #{forward.9} parent=1 // pred_check
      _
    $region23: #{forward.9} parent=1 // pred_check_branch
      %23 = sbr.rel (0) target = $region25
    $region24: #{forward.9} parent=1 // pred_region
      _
    $region25: #{forward.9} parent=1 // pred_fallthru
      _
    %v25 = vld [vmem:[%s0] sm:$0xff]
    %v26 = vld [vmem:[%s0 + $0x8] sm:$0x3]
    %v29 = vcombine.high %v25, %v25
    %v31 = vunpack.c.l.s4 1983009808
    %v32 = vunpack.c.0.s8 %v31
    %v33 = vlaneseq
    %v34 = vshrl.u32 %v33, 7
    %v35 = vsub.s32 %v32, %v34
    %v36 = vrot.slane %v25, %v35
    %v38 = vunpack.c.l.s4 1983009808
    %v39 = vunpack.c.0.s8 %v38
    %v40 = vlaneseq
    %v41 = vshrl.u32 %v40, 7
    %v42 = vsub.s32 %v39, %v41
    %v43 = vrot.slane %v29, %v42
    %v44 = vcombine.high %v36, %v36
    %v45 = vcombine.high %v43, %v43
    %v47 = vunpack.c.l.s4 1983009808
    %v48 = vunpack.c.0.s8 %v47
    %v49 = vlaneseq
    %v50 = vshrl.u32 %v49, 7
    %v51 = vsub.s32 %v48, %v50
    %v52 = vrot.slane %v26, %v51
    %v58 = vpack.c.bf16 %v36, %v36
    %v59 = vpack.c.bf16 %v44, %v44
    %v60 = vpack.c.bf16 %v43, %v43
    %v61 = vpack.c.bf16 %v45, %v45
    %v62 = vpack.c.bf16 %v52, %v52
    %v63 = vld [vmem:[%s1] sm:$0xff]
    %v64 = vld [vmem:[%s1 + $0x8] sm:$0xff]
    %v65 = vld [vmem:[%s1 + $0x10] sm:$0xff]
    %v66 = vld [vmem:[%s1 + $0x18] sm:$0xf]
    %v67 = vld [vmem:[%s1 + $0x1c] sm:$0xff]
    %v68 = vld [vmem:[%s1 + $0x24] sm:$0xff]
    %v69 = vld [vmem:[%s1 + $0x2c] sm:$0xff]
    %v70 = vld [vmem:[%s1 + $0x34] sm:$0xf]
    %v71 = vld [vmem:[%s1 + $0x38] sm:$0xff]
    %v72 = vld [vmem:[%s1 + $0x40] sm:$0xff]
    %v73 = vld [vmem:[%s1 + $0x48] sm:$0xff]
    %v74 = vld [vmem:[%s1 + $0x50] sm:$0xf]
    %v75 = vld [vmem:[%s1 + $0x54] sm:$0xff]
    %v76 = vld [vmem:[%s1 + $0x5c] sm:$0xff]
    %v77 = vld [vmem:[%s1 + $0x64] sm:$0xff]
    %v78 = vld [vmem:[%s1 + $0x6c] sm:$0xf]
    %v79 = vld [vmem:[%s1 + $0x70] sm:$0xff]
    %v80 = vld [vmem:[%s1 + $0x78] sm:$0xff]
    %v81 = vld [vmem:[%s1 + $0x80] sm:$0xff]
    %v82 = vld [vmem:[%s1 + $0x88] sm:$0xf]
    %v83 = vld [vmem:[%s1 + $0x8c] sm:$0xff]
    %v84 = vld [vmem:[%s1 + $0x94] sm:$0xff]
    %v85 = vld [vmem:[%s1 + $0x9c] sm:$0xff]
    %v86 = vld [vmem:[%s1 + $0xa4] sm:$0xf]
    %v87 = vld [vmem:[%s1 + $0xa8] sm:$0xff]
    %v88 = vld [vmem:[%s1 + $0xb0] sm:$0xff]
    %v89 = vld [vmem:[%s1 + $0xb8] sm:$0xff]
    %v90 = vld [vmem:[%s1 + $0xc0] sm:$0xf]
    %v91 = vld [vmem:[%s1 + $0xc4] sm:$0xff]
    %v92 = vld [vmem:[%s1 + $0xcc] sm:$0xff]
    %v93 = vld [vmem:[%s1 + $0xd4] sm:$0xff]
    %v94 = vld [vmem:[%s1 + $0xdc] sm:$0xf]
    %v95 = vld [vmem:[%s1 + $0xe0] sm:$0xff]
    %v96 = vld [vmem:[%s1 + $0xe8] sm:$0xff]
    %v97 = vld [vmem:[%s1 + $0xf0] sm:$0xff]
    %v98 = vld [vmem:[%s1 + $0xf8] sm:$0xf]
    %v99 = vld [vmem:[%s1 + $0xfc] sm:$0xff]
    %v100 = vld [vmem:[%s1 + $0x104] sm:$0xff]
    %v101 = vld [vmem:[%s1 + $0x10c] sm:$0xff]
    %v102 = vld [vmem:[%s1 + $0x114] sm:$0xf]
    %v103 = vld [vmem:[%s1 + $0x118] sm:$0xff]
    %v104 = vld [vmem:[%s1 + $0x120] sm:$0xff]
    %v105 = vld [vmem:[%s1 + $0x128] sm:$0xff]
    %v106 = vld [vmem:[%s1 + $0x130] sm:$0xf]
    %v107 = vld [vmem:[%s1 + $0x134] sm:$0xff]
    %v108 = vld [vmem:[%s1 + $0x13c] sm:$0xff]
    %v109 = vld [vmem:[%s1 + $0x144] sm:$0xff]
    %v110 = vld [vmem:[%s1 + $0x14c] sm:$0xf]
    %v111 = vld [vmem:[%s1 + $0x150] sm:$0xff]
    %v112 = vld [vmem:[%s1 + $0x158] sm:$0xff]
    %v113 = vld [vmem:[%s1 + $0x160] sm:$0xff]
    %v114 = vld [vmem:[%s1 + $0x168] sm:$0xf]
    %v115 = vld [vmem:[%s1 + $0x16c] sm:$0xff]
    %v116 = vld [vmem:[%s1 + $0x174] sm:$0xff]
    %v117 = vld [vmem:[%s1 + $0x17c] sm:$0xff]
    %v118 = vld [vmem:[%s1 + $0x184] sm:$0xf]
    %v119 = vld [vmem:[%s1 + $0x188] sm:$0xff]
    %v120 = vld [vmem:[%s1 + $0x190] sm:$0xff]
    %v121 = vld [vmem:[%s1 + $0x198] sm:$0xff]
    %v122 = vld [vmem:[%s1 + $0x1a0] sm:$0xf]
    %v123 = vld [vmem:[%s1 + $0x1a4] sm:$0xff]
    %v124 = vld [vmem:[%s1 + $0x1ac] sm:$0xff]
    %v125 = vld [vmem:[%s1 + $0x1b4] sm:$0xff]
    %v126 = vld [vmem:[%s1 + $0x1bc] sm:$0xf]
    %v127 = vld [vmem:[%s1 + $0x1c0] sm:$0xff]
    %v128 = vld [vmem:[%s1 + $0x1c8] sm:$0xff]
    %v129 = vld [vmem:[%s1 + $0x1d0] sm:$0xff]
    %v130 = vld [vmem:[%s1 + $0x1d8] sm:$0xf]
    %v131 = vld [vmem:[%s1 + $0x1dc] sm:$0xff]
    %v132 = vld [vmem:[%s1 + $0x1e4] sm:$0xff]
    %v133 = vld [vmem:[%s1 + $0x1ec] sm:$0xff]
    %v134 = vld [vmem:[%s1 + $0x1f4] sm:$0xf]
    %v135 = vld [vmem:[%s1 + $0x1f8] sm:$0xff]
    %v136 = vld [vmem:[%s1 + $0x200] sm:$0xff]
    %v137 = vld [vmem:[%s1 + $0x208] sm:$0xff]
    %v138 = vld [vmem:[%s1 + $0x210] sm:$0xf]
    %v139 = vld [vmem:[%s1 + $0x214] sm:$0xff]
    %v140 = vld [vmem:[%s1 + $0x21c] sm:$0xff]
    %v141 = vld [vmem:[%s1 + $0x224] sm:$0xff]
    %v142 = vld [vmem:[%s1 + $0x22c] sm:$0xf]
    %v143 = vld [vmem:[%s1 + $0x230] sm:$0xff]
    %v144 = vld [vmem:[%s1 + $0x238] sm:$0xff]
    %v145 = vld [vmem:[%s1 + $0x240] sm:$0xff]
    %v146 = vld [vmem:[%s1 + $0x248] sm:$0xf]
    %v147 = vld [vmem:[%s1 + $0x24c] sm:$0xff]
    %v148 = vld [vmem:[%s1 + $0x254] sm:$0xff]
    %v149 = vld [vmem:[%s1 + $0x25c] sm:$0xff]
    %v150 = vld [vmem:[%s1 + $0x264] sm:$0xf]
    %v151 = vld [vmem:[%s1 + $0x268] sm:$0xff]
    %v152 = vld [vmem:[%s1 + $0x270] sm:$0xff]
    %v153 = vld [vmem:[%s1 + $0x278] sm:$0xff]
    %v154 = vld [vmem:[%s1 + $0x280] sm:$0xf]
    %v155 = vld [vmem:[%s1 + $0x284] sm:$0xff]
    %v156 = vld [vmem:[%s1 + $0x28c] sm:$0xff]
    %v157 = vld [vmem:[%s1 + $0x294] sm:$0xff]
    %v158 = vld [vmem:[%s1 + $0x29c] sm:$0xf]
    %v159 = vld [vmem:[%s1 + $0x2a0] sm:$0xff]
    %v160 = vld [vmem:[%s1 + $0x2a8] sm:$0xff]
    %v161 = vld [vmem:[%s1 + $0x2b0] sm:$0xff]
    %v162 = vld [vmem:[%s1 + $0x2b8] sm:$0xf]
    %v163 = vld [vmem:[%s1 + $0x2bc] sm:$0xff]
    %v164 = vld [vmem:[%s1 + $0x2c4] sm:$0xff]
    %v165 = vld [vmem:[%s1 + $0x2cc] sm:$0xff]
    %v166 = vld [vmem:[%s1 + $0x2d4] sm:$0xf]
    %v167 = vld [vmem:[%s1 + $0x2d8] sm:$0xff]
    %v168 = vld [vmem:[%s1 + $0x2e0] sm:$0xff]
    %v169 = vld [vmem:[%s1 + $0x2e8] sm:$0xff]
    %v170 = vld [vmem:[%s1 + $0x2f0] sm:$0xf]
    %v171 = vld [vmem:[%s1 + $0x2f4] sm:$0xff]
    %v172 = vld [vmem:[%s1 + $0x2fc] sm:$0xff]
    %v173 = vld [vmem:[%s1 + $0x304] sm:$0xff]
    %v174 = vld [vmem:[%s1 + $0x30c] sm:$0xf]
    %v175 = vld [vmem:[%s1 + $0x310] sm:$0xff]
    %v176 = vld [vmem:[%s1 + $0x318] sm:$0xff]
    %v177 = vld [vmem:[%s1 + $0x320] sm:$0xff]
    %v178 = vld [vmem:[%s1 + $0x328] sm:$0xf]
    %v179 = vld [vmem:[%s1 + $0x32c] sm:$0xff]
    %v180 = vld [vmem:[%s1 + $0x334] sm:$0xff]
    %v181 = vld [vmem:[%s1 + $0x33c] sm:$0xff]
    %v182 = vld [vmem:[%s1 + $0x344] sm:$0xf]
    %v183 = vld [vmem:[%s1 + $0x348] sm:$0xff]
    %v184 = vld [vmem:[%s1 + $0x350] sm:$0xff]
    %v185 = vld [vmem:[%s1 + $0x358] sm:$0xff]
    %v186 = vld [vmem:[%s1 + $0x360] sm:$0xf]
    %v187 = vld [vmem:[%s1 + $0x364] sm:$0xff]
    %v188 = vld [vmem:[%s1 + $0x36c] sm:$0xff]
    %v189 = vld [vmem:[%s1 + $0x374] sm:$0xff]
    %v190 = vld [vmem:[%s1 + $0x37c] sm:$0xf]
    %v191 = vld [vmem:[%s1 + $0x380] sm:$0xff]
    %v192 = vld [vmem:[%s1 + $0x388] sm:$0xff]
    %v193 = vld [vmem:[%s1 + $0x390] sm:$0xff]
    %v194 = vld [vmem:[%s1 + $0x398] sm:$0xf]
    %v195 = vld [vmem:[%s1 + $0x39c] sm:$0xff]
    %v196 = vld [vmem:[%s1 + $0x3a4] sm:$0xff]
    %v197 = vld [vmem:[%s1 + $0x3ac] sm:$0xff]
    %v198 = vld [vmem:[%s1 + $0x3b4] sm:$0xf]
    %v199 = vld [vmem:[%s1 + $0x3b8] sm:$0xff]
    %v200 = vld [vmem:[%s1 + $0x3c0] sm:$0xff]
    %v201 = vld [vmem:[%s1 + $0x3c8] sm:$0xff]
    %v202 = vld [vmem:[%s1 + $0x3d0] sm:$0xf]
    %v203 = vld [vmem:[%s1 + $0x3d4] sm:$0xff]
    %v204 = vld [vmem:[%s1 + $0x3dc] sm:$0xff]
    %v205 = vld [vmem:[%s1 + $0x3e4] sm:$0xff]
    %v206 = vld [vmem:[%s1 + $0x3ec] sm:$0xf]
    %v207 = vld [vmem:[%s1 + $0x3f0] sm:$0xff]
    %v208 = vld [vmem:[%s1 + $0x3f8] sm:$0xff]
    %v209 = vld [vmem:[%s1 + $0x400] sm:$0xff]
    %v210 = vld [vmem:[%s1 + $0x408] sm:$0xf]
    %v211 = vld [vmem:[%s1 + $0x40c] sm:$0xff]
    %v212 = vld [vmem:[%s1 + $0x414] sm:$0xff]
    %v213 = vld [vmem:[%s1 + $0x41c] sm:$0xff]
    %v214 = vld [vmem:[%s1 + $0x424] sm:$0xf]
    %v215 = vld [vmem:[%s1 + $0x428] sm:$0xff]
    %v216 = vld [vmem:[%s1 + $0x430] sm:$0xff]
    %v217 = vld [vmem:[%s1 + $0x438] sm:$0xff]
    %v218 = vld [vmem:[%s1 + $0x440] sm:$0xf]
    %v219 = vld [vmem:[%s1 + $0x444] sm:$0xff]
    %v220 = vld [vmem:[%s1 + $0x44c] sm:$0xff]
    %v221 = vld [vmem:[%s1 + $0x454] sm:$0xff]
    %v222 = vld [vmem:[%s1 + $0x45c] sm:$0xf]
    %v223 = vld [vmem:[%s1 + $0x460] sm:$0xff]
    %v224 = vld [vmem:[%s1 + $0x468] sm:$0xff]
    %v225 = vld [vmem:[%s1 + $0x470] sm:$0xff]
    %v226 = vld [vmem:[%s1 + $0x478] sm:$0xf]
    %v227 = vld [vmem:[%s1 + $0x47c] sm:$0xff]
    %v228 = vld [vmem:[%s1 + $0x484] sm:$0xff]
    %v229 = vld [vmem:[%s1 + $0x48c] sm:$0xff]
    %v230 = vld [vmem:[%s1 + $0x494] sm:$0xf]
    %v231 = vld [vmem:[%s1 + $0x498] sm:$0xff]
    %v232 = vld [vmem:[%s1 + $0x4a0] sm:$0xff]
    %v233 = vld [vmem:[%s1 + $0x4a8] sm:$0xff]
    %v234 = vld [vmem:[%s1 + $0x4b0] sm:$0xf]
    %v235 = vld [vmem:[%s1 + $0x4b4] sm:$0xff]
    %v236 = vld [vmem:[%s1 + $0x4bc] sm:$0xff]
    %v237 = vld [vmem:[%s1 + $0x4c4] sm:$0xff]
    %v238 = vld [vmem:[%s1 + $0x4cc] sm:$0xf]
    %v239 = vld [vmem:[%s1 + $0x4d0] sm:$0xff]
    %v240 = vld [vmem:[%s1 + $0x4d8] sm:$0xff]
    %v241 = vld [vmem:[%s1 + $0x4e0] sm:$0xff]
    %v242 = vld [vmem:[%s1 + $0x4e8] sm:$0xf]
    %v243 = vld [vmem:[%s1 + $0x4ec] sm:$0xff]
    %v244 = vld [vmem:[%s1 + $0x4f4] sm:$0xff]
    %v245 = vld [vmem:[%s1 + $0x4fc] sm:$0xff]
    %v246 = vld [vmem:[%s1 + $0x504] sm:$0xf]
    %v247 = vld [vmem:[%s1 + $0x508] sm:$0xff]
    %v248 = vld [vmem:[%s1 + $0x510] sm:$0xff]
    %v249 = vld [vmem:[%s1 + $0x518] sm:$0xff]
    %v250 = vld [vmem:[%s1 + $0x520] sm:$0xf]
    %v251 = vld [vmem:[%s1 + $0x524] sm:$0xff]
    %v252 = vld [vmem:[%s1 + $0x52c] sm:$0xff]
    %v253 = vld [vmem:[%s1 + $0x534] sm:$0xff]
    %v254 = vld [vmem:[%s1 + $0x53c] sm:$0xf]
    %v255 = vld [vmem:[%s1 + $0x540] sm:$0xff]
    %v256 = vld [vmem:[%s1 + $0x548] sm:$0xff]
    %v257 = vld [vmem:[%s1 + $0x550] sm:$0xff]
    %v258 = vld [vmem:[%s1 + $0x558] sm:$0xf]
    %v259 = vld [vmem:[%s1 + $0x55c] sm:$0xff]
    %v260 = vld [vmem:[%s1 + $0x564] sm:$0xff]
    %v261 = vld [vmem:[%s1 + $0x56c] sm:$0xff]
    %v262 = vld [vmem:[%s1 + $0x574] sm:$0xf]
    %v263 = vld [vmem:[%s1 + $0x578] sm:$0xff]
    %v264 = vld [vmem:[%s1 + $0x580] sm:$0xff]
    %v265 = vld [vmem:[%s1 + $0x588] sm:$0xff]
    %v266 = vld [vmem:[%s1 + $0x590] sm:$0xf]
    %v267 = vld [vmem:[%s1 + $0x594] sm:$0xff]
    %v268 = vld [vmem:[%s1 + $0x59c] sm:$0xff]
    %v269 = vld [vmem:[%s1 + $0x5a4] sm:$0xff]
    %v270 = vld [vmem:[%s1 + $0x5ac] sm:$0xf]
    %v271 = vld [vmem:[%s1 + $0x5b0] sm:$0xff]
    %v272 = vld [vmem:[%s1 + $0x5b8] sm:$0xff]
    %v273 = vld [vmem:[%s1 + $0x5c0] sm:$0xff]
    %v274 = vld [vmem:[%s1 + $0x5c8] sm:$0xf]
    %v275 = vld [vmem:[%s1 + $0x5cc] sm:$0xff]
    %v276 = vld [vmem:[%s1 + $0x5d4] sm:$0xff]
    %v277 = vld [vmem:[%s1 + $0x5dc] sm:$0xff]
    %v278 = vld [vmem:[%s1 + $0x5e4] sm:$0xf]
    %v279 = vld [vmem:[%s1 + $0x5e8] sm:$0xff]
    %v280 = vld [vmem:[%s1 + $0x5f0] sm:$0xff]
    %v281 = vld [vmem:[%s1 + $0x5f8] sm:$0xff]
    %v282 = vld [vmem:[%s1 + $0x600] sm:$0xf]
    %v283 = vld [vmem:[%s1 + $0x604] sm:$0xff]
    %v284 = vld [vmem:[%s1 + $0x60c] sm:$0xff]
    %v285 = vld [vmem:[%s1 + $0x614] sm:$0xff]
    %v286 = vld [vmem:[%s1 + $0x61c] sm:$0xf]
    %v287 = vld [vmem:[%s1 + $0x620] sm:$0xff]
    %v288 = vld [vmem:[%s1 + $0x628] sm:$0xff]
    %v289 = vld [vmem:[%s1 + $0x630] sm:$0xff]
    %v290 = vld [vmem:[%s1 + $0x638] sm:$0xf]
    %v291 = vld [vmem:[%s1 + $0x63c] sm:$0xff]
    %v292 = vld [vmem:[%s1 + $0x644] sm:$0xff]
    %v293 = vld [vmem:[%s1 + $0x64c] sm:$0xff]
    %v294 = vld [vmem:[%s1 + $0x654] sm:$0xf]
    %v295 = vld [vmem:[%s1 + $0x658] sm:$0xff]
    %v296 = vld [vmem:[%s1 + $0x660] sm:$0xff]
    %v297 = vld [vmem:[%s1 + $0x668] sm:$0xff]
    %v298 = vld [vmem:[%s1 + $0x670] sm:$0xf]
    %v299 = vld [vmem:[%s1 + $0x674] sm:$0xff]
    %v300 = vld [vmem:[%s1 + $0x67c] sm:$0xff]
    %v301 = vld [vmem:[%s1 + $0x684] sm:$0xff]
    %v302 = vld [vmem:[%s1 + $0x68c] sm:$0xf]
    %v303 = vld [vmem:[%s1 + $0x690] sm:$0xff]
    %v304 = vld [vmem:[%s1 + $0x698] sm:$0xff]
    %v305 = vld [vmem:[%s1 + $0x6a0] sm:$0xff]
    %v306 = vld [vmem:[%s1 + $0x6a8] sm:$0xf]
    %v307 = vld [vmem:[%s1 + $0x6ac] sm:$0xff]
    %v308 = vld [vmem:[%s1 + $0x6b4] sm:$0xff]
    %v309 = vld [vmem:[%s1 + $0x6bc] sm:$0xff]
    %v310 = vld [vmem:[%s1 + $0x6c4] sm:$0xf]
    %v311 = vld [vmem:[%s1 + $0x6c8] sm:$0xff]
    %v312 = vld [vmem:[%s1 + $0x6d0] sm:$0xff]
    %v313 = vld [vmem:[%s1 + $0x6d8] sm:$0xff]
    %v314 = vld [vmem:[%s1 + $0x6e0] sm:$0xf]
    %v315 = vld [vmem:[%s1 + $0x6e4] sm:$0xff]
    %v316 = vld [vmem:[%s1 + $0x6ec] sm:$0xff]
    %v317 = vld [vmem:[%s1 + $0x6f4] sm:$0xff]
    %v318 = vld [vmem:[%s1 + $0x6fc] sm:$0xf]
    %v319 = vld [vmem:[%s1 + $0x700] sm:$0xff]
    %v320 = vld [vmem:[%s1 + $0x708] sm:$0xff]
    %v321 = vld [vmem:[%s1 + $0x710] sm:$0xff]
    %v322 = vld [vmem:[%s1 + $0x718] sm:$0xf]
    %v323 = vld [vmem:[%s1 + $0x71c] sm:$0xff]
    %v324 = vld [vmem:[%s1 + $0x724] sm:$0xff]
    %v325 = vld [vmem:[%s1 + $0x72c] sm:$0xff]
    %v326 = vld [vmem:[%s1 + $0x734] sm:$0xf]
    %v327 = vld [vmem:[%s1 + $0x738] sm:$0xff]
    %v328 = vld [vmem:[%s1 + $0x740] sm:$0xff]
    %v329 = vld [vmem:[%s1 + $0x748] sm:$0xff]
    %v330 = vld [vmem:[%s1 + $0x750] sm:$0xf]
    %v331 = vld [vmem:[%s1 + $0x754] sm:$0xff]
    %v332 = vld [vmem:[%s1 + $0x75c] sm:$0xff]
    %v333 = vld [vmem:[%s1 + $0x764] sm:$0xff]
    %v334 = vld [vmem:[%s1 + $0x76c] sm:$0xf]
    %v335 = vld [vmem:[%s1 + $0x770] sm:$0xff]
    %v336 = vld [vmem:[%s1 + $0x778] sm:$0xff]
    %v337 = vld [vmem:[%s1 + $0x780] sm:$0xff]
    %v338 = vld [vmem:[%s1 + $0x788] sm:$0xf]
    %v339 = vld [vmem:[%s1 + $0x78c] sm:$0xff]
    %v340 = vld [vmem:[%s1 + $0x794] sm:$0xff]
    %v341 = vld [vmem:[%s1 + $0x79c] sm:$0xff]
    %v342 = vld [vmem:[%s1 + $0x7a4] sm:$0xf]
    %v343 = vld [vmem:[%s1 + $0x7a8] sm:$0xff]
    %v344 = vld [vmem:[%s1 + $0x7b0] sm:$0xff]
    %v345 = vld [vmem:[%s1 + $0x7b8] sm:$0xff]
    %v346 = vld [vmem:[%s1 + $0x7c0] sm:$0xf]
    %v347 = vld [vmem:[%s1 + $0x7c4] sm:$0xff]
    %v348 = vld [vmem:[%s1 + $0x7cc] sm:$0xff]
    %v349 = vld [vmem:[%s1 + $0x7d4] sm:$0xff]
    %v350 = vld [vmem:[%s1 + $0x7dc] sm:$0xf]
    %v639 = vunpack.c.l.b16 %v63
    %v640 = vunpack.c.h.b16 %v63
    %v641 = vunpack.c.l.b16 %v64
    %v642 = vunpack.c.h.b16 %v64
    %v643 = vunpack.c.l.b16 %v65
    %v644 = vunpack.c.h.b16 %v65
    %v645 = vunpack.c.l.b16 %v66
    %v646 = vunpack.c.l.b16 %v67
    %v647 = vunpack.c.h.b16 %v67
    %v648 = vunpack.c.l.b16 %v68
    %v649 = vunpack.c.h.b16 %v68
    %v650 = vunpack.c.l.b16 %v69
    %v651 = vunpack.c.h.b16 %v69
    %v652 = vunpack.c.l.b16 %v70
    %v653 = vunpack.c.l.b16 %v71
    %v654 = vunpack.c.h.b16 %v71
    %v655 = vunpack.c.l.b16 %v72
    %v656 = vunpack.c.h.b16 %v72
    %v657 = vunpack.c.l.b16 %v73
    %v658 = vunpack.c.h.b16 %v73
    %v659 = vunpack.c.l.b16 %v74
    %v660 = vunpack.c.l.b16 %v75
    %v661 = vunpack.c.h.b16 %v75
    %v662 = vunpack.c.l.b16 %v76
    %v663 = vunpack.c.h.b16 %v76
    %v664 = vunpack.c.l.b16 %v77
    %v665 = vunpack.c.h.b16 %v77
    %v666 = vunpack.c.l.b16 %v78
    %v667 = vunpack.c.l.b16 %v79
    %v668 = vunpack.c.h.b16 %v79
    %v669 = vunpack.c.l.b16 %v80
    %v670 = vunpack.c.h.b16 %v80
    %v671 = vunpack.c.l.b16 %v81
    %v672 = vunpack.c.h.b16 %v81
    %v673 = vunpack.c.l.b16 %v82
    %v674 = vunpack.c.l.b16 %v83
    %v675 = vunpack.c.h.b16 %v83
    %v676 = vunpack.c.l.b16 %v84
    %v677 = vunpack.c.h.b16 %v84
    %v678 = vunpack.c.l.b16 %v85
    %v679 = vunpack.c.h.b16 %v85
    %v680 = vunpack.c.l.b16 %v86
    %v681 = vunpack.c.l.b16 %v87
    %v682 = vunpack.c.h.b16 %v87
    %v683 = vunpack.c.l.b16 %v88
    %v684 = vunpack.c.h.b16 %v88
    %v685 = vunpack.c.l.b16 %v89
    %v686 = vunpack.c.h.b16 %v89
    %v687 = vunpack.c.l.b16 %v90
    %v688 = vunpack.c.l.b16 %v91
    %v689 = vunpack.c.h.b16 %v91
    %v690 = vunpack.c.l.b16 %v92
    %v691 = vunpack.c.h.b16 %v92
    %v692 = vunpack.c.l.b16 %v93
    %v693 = vunpack.c.h.b16 %v93
    %v694 = vunpack.c.l.b16 %v94
    %v695 = vunpack.c.l.b16 %v95
    %v696 = vunpack.c.h.b16 %v95
    %v697 = vunpack.c.l.b16 %v96
    %v698 = vunpack.c.h.b16 %v96
    %v699 = vunpack.c.l.b16 %v97
    %v700 = vunpack.c.h.b16 %v97
    %v701 = vunpack.c.l.b16 %v98
    %v702 = vunpack.c.l.b16 %v99
    %v703 = vunpack.c.h.b16 %v99
    %v704 = vunpack.c.l.b16 %v100
    %v705 = vunpack.c.h.b16 %v100
    %v706 = vunpack.c.l.b16 %v101
    %v707 = vunpack.c.h.b16 %v101
    %v708 = vunpack.c.l.b16 %v102
    %v709 = vunpack.c.l.b16 %v103
    %v710 = vunpack.c.h.b16 %v103
    %v711 = vunpack.c.l.b16 %v104
    %v712 = vunpack.c.h.b16 %v104
    %v713 = vunpack.c.l.b16 %v105
    %v714 = vunpack.c.h.b16 %v105
    %v715 = vunpack.c.l.b16 %v106
    %v716 = vunpack.c.l.b16 %v107
    %v717 = vunpack.c.h.b16 %v107
    %v718 = vunpack.c.l.b16 %v108
    %v719 = vunpack.c.h.b16 %v108
    %v720 = vunpack.c.l.b16 %v109
    %v721 = vunpack.c.h.b16 %v109
    %v722 = vunpack.c.l.b16 %v110
    %v723 = vunpack.c.l.b16 %v111
    %v724 = vunpack.c.h.b16 %v111
    %v725 = vunpack.c.l.b16 %v112
    %v726 = vunpack.c.h.b16 %v112
    %v727 = vunpack.c.l.b16 %v113
    %v728 = vunpack.c.h.b16 %v113
    %v729 = vunpack.c.l.b16 %v114
    %v730 = vunpack.c.l.b16 %v115
    %v731 = vunpack.c.h.b16 %v115
    %v732 = vunpack.c.l.b16 %v116
    %v733 = vunpack.c.h.b16 %v116
    %v734 = vunpack.c.l.b16 %v117
    %v735 = vunpack.c.h.b16 %v117
    %v736 = vunpack.c.l.b16 %v118
    %v737 = vunpack.c.l.b16 %v119
    %v738 = vunpack.c.h.b16 %v119
    %v739 = vunpack.c.l.b16 %v120
    %v740 = vunpack.c.h.b16 %v120
    %v741 = vunpack.c.l.b16 %v121
    %v742 = vunpack.c.h.b16 %v121
    %v743 = vunpack.c.l.b16 %v122
    %v744 = vunpack.c.l.b16 %v123
    %v745 = vunpack.c.h.b16 %v123
    %v746 = vunpack.c.l.b16 %v124
    %v747 = vunpack.c.h.b16 %v124
    %v748 = vunpack.c.l.b16 %v125
    %v749 = vunpack.c.h.b16 %v125
    %v750 = vunpack.c.l.b16 %v126
    %v751 = vunpack.c.l.b16 %v127
    %v752 = vunpack.c.h.b16 %v127
    %v753 = vunpack.c.l.b16 %v128
    %v754 = vunpack.c.h.b16 %v128
    %v755 = vunpack.c.l.b16 %v129
    %v756 = vunpack.c.h.b16 %v129
    %v757 = vunpack.c.l.b16 %v130
    %v758 = vunpack.c.l.b16 %v131
    %v759 = vunpack.c.h.b16 %v131
    %v760 = vunpack.c.l.b16 %v132
    %v761 = vunpack.c.h.b16 %v132
    %v762 = vunpack.c.l.b16 %v133
    %v763 = vunpack.c.h.b16 %v133
    %v764 = vunpack.c.l.b16 %v134
    %v765 = vunpack.c.l.b16 %v135
    %v766 = vunpack.c.h.b16 %v135
    %v767 = vunpack.c.l.b16 %v136
    %v768 = vunpack.c.h.b16 %v136
    %v769 = vunpack.c.l.b16 %v137
    %v770 = vunpack.c.h.b16 %v137
    %v771 = vunpack.c.l.b16 %v138
    %v772 = vunpack.c.l.b16 %v139
    %v773 = vunpack.c.h.b16 %v139
    %v774 = vunpack.c.l.b16 %v140
    %v775 = vunpack.c.h.b16 %v140
    %v776 = vunpack.c.l.b16 %v141
    %v777 = vunpack.c.h.b16 %v141
    %v778 = vunpack.c.l.b16 %v142
    %v779 = vunpack.c.l.b16 %v143
    %v780 = vunpack.c.h.b16 %v143
    %v781 = vunpack.c.l.b16 %v144
    %v782 = vunpack.c.h.b16 %v144
    %v783 = vunpack.c.l.b16 %v145
    %v784 = vunpack.c.h.b16 %v145
    %v785 = vunpack.c.l.b16 %v146
    %v786 = vunpack.c.l.b16 %v147
    %v787 = vunpack.c.h.b16 %v147
    %v788 = vunpack.c.l.b16 %v148
    %v789 = vunpack.c.h.b16 %v148
    %v790 = vunpack.c.l.b16 %v149
    %v791 = vunpack.c.h.b16 %v149
    %v792 = vunpack.c.l.b16 %v150
    %v793 = vunpack.c.l.b16 %v151
    %v794 = vunpack.c.h.b16 %v151
    %v795 = vunpack.c.l.b16 %v152
    %v796 = vunpack.c.h.b16 %v152
    %v797 = vunpack.c.l.b16 %v153
    %v798 = vunpack.c.h.b16 %v153
    %v799 = vunpack.c.l.b16 %v154
    %v800 = vunpack.c.l.b16 %v155
    %v801 = vunpack.c.h.b16 %v155
    %v802 = vunpack.c.l.b16 %v156
    %v803 = vunpack.c.h.b16 %v156
    %v804 = vunpack.c.l.b16 %v157
    %v805 = vunpack.c.h.b16 %v157
    %v806 = vunpack.c.l.b16 %v158
    %v807 = vunpack.c.l.b16 %v159
    %v808 = vunpack.c.h.b16 %v159
    %v809 = vunpack.c.l.b16 %v160
    %v810 = vunpack.c.h.b16 %v160
    %v811 = vunpack.c.l.b16 %v161
    %v812 = vunpack.c.h.b16 %v161
    %v813 = vunpack.c.l.b16 %v162
    %v814 = vunpack.c.l.b16 %v163
    %v815 = vunpack.c.h.b16 %v163
    %v816 = vunpack.c.l.b16 %v164
    %v817 = vunpack.c.h.b16 %v164
    %v818 = vunpack.c.l.b16 %v165
    %v819 = vunpack.c.h.b16 %v165
    %v820 = vunpack.c.l.b16 %v166
    %v821 = vunpack.c.l.b16 %v167
    %v822 = vunpack.c.h.b16 %v167
    %v823 = vunpack.c.l.b16 %v168
    %v824 = vunpack.c.h.b16 %v168
    %v825 = vunpack.c.l.b16 %v169
    %v826 = vunpack.c.h.b16 %v169
    %v827 = vunpack.c.l.b16 %v170
    %v828 = vunpack.c.l.b16 %v171
    %v829 = vunpack.c.h.b16 %v171
    %v830 = vunpack.c.l.b16 %v172
    %v831 = vunpack.c.h.b16 %v172
    %v832 = vunpack.c.l.b16 %v173
    %v833 = vunpack.c.h.b16 %v173
    %v834 = vunpack.c.l.b16 %v174
    %v835 = vunpack.c.l.b16 %v175
    %v836 = vunpack.c.h.b16 %v175
    %v837 = vunpack.c.l.b16 %v176
    %v838 = vunpack.c.h.b16 %v176
    %v839 = vunpack.c.l.b16 %v177
    %v840 = vunpack.c.h.b16 %v177
    %v841 = vunpack.c.l.b16 %v178
    %v842 = vunpack.c.l.b16 %v179
    %v843 = vunpack.c.h.b16 %v179
    %v844 = vunpack.c.l.b16 %v180
    %v845 = vunpack.c.h.b16 %v180
    %v846 = vunpack.c.l.b16 %v181
    %v847 = vunpack.c.h.b16 %v181
    %v848 = vunpack.c.l.b16 %v182
    %v849 = vunpack.c.l.b16 %v183
    %v850 = vunpack.c.h.b16 %v183
    %v851 = vunpack.c.l.b16 %v184
    %v852 = vunpack.c.h.b16 %v184
    %v853 = vunpack.c.l.b16 %v185
    %v854 = vunpack.c.h.b16 %v185
    %v855 = vunpack.c.l.b16 %v186
    %v856 = vunpack.c.l.b16 %v187
    %v857 = vunpack.c.h.b16 %v187
    %v858 = vunpack.c.l.b16 %v188
    %v859 = vunpack.c.h.b16 %v188
    %v860 = vunpack.c.l.b16 %v189
    %v861 = vunpack.c.h.b16 %v189
    %v862 = vunpack.c.l.b16 %v190
    %v863 = vunpack.c.l.b16 %v191
    %v864 = vunpack.c.h.b16 %v191
    %v865 = vunpack.c.l.b16 %v192
    %v866 = vunpack.c.h.b16 %v192
    %v867 = vunpack.c.l.b16 %v193
    %v868 = vunpack.c.h.b16 %v193
    %v869 = vunpack.c.l.b16 %v194
    %v870 = vunpack.c.l.b16 %v195
    %v871 = vunpack.c.h.b16 %v195
    %v872 = vunpack.c.l.b16 %v196
    %v873 = vunpack.c.h.b16 %v196
    %v874 = vunpack.c.l.b16 %v197
    %v875 = vunpack.c.h.b16 %v197
    %v876 = vunpack.c.l.b16 %v198
    %v877 = vunpack.c.l.b16 %v199
    %v878 = vunpack.c.h.b16 %v199
    %v879 = vunpack.c.l.b16 %v200
    %v880 = vunpack.c.h.b16 %v200
    %v881 = vunpack.c.l.b16 %v201
    %v882 = vunpack.c.h.b16 %v201
    %v883 = vunpack.c.l.b16 %v202
    %v884 = vunpack.c.l.b16 %v203
    %v885 = vunpack.c.h.b16 %v203
    %v886 = vunpack.c.l.b16 %v204
    %v887 = vunpack.c.h.b16 %v204
    %v888 = vunpack.c.l.b16 %v205
    %v889 = vunpack.c.h.b16 %v205
    %v890 = vunpack.c.l.b16 %v206
    %v891 = vunpack.c.l.b16 %v207
    %v892 = vunpack.c.h.b16 %v207
    %v893 = vunpack.c.l.b16 %v208
    %v894 = vunpack.c.h.b16 %v208
    %v895 = vunpack.c.l.b16 %v209
    %v896 = vunpack.c.h.b16 %v209
    %v897 = vunpack.c.l.b16 %v210
    %v898 = vunpack.c.l.b16 %v211
    %v899 = vunpack.c.h.b16 %v211
    %v900 = vunpack.c.l.b16 %v212
    %v901 = vunpack.c.h.b16 %v212
    %v902 = vunpack.c.l.b16 %v213
    %v903 = vunpack.c.h.b16 %v213
    %v904 = vunpack.c.l.b16 %v214
    %v905 = vunpack.c.l.b16 %v215
    %v906 = vunpack.c.h.b16 %v215
    %v907 = vunpack.c.l.b16 %v216
    %v908 = vunpack.c.h.b16 %v216
    %v909 = vunpack.c.l.b16 %v217
    %v910 = vunpack.c.h.b16 %v217
    %v911 = vunpack.c.l.b16 %v218
    %v912 = vunpack.c.l.b16 %v219
    %v913 = vunpack.c.h.b16 %v219
    %v914 = vunpack.c.l.b16 %v220
    %v915 = vunpack.c.h.b16 %v220
    %v916 = vunpack.c.l.b16 %v221
    %v917 = vunpack.c.h.b16 %v221
    %v918 = vunpack.c.l.b16 %v222
    %v919 = vunpack.c.l.b16 %v223
    %v920 = vunpack.c.h.b16 %v223
    %v921 = vunpack.c.l.b16 %v224
    %v922 = vunpack.c.h.b16 %v224
    %v923 = vunpack.c.l.b16 %v225
    %v924 = vunpack.c.h.b16 %v225
    %v925 = vunpack.c.l.b16 %v226
    %v926 = vunpack.c.l.b16 %v227
    %v927 = vunpack.c.h.b16 %v227
    %v928 = vunpack.c.l.b16 %v228
    %v929 = vunpack.c.h.b16 %v228
    %v930 = vunpack.c.l.b16 %v229
    %v931 = vunpack.c.h.b16 %v229
    %v932 = vunpack.c.l.b16 %v230
    %v933 = vunpack.c.l.b16 %v231
    %v934 = vunpack.c.h.b16 %v231
    %v935 = vunpack.c.l.b16 %v232
    %v936 = vunpack.c.h.b16 %v232
    %v937 = vunpack.c.l.b16 %v233
    %v938 = vunpack.c.h.b16 %v233
    %v939 = vunpack.c.l.b16 %v234
    %v940 = vunpack.c.l.b16 %v235
    %v941 = vunpack.c.h.b16 %v235
    %v942 = vunpack.c.l.b16 %v236
    %v943 = vunpack.c.h.b16 %v236
    %v944 = vunpack.c.l.b16 %v237
    %v945 = vunpack.c.h.b16 %v237
    %v946 = vunpack.c.l.b16 %v238
    %v947 = vunpack.c.l.b16 %v239
    %v948 = vunpack.c.h.b16 %v239
    %v949 = vunpack.c.l.b16 %v240
    %v950 = vunpack.c.h.b16 %v240
    %v951 = vunpack.c.l.b16 %v241
    %v952 = vunpack.c.h.b16 %v241
    %v953 = vunpack.c.l.b16 %v242
    %v954 = vunpack.c.l.b16 %v243
    %v955 = vunpack.c.h.b16 %v243
    %v956 = vunpack.c.l.b16 %v244
    %v957 = vunpack.c.h.b16 %v244
    %v958 = vunpack.c.l.b16 %v245
    %v959 = vunpack.c.h.b16 %v245
    %v960 = vunpack.c.l.b16 %v246
    %v961 = vunpack.c.l.b16 %v247
    %v962 = vunpack.c.h.b16 %v247
    %v963 = vunpack.c.l.b16 %v248
    %v964 = vunpack.c.h.b16 %v248
    %v965 = vunpack.c.l.b16 %v249
    %v966 = vunpack.c.h.b16 %v249
    %v967 = vunpack.c.l.b16 %v250
    %v968 = vunpack.c.l.b16 %v251
    %v969 = vunpack.c.h.b16 %v251
    %v970 = vunpack.c.l.b16 %v252
    %v971 = vunpack.c.h.b16 %v252
    %v972 = vunpack.c.l.b16 %v253
    %v973 = vunpack.c.h.b16 %v253
    %v974 = vunpack.c.l.b16 %v254
    %v975 = vunpack.c.l.b16 %v255
    %v976 = vunpack.c.h.b16 %v255
    %v977 = vunpack.c.l.b16 %v256
    %v978 = vunpack.c.h.b16 %v256
    %v979 = vunpack.c.l.b16 %v257
    %v980 = vunpack.c.h.b16 %v257
    %v981 = vunpack.c.l.b16 %v258
    %v982 = vunpack.c.l.b16 %v259
    %v983 = vunpack.c.h.b16 %v259
    %v984 = vunpack.c.l.b16 %v260
    %v985 = vunpack.c.h.b16 %v260
    %v986 = vunpack.c.l.b16 %v261
    %v987 = vunpack.c.h.b16 %v261
    %v988 = vunpack.c.l.b16 %v262
    %v989 = vunpack.c.l.b16 %v263
    %v990 = vunpack.c.h.b16 %v263
    %v991 = vunpack.c.l.b16 %v264
    %v992 = vunpack.c.h.b16 %v264
    %v993 = vunpack.c.l.b16 %v265
    %v994 = vunpack.c.h.b16 %v265
    %v995 = vunpack.c.l.b16 %v266
    %v996 = vunpack.c.l.b16 %v267
    %v997 = vunpack.c.h.b16 %v267
    %v998 = vunpack.c.l.b16 %v268
    %v999 = vunpack.c.h.b16 %v268
    %v1000 = vunpack.c.l.b16 %v269
    %v1001 = vunpack.c.h.b16 %v269
    %v1002 = vunpack.c.l.b16 %v270
    %v1003 = vunpack.c.l.b16 %v271
    %v1004 = vunpack.c.h.b16 %v271
    %v1005 = vunpack.c.l.b16 %v272
    %v1006 = vunpack.c.h.b16 %v272
    %v1007 = vunpack.c.l.b16 %v273
    %v1008 = vunpack.c.h.b16 %v273
    %v1009 = vunpack.c.l.b16 %v274
    %v1010 = vunpack.c.l.b16 %v275
    %v1011 = vunpack.c.h.b16 %v275
    %v1012 = vunpack.c.l.b16 %v276
    %v1013 = vunpack.c.h.b16 %v276
    %v1014 = vunpack.c.l.b16 %v277
    %v1015 = vunpack.c.h.b16 %v277
    %v1016 = vunpack.c.l.b16 %v278
    %v1017 = vunpack.c.l.b16 %v279
    %v1018 = vunpack.c.h.b16 %v279
    %v1019 = vunpack.c.l.b16 %v280
    %v1020 = vunpack.c.h.b16 %v280
    %v1021 = vunpack.c.l.b16 %v281
    %v1022 = vunpack.c.h.b16 %v281
    %v1023 = vunpack.c.l.b16 %v282
    %v1024 = vunpack.c.l.b16 %v283
    %v1025 = vunpack.c.h.b16 %v283
    %v1026 = vunpack.c.l.b16 %v284
    %v1027 = vunpack.c.h.b16 %v284
    %v1028 = vunpack.c.l.b16 %v285
    %v1029 = vunpack.c.h.b16 %v285
    %v1030 = vunpack.c.l.b16 %v286
    %v1031 = vunpack.c.l.b16 %v287
    %v1032 = vunpack.c.h.b16 %v287
    %v1033 = vunpack.c.l.b16 %v288
    %v1034 = vunpack.c.h.b16 %v288
    %v1035 = vunpack.c.l.b16 %v289
    %v1036 = vunpack.c.h.b16 %v289
    %v1037 = vunpack.c.l.b16 %v290
    %v1038 = vunpack.c.l.b16 %v291
    %v1039 = vunpack.c.h.b16 %v291
    %v1040 = vunpack.c.l.b16 %v292
    %v1041 = vunpack.c.h.b16 %v292
    %v1042 = vunpack.c.l.b16 %v293
    %v1043 = vunpack.c.h.b16 %v293
    %v1044 = vunpack.c.l.b16 %v294
    %v1045 = vunpack.c.l.b16 %v295
    %v1046 = vunpack.c.h.b16 %v295
    %v1047 = vunpack.c.l.b16 %v296
    %v1048 = vunpack.c.h.b16 %v296
    %v1049 = vunpack.c.l.b16 %v297
    %v1050 = vunpack.c.h.b16 %v297
    %v1051 = vunpack.c.l.b16 %v298
    %v1052 = vunpack.c.l.b16 %v299
    %v1053 = vunpack.c.h.b16 %v299
    %v1054 = vunpack.c.l.b16 %v300
    %v1055 = vunpack.c.h.b16 %v300
    %v1056 = vunpack.c.l.b16 %v301
    %v1057 = vunpack.c.h.b16 %v301
    %v1058 = vunpack.c.l.b16 %v302
    %v1059 = vunpack.c.l.b16 %v303
    %v1060 = vunpack.c.h.b16 %v303
    %v1061 = vunpack.c.l.b16 %v304
    %v1062 = vunpack.c.h.b16 %v304
    %v1063 = vunpack.c.l.b16 %v305
    %v1064 = vunpack.c.h.b16 %v305
    %v1065 = vunpack.c.l.b16 %v306
    %v1066 = vunpack.c.l.b16 %v307
    %v1067 = vunpack.c.h.b16 %v307
    %v1068 = vunpack.c.l.b16 %v308
    %v1069 = vunpack.c.h.b16 %v308
    %v1070 = vunpack.c.l.b16 %v309
    %v1071 = vunpack.c.h.b16 %v309
    %v1072 = vunpack.c.l.b16 %v310
    %v1073 = vunpack.c.l.b16 %v311
    %v1074 = vunpack.c.h.b16 %v311
    %v1075 = vunpack.c.l.b16 %v312
    %v1076 = vunpack.c.h.b16 %v312
    %v1077 = vunpack.c.l.b16 %v313
    %v1078 = vunpack.c.h.b16 %v313
    %v1079 = vunpack.c.l.b16 %v314
    %v1080 = vunpack.c.l.b16 %v315
    %v1081 = vunpack.c.h.b16 %v315
    %v1082 = vunpack.c.l.b16 %v316
    %v1083 = vunpack.c.h.b16 %v316
    %v1084 = vunpack.c.l.b16 %v317
    %v1085 = vunpack.c.h.b16 %v317
    %v1086 = vunpack.c.l.b16 %v318
    %v1087 = vunpack.c.l.b16 %v319
    %v1088 = vunpack.c.h.b16 %v319
    %v1089 = vunpack.c.l.b16 %v320
    %v1090 = vunpack.c.h.b16 %v320
    %v1091 = vunpack.c.l.b16 %v321
    %v1092 = vunpack.c.h.b16 %v321
    %v1093 = vunpack.c.l.b16 %v322
    %v1094 = vunpack.c.l.b16 %v323
    %v1095 = vunpack.c.h.b16 %v323
    %v1096 = vunpack.c.l.b16 %v324
    %v1097 = vunpack.c.h.b16 %v324
    %v1098 = vunpack.c.l.b16 %v325
    %v1099 = vunpack.c.h.b16 %v325
    %v1100 = vunpack.c.l.b16 %v326
    %v1101 = vunpack.c.l.b16 %v327
    %v1102 = vunpack.c.h.b16 %v327
    %v1103 = vunpack.c.l.b16 %v328
    %v1104 = vunpack.c.h.b16 %v328
    %v1105 = vunpack.c.l.b16 %v329
    %v1106 = vunpack.c.h.b16 %v329
    %v1107 = vunpack.c.l.b16 %v330
    %v1108 = vunpack.c.l.b16 %v331
    %v1109 = vunpack.c.h.b16 %v331
    %v1110 = vunpack.c.l.b16 %v332
    %v1111 = vunpack.c.h.b16 %v332
    %v1112 = vunpack.c.l.b16 %v333
    %v1113 = vunpack.c.h.b16 %v333
    %v1114 = vunpack.c.l.b16 %v334
    %v1115 = vunpack.c.l.b16 %v335
    %v1116 = vunpack.c.h.b16 %v335
    %v1117 = vunpack.c.l.b16 %v336
    %v1118 = vunpack.c.h.b16 %v336
    %v1119 = vunpack.c.l.b16 %v337
    %v1120 = vunpack.c.h.b16 %v337
    %v1121 = vunpack.c.l.b16 %v338
    %v1122 = vunpack.c.l.b16 %v339
    %v1123 = vunpack.c.h.b16 %v339
    %v1124 = vunpack.c.l.b16 %v340
    %v1125 = vunpack.c.h.b16 %v340
    %v1126 = vunpack.c.l.b16 %v341
    %v1127 = vunpack.c.h.b16 %v341
    %v1128 = vunpack.c.l.b16 %v342
    %v1129 = vunpack.c.l.b16 %v343
    %v1130 = vunpack.c.h.b16 %v343
    %v1131 = vunpack.c.l.b16 %v344
    %v1132 = vunpack.c.h.b16 %v344
    %v1133 = vunpack.c.l.b16 %v345
    %v1134 = vunpack.c.h.b16 %v345
    %v1135 = vunpack.c.l.b16 %v346
    %v1136 = vunpack.c.l.b16 %v347
    %v1137 = vunpack.c.h.b16 %v347
    %v1138 = vunpack.c.l.b16 %v348
    %v1139 = vunpack.c.h.b16 %v348
    %v1140 = vunpack.c.l.b16 %v349
    %v1141 = vunpack.c.h.b16 %v349
    %v1142 = vunpack.c.l.b16 %v350
    %v1143 = vpack.c.b16 %v646, %v639
    %v1144 = vpack.c.b16 %v647, %v640
    %v1145 = vpack.c.b16 %v648, %v641
    %v1146 = vpack.c.b16 %v649, %v642
    %v1147 = vpack.c.b16 %v650, %v643
    %v1148 = vpack.c.b16 %v651, %v644
    %v1149 = vpack.c.b16 %v652, %v645
    %v1150 = vpack.c.b16 %v660, %v653
    %v1151 = vpack.c.b16 %v661, %v654
    %v1152 = vpack.c.b16 %v662, %v655
    %v1153 = vpack.c.b16 %v663, %v656
    %v1154 = vpack.c.b16 %v664, %v657
    %v1155 = vpack.c.b16 %v665, %v658
    %v1156 = vpack.c.b16 %v666, %v659
    %v1157 = vpack.c.b16 %v674, %v667
    %v1158 = vpack.c.b16 %v675, %v668
    %v1159 = vpack.c.b16 %v676, %v669
    %v1160 = vpack.c.b16 %v677, %v670
    %v1161 = vpack.c.b16 %v678, %v671
    %v1162 = vpack.c.b16 %v679, %v672
    %v1163 = vpack.c.b16 %v680, %v673
    %v1164 = vpack.c.b16 %v688, %v681
    %v1165 = vpack.c.b16 %v689, %v682
    %v1166 = vpack.c.b16 %v690, %v683
    %v1167 = vpack.c.b16 %v691, %v684
    %v1168 = vpack.c.b16 %v692, %v685
    %v1169 = vpack.c.b16 %v693, %v686
    %v1170 = vpack.c.b16 %v694, %v687
    %v1171 = vpack.c.b16 %v702, %v695
    %v1172 = vpack.c.b16 %v703, %v696
    %v1173 = vpack.c.b16 %v704, %v697
    %v1174 = vpack.c.b16 %v705, %v698
    %v1175 = vpack.c.b16 %v706, %v699
    %v1176 = vpack.c.b16 %v707, %v700
    %v1177 = vpack.c.b16 %v708, %v701
    %v1178 = vpack.c.b16 %v716, %v709
    %v1179 = vpack.c.b16 %v717, %v710
    %v1180 = vpack.c.b16 %v718, %v711
    %v1181 = vpack.c.b16 %v719, %v712
    %v1182 = vpack.c.b16 %v720, %v713
    %v1183 = vpack.c.b16 %v721, %v714
    %v1184 = vpack.c.b16 %v722, %v715
    %v1185 = vpack.c.b16 %v730, %v723
    %v1186 = vpack.c.b16 %v731, %v724
    %v1187 = vpack.c.b16 %v732, %v725
    %v1188 = vpack.c.b16 %v733, %v726
    %v1189 = vpack.c.b16 %v734, %v727
    %v1190 = vpack.c.b16 %v735, %v728
    %v1191 = vpack.c.b16 %v736, %v729
    %v1192 = vpack.c.b16 %v744, %v737
    %v1193 = vpack.c.b16 %v745, %v738
    %v1194 = vpack.c.b16 %v746, %v739
    %v1195 = vpack.c.b16 %v747, %v740
    %v1196 = vpack.c.b16 %v748, %v741
    %v1197 = vpack.c.b16 %v749, %v742
    %v1198 = vpack.c.b16 %v750, %v743
    %v1199 = vpack.c.b16 %v758, %v751
    %v1200 = vpack.c.b16 %v759, %v752
    %v1201 = vpack.c.b16 %v760, %v753
    %v1202 = vpack.c.b16 %v761, %v754
    %v1203 = vpack.c.b16 %v762, %v755
    %v1204 = vpack.c.b16 %v763, %v756
    %v1205 = vpack.c.b16 %v764, %v757
    %v1206 = vpack.c.b16 %v772, %v765
    %v1207 = vpack.c.b16 %v773, %v766
    %v1208 = vpack.c.b16 %v774, %v767
    %v1209 = vpack.c.b16 %v775, %v768
    %v1210 = vpack.c.b16 %v776, %v769
    %v1211 = vpack.c.b16 %v777, %v770
    %v1212 = vpack.c.b16 %v778, %v771
    %v1213 = vpack.c.b16 %v786, %v779
    %v1214 = vpack.c.b16 %v787, %v780
    %v1215 = vpack.c.b16 %v788, %v781
    %v1216 = vpack.c.b16 %v789, %v782
    %v1217 = vpack.c.b16 %v790, %v783
    %v1218 = vpack.c.b16 %v791, %v784
    %v1219 = vpack.c.b16 %v792, %v785
    %v1220 = vpack.c.b16 %v800, %v793
    %v1221 = vpack.c.b16 %v801, %v794
    %v1222 = vpack.c.b16 %v802, %v795
    %v1223 = vpack.c.b16 %v803, %v796
    %v1224 = vpack.c.b16 %v804, %v797
    %v1225 = vpack.c.b16 %v805, %v798
    %v1226 = vpack.c.b16 %v806, %v799
    %v1227 = vpack.c.b16 %v814, %v807
    %v1228 = vpack.c.b16 %v815, %v808
    %v1229 = vpack.c.b16 %v816, %v809
    %v1230 = vpack.c.b16 %v817, %v810
    %v1231 = vpack.c.b16 %v818, %v811
    %v1232 = vpack.c.b16 %v819, %v812
    %v1233 = vpack.c.b16 %v820, %v813
    %v1234 = vpack.c.b16 %v828, %v821
    %v1235 = vpack.c.b16 %v829, %v822
    %v1236 = vpack.c.b16 %v830, %v823
    %v1237 = vpack.c.b16 %v831, %v824
    %v1238 = vpack.c.b16 %v832, %v825
    %v1239 = vpack.c.b16 %v833, %v826
    %v1240 = vpack.c.b16 %v834, %v827
    %v1241 = vpack.c.b16 %v842, %v835
    %v1242 = vpack.c.b16 %v843, %v836
    %v1243 = vpack.c.b16 %v844, %v837
    %v1244 = vpack.c.b16 %v845, %v838
    %v1245 = vpack.c.b16 %v846, %v839
    %v1246 = vpack.c.b16 %v847, %v840
    %v1247 = vpack.c.b16 %v848, %v841
    %v1248 = vpack.c.b16 %v856, %v849
    %v1249 = vpack.c.b16 %v857, %v850
    %v1250 = vpack.c.b16 %v858, %v851
    %v1251 = vpack.c.b16 %v859, %v852
    %v1252 = vpack.c.b16 %v860, %v853
    %v1253 = vpack.c.b16 %v861, %v854
    %v1254 = vpack.c.b16 %v862, %v855
    %v1255 = vpack.c.b16 %v870, %v863
    %v1256 = vpack.c.b16 %v871, %v864
    %v1257 = vpack.c.b16 %v872, %v865
    %v1258 = vpack.c.b16 %v873, %v866
    %v1259 = vpack.c.b16 %v874, %v867
    %v1260 = vpack.c.b16 %v875, %v868
    %v1261 = vpack.c.b16 %v876, %v869
    %v1262 = vpack.c.b16 %v884, %v877
    %v1263 = vpack.c.b16 %v885, %v878
    %v1264 = vpack.c.b16 %v886, %v879
    %v1265 = vpack.c.b16 %v887, %v880
    %v1266 = vpack.c.b16 %v888, %v881
    %v1267 = vpack.c.b16 %v889, %v882
    %v1268 = vpack.c.b16 %v890, %v883
    %v1269 = vpack.c.b16 %v898, %v891
    %v1270 = vpack.c.b16 %v899, %v892
    %v1271 = vpack.c.b16 %v900, %v893
    %v1272 = vpack.c.b16 %v901, %v894
    %v1273 = vpack.c.b16 %v902, %v895
    %v1274 = vpack.c.b16 %v903, %v896
    %v1275 = vpack.c.b16 %v904, %v897
    %v1276 = vpack.c.b16 %v912, %v905
    %v1277 = vpack.c.b16 %v913, %v906
    %v1278 = vpack.c.b16 %v914, %v907
    %v1279 = vpack.c.b16 %v915, %v908
    %v1280 = vpack.c.b16 %v916, %v909
    %v1281 = vpack.c.b16 %v917, %v910
    %v1282 = vpack.c.b16 %v918, %v911
    %v1283 = vpack.c.b16 %v926, %v919
    %v1284 = vpack.c.b16 %v927, %v920
    %v1285 = vpack.c.b16 %v928, %v921
    %v1286 = vpack.c.b16 %v929, %v922
    %v1287 = vpack.c.b16 %v930, %v923
    %v1288 = vpack.c.b16 %v931, %v924
    %v1289 = vpack.c.b16 %v932, %v925
    %v1290 = vpack.c.b16 %v940, %v933
    %v1291 = vpack.c.b16 %v941, %v934
    %v1292 = vpack.c.b16 %v942, %v935
    %v1293 = vpack.c.b16 %v943, %v936
    %v1294 = vpack.c.b16 %v944, %v937
    %v1295 = vpack.c.b16 %v945, %v938
    %v1296 = vpack.c.b16 %v946, %v939
    %v1297 = vpack.c.b16 %v954, %v947
    %v1298 = vpack.c.b16 %v955, %v948
    %v1299 = vpack.c.b16 %v956, %v949
    %v1300 = vpack.c.b16 %v957, %v950
    %v1301 = vpack.c.b16 %v958, %v951
    %v1302 = vpack.c.b16 %v959, %v952
    %v1303 = vpack.c.b16 %v960, %v953
    %v1304 = vpack.c.b16 %v968, %v961
    %v1305 = vpack.c.b16 %v969, %v962
    %v1306 = vpack.c.b16 %v970, %v963
    %v1307 = vpack.c.b16 %v971, %v964
    %v1308 = vpack.c.b16 %v972, %v965
    %v1309 = vpack.c.b16 %v973, %v966
    %v1310 = vpack.c.b16 %v974, %v967
    %v1311 = vpack.c.b16 %v982, %v975
    %v1312 = vpack.c.b16 %v983, %v976
    %v1313 = vpack.c.b16 %v984, %v977
    %v1314 = vpack.c.b16 %v985, %v978
    %v1315 = vpack.c.b16 %v986, %v979
    %v1316 = vpack.c.b16 %v987, %v980
    %v1317 = vpack.c.b16 %v988, %v981
    %v1318 = vpack.c.b16 %v996, %v989
    %v1319 = vpack.c.b16 %v997, %v990
    %v1320 = vpack.c.b16 %v998, %v991
    %v1321 = vpack.c.b16 %v999, %v992
    %v1322 = vpack.c.b16 %v1000, %v993
    %v1323 = vpack.c.b16 %v1001, %v994
    %v1324 = vpack.c.b16 %v1002, %v995
    %v1325 = vpack.c.b16 %v1010, %v1003
    %v1326 = vpack.c.b16 %v1011, %v1004
    %v1327 = vpack.c.b16 %v1012, %v1005
    %v1328 = vpack.c.b16 %v1013, %v1006
    %v1329 = vpack.c.b16 %v1014, %v1007
    %v1330 = vpack.c.b16 %v1015, %v1008
    %v1331 = vpack.c.b16 %v1016, %v1009
    %v1332 = vpack.c.b16 %v1024, %v1017
    %v1333 = vpack.c.b16 %v1025, %v1018
    %v1334 = vpack.c.b16 %v1026, %v1019
    %v1335 = vpack.c.b16 %v1027, %v1020
    %v1336 = vpack.c.b16 %v1028, %v1021
    %v1337 = vpack.c.b16 %v1029, %v1022
    %v1338 = vpack.c.b16 %v1030, %v1023
    %v1339 = vpack.c.b16 %v1038, %v1031
    %v1340 = vpack.c.b16 %v1039, %v1032
    %v1341 = vpack.c.b16 %v1040, %v1033
    %v1342 = vpack.c.b16 %v1041, %v1034
    %v1343 = vpack.c.b16 %v1042, %v1035
    %v1344 = vpack.c.b16 %v1043, %v1036
    %v1345 = vpack.c.b16 %v1044, %v1037
    %v1346 = vpack.c.b16 %v1052, %v1045
    %v1347 = vpack.c.b16 %v1053, %v1046
    %v1348 = vpack.c.b16 %v1054, %v1047
    %v1349 = vpack.c.b16 %v1055, %v1048
    %v1350 = vpack.c.b16 %v1056, %v1049
    %v1351 = vpack.c.b16 %v1057, %v1050
    %v1352 = vpack.c.b16 %v1058, %v1051
    %v1353 = vpack.c.b16 %v1066, %v1059
    %v1354 = vpack.c.b16 %v1067, %v1060
    %v1355 = vpack.c.b16 %v1068, %v1061
    %v1356 = vpack.c.b16 %v1069, %v1062
    %v1357 = vpack.c.b16 %v1070, %v1063
    %v1358 = vpack.c.b16 %v1071, %v1064
    %v1359 = vpack.c.b16 %v1072, %v1065
    %v1360 = vpack.c.b16 %v1080, %v1073
    %v1361 = vpack.c.b16 %v1081, %v1074
    %v1362 = vpack.c.b16 %v1082, %v1075
    %v1363 = vpack.c.b16 %v1083, %v1076
    %v1364 = vpack.c.b16 %v1084, %v1077
    %v1365 = vpack.c.b16 %v1085, %v1078
    %v1366 = vpack.c.b16 %v1086, %v1079
    %v1367 = vpack.c.b16 %v1094, %v1087
    %v1368 = vpack.c.b16 %v1095, %v1088
    %v1369 = vpack.c.b16 %v1096, %v1089
    %v1370 = vpack.c.b16 %v1097, %v1090
    %v1371 = vpack.c.b16 %v1098, %v1091
    %v1372 = vpack.c.b16 %v1099, %v1092
    %v1373 = vpack.c.b16 %v1100, %v1093
    %v1374 = vpack.c.b16 %v1108, %v1101
    %v1375 = vpack.c.b16 %v1109, %v1102
    %v1376 = vpack.c.b16 %v1110, %v1103
    %v1377 = vpack.c.b16 %v1111, %v1104
    %v1378 = vpack.c.b16 %v1112, %v1105
    %v1379 = vpack.c.b16 %v1113, %v1106
    %v1380 = vpack.c.b16 %v1114, %v1107
    %v1381 = vpack.c.b16 %v1122, %v1115
    %v1382 = vpack.c.b16 %v1123, %v1116
    %v1383 = vpack.c.b16 %v1124, %v1117
    %v1384 = vpack.c.b16 %v1125, %v1118
    %v1385 = vpack.c.b16 %v1126, %v1119
    %v1386 = vpack.c.b16 %v1127, %v1120
    %v1387 = vpack.c.b16 %v1128, %v1121
    %v1388 = vpack.c.b16 %v1136, %v1129
    %v1389 = vpack.c.b16 %v1137, %v1130
    %v1390 = vpack.c.b16 %v1138, %v1131
    %v1391 = vpack.c.b16 %v1139, %v1132
    %v1392 = vpack.c.b16 %v1140, %v1133
    %v1393 = vpack.c.b16 %v1141, %v1134
    %v1394 = vpack.c.b16 %v1142, %v1135
    %vm1647 = vcmask 523264
    %v1649 = vsel %vm1647, %v62, 0
    %1651 = vmatprep.subr.bf16.mxu0 %v1144
    %1652 = vmatpush1.bf16.msra.mxu0 %v1143
    %1653 = vmatprep.subr.bf16.mxu0 %v1151
    %1654 = vmatpush1.bf16.msra.mxu0 %v1150
    %1655 = vmatprep.subr.bf16.mxu0 %v1158
    %1656 = vmatpush1.bf16.msra.mxu0 %v1157
    %1657 = vmatprep.subr.bf16.mxu0 %v1165
    %1658 = vmatpush1.bf16.msra.mxu0 %v1164
    %1659 = vmatprep.subr.bf16.mxu0 %v1172
    %1660 = vmatpush1.bf16.msra.mxu0 %v1171
    %1661 = vmatprep.subr.bf16.mxu0 %v1179
    %1662 = vmatpush1.bf16.msra.mxu0 %v1178
    %1663 = vmatprep.subr.bf16.mxu0 %v1186
    %1664 = vmatpush1.bf16.msra.mxu0 %v1185
    %1665 = vmatprep.subr.bf16.mxu0 %v1193
    %1666 = vmatpush1.bf16.msra.mxu0 %v1192
    %1667 = vmatprep.subr.bf16.mxu0 %v1200
    %1668 = vmatpush1.bf16.msra.mxu0 %v1199
    %1669 = vmatprep.subr.bf16.mxu0 %v1207
    %1670 = vmatpush1.bf16.msra.mxu0 %v1206
    %1671 = vmatprep.subr.bf16.mxu0 %v1214
    %1672 = vmatpush1.bf16.msra.mxu0 %v1213
    %1673 = vmatprep.subr.bf16.mxu0 %v1221
    %1674 = vmatpush1.bf16.msra.mxu0 %v1220
    %1675 = vmatprep.subr.bf16.mxu0 %v1228
    %1676 = vmatpush1.bf16.msra.mxu0 %v1227
    %1677 = vmatprep.subr.bf16.mxu0 %v1235
    %1678 = vmatpush1.bf16.msra.mxu0 %v1234
    %1679 = vmatprep.subr.bf16.mxu0 %v1242
    %1680 = vmatpush1.bf16.msra.mxu0 %v1241
    %1681 = vmatprep.subr.bf16.mxu0 %v1249
    %1682 = vmatpush1.bf16.msra.mxu0 %v1248
    %1683 = vmatprep.mubr.bf16.mxu0 %v59
    %1684 = vmatmul.mubr.bf16.gmra.mrb[0].mxu0 %v58
    %v1685 = vpop.f32.mrb[0].mxu0
    %v1686 = vadd.f32 0.0, %v1685
    %v1687 = vpop.f32.mrb[0].mxu0
    %v1688 = vadd.f32 0.0, %v1687
    %v1689 = vpop.f32.mrb[0].mxu0
    %v1690 = vpop.f32.mrb[0].mxu0
    %1691 = vdwg.mxu0
    %1692 = vmatprep.subr.bf16.mxu0 %v1256
    %1693 = vmatpush1.bf16.msra.mxu0 %v1255
    %1694 = vmatprep.subr.bf16.mxu0 %v1263
    %1695 = vmatpush1.bf16.msra.mxu0 %v1262
    %1696 = vmatprep.subr.bf16.mxu0 %v1270
    %1697 = vmatpush1.bf16.msra.mxu0 %v1269
    %1698 = vmatprep.subr.bf16.mxu0 %v1277
    %1699 = vmatpush1.bf16.msra.mxu0 %v1276
    %1700 = vmatprep.subr.bf16.mxu0 %v1284
    %1701 = vmatpush1.bf16.msra.mxu0 %v1283
    %1702 = vmatprep.subr.bf16.mxu0 %v1291
    %1703 = vmatpush1.bf16.msra.mxu0 %v1290
    %1704 = vmatprep.subr.bf16.mxu0 %v1298
    %1705 = vmatpush1.bf16.msra.mxu0 %v1297
    %1706 = vmatprep.subr.bf16.mxu0 %v1305
    %1707 = vmatpush1.bf16.msra.mxu0 %v1304
    %1708 = vmatprep.subr.bf16.mxu0 %v1312
    %1709 = vmatpush1.bf16.msra.mxu0 %v1311
    %1710 = vmatprep.subr.bf16.mxu0 %v1319
    %1711 = vmatpush1.bf16.msra.mxu0 %v1318
    %1712 = vmatprep.subr.bf16.mxu0 %v1326
    %1713 = vmatpush1.bf16.msra.mxu0 %v1325
    %1714 = vmatprep.subr.bf16.mxu0 %v1333
    %1715 = vmatpush1.bf16.msra.mxu0 %v1332
    %1716 = vmatprep.subr.bf16.mxu0 %v1340
    %1717 = vmatpush1.bf16.msra.mxu0 %v1339
    %1718 = vmatprep.subr.bf16.mxu0 %v1347
    %1719 = vmatpush1.bf16.msra.mxu0 %v1346
    %1720 = vmatprep.subr.bf16.mxu0 %v1354
    %1721 = vmatpush1.bf16.msra.mxu0 %v1353
    %1722 = vmatprep.subr.bf16.mxu0 %v1361
    %1723 = vmatpush1.bf16.msra.mxu0 %v1360
    %1724 = vmatprep.mubr.bf16.mxu0 %v61
    %1725 = vmatmul.mubr.bf16.gmra.mrb[0].mxu0 %v60
    %v1726 = vpop.f32.mrb[0].mxu0
    %v1727 = vadd.f32 %v1686, %v1726
    %v1728 = vpop.f32.mrb[0].mxu0
    %v1729 = vadd.f32 %v1688, %v1728
    %v1730 = vpop.f32.mrb[0].mxu0
    %v1731 = vpop.f32.mrb[0].mxu0
    %1732 = vdwg.mxu0
    %1733 = vmatprep.subr.bf16.mxu0 %v1368
    %1734 = vmatpush1.bf16.msra.mxu0 %v1367
    %1735 = vmatprep.subr.bf16.mxu0 %v1375
    %1736 = vmatpush1.bf16.msra.mxu0 %v1374
    %1737 = vmatprep.subr.bf16.mxu0 %v1382
    %1738 = vmatpush1.bf16.msra.mxu0 %v1381
    %1739 = vmatprep.subr.bf16.mxu0 %v1389
    %1740 = vmatpush1.bf16.msra.mxu0 %v1388
    %1741 = vmatprep.subr.bf16.mxu0 0
    %1742 = vmatpush1.bf16.msra.mxu0 0
    %1743 = vmatprep.subr.bf16.mxu0 0
    %1744 = vmatpush1.bf16.msra.mxu0 0
    %1745 = vmatprep.subr.bf16.mxu0 0
    %1746 = vmatpush1.bf16.msra.mxu0 0
    %1747 = vmatprep.subr.bf16.mxu0 0
    %1748 = vmatpush1.bf16.msra.mxu0 0
    %1749 = vmatprep.subr.bf16.mxu0 0
    %1750 = vmatpush1.bf16.msra.mxu0 0
    %1751 = vmatprep.subr.bf16.mxu0 0
    %1752 = vmatpush1.bf16.msra.mxu0 0
    %1753 = vmatprep.subr.bf16.mxu0 0
    %1754 = vmatpush1.bf16.msra.mxu0 0
    %1755 = vmatprep.subr.bf16.mxu0 0
    %1756 = vmatpush1.bf16.msra.mxu0 0
    %1757 = vmatprep.subr.bf16.mxu0 0
    %1758 = vmatpush1.bf16.msra.mxu0 0
    %1759 = vmatprep.subr.bf16.mxu0 0
    %1760 = vmatpush1.bf16.msra.mxu0 0
    %1761 = vmatprep.subr.bf16.mxu0 0
    %1762 = vmatpush1.bf16.msra.mxu0 0
    %1763 = vmatprep.subr.bf16.mxu0 0
    %1764 = vmatpush1.bf16.msra.mxu0 0
    %1765 = vmatprep.mubr.bf16.mxu0 0
    %1766 = vmatmul.mubr.bf16.gmra.mrb[0].mxu0 %v1649
    %v1767 = vpop.f32.mrb[0].mxu0
    %v1768 = vadd.f32 %v1727, %v1767
    %v1769 = vpop.f32.mrb[0].mxu0
    %v1770 = vadd.f32 %v1729, %v1769
    %v1771 = vpop.f32.mrb[0].mxu0
    %v1772 = vpop.f32.mrb[0].mxu0
    %1773 = vdwg.mxu0
    %1774 = vmatprep.subr.bf16.mxu0 %v1146
    %1775 = vmatpush1.bf16.msra.mxu0 %v1145
    %1776 = vmatprep.subr.bf16.mxu0 %v1153
    %1777 = vmatpush1.bf16.msra.mxu0 %v1152
    %1778 = vmatprep.subr.bf16.mxu0 %v1160
    %1779 = vmatpush1.bf16.msra.mxu0 %v1159
    %1780 = vmatprep.subr.bf16.mxu0 %v1167
    %1781 = vmatpush1.bf16.msra.mxu0 %v1166
    %1782 = vmatprep.subr.bf16.mxu0 %v1174
    %1783 = vmatpush1.bf16.msra.mxu0 %v1173
    %1784 = vmatprep.subr.bf16.mxu0 %v1181
    %1785 = vmatpush1.bf16.msra.mxu0 %v1180
    %1786 = vmatprep.subr.bf16.mxu0 %v1188
    %1787 = vmatpush1.bf16.msra.mxu0 %v1187
    %1788 = vmatprep.subr.bf16.mxu0 %v1195
    %1789 = vmatpush1.bf16.msra.mxu0 %v1194
    %1790 = vmatprep.subr.bf16.mxu0 %v1202
    %1791 = vmatpush1.bf16.msra.mxu0 %v1201
    %1792 = vmatprep.subr.bf16.mxu0 %v1209
    %1793 = vmatpush1.bf16.msra.mxu0 %v1208
    %1794 = vmatprep.subr.bf16.mxu0 %v1216
    %1795 = vmatpush1.bf16.msra.mxu0 %v1215
    %1796 = vmatprep.subr.bf16.mxu0 %v1223
    %1797 = vmatpush1.bf16.msra.mxu0 %v1222
    %1798 = vmatprep.subr.bf16.mxu0 %v1230
    %1799 = vmatpush1.bf16.msra.mxu0 %v1229
    %1800 = vmatprep.subr.bf16.mxu0 %v1237
    %1801 = vmatpush1.bf16.msra.mxu0 %v1236
    %1802 = vmatprep.subr.bf16.mxu0 %v1244
    %1803 = vmatpush1.bf16.msra.mxu0 %v1243
    %1804 = vmatprep.subr.bf16.mxu0 %v1251
    %1805 = vmatpush1.bf16.msra.mxu0 %v1250
    %1806 = vmatprep.mubr.bf16.mxu0 %v59
    %1807 = vmatmul.mubr.bf16.gmra.mrb[0].mxu0 %v58
    %v1808 = vpop.f32.mrb[0].mxu0
    %v1809 = vadd.f32 0.0, %v1808
    %v1810 = vpop.f32.mrb[0].mxu0
    %v1811 = vadd.f32 0.0, %v1810
    %v1812 = vpop.f32.mrb[0].mxu0
    %v1813 = vpop.f32.mrb[0].mxu0
    %1814 = vdwg.mxu0
    %1815 = vmatprep.subr.bf16.mxu0 %v1258
    %1816 = vmatpush1.bf16.msra.mxu0 %v1257
    %1817 = vmatprep.subr.bf16.mxu0 %v1265
    %1818 = vmatpush1.bf16.msra.mxu0 %v1264
    %1819 = vmatprep.subr.bf16.mxu0 %v1272
    %1820 = vmatpush1.bf16.msra.mxu0 %v1271
    %1821 = vmatprep.subr.bf16.mxu0 %v1279
    %1822 = vmatpush1.bf16.msra.mxu0 %v1278
    %1823 = vmatprep.subr.bf16.mxu0 %v1286
    %1824 = vmatpush1.bf16.msra.mxu0 %v1285
    %1825 = vmatprep.subr.bf16.mxu0 %v1293
    %1826 = vmatpush1.bf16.msra.mxu0 %v1292
    %1827 = vmatprep.subr.bf16.mxu0 %v1300
    %1828 = vmatpush1.bf16.msra.mxu0 %v1299
    %1829 = vmatprep.subr.bf16.mxu0 %v1307
    %1830 = vmatpush1.bf16.msra.mxu0 %v1306
    %1831 = vmatprep.subr.bf16.mxu0 %v1314
    %1832 = vmatpush1.bf16.msra.mxu0 %v1313
    %1833 = vmatprep.subr.bf16.mxu0 %v1321
    %1834 = vmatpush1.bf16.msra.mxu0 %v1320
    %1835 = vmatprep.subr.bf16.mxu0 %v1328
    %1836 = vmatpush1.bf16.msra.mxu0 %v1327
    %1837 = vmatprep.subr.bf16.mxu0 %v1335
    %1838 = vmatpush1.bf16.msra.mxu0 %v1334
    %1839 = vmatprep.subr.bf16.mxu0 %v1342
    %1840 = vmatpush1.bf16.msra.mxu0 %v1341
    %1841 = vmatprep.subr.bf16.mxu0 %v1349
    %1842 = vmatpush1.bf16.msra.mxu0 %v1348
    %1843 = vmatprep.subr.bf16.mxu0 %v1356
    %1844 = vmatpush1.bf16.msra.mxu0 %v1355
    %1845 = vmatprep.subr.bf16.mxu0 %v1363
    %1846 = vmatpush1.bf16.msra.mxu0 %v1362
    %1847 = vmatprep.mubr.bf16.mxu0 %v61
    %1848 = vmatmul.mubr.bf16.gmra.mrb[0].mxu0 %v60
    %v1849 = vpop.f32.mrb[0].mxu0
    %v1850 = vadd.f32 %v1809, %v1849
    %v1851 = vpop.f32.mrb[0].mxu0
    %v1852 = vadd.f32 %v1811, %v1851
    %v1853 = vpop.f32.mrb[0].mxu0
    %v1854 = vpop.f32.mrb[0].mxu0
    %1855 = vdwg.mxu0
    %1856 = vmatprep.subr.bf16.mxu0 %v1370
    %1857 = vmatpush1.bf16.msra.mxu0 %v1369
    %1858 = vmatprep.subr.bf16.mxu0 %v1377
    %1859 = vmatpush1.bf16.msra.mxu0 %v1376
    %1860 = vmatprep.subr.bf16.mxu0 %v1384
    %1861 = vmatpush1.bf16.msra.mxu0 %v1383
    %1862 = vmatprep.subr.bf16.mxu0 %v1391
    %1863 = vmatpush1.bf16.msra.mxu0 %v1390
    %1864 = vmatprep.subr.bf16.mxu0 0
    %1865 = vmatpush1.bf16.msra.mxu0 0
    %1866 = vmatprep.subr.bf16.mxu0 0
    %1867 = vmatpush1.bf16.msra.mxu0 0
    %1868 = vmatprep.subr.bf16.mxu0 0
    %1869 = vmatpush1.bf16.msra.mxu0 0
    %1870 = vmatprep.subr.bf16.mxu0 0
    %1871 = vmatpush1.bf16.msra.mxu0 0
    %1872 = vmatprep.subr.bf16.mxu0 0
    %1873 = vmatpush1.bf16.msra.mxu0 0
    %1874 = vmatprep.subr.bf16.mxu0 0
    %1875 = vmatpush1.bf16.msra.mxu0 0
    %1876 = vmatprep.subr.bf16.mxu0 0
    %1877 = vmatpush1.bf16.msra.mxu0 0
    %1878 = vmatprep.subr.bf16.mxu0 0
    %1879 = vmatpush1.bf16.msra.mxu0 0
    %1880 = vmatprep.subr.bf16.mxu0 0
    %1881 = vmatpush1.bf16.msra.mxu0 0
    %1882 = vmatprep.subr.bf16.mxu0 0
    %1883 = vmatpush1.bf16.msra.mxu0 0
    %1884 = vmatprep.subr.bf16.mxu0 0
    %1885 = vmatpush1.bf16.msra.mxu0 0
    %1886 = vmatprep.subr.bf16.mxu0 0
    %1887 = vmatpush1.bf16.msra.mxu0 0
    %1888 = vmatprep.mubr.bf16.mxu0 0
    %1889 = vmatmul.mubr.bf16.gmra.mrb[0].mxu0 %v1649
    %v1890 = vpop.f32.mrb[0].mxu0
    %v1891 = vadd.f32 %v1850, %v1890
    %v1892 = vpop.f32.mrb[0].mxu0
    %v1893 = vadd.f32 %v1852, %v1892
    %v1894 = vpop.f32.mrb[0].mxu0
    %v1895 = vpop.f32.mrb[0].mxu0
    %1896 = vdwg.mxu0
    %1897 = vmatprep.subr.bf16.mxu0 %v1148
    %1898 = vmatpush1.bf16.msra.mxu0 %v1147
    %1899 = vmatprep.subr.bf16.mxu0 %v1155
    %1900 = vmatpush1.bf16.msra.mxu0 %v1154
    %1901 = vmatprep.subr.bf16.mxu0 %v1162
    %1902 = vmatpush1.bf16.msra.mxu0 %v1161
    %1903 = vmatprep.subr.bf16.mxu0 %v1169
    %1904 = vmatpush1.bf16.msra.mxu0 %v1168
    %1905 = vmatprep.subr.bf16.mxu0 %v1176
    %1906 = vmatpush1.bf16.msra.mxu0 %v1175
    %1907 = vmatprep.subr.bf16.mxu0 %v1183
    %1908 = vmatpush1.bf16.msra.mxu0 %v1182
    %1909 = vmatprep.subr.bf16.mxu0 %v1190
    %1910 = vmatpush1.bf16.msra.mxu0 %v1189
    %1911 = vmatprep.subr.bf16.mxu0 %v1197
    %1912 = vmatpush1.bf16.msra.mxu0 %v1196
    %1913 = vmatprep.subr.bf16.mxu0 %v1204
    %1914 = vmatpush1.bf16.msra.mxu0 %v1203
    %1915 = vmatprep.subr.bf16.mxu0 %v1211
    %1916 = vmatpush1.bf16.msra.mxu0 %v1210
    %1917 = vmatprep.subr.bf16.mxu0 %v1218
    %1918 = vmatpush1.bf16.msra.mxu0 %v1217
    %1919 = vmatprep.subr.bf16.mxu0 %v1225
    %1920 = vmatpush1.bf16.msra.mxu0 %v1224
    %1921 = vmatprep.subr.bf16.mxu0 %v1232
    %1922 = vmatpush1.bf16.msra.mxu0 %v1231
    %1923 = vmatprep.subr.bf16.mxu0 %v1239
    %1924 = vmatpush1.bf16.msra.mxu0 %v1238
    %1925 = vmatprep.subr.bf16.mxu0 %v1246
    %1926 = vmatpush1.bf16.msra.mxu0 %v1245
    %1927 = vmatprep.subr.bf16.mxu0 %v1253
    %1928 = vmatpush1.bf16.msra.mxu0 %v1252
    %1929 = vmatprep.mubr.bf16.mxu0 %v59
    %1930 = vmatmul.mubr.bf16.gmra.mrb[0].mxu0 %v58
    %v1931 = vpop.f32.mrb[0].mxu0
    %v1932 = vadd.f32 0.0, %v1931
    %v1933 = vpop.f32.mrb[0].mxu0
    %v1934 = vadd.f32 0.0, %v1933
    %v1935 = vpop.f32.mrb[0].mxu0
    %v1936 = vpop.f32.mrb[0].mxu0
    %1937 = vdwg.mxu0
    %1938 = vmatprep.subr.bf16.mxu0 %v1260
    %1939 = vmatpush1.bf16.msra.mxu0 %v1259
    %1940 = vmatprep.subr.bf16.mxu0 %v1267
    %1941 = vmatpush1.bf16.msra.mxu0 %v1266
    %1942 = vmatprep.subr.bf16.mxu0 %v1274
    %1943 = vmatpush1.bf16.msra.mxu0 %v1273
    %1944 = vmatprep.subr.bf16.mxu0 %v1281
    %1945 = vmatpush1.bf16.msra.mxu0 %v1280
    %1946 = vmatprep.subr.bf16.mxu0 %v1288
    %1947 = vmatpush1.bf16.msra.mxu0 %v1287
    %1948 = vmatprep.subr.bf16.mxu0 %v1295
    %1949 = vmatpush1.bf16.msra.mxu0 %v1294
    %1950 = vmatprep.subr.bf16.mxu0 %v1302
    %1951 = vmatpush1.bf16.msra.mxu0 %v1301
    %1952 = vmatprep.subr.bf16.mxu0 %v1309
    %1953 = vmatpush1.bf16.msra.mxu0 %v1308
    %1954 = vmatprep.subr.bf16.mxu0 %v1316
    %1955 = vmatpush1.bf16.msra.mxu0 %v1315
    %1956 = vmatprep.subr.bf16.mxu0 %v1323
    %1957 = vmatpush1.bf16.msra.mxu0 %v1322
    %1958 = vmatprep.subr.bf16.mxu0 %v1330
    %1959 = vmatpush1.bf16.msra.mxu0 %v1329
    %1960 = vmatprep.subr.bf16.mxu0 %v1337
    %1961 = vmatpush1.bf16.msra.mxu0 %v1336
    %1962 = vmatprep.subr.bf16.mxu0 %v1344
    %1963 = vmatpush1.bf16.msra.mxu0 %v1343
    %1964 = vmatprep.subr.bf16.mxu0 %v1351
    %1965 = vmatpush1.bf16.msra.mxu0 %v1350
    %1966 = vmatprep.subr.bf16.mxu0 %v1358
    %1967 = vmatpush1.bf16.msra.mxu0 %v1357
    %1968 = vmatprep.subr.bf16.mxu0 %v1365
    %1969 = vmatpush1.bf16.msra.mxu0 %v1364
    %1970 = vmatprep.mubr.bf16.mxu0 %v61
    %1971 = vmatmul.mubr.bf16.gmra.mrb[0].mxu0 %v60
    %v1972 = vpop.f32.mrb[0].mxu0
    %v1973 = vadd.f32 %v1932, %v1972
    %v1974 = vpop.f32.mrb[0].mxu0
    %v1975 = vadd.f32 %v1934, %v1974
    %v1976 = vpop.f32.mrb[0].mxu0
    %v1977 = vpop.f32.mrb[0].mxu0
    %1978 = vdwg.mxu0
    %1979 = vmatprep.subr.bf16.mxu0 %v1372
    %1980 = vmatpush1.bf16.msra.mxu0 %v1371
    %1981 = vmatprep.subr.bf16.mxu0 %v1379
    %1982 = vmatpush1.bf16.msra.mxu0 %v1378
    %1983 = vmatprep.subr.bf16.mxu0 %v1386
    %1984 = vmatpush1.bf16.msra.mxu0 %v1385
    %1985 = vmatprep.subr.bf16.mxu0 %v1393
    %1986 = vmatpush1.bf16.msra.mxu0 %v1392
    %1987 = vmatprep.subr.bf16.mxu0 0
    %1988 = vmatpush1.bf16.msra.mxu0 0
    %1989 = vmatprep.subr.bf16.mxu0 0
    %1990 = vmatpush1.bf16.msra.mxu0 0
    %1991 = vmatprep.subr.bf16.mxu0 0
    %1992 = vmatpush1.bf16.msra.mxu0 0
    %1993 = vmatprep.subr.bf16.mxu0 0
    %1994 = vmatpush1.bf16.msra.mxu0 0
    %1995 = vmatprep.subr.bf16.mxu0 0
    %1996 = vmatpush1.bf16.msra.mxu0 0
    %1997 = vmatprep.subr.bf16.mxu0 0
    %1998 = vmatpush1.bf16.msra.mxu0 0
    %1999 = vmatprep.subr.bf16.mxu0 0
    %2000 = vmatpush1.bf16.msra.mxu0 0
    %2001 = vmatprep.subr.bf16.mxu0 0
    %2002 = vmatpush1.bf16.msra.mxu0 0
    %2003 = vmatprep.subr.bf16.mxu0 0
    %2004 = vmatpush1.bf16.msra.mxu0 0
    %2005 = vmatprep.subr.bf16.mxu0 0
    %2006 = vmatpush1.bf16.msra.mxu0 0
    %2007 = vmatprep.subr.bf16.mxu0 0
    %2008 = vmatpush1.bf16.msra.mxu0 0
    %2009 = vmatprep.subr.bf16.mxu0 0
    %2010 = vmatpush1.bf16.msra.mxu0 0
    %2011 = vmatprep.mubr.bf16.mxu0 0
    %2012 = vmatmul.mubr.bf16.gmra.mrb[0].mxu0 %v1649
    %v2013 = vpop.f32.mrb[0].mxu0
    %v2014 = vadd.f32 %v1973, %v2013
    %v2015 = vpop.f32.mrb[0].mxu0
    %v2016 = vadd.f32 %v1975, %v2015
    %v2017 = vpop.f32.mrb[0].mxu0
    %v2018 = vpop.f32.mrb[0].mxu0
    %2019 = vdwg.mxu0
    %2020 = vmatprep.subr.bf16.mxu0 0
    %2021 = vmatpush1.bf16.msra.mxu0 %v1149
    %2022 = vmatprep.subr.bf16.mxu0 0
    %2023 = vmatpush1.bf16.msra.mxu0 %v1156
    %2024 = vmatprep.subr.bf16.mxu0 0
    %2025 = vmatpush1.bf16.msra.mxu0 %v1163
    %2026 = vmatprep.subr.bf16.mxu0 0
    %2027 = vmatpush1.bf16.msra.mxu0 %v1170
    %2028 = vmatprep.subr.bf16.mxu0 0
    %2029 = vmatpush1.bf16.msra.mxu0 %v1177
    %2030 = vmatprep.subr.bf16.mxu0 0
    %2031 = vmatpush1.bf16.msra.mxu0 %v1184
    %2032 = vmatprep.subr.bf16.mxu0 0
    %2033 = vmatpush1.bf16.msra.mxu0 %v1191
    %2034 = vmatprep.subr.bf16.mxu0 0
    %2035 = vmatpush1.bf16.msra.mxu0 %v1198
    %2036 = vmatprep.subr.bf16.mxu0 0
    %2037 = vmatpush1.bf16.msra.mxu0 %v1205
    %2038 = vmatprep.subr.bf16.mxu0 0
    %2039 = vmatpush1.bf16.msra.mxu0 %v1212
    %2040 = vmatprep.subr.bf16.mxu0 0
    %2041 = vmatpush1.bf16.msra.mxu0 %v1219
    %2042 = vmatprep.subr.bf16.mxu0 0
    %2043 = vmatpush1.bf16.msra.mxu0 %v1226
    %2044 = vmatprep.subr.bf16.mxu0 0
    %2045 = vmatpush1.bf16.msra.mxu0 %v1233
    %2046 = vmatprep.subr.bf16.mxu0 0
    %2047 = vmatpush1.bf16.msra.mxu0 %v1240
    %2048 = vmatprep.subr.bf16.mxu0 0
    %2049 = vmatpush1.bf16.msra.mxu0 %v1247
    %2050 = vmatprep.subr.bf16.mxu0 0
    %2051 = vmatpush1.bf16.msra.mxu0 %v1254
    %2052 = vmatprep.mubr.bf16.mxu0 %v59
    %2053 = vmatmul.mubr.bf16.gmra.mrb[0].mxu0 %v58
    %v2054 = vpop.f32.mrb[0].mxu0
    %v2055 = vadd.f32 0.0, %v2054
    %v2056 = vpop.f32.mrb[0].mxu0
    %v2057 = vpop.f32.mrb[0].mxu0
    %v2058 = vpop.f32.mrb[0].mxu0
    %2059 = vdwg.mxu0
    %2060 = vmatprep.subr.bf16.mxu0 0
    %2061 = vmatpush1.bf16.msra.mxu0 %v1261
    %2062 = vmatprep.subr.bf16.mxu0 0
    %2063 = vmatpush1.bf16.msra.mxu0 %v1268
    %2064 = vmatprep.subr.bf16.mxu0 0
    %2065 = vmatpush1.bf16.msra.mxu0 %v1275
    %2066 = vmatprep.subr.bf16.mxu0 0
    %2067 = vmatpush1.bf16.msra.mxu0 %v1282
    %2068 = vmatprep.subr.bf16.mxu0 0
    %2069 = vmatpush1.bf16.msra.mxu0 %v1289
    %2070 = vmatprep.subr.bf16.mxu0 0
    %2071 = vmatpush1.bf16.msra.mxu0 %v1296
    %2072 = vmatprep.subr.bf16.mxu0 0
    %2073 = vmatpush1.bf16.msra.mxu0 %v1303
    %2074 = vmatprep.subr.bf16.mxu0 0
    %2075 = vmatpush1.bf16.msra.mxu0 %v1310
    %2076 = vmatprep.subr.bf16.mxu0 0
    %2077 = vmatpush1.bf16.msra.mxu0 %v1317
    %2078 = vmatprep.subr.bf16.mxu0 0
    %2079 = vmatpush1.bf16.msra.mxu0 %v1324
    %2080 = vmatprep.subr.bf16.mxu0 0
    %2081 = vmatpush1.bf16.msra.mxu0 %v1331
    %2082 = vmatprep.subr.bf16.mxu0 0
    %2083 = vmatpush1.bf16.msra.mxu0 %v1338
    %2084 = vmatprep.subr.bf16.mxu0 0
    %2085 = vmatpush1.bf16.msra.mxu0 %v1345
    %2086 = vmatprep.subr.bf16.mxu0 0
    %2087 = vmatpush1.bf16.msra.mxu0 %v1352
    %2088 = vmatprep.subr.bf16.mxu0 0
    %2089 = vmatpush1.bf16.msra.mxu0 %v1359
    %2090 = vmatprep.subr.bf16.mxu0 0
    %2091 = vmatpush1.bf16.msra.mxu0 %v1366
    %2092 = vmatprep.mubr.bf16.mxu0 %v61
    %2093 = vmatmul.mubr.bf16.gmra.mrb[0].mxu0 %v60
    %v2094 = vpop.f32.mrb[0].mxu0
    %v2095 = vadd.f32 %v2055, %v2094
    %v2096 = vpop.f32.mrb[0].mxu0
    %v2097 = vpop.f32.mrb[0].mxu0
    %v2098 = vpop.f32.mrb[0].mxu0
    %2099 = vdwg.mxu0
    %2100 = vmatprep.subr.bf16.mxu0 0
    %2101 = vmatpush1.bf16.msra.mxu0 %v1373
    %2102 = vmatprep.subr.bf16.mxu0 0
    %2103 = vmatpush1.bf16.msra.mxu0 %v1380
    %2104 = vmatprep.subr.bf16.mxu0 0
    %2105 = vmatpush1.bf16.msra.mxu0 %v1387
    %2106 = vmatprep.subr.bf16.mxu0 0
    %2107 = vmatpush1.bf16.msra.mxu0 %v1394
    %2108 = vmatprep.subr.bf16.mxu0 0
    %2109 = vmatpush1.bf16.msra.mxu0 0
    %2110 = vmatprep.subr.bf16.mxu0 0
    %2111 = vmatpush1.bf16.msra.mxu0 0
    %2112 = vmatprep.subr.bf16.mxu0 0
    %2113 = vmatpush1.bf16.msra.mxu0 0
    %2114 = vmatprep.subr.bf16.mxu0 0
    %2115 = vmatpush1.bf16.msra.mxu0 0
    %2116 = vmatprep.subr.bf16.mxu0 0
    %2117 = vmatpush1.bf16.msra.mxu0 0
    %2118 = vmatprep.subr.bf16.mxu0 0
    %2119 = vmatpush1.bf16.msra.mxu0 0
    %2120 = vmatprep.subr.bf16.mxu0 0
    %2121 = vmatpush1.bf16.msra.mxu0 0
    %2122 = vmatprep.subr.bf16.mxu0 0
    %2123 = vmatpush1.bf16.msra.mxu0 0
    %2124 = vmatprep.subr.bf16.mxu0 0
    %2125 = vmatpush1.bf16.msra.mxu0 0
    %2126 = vmatprep.subr.bf16.mxu0 0
    %2127 = vmatpush1.bf16.msra.mxu0 0
    %2128 = vmatprep.subr.bf16.mxu0 0
    %2129 = vmatpush1.bf16.msra.mxu0 0
    %2130 = vmatprep.subr.bf16.mxu0 0
    %2131 = vmatpush1.bf16.msra.mxu0 0
    %2132 = vmatprep.mubr.bf16.mxu0 0
    %2133 = vmatmul.mubr.bf16.gmra.mrb[0].mxu0 %v1649
    %v2134 = vpop.f32.mrb[0].mxu0
    %v2135 = vadd.f32 %v2095, %v2134
    %v2136 = vpop.f32.mrb[0].mxu0
    %v2137 = vpop.f32.mrb[0].mxu0
    %v2138 = vpop.f32.mrb[0].mxu0
    %2139 = vdwg.mxu0
    %v2140 = vld [vmem:[%s2] sm:$0x7f]
    %v2142 = vlaneseq
    %v2143 = vshrl.u32 %v2142, 7
    %v2144 = vsub.s32 0, %v2143
    %v2145 = vrot.slane %v2140, %v2144
    %v2146 = vlaneseq
    %v2147 = vshrl.u32 %v2146, 7
    %v2148 = vsub.s32 1, %v2147
    %v2149 = vrot.slane %v2140, %v2148
    %v2150 = vlaneseq
    %v2151 = vshrl.u32 %v2150, 7
    %v2152 = vsub.s32 2, %v2151
    %v2153 = vrot.slane %v2140, %v2152
    %v2154 = vlaneseq
    %v2155 = vshrl.u32 %v2154, 7
    %v2156 = vsub.s32 3, %v2155
    %v2157 = vrot.slane %v2140, %v2156
    %v2158 = vlaneseq
    %v2159 = vshrl.u32 %v2158, 7
    %v2160 = vsub.s32 4, %v2159
    %v2161 = vrot.slane %v2140, %v2160
    %v2162 = vlaneseq
    %v2163 = vshrl.u32 %v2162, 7
    %v2164 = vsub.s32 5, %v2163
    %v2165 = vrot.slane %v2140, %v2164
    %v2166 = vlaneseq
    %v2167 = vshrl.u32 %v2166, 7
    %v2168 = vsub.s32 6, %v2167
    %v2169 = vrot.slane %v2140, %v2168
    %v2177 = vmul.f32 %v1768, %v2145
    %v2178 = vmul.f32 %v1770, %v2149
    %v2179 = vmul.f32 %v1891, %v2153
    %v2180 = vmul.f32 %v1893, %v2157
    %v2181 = vmul.f32 %v2014, %v2161
    %v2182 = vmul.f32 %v2016, %v2165
    %v2183 = vmul.f32 %v2135, %v2169
    %v2184 = vld [vmem:[%s3] sm:$0x7f]
    %v2186 = vlaneseq
    %v2187 = vshrl.u32 %v2186, 7
    %v2188 = vsub.s32 0, %v2187
    %v2189 = vrot.slane %v2184, %v2188
    %v2190 = vlaneseq
    %v2191 = vshrl.u32 %v2190, 7
    %v2192 = vsub.s32 1, %v2191
    %v2193 = vrot.slane %v2184, %v2192
    %v2194 = vlaneseq
    %v2195 = vshrl.u32 %v2194, 7
    %v2196 = vsub.s32 2, %v2195
    %v2197 = vrot.slane %v2184, %v2196
    %v2198 = vlaneseq
    %v2199 = vshrl.u32 %v2198, 7
    %v2200 = vsub.s32 3, %v2199
    %v2201 = vrot.slane %v2184, %v2200
    %v2202 = vlaneseq
    %v2203 = vshrl.u32 %v2202, 7
    %v2204 = vsub.s32 4, %v2203
    %v2205 = vrot.slane %v2184, %v2204
    %v2206 = vlaneseq
    %v2207 = vshrl.u32 %v2206, 7
    %v2208 = vsub.s32 5, %v2207
    %v2209 = vrot.slane %v2184, %v2208
    %v2210 = vlaneseq
    %v2211 = vshrl.u32 %v2210, 7
    %v2212 = vsub.s32 6, %v2211
    %v2213 = vrot.slane %v2184, %v2212
    %v2221 = vadd.f32 %v2177, %v2189
    %v2222 = vadd.f32 %v2178, %v2193
    %v2223 = vadd.f32 %v2179, %v2197
    %v2224 = vadd.f32 %v2180, %v2201
    %v2225 = vadd.f32 %v2181, %v2205
    %v2226 = vadd.f32 %v2182, %v2209
    %v2227 = vadd.f32 %v2183, %v2213
    %v2228 = vmax.f32 %v2221, 0.0
    %v2229 = vmax.f32 %v2222, 0.0
    %v2230 = vmax.f32 %v2223, 0.0
    %v2231 = vmax.f32 %v2224, 0.0
    %v2232 = vmax.f32 %v2225, 0.0
    %v2233 = vmax.f32 %v2226, 0.0
    %v2234 = vmax.f32 %v2227, 0.0
    %v2235 = vpack.c.bf16 %v2228, %v2228
    %v2236 = vpack.c.bf16 %v2229, %v2229
    %v2237 = vpack.c.bf16 %v2230, %v2230
    %v2238 = vpack.c.bf16 %v2231, %v2231
    %v2239 = vpack.c.bf16 %v2232, %v2232
    %v2240 = vpack.c.bf16 %v2233, %v2233
    %v2241 = vpack.c.bf16 %v2234, %v2234
    %v2242 = vld [vmem:[%s4] sm:$0xff]
    %v2243 = vld [vmem:[%s4 + $0x8] sm:$0xff]
    %v2244 = vld [vmem:[%s4 + $0x10] sm:$0xff]
    %v2245 = vld [vmem:[%s4 + $0x18] sm:$0xff]
    %v2246 = vld [vmem:[%s4 + $0x20] sm:$0xff]
    %v2247 = vld [vmem:[%s4 + $0x28] sm:$0xff]
    %v2248 = vld [vmem:[%s4 + $0x30] sm:$0xff]
    %v2249 = vld [vmem:[%s4 + $0x38] sm:$0xff]
    %v2250 = vld [vmem:[%s4 + $0x40] sm:$0xff]
    %v2251 = vld [vmem:[%s4 + $0x48] sm:$0xff]
    %v2252 = vld [vmem:[%s4 + $0x50] sm:$0xff]
    %v2253 = vld [vmem:[%s4 + $0x58] sm:$0xff]
    %v2254 = vld [vmem:[%s4 + $0x60] sm:$0xff]
    %v2255 = vld [vmem:[%s4 + $0x68] sm:$0xff]
    %v2256 = vld [vmem:[%s4 + $0x70] sm:$0xff]
    %v2257 = vld [vmem:[%s4 + $0x78] sm:$0xff]
    %v2258 = vld [vmem:[%s4 + $0x80] sm:$0xff]
    %v2259 = vld [vmem:[%s4 + $0x88] sm:$0xff]
    %v2260 = vld [vmem:[%s4 + $0x90] sm:$0xff]
    %v2261 = vld [vmem:[%s4 + $0x98] sm:$0xff]
    %v2262 = vld [vmem:[%s4 + $0xa0] sm:$0xff]
    %v2263 = vld [vmem:[%s4 + $0xa8] sm:$0xff]
    %v2264 = vld [vmem:[%s4 + $0xb0] sm:$0xff]
    %v2265 = vld [vmem:[%s4 + $0xb8] sm:$0xff]
    %v2266 = vld [vmem:[%s4 + $0xc0] sm:$0xff]
    %v2267 = vld [vmem:[%s4 + $0xc8] sm:$0xff]
    %v2268 = vld [vmem:[%s4 + $0xd0] sm:$0xff]
    %v2269 = vld [vmem:[%s4 + $0xd8] sm:$0xff]
    %v2270 = vld [vmem:[%s4 + $0xe0] sm:$0xff]
    %v2271 = vld [vmem:[%s4 + $0xe8] sm:$0xff]
    %v2272 = vld [vmem:[%s4 + $0xf0] sm:$0xff]
    %v2273 = vld [vmem:[%s4 + $0xf8] sm:$0xff]
    %v2274 = vld [vmem:[%s4 + $0x100] sm:$0xff]
    %v2275 = vld [vmem:[%s4 + $0x108] sm:$0xff]
    %v2276 = vld [vmem:[%s4 + $0x110] sm:$0xff]
    %v2277 = vld [vmem:[%s4 + $0x118] sm:$0xff]
    %v2278 = vld [vmem:[%s4 + $0x120] sm:$0xff]
    %v2279 = vld [vmem:[%s4 + $0x128] sm:$0xff]
    %v2280 = vld [vmem:[%s4 + $0x130] sm:$0xff]
    %v2281 = vld [vmem:[%s4 + $0x138] sm:$0xff]
    %v2282 = vld [vmem:[%s4 + $0x140] sm:$0xff]
    %v2283 = vld [vmem:[%s4 + $0x148] sm:$0xff]
    %v2284 = vld [vmem:[%s4 + $0x150] sm:$0xff]
    %v2285 = vld [vmem:[%s4 + $0x158] sm:$0xff]
    %v2286 = vld [vmem:[%s4 + $0x160] sm:$0xff]
    %v2287 = vld [vmem:[%s4 + $0x168] sm:$0xff]
    %v2288 = vld [vmem:[%s4 + $0x170] sm:$0xff]
    %v2289 = vld [vmem:[%s4 + $0x178] sm:$0xff]
    %v2290 = vld [vmem:[%s4 + $0x180] sm:$0xff]
    %v2291 = vld [vmem:[%s4 + $0x188] sm:$0xff]
    %v2292 = vld [vmem:[%s4 + $0x190] sm:$0xff]
    %v2293 = vld [vmem:[%s4 + $0x198] sm:$0xff]
    %v2294 = vld [vmem:[%s4 + $0x1a0] sm:$0xff]
    %v2295 = vld [vmem:[%s4 + $0x1a8] sm:$0xff]
    %v2296 = vld [vmem:[%s4 + $0x1b0] sm:$0xff]
    %v2297 = vld [vmem:[%s4 + $0x1b8] sm:$0xff]
    %v2298 = vld [vmem:[%s4 + $0x1c0] sm:$0xff]
    %v2299 = vld [vmem:[%s4 + $0x1c8] sm:$0xff]
    %v2300 = vld [vmem:[%s4 + $0x1d0] sm:$0xff]
    %v2301 = vld [vmem:[%s4 + $0x1d8] sm:$0xff]
    %v2302 = vld [vmem:[%s4 + $0x1e0] sm:$0xff]
    %v2303 = vld [vmem:[%s4 + $0x1e8] sm:$0xff]
    %v2304 = vld [vmem:[%s4 + $0x1f0] sm:$0xff]
    %v2305 = vld [vmem:[%s4 + $0x1f8] sm:$0xff]
    %v2306 = vld [vmem:[%s4 + $0x200] sm:$0xff]
    %v2307 = vld [vmem:[%s4 + $0x208] sm:$0xff]
    %v2308 = vld [vmem:[%s4 + $0x210] sm:$0xff]
    %v2309 = vld [vmem:[%s4 + $0x218] sm:$0xff]
    %v2310 = vld [vmem:[%s4 + $0x220] sm:$0xff]
    %v2311 = vld [vmem:[%s4 + $0x228] sm:$0xff]
    %v2312 = vld [vmem:[%s4 + $0x230] sm:$0xff]
    %v2313 = vld [vmem:[%s4 + $0x238] sm:$0xff]
    %v2314 = vld [vmem:[%s4 + $0x240] sm:$0xff]
    %v2315 = vld [vmem:[%s4 + $0x248] sm:$0xff]
    %v2316 = vld [vmem:[%s4 + $0x250] sm:$0xff]
    %v2317 = vld [vmem:[%s4 + $0x258] sm:$0xff]
    %v2318 = vld [vmem:[%s4 + $0x260] sm:$0xff]
    %v2319 = vld [vmem:[%s4 + $0x268] sm:$0xff]
    %v2320 = vld [vmem:[%s4 + $0x270] sm:$0xff]
    %v2321 = vld [vmem:[%s4 + $0x278] sm:$0xff]
    %v2322 = vld [vmem:[%s4 + $0x280] sm:$0xff]
    %v2323 = vld [vmem:[%s4 + $0x288] sm:$0xff]
    %v2324 = vld [vmem:[%s4 + $0x290] sm:$0xff]
    %v2325 = vld [vmem:[%s4 + $0x298] sm:$0xff]
    %v2326 = vld [vmem:[%s4 + $0x2a0] sm:$0xff]
    %v2327 = vld [vmem:[%s4 + $0x2a8] sm:$0xff]
    %v2328 = vld [vmem:[%s4 + $0x2b0] sm:$0xff]
    %v2329 = vld [vmem:[%s4 + $0x2b8] sm:$0xff]
    %v2330 = vld [vmem:[%s4 + $0x2c0] sm:$0xff]
    %v2331 = vld [vmem:[%s4 + $0x2c8] sm:$0xff]
    %v2332 = vld [vmem:[%s4 + $0x2d0] sm:$0xff]
    %v2333 = vld [vmem:[%s4 + $0x2d8] sm:$0xff]
    %v2334 = vld [vmem:[%s4 + $0x2e0] sm:$0xff]
    %v2335 = vld [vmem:[%s4 + $0x2e8] sm:$0xff]
    %v2336 = vld [vmem:[%s4 + $0x2f0] sm:$0xff]
    %v2337 = vld [vmem:[%s4 + $0x2f8] sm:$0xff]
    %v2338 = vld [vmem:[%s4 + $0x300] sm:$0xff]
    %v2339 = vld [vmem:[%s4 + $0x308] sm:$0xff]
    %v2340 = vld [vmem:[%s4 + $0x310] sm:$0xff]
    %v2341 = vld [vmem:[%s4 + $0x318] sm:$0xff]
    %v2342 = vld [vmem:[%s4 + $0x320] sm:$0xff]
    %v2343 = vld [vmem:[%s4 + $0x328] sm:$0xff]
    %v2344 = vld [vmem:[%s4 + $0x330] sm:$0xff]
    %v2345 = vld [vmem:[%s4 + $0x338] sm:$0xff]
    %v2346 = vld [vmem:[%s4 + $0x340] sm:$0xff]
    %v2347 = vld [vmem:[%s4 + $0x348] sm:$0xff]
    %v2348 = vld [vmem:[%s4 + $0x350] sm:$0x11]
    %v2349 = vld [vmem:[%s5] sm:$0x3]
    %v2351 = vlaneseq
    %v2352 = vshrl.u32 %v2351, 7
    %v2353 = vsub.s32 0, %v2352
    %v2354 = vrot.slane %v2349, %v2353
    %v2355 = vlaneseq
    %v2356 = vshrl.u32 %v2355, 7
    %v2357 = vsub.s32 1, %v2356
    %v2358 = vrot.slane %v2349, %v2357
    %v2468 = vunpack.c.l.b16 %v2242
    %v2469 = vunpack.c.h.b16 %v2242
    %v2470 = vunpack.c.l.b16 %v2243
    %v2471 = vunpack.c.h.b16 %v2243
    %v2472 = vunpack.c.l.b16 %v2244
    %v2473 = vunpack.c.h.b16 %v2244
    %v2474 = vunpack.c.l.b16 %v2245
    %v2475 = vunpack.c.h.b16 %v2245
    %v2476 = vunpack.c.l.b16 %v2246
    %v2477 = vunpack.c.h.b16 %v2246
    %v2478 = vunpack.c.l.b16 %v2247
    %v2479 = vunpack.c.h.b16 %v2247
    %v2480 = vunpack.c.l.b16 %v2248
    %v2481 = vunpack.c.h.b16 %v2248
    %v2482 = vunpack.c.l.b16 %v2249
    %v2483 = vunpack.c.h.b16 %v2249
    %v2484 = vunpack.c.l.b16 %v2250
    %v2485 = vunpack.c.h.b16 %v2250
    %v2486 = vunpack.c.l.b16 %v2251
    %v2487 = vunpack.c.h.b16 %v2251
    %v2488 = vunpack.c.l.b16 %v2252
    %v2489 = vunpack.c.h.b16 %v2252
    %v2490 = vunpack.c.l.b16 %v2253
    %v2491 = vunpack.c.h.b16 %v2253
    %v2492 = vunpack.c.l.b16 %v2254
    %v2493 = vunpack.c.h.b16 %v2254
    %v2494 = vunpack.c.l.b16 %v2255
    %v2495 = vunpack.c.h.b16 %v2255
    %v2496 = vunpack.c.l.b16 %v2256
    %v2497 = vunpack.c.h.b16 %v2256
    %v2498 = vunpack.c.l.b16 %v2257
    %v2499 = vunpack.c.h.b16 %v2257
    %v2500 = vunpack.c.l.b16 %v2258
    %v2501 = vunpack.c.h.b16 %v2258
    %v2502 = vunpack.c.l.b16 %v2259
    %v2503 = vunpack.c.h.b16 %v2259
    %v2504 = vunpack.c.l.b16 %v2260
    %v2505 = vunpack.c.h.b16 %v2260
    %v2506 = vunpack.c.l.b16 %v2261
    %v2507 = vunpack.c.h.b16 %v2261
    %v2508 = vunpack.c.l.b16 %v2262
    %v2509 = vunpack.c.h.b16 %v2262
    %v2510 = vunpack.c.l.b16 %v2263
    %v2511 = vunpack.c.h.b16 %v2263
    %v2512 = vunpack.c.l.b16 %v2264
    %v2513 = vunpack.c.h.b16 %v2264
    %v2514 = vunpack.c.l.b16 %v2265
    %v2515 = vunpack.c.h.b16 %v2265
    %v2516 = vunpack.c.l.b16 %v2266
    %v2517 = vunpack.c.h.b16 %v2266
    %v2518 = vunpack.c.l.b16 %v2267
    %v2519 = vunpack.c.h.b16 %v2267
    %v2520 = vunpack.c.l.b16 %v2268
    %v2521 = vunpack.c.h.b16 %v2268
    %v2522 = vunpack.c.l.b16 %v2269
    %v2523 = vunpack.c.h.b16 %v2269
    %v2524 = vunpack.c.l.b16 %v2270
    %v2525 = vunpack.c.h.b16 %v2270
    %v2526 = vunpack.c.l.b16 %v2271
    %v2527 = vunpack.c.h.b16 %v2271
    %v2528 = vunpack.c.l.b16 %v2272
    %v2529 = vunpack.c.h.b16 %v2272
    %v2530 = vunpack.c.l.b16 %v2273
    %v2531 = vunpack.c.h.b16 %v2273
    %v2532 = vunpack.c.l.b16 %v2274
    %v2533 = vunpack.c.h.b16 %v2274
    %v2534 = vunpack.c.l.b16 %v2275
    %v2535 = vunpack.c.h.b16 %v2275
    %v2536 = vunpack.c.l.b16 %v2276
    %v2537 = vunpack.c.h.b16 %v2276
    %v2538 = vunpack.c.l.b16 %v2277
    %v2539 = vunpack.c.h.b16 %v2277
    %v2540 = vunpack.c.l.b16 %v2278
    %v2541 = vunpack.c.h.b16 %v2278
    %v2542 = vunpack.c.l.b16 %v2279
    %v2543 = vunpack.c.h.b16 %v2279
    %v2544 = vunpack.c.l.b16 %v2280
    %v2545 = vunpack.c.h.b16 %v2280
    %v2546 = vunpack.c.l.b16 %v2281
    %v2547 = vunpack.c.h.b16 %v2281
    %v2548 = vunpack.c.l.b16 %v2282
    %v2549 = vunpack.c.h.b16 %v2282
    %v2550 = vunpack.c.l.b16 %v2283
    %v2551 = vunpack.c.h.b16 %v2283
    %v2552 = vunpack.c.l.b16 %v2284
    %v2553 = vunpack.c.h.b16 %v2284
    %v2554 = vunpack.c.l.b16 %v2285
    %v2555 = vunpack.c.h.b16 %v2285
    %v2556 = vunpack.c.l.b16 %v2286
    %v2557 = vunpack.c.h.b16 %v2286
    %v2558 = vunpack.c.l.b16 %v2287
    %v2559 = vunpack.c.h.b16 %v2287
    %v2560 = vunpack.c.l.b16 %v2288
    %v2561 = vunpack.c.h.b16 %v2288
    %v2562 = vunpack.c.l.b16 %v2289
    %v2563 = vunpack.c.h.b16 %v2289
    %v2564 = vunpack.c.l.b16 %v2290
    %v2565 = vunpack.c.h.b16 %v2290
    %v2566 = vunpack.c.l.b16 %v2291
    %v2567 = vunpack.c.h.b16 %v2291
    %v2568 = vunpack.c.l.b16 %v2292
    %v2569 = vunpack.c.h.b16 %v2292
    %v2570 = vunpack.c.l.b16 %v2293
    %v2571 = vunpack.c.h.b16 %v2293
    %v2572 = vunpack.c.l.b16 %v2294
    %v2573 = vunpack.c.h.b16 %v2294
    %v2574 = vunpack.c.l.b16 %v2295
    %v2575 = vunpack.c.h.b16 %v2295
    %v2576 = vunpack.c.l.b16 %v2296
    %v2577 = vunpack.c.h.b16 %v2296
    %v2578 = vunpack.c.l.b16 %v2297
    %v2579 = vunpack.c.h.b16 %v2297
    %v2580 = vunpack.c.l.b16 %v2298
    %v2581 = vunpack.c.h.b16 %v2298
    %v2582 = vunpack.c.l.b16 %v2299
    %v2583 = vunpack.c.h.b16 %v2299
    %v2584 = vunpack.c.l.b16 %v2300
    %v2585 = vunpack.c.h.b16 %v2300
    %v2586 = vunpack.c.l.b16 %v2301
    %v2587 = vunpack.c.h.b16 %v2301
    %v2588 = vunpack.c.l.b16 %v2302
    %v2589 = vunpack.c.h.b16 %v2302
    %v2590 = vunpack.c.l.b16 %v2303
    %v2591 = vunpack.c.h.b16 %v2303
    %v2592 = vunpack.c.l.b16 %v2304
    %v2593 = vunpack.c.h.b16 %v2304
    %v2594 = vunpack.c.l.b16 %v2305
    %v2595 = vunpack.c.h.b16 %v2305
    %v2596 = vunpack.c.l.b16 %v2306
    %v2597 = vunpack.c.h.b16 %v2306
    %v2598 = vunpack.c.l.b16 %v2307
    %v2599 = vunpack.c.h.b16 %v2307
    %v2600 = vunpack.c.l.b16 %v2308
    %v2601 = vunpack.c.h.b16 %v2308
    %v2602 = vunpack.c.l.b16 %v2309
    %v2603 = vunpack.c.h.b16 %v2309
    %v2604 = vunpack.c.l.b16 %v2310
    %v2605 = vunpack.c.h.b16 %v2310
    %v2606 = vunpack.c.l.b16 %v2311
    %v2607 = vunpack.c.h.b16 %v2311
    %v2608 = vunpack.c.l.b16 %v2312
    %v2609 = vunpack.c.h.b16 %v2312
    %v2610 = vunpack.c.l.b16 %v2313
    %v2611 = vunpack.c.h.b16 %v2313
    %v2612 = vunpack.c.l.b16 %v2314
    %v2613 = vunpack.c.h.b16 %v2314
    %v2614 = vunpack.c.l.b16 %v2315
    %v2615 = vunpack.c.h.b16 %v2315
    %v2616 = vunpack.c.l.b16 %v2316
    %v2617 = vunpack.c.h.b16 %v2316
    %v2618 = vunpack.c.l.b16 %v2317
    %v2619 = vunpack.c.h.b16 %v2317
    %v2620 = vunpack.c.l.b16 %v2318
    %v2621 = vunpack.c.h.b16 %v2318
    %v2622 = vunpack.c.l.b16 %v2319
    %v2623 = vunpack.c.h.b16 %v2319
    %v2624 = vunpack.c.l.b16 %v2320
    %v2625 = vunpack.c.h.b16 %v2320
    %v2626 = vunpack.c.l.b16 %v2321
    %v2627 = vunpack.c.h.b16 %v2321
    %v2628 = vunpack.c.l.b16 %v2322
    %v2629 = vunpack.c.h.b16 %v2322
    %v2630 = vunpack.c.l.b16 %v2323
    %v2631 = vunpack.c.h.b16 %v2323
    %v2632 = vunpack.c.l.b16 %v2324
    %v2633 = vunpack.c.h.b16 %v2324
    %v2634 = vunpack.c.l.b16 %v2325
    %v2635 = vunpack.c.h.b16 %v2325
    %v2636 = vunpack.c.l.b16 %v2326
    %v2637 = vunpack.c.h.b16 %v2326
    %v2638 = vunpack.c.l.b16 %v2327
    %v2639 = vunpack.c.h.b16 %v2327
    %v2640 = vunpack.c.l.b16 %v2328
    %v2641 = vunpack.c.h.b16 %v2328
    %v2642 = vunpack.c.l.b16 %v2329
    %v2643 = vunpack.c.h.b16 %v2329
    %v2644 = vunpack.c.l.b16 %v2330
    %v2645 = vunpack.c.h.b16 %v2330
    %v2646 = vunpack.c.l.b16 %v2331
    %v2647 = vunpack.c.h.b16 %v2331
    %v2648 = vunpack.c.l.b16 %v2332
    %v2649 = vunpack.c.h.b16 %v2332
    %v2650 = vunpack.c.l.b16 %v2333
    %v2651 = vunpack.c.h.b16 %v2333
    %v2652 = vunpack.c.l.b16 %v2334
    %v2653 = vunpack.c.h.b16 %v2334
    %v2654 = vunpack.c.l.b16 %v2335
    %v2655 = vunpack.c.h.b16 %v2335
    %v2656 = vunpack.c.l.b16 %v2336
    %v2657 = vunpack.c.h.b16 %v2336
    %v2658 = vunpack.c.l.b16 %v2337
    %v2659 = vunpack.c.h.b16 %v2337
    %v2660 = vunpack.c.l.b16 %v2338
    %v2661 = vunpack.c.h.b16 %v2338
    %v2662 = vunpack.c.l.b16 %v2339
    %v2663 = vunpack.c.h.b16 %v2339
    %v2664 = vunpack.c.l.b16 %v2340
    %v2665 = vunpack.c.h.b16 %v2340
    %v2666 = vunpack.c.l.b16 %v2341
    %v2667 = vunpack.c.h.b16 %v2341
    %v2668 = vunpack.c.l.b16 %v2342
    %v2669 = vunpack.c.h.b16 %v2342
    %v2670 = vunpack.c.l.b16 %v2343
    %v2671 = vunpack.c.h.b16 %v2343
    %v2672 = vunpack.c.l.b16 %v2344
    %v2673 = vunpack.c.h.b16 %v2344
    %v2674 = vunpack.c.l.b16 %v2345
    %v2675 = vunpack.c.h.b16 %v2345
    %v2676 = vunpack.c.l.b16 %v2346
    %v2677 = vunpack.c.h.b16 %v2346
    %v2678 = vunpack.c.l.b16 %v2347
    %v2679 = vunpack.c.h.b16 %v2347
    %v2680 = vunpack.c.l.b16 %v2348
    %v2681 = vunpack.c.h.b16 %v2348
    %v2682 = vpack.c.b16 %v2470, %v2468
    %v2683 = vpack.c.b16 %v2471, %v2469
    %v2684 = vpack.c.b16 %v2474, %v2472
    %v2685 = vpack.c.b16 %v2475, %v2473
    %v2686 = vpack.c.b16 %v2478, %v2476
    %v2687 = vpack.c.b16 %v2479, %v2477
    %v2688 = vpack.c.b16 %v2482, %v2480
    %v2689 = vpack.c.b16 %v2483, %v2481
    %v2690 = vpack.c.b16 %v2486, %v2484
    %v2691 = vpack.c.b16 %v2487, %v2485
    %v2692 = vpack.c.b16 %v2490, %v2488
    %v2693 = vpack.c.b16 %v2491, %v2489
    %v2694 = vpack.c.b16 %v2494, %v2492
    %v2695 = vpack.c.b16 %v2495, %v2493
    %v2696 = vpack.c.b16 %v2498, %v2496
    %v2697 = vpack.c.b16 %v2499, %v2497
    %v2698 = vpack.c.b16 %v2502, %v2500
    %v2699 = vpack.c.b16 %v2503, %v2501
    %v2700 = vpack.c.b16 %v2506, %v2504
    %v2701 = vpack.c.b16 %v2507, %v2505
    %v2702 = vpack.c.b16 %v2510, %v2508
    %v2703 = vpack.c.b16 %v2511, %v2509
    %v2704 = vpack.c.b16 %v2514, %v2512
    %v2705 = vpack.c.b16 %v2515, %v2513
    %v2706 = vpack.c.b16 %v2518, %v2516
    %v2707 = vpack.c.b16 %v2519, %v2517
    %v2708 = vpack.c.b16 %v2522, %v2520
    %v2709 = vpack.c.b16 %v2523, %v2521
    %v2710 = vpack.c.b16 %v2526, %v2524
    %v2711 = vpack.c.b16 %v2527, %v2525
    %v2712 = vpack.c.b16 %v2530, %v2528
    %v2713 = vpack.c.b16 %v2531, %v2529
    %v2714 = vpack.c.b16 %v2534, %v2532
    %v2715 = vpack.c.b16 %v2535, %v2533
    %v2716 = vpack.c.b16 %v2538, %v2536
    %v2717 = vpack.c.b16 %v2539, %v2537
    %v2718 = vpack.c.b16 %v2542, %v2540
    %v2719 = vpack.c.b16 %v2543, %v2541
    %v2720 = vpack.c.b16 %v2546, %v2544
    %v2721 = vpack.c.b16 %v2547, %v2545
    %v2722 = vpack.c.b16 %v2550, %v2548
    %v2723 = vpack.c.b16 %v2551, %v2549
    %v2724 = vpack.c.b16 %v2554, %v2552
    %v2725 = vpack.c.b16 %v2555, %v2553
    %v2726 = vpack.c.b16 %v2558, %v2556
    %v2727 = vpack.c.b16 %v2559, %v2557
    %v2728 = vpack.c.b16 %v2562, %v2560
    %v2729 = vpack.c.b16 %v2563, %v2561
    %v2730 = vpack.c.b16 %v2566, %v2564
    %v2731 = vpack.c.b16 %v2567, %v2565
    %v2732 = vpack.c.b16 %v2570, %v2568
    %v2733 = vpack.c.b16 %v2571, %v2569
    %v2734 = vpack.c.b16 %v2574, %v2572
    %v2735 = vpack.c.b16 %v2575, %v2573
    %v2736 = vpack.c.b16 %v2578, %v2576
    %v2737 = vpack.c.b16 %v2579, %v2577
    %v2738 = vpack.c.b16 %v2582, %v2580
    %v2739 = vpack.c.b16 %v2583, %v2581
    %v2740 = vpack.c.b16 %v2586, %v2584
    %v2741 = vpack.c.b16 %v2587, %v2585
    %v2742 = vpack.c.b16 %v2590, %v2588
    %v2743 = vpack.c.b16 %v2591, %v2589
    %v2744 = vpack.c.b16 %v2594, %v2592
    %v2745 = vpack.c.b16 %v2595, %v2593
    %v2746 = vpack.c.b16 %v2598, %v2596
    %v2747 = vpack.c.b16 %v2599, %v2597
    %v2748 = vpack.c.b16 %v2602, %v2600
    %v2749 = vpack.c.b16 %v2603, %v2601
    %v2750 = vpack.c.b16 %v2606, %v2604
    %v2751 = vpack.c.b16 %v2607, %v2605
    %v2752 = vpack.c.b16 %v2610, %v2608
    %v2753 = vpack.c.b16 %v2611, %v2609
    %v2754 = vpack.c.b16 %v2614, %v2612
    %v2755 = vpack.c.b16 %v2615, %v2613
    %v2756 = vpack.c.b16 %v2618, %v2616
    %v2757 = vpack.c.b16 %v2619, %v2617
    %v2758 = vpack.c.b16 %v2622, %v2620
    %v2759 = vpack.c.b16 %v2623, %v2621
    %v2760 = vpack.c.b16 %v2626, %v2624
    %v2761 = vpack.c.b16 %v2627, %v2625
    %v2762 = vpack.c.b16 %v2630, %v2628
    %v2763 = vpack.c.b16 %v2631, %v2629
    %v2764 = vpack.c.b16 %v2634, %v2632
    %v2765 = vpack.c.b16 %v2635, %v2633
    %v2766 = vpack.c.b16 %v2638, %v2636
    %v2767 = vpack.c.b16 %v2639, %v2637
    %v2768 = vpack.c.b16 %v2642, %v2640
    %v2769 = vpack.c.b16 %v2643, %v2641
    %v2770 = vpack.c.b16 %v2646, %v2644
    %v2771 = vpack.c.b16 %v2647, %v2645
    %v2772 = vpack.c.b16 %v2650, %v2648
    %v2773 = vpack.c.b16 %v2651, %v2649
    %v2774 = vpack.c.b16 %v2654, %v2652
    %v2775 = vpack.c.b16 %v2655, %v2653
    %v2776 = vpack.c.b16 %v2658, %v2656
    %v2777 = vpack.c.b16 %v2659, %v2657
    %v2778 = vpack.c.b16 %v2662, %v2660
    %v2779 = vpack.c.b16 %v2663, %v2661
    %v2780 = vpack.c.b16 %v2666, %v2664
    %v2781 = vpack.c.b16 %v2667, %v2665
    %v2782 = vpack.c.b16 %v2670, %v2668
    %v2783 = vpack.c.b16 %v2671, %v2669
    %v2784 = vpack.c.b16 %v2674, %v2672
    %v2785 = vpack.c.b16 %v2675, %v2673
    %v2786 = vpack.c.b16 %v2678, %v2676
    %v2787 = vpack.c.b16 %v2679, %v2677
    %v2788 = vpack.c.b16 %v2680, %v2680
    %v2789 = vpack.c.b16 %v2681, %v2681
    %vm2896 = vcmask 670720
    %v2898 = vsel %vm2896, %v2241, 0
    %vm2900 = vcmask 1040384
    %v2902 = vsel %vm2900, %v2788, 0
    %v2905 = vsel %vm2900, %v2789, 0
    %2907 = vmatprep.subr.bf16.mxu0 %v2683
    %2908 = vmatpush1.bf16.msra.mxu0 %v2682
    %2909 = vmatprep.subr.bf16.mxu0 %v2685
    %2910 = vmatpush1.bf16.msra.mxu0 %v2684
    %2911 = vmatprep.subr.bf16.mxu0 %v2687
    %2912 = vmatpush1.bf16.msra.mxu0 %v2686
    %2913 = vmatprep.subr.bf16.mxu0 %v2689
    %2914 = vmatpush1.bf16.msra.mxu0 %v2688
    %2915 = vmatprep.subr.bf16.mxu0 %v2691
    %2916 = vmatpush1.bf16.msra.mxu0 %v2690
    %2917 = vmatprep.subr.bf16.mxu0 %v2693
    %2918 = vmatpush1.bf16.msra.mxu0 %v2692
    %2919 = vmatprep.subr.bf16.mxu0 %v2695
    %2920 = vmatpush1.bf16.msra.mxu0 %v2694
    %2921 = vmatprep.subr.bf16.mxu0 %v2697
    %2922 = vmatpush1.bf16.msra.mxu0 %v2696
    %2923 = vmatprep.subr.bf16.mxu0 %v2699
    %2924 = vmatpush1.bf16.msra.mxu0 %v2698
    %2925 = vmatprep.subr.bf16.mxu0 %v2701
    %2926 = vmatpush1.bf16.msra.mxu0 %v2700
    %2927 = vmatprep.subr.bf16.mxu0 %v2703
    %2928 = vmatpush1.bf16.msra.mxu0 %v2702
    %2929 = vmatprep.subr.bf16.mxu0 %v2705
    %2930 = vmatpush1.bf16.msra.mxu0 %v2704
    %2931 = vmatprep.subr.bf16.mxu0 %v2707
    %2932 = vmatpush1.bf16.msra.mxu0 %v2706
    %2933 = vmatprep.subr.bf16.mxu0 %v2709
    %2934 = vmatpush1.bf16.msra.mxu0 %v2708
    %2935 = vmatprep.subr.bf16.mxu0 %v2711
    %2936 = vmatpush1.bf16.msra.mxu0 %v2710
    %2937 = vmatprep.subr.bf16.mxu0 %v2713
    %2938 = vmatpush1.bf16.msra.mxu0 %v2712
    %2939 = vmatprep.mubr.bf16.mxu0 %v2236
    %2940 = vmatmul.mubr.bf16.gmra.mrb[0].mxu0 %v2235
    %v2941 = vpop.f32.mrb[0].mxu0
    %v2942 = vadd.f32 %v2354, %v2941
    %v2943 = vpop.f32.mrb[0].mxu0
    %v2944 = vadd.f32 %v2358, %v2943
    %v2945 = vpop.f32.mrb[0].mxu0
    %v2946 = vpop.f32.mrb[0].mxu0
    %2947 = vdwg.mxu0
    %2948 = vmatprep.subr.bf16.mxu0 %v2715
    %2949 = vmatpush1.bf16.msra.mxu0 %v2714
    %2950 = vmatprep.subr.bf16.mxu0 %v2717
    %2951 = vmatpush1.bf16.msra.mxu0 %v2716
    %2952 = vmatprep.subr.bf16.mxu0 %v2719
    %2953 = vmatpush1.bf16.msra.mxu0 %v2718
    %2954 = vmatprep.subr.bf16.mxu0 %v2721
    %2955 = vmatpush1.bf16.msra.mxu0 %v2720
    %2956 = vmatprep.subr.bf16.mxu0 %v2723
    %2957 = vmatpush1.bf16.msra.mxu0 %v2722
    %2958 = vmatprep.subr.bf16.mxu0 %v2725
    %2959 = vmatpush1.bf16.msra.mxu0 %v2724
    %2960 = vmatprep.subr.bf16.mxu0 %v2727
    %2961 = vmatpush1.bf16.msra.mxu0 %v2726
    %2962 = vmatprep.subr.bf16.mxu0 %v2729
    %2963 = vmatpush1.bf16.msra.mxu0 %v2728
    %2964 = vmatprep.subr.bf16.mxu0 %v2731
    %2965 = vmatpush1.bf16.msra.mxu0 %v2730
    %2966 = vmatprep.subr.bf16.mxu0 %v2733
    %2967 = vmatpush1.bf16.msra.mxu0 %v2732
    %2968 = vmatprep.subr.bf16.mxu0 %v2735
    %2969 = vmatpush1.bf16.msra.mxu0 %v2734
    %2970 = vmatprep.subr.bf16.mxu0 %v2737
    %2971 = vmatpush1.bf16.msra.mxu0 %v2736
    %2972 = vmatprep.subr.bf16.mxu0 %v2739
    %2973 = vmatpush1.bf16.msra.mxu0 %v2738
    %2974 = vmatprep.subr.bf16.mxu0 %v2741
    %2975 = vmatpush1.bf16.msra.mxu0 %v2740
    %2976 = vmatprep.subr.bf16.mxu0 %v2743
    %2977 = vmatpush1.bf16.msra.mxu0 %v2742
    %2978 = vmatprep.subr.bf16.mxu0 %v2745
    %2979 = vmatpush1.bf16.msra.mxu0 %v2744
    %2980 = vmatprep.mubr.bf16.mxu0 %v2238
    %2981 = vmatmul.mubr.bf16.gmra.mrb[0].mxu0 %v2237
    %v2982 = vpop.f32.mrb[0].mxu0
    %v2983 = vadd.f32 %v2942, %v2982
    %v2984 = vpop.f32.mrb[0].mxu0
    %v2985 = vadd.f32 %v2944, %v2984
    %v2986 = vpop.f32.mrb[0].mxu0
    %v2987 = vpop.f32.mrb[0].mxu0
    %2988 = vdwg.mxu0
    %2989 = vmatprep.subr.bf16.mxu0 %v2747
    %2990 = vmatpush1.bf16.msra.mxu0 %v2746
    %2991 = vmatprep.subr.bf16.mxu0 %v2749
    %2992 = vmatpush1.bf16.msra.mxu0 %v2748
    %2993 = vmatprep.subr.bf16.mxu0 %v2751
    %2994 = vmatpush1.bf16.msra.mxu0 %v2750
    %2995 = vmatprep.subr.bf16.mxu0 %v2753
    %2996 = vmatpush1.bf16.msra.mxu0 %v2752
    %2997 = vmatprep.subr.bf16.mxu0 %v2755
    %2998 = vmatpush1.bf16.msra.mxu0 %v2754
    %2999 = vmatprep.subr.bf16.mxu0 %v2757
    %3000 = vmatpush1.bf16.msra.mxu0 %v2756
    %3001 = vmatprep.subr.bf16.mxu0 %v2759
    %3002 = vmatpush1.bf16.msra.mxu0 %v2758
    %3003 = vmatprep.subr.bf16.mxu0 %v2761
    %3004 = vmatpush1.bf16.msra.mxu0 %v2760
    %3005 = vmatprep.subr.bf16.mxu0 %v2763
    %3006 = vmatpush1.bf16.msra.mxu0 %v2762
    %3007 = vmatprep.subr.bf16.mxu0 %v2765
    %3008 = vmatpush1.bf16.msra.mxu0 %v2764
    %3009 = vmatprep.subr.bf16.mxu0 %v2767
    %3010 = vmatpush1.bf16.msra.mxu0 %v2766
    %3011 = vmatprep.subr.bf16.mxu0 %v2769
    %3012 = vmatpush1.bf16.msra.mxu0 %v2768
    %3013 = vmatprep.subr.bf16.mxu0 %v2771
    %3014 = vmatpush1.bf16.msra.mxu0 %v2770
    %3015 = vmatprep.subr.bf16.mxu0 %v2773
    %3016 = vmatpush1.bf16.msra.mxu0 %v2772
    %3017 = vmatprep.subr.bf16.mxu0 %v2775
    %3018 = vmatpush1.bf16.msra.mxu0 %v2774
    %3019 = vmatprep.subr.bf16.mxu0 %v2777
    %3020 = vmatpush1.bf16.msra.mxu0 %v2776
    %3021 = vmatprep.mubr.bf16.mxu0 %v2240
    %3022 = vmatmul.mubr.bf16.gmra.mrb[0].mxu0 %v2239
    %v3023 = vpop.f32.mrb[0].mxu0
    %v3024 = vadd.f32 %v2983, %v3023
    %v3025 = vpop.f32.mrb[0].mxu0
    %v3026 = vadd.f32 %v2985, %v3025
    %v3027 = vpop.f32.mrb[0].mxu0
    %v3028 = vpop.f32.mrb[0].mxu0
    %3029 = vdwg.mxu0
    %3030 = vmatprep.subr.bf16.mxu0 %v2779
    %3031 = vmatpush1.bf16.msra.mxu0 %v2778
    %3032 = vmatprep.subr.bf16.mxu0 %v2781
    %3033 = vmatpush1.bf16.msra.mxu0 %v2780
    %3034 = vmatprep.subr.bf16.mxu0 %v2783
    %3035 = vmatpush1.bf16.msra.mxu0 %v2782
    %3036 = vmatprep.subr.bf16.mxu0 %v2785
    %3037 = vmatpush1.bf16.msra.mxu0 %v2784
    %3038 = vmatprep.subr.bf16.mxu0 %v2787
    %3039 = vmatpush1.bf16.msra.mxu0 %v2786
    %3040 = vmatprep.subr.bf16.mxu0 %v2905
    %3041 = vmatpush1.bf16.msra.mxu0 %v2902
    %3042 = vmatprep.subr.bf16.mxu0 0
    %3043 = vmatpush1.bf16.msra.mxu0 0
    %3044 = vmatprep.subr.bf16.mxu0 0
    %3045 = vmatpush1.bf16.msra.mxu0 0
    %3046 = vmatprep.subr.bf16.mxu0 0
    %3047 = vmatpush1.bf16.msra.mxu0 0
    %3048 = vmatprep.subr.bf16.mxu0 0
    %3049 = vmatpush1.bf16.msra.mxu0 0
    %3050 = vmatprep.subr.bf16.mxu0 0
    %3051 = vmatpush1.bf16.msra.mxu0 0
    %3052 = vmatprep.subr.bf16.mxu0 0
    %3053 = vmatpush1.bf16.msra.mxu0 0
    %3054 = vmatprep.subr.bf16.mxu0 0
    %3055 = vmatpush1.bf16.msra.mxu0 0
    %3056 = vmatprep.subr.bf16.mxu0 0
    %3057 = vmatpush1.bf16.msra.mxu0 0
    %3058 = vmatprep.subr.bf16.mxu0 0
    %3059 = vmatpush1.bf16.msra.mxu0 0
    %3060 = vmatprep.subr.bf16.mxu0 0
    %3061 = vmatpush1.bf16.msra.mxu0 0
    %3062 = vmatprep.mubr.bf16.mxu0 0
    %3063 = vmatmul.mubr.bf16.gmra.mrb[0].mxu0 %v2898
    %v3064 = vpop.f32.mrb[0].mxu0
    %v3065 = vadd.f32 %v3024, %v3064
    %v3066 = vpop.f32.mrb[0].mxu0
    %v3067 = vadd.f32 %v3026, %v3066
    %v3068 = vpop.f32.mrb[0].mxu0
    %v3069 = vpop.f32.mrb[0].mxu0
    %3070 = vdwg.mxu0
    %v3073 = vcombine.low %v3065, %v3067
    %v3075 = vunpack.c.l.s4 1983009808
    %v3076 = vunpack.c.0.s8 %v3075
    %v3077 = vlaneseq
    %v3078 = vshrl.u32 %v3077, 7
    %v3079 = vsub.s32 %v3076, %v3078
    %v3080 = vrot.slane %v3073, %v3079
    %vm3082 = vcmask 1041408
    %vm3083 = vcmask 846850
    %vm3084 = vmor %vm3083, %vm3082
    %3085 = vst.msk [vmem:[#allocation2] sm:$0xf] %vm3084, %v3080
    // Predicated region
    $region26: #{forward.9} parent=1 // pred_check
      _
    $region27: #{forward.9} parent=1 // pred_check_branch
      %3087 = sbr.rel (0) target = $region29
    $region28: #{forward.9} parent=1 // pred_region
      %s3089 = ssub.s32 64, 64
      %3090 = vsyncadd [#allocation3], %s3089
      %s3092 = sshll.u32 [#allocation2], 4
      %s3093 = int_to_ptr.vmem [resolvable:$true] %s3092
      %3095 = dma.vmem_to_hbm [thread:$0]  %s3093, 64, %s6, [#allocation3]
    $region29: #{forward.9} parent=1 // pred_fallthru
      _
    // Predicated region
    $region30: #{forward.9} parent=1 // pred_check
      _
    $region31: #{forward.9} parent=1 // pred_check_branch
      %3097 = sbr.rel (0) target = $region33
    $region32: #{forward.9} parent=1 // pred_region
      %3098 = dma.done [#allocation3], 64
    $region33: #{forward.9} parent=1 // pred_fallthru
      _
    %3099 = vsyncpa [#allocation3], 1

</llo_original>
